<compile_context>
chip_gen: v6e
topology: v6e:2x2x1
jax: 0.10.0
libtpu: 0.0.40
codegen_flags: <defaults>
</compile_context>

<pallas_src>
import functools

import jax
import jax.numpy as jnp
from jax import lax
from jax.experimental import pallas as pl
from jax.experimental.pallas import tpu as pltpu

K = 4              # ConvTranspose2d kernel size throughout the DCGAN generator
BN_EPS = 1e-5      # nn.BatchNorm2d default
LANE = 128         # TPU lane width
VMEM_LIMIT = 32 * 1024 * 1024   # leave headroom on v7x (64 MiB/TC)

# (stride, padding) of the 5 ConvTranspose2d layers (used by the reference).
LAYER_CFGS = ((1, 0), (2, 1), (2, 1), (2, 1), (2, 1))


def _round_up(x, m):
    return ((x + m - 1) // m) * m


def _mosaic_params(dim_sems):
    return pltpu.CompilerParams(dimension_semantics=dim_sems,
                                vmem_limit_bytes=VMEM_LIMIT)


# ----------------------------------------------------------------------------
# Pallas kernels
# ----------------------------------------------------------------------------
def _fc_bn_relu_kernel(n_real, count, z_ref, w_ref, g_ref, b_ref, o_ref):
    """Layer 0: (B,nz)x(nz,16*C) matmul + fused training-mode BN + ReLU."""
    c = g_ref.shape[1]
    groups = n_real // c                       # = 16 spatial positions
    y = jnp.dot(z_ref[...], w_ref[...], preferred_element_type=jnp.float32)
    s = jnp.sum(y, axis=0, keepdims=True)      # per-lane sums (zero rows -> 0)
    ss = jnp.sum(y * y, axis=0, keepdims=True)
    # reduce the 16 spatial lane-groups down to per-channel statistics
    s_c = sum(s[:, k * c:(k + 1) * c] for k in range(groups))
    ss_c = sum(ss[:, k * c:(k + 1) * c] for k in range(groups))
    mean = s_c / count
    var = jnp.maximum(ss_c / count - mean * mean, 0.0)
    scale = g_ref[...] * lax.rsqrt(var + BN_EPS)
    shift = b_ref[...] - mean * scale
    scale_l = jnp.concatenate([scale] * groups, axis=1)
    shift_l = jnp.concatenate([shift] * groups, axis=1)
    act = jnp.maximum(y[:, :n_real] * scale_l + shift_l, 0.0)
    o_ref[...] = act.astype(o_ref.dtype)


def _conv_stats_kernel(h, w, x_ref, w_ref, y_ref, stats_ref):
    """Stride-2 layer pass 1: in-kernel 3x3 im2col + matmul + per-image stats.

    x_ref:(1,h+2,w+2,cin) bf16  w_ref:(9*cin,n_pad) bf16
    y_ref:(1,h,w,n_pad) bf16    stats_ref:(1,2,n_pad) f32
    """
    n_pad = y_ref.shape[3]
    wm = w_ref[...]

    def row_body(i, carry):
        s, ss = carry
        taps = [x_ref[0, i + di, dj:dj + w, :]
                for di in range(3) for dj in range(3)]
        patch = jnp.concatenate(taps, axis=-1)                   # (w, 9*cin)
        acc = jnp.dot(patch, wm, preferred_element_type=jnp.float32)
        y_ref[0, i] = acc.astype(y_ref.dtype)                    # bf16 y
        return (s + jnp.sum(acc, axis=0, keepdims=True),
                ss + jnp.sum(acc * acc, axis=0, keepdims=True))

    zero = jnp.zeros((1, n_pad), jnp.float32)
    s, ss = lax.fori_loop(0, h, row_body, (zero, zero))
    stats_ref[0] = jnp.concatenate([s, ss], axis=0)


def _bn_relu_shuffle_kernel(h, w, cout, y_ref, scale_ref, shift_ref, o_ref):
    """Stride-2 layer pass 2: folded BN affine + ReLU, with the pixel-shuffle
    and the next layer's +1 spatial zero padding fused into the output layout.

    o_ref block (h+1, 2, w+1, 2*cout) reinterprets as padded NHWC
    (2h+2, 2w+2, cout) of one image (rows r = 2q+s, cols c = 2qc+sc).
    """
    act = jnp.maximum(
        y_ref[0].astype(jnp.float32) * scale_ref[...] + shift_ref[...],
        0.0).astype(o_ref.dtype)                                 # (h, w, n_pad)
    o_ref[...] = jnp.zeros(o_ref.shape, o_ref.dtype)             # zero pad border
    for a in (0, 1):          # output row parity   (row 2i+a  -> q=i+a, s=1-a)
        for b in (0, 1):      # output col parity   (col 2j+b  -> qc=j+b, sc=1-b)
            g = 2 * a + b
            p = act[:, :, g * cout:(g + 1) * cout]               # (h, w, cout)
            o_ref[a:h + a, 1 - a, b:w + b,
                  (1 - b) * cout:(2 - b) * cout] = p


def _conv_tanh_shuffle_kernel(h, w, cout, x_ref, w_ref, o_ref):
    """Final layer: in-kernel im2col + matmul + tanh, pixel-shuffled bf16 out.

    o_ref block (h, 2, w, 2*cout) reinterprets as (2h, 2w, cout) of one image.
    """
    wm = w_ref[...]

    def row_body(i, carry):
        taps = [x_ref[0, i + di, dj:dj + w, :]
                for di in range(3) for dj in range(3)]
        patch = jnp.concatenate(taps, axis=-1)
        acc = jnp.tanh(jnp.dot(patch, wm, preferred_element_type=jnp.float32))
        acc = acc.astype(o_ref.dtype)                            # (w, n_pad)
        for a in (0, 1):
            for b in (0, 1):
                g = 2 * a + b
                o_ref[i, a, 0:w, b * cout:(b + 1) * cout] = \
                    acc[:, g * cout:(g + 1) * cout]
        return carry

    lax.fori_loop(0, h, row_body, 0)


# ----------------------------------------------------------------------------
# pallas_call wrappers
# ----------------------------------------------------------------------------
def _fc_bn_relu(z2, w0, gamma, beta, n_real, count):
    m_pad, nz = z2.shape
    n_pad = w0.shape[1]
    kernel = functools.partial(_fc_bn_relu_kernel, n_real, float(count))
    return pl.pallas_call(
        kernel,
        out_shape=jax.ShapeDtypeStruct((m_pad, n_real), jnp.bfloat16),
        grid_spec=pltpu.PrefetchScalarGridSpec(
            num_scalar_prefetch=0,
            grid=(1,),
            in_specs=[pl.BlockSpec((m_pad, nz), lambda i: (0, 0)),
                      pl.BlockSpec((nz, n_pad), lambda i: (0, 0)),
                      pl.BlockSpec((1, gamma.shape[1]), lambda i: (0, 0)),
                      pl.BlockSpec((1, beta.shape[1]), lambda i: (0, 0))],
            out_specs=pl.BlockSpec((m_pad, n_real), lambda i: (0, 0))),
        compiler_params=_mosaic_params(("arbitrary",)),
    )(z2, w0, gamma, beta)


def _conv_stats(xp, wmat, h, w):
    bsz, hp, wp, cin = xp.shape
    n_pad = wmat.shape[1]
    kernel = functools.partial(_conv_stats_kernel, h, w)
    flops = 2 * bsz * h * w * 9 * cin * n_pad
    bytes_acc = xp.size * 2 + wmat.size * 2 + bsz * h * w * n_pad * 2
    return pl.pallas_call(
        kernel,
        out_shape=(jax.ShapeDtypeStruct((bsz, h, w, n_pad), jnp.bfloat16),
                   jax.ShapeDtypeStruct((bsz, 2, n_pad), jnp.float32)),
        grid_spec=pltpu.PrefetchScalarGridSpec(
            num_scalar_prefetch=0,
            grid=(bsz,),
            in_specs=[pl.BlockSpec((1, hp, wp, cin), lambda b: (b, 0, 0, 0)),
                      pl.BlockSpec((9 * cin, n_pad), lambda b: (0, 0))],
            out_specs=[pl.BlockSpec((1, h, w, n_pad), lambda b: (b, 0, 0, 0)),
                       pl.BlockSpec((1, 2, n_pad), lambda b: (b, 0, 0))]),
        compiler_params=_mosaic_params(("parallel",)),
        cost_estimate=pl.CostEstimate(flops=int(flops), transcendentals=0,
                                      bytes_accessed=int(bytes_acc)),
    )(xp, wmat)


def _bn_relu_shuffle(y, scale_l, shift_l, h, w, cout):
    bsz, _, _, n_pad = y.shape
    kernel = functools.partial(_bn_relu_shuffle_kernel, h, w, cout)
    return pl.pallas_call(
        kernel,
        out_shape=jax.ShapeDtypeStruct(
            (bsz * (h + 1), 2, w + 1, 2 * cout), jnp.bfloat16),
        grid_spec=pltpu.PrefetchScalarGridSpec(
            num_scalar_prefetch=0,
            grid=(bsz,),
            in_specs=[pl.BlockSpec((1, h, w, n_pad), lambda b: (b, 0, 0, 0)),
                      pl.BlockSpec((1, n_pad), lambda b: (0, 0)),
                      pl.BlockSpec((1, n_pad), lambda b: (0, 0))],
            out_specs=pl.BlockSpec((h + 1, 2, w + 1, 2 * cout),
                                   lambda b: (b, 0, 0, 0))),
        compiler_params=_mosaic_params(("parallel",)),
    )(y, scale_l, shift_l)


def _conv_tanh(xp, wmat, h, w, cout):
    bsz, hp, wp, cin = xp.shape
    n_pad = wmat.shape[1]
    kernel = functools.partial(_conv_tanh_shuffle_kernel, h, w, cout)
    flops = 2 * bsz * h * w * 9 * cin * n_pad
    bytes_acc = xp.size * 2 + wmat.size * 2 + bsz * h * w * 4 * cout * 2
    return pl.pallas_call(
        kernel,
        out_shape=jax.ShapeDtypeStruct((bsz * h, 2, w, 2 * cout), jnp.bfloat16),
        grid_spec=pltpu.PrefetchScalarGridSpec(
            num_scalar_prefetch=0,
            grid=(bsz,),
            in_specs=[pl.BlockSpec((1, hp, wp, cin), lambda b: (b, 0, 0, 0)),
                      pl.BlockSpec((9 * cin, n_pad), lambda b: (0, 0))],
            out_specs=pl.BlockSpec((h, 2, w, 2 * cout), lambda b: (b, 0, 0, 0))),
        compiler_params=_mosaic_params(("parallel",)),
        cost_estimate=pl.CostEstimate(flops=int(flops),
                                      transcendentals=int(bsz * h * w * n_pad),
                                      bytes_accessed=int(bytes_acc)),
    )(xp, wmat)


# ----------------------------------------------------------------------------
# One-time weight preparation
# ----------------------------------------------------------------------------
# For stride-2 / pad-1 ConvTranspose: output row 2m+a only sees kernel rows k
# with k = a+1 (mod 2).  (kernel row k, input row offset di) pairs per parity:
_SUBPIX_TAPS = {0: ((1, 0), (3, -1)), 1: ((0, 1), (2, 0))}


def _prep_weight_fc(w_pt, n_pad):
    """(nz, Cout, 4, 4) -> (nz, 16*Cout): direct matmul for the 1x1 input."""
    cin, cout = w_pt.shape[0], w_pt.shape[1]
    wmat = jnp.transpose(w_pt, (0, 2, 3, 1)).reshape(cin, K * K * cout)
    return jnp.pad(wmat, ((0, 0), (0, n_pad - K * K * cout))).astype(jnp.bfloat16)


def _prep_weight_subpixel(w_pt, n_pad):
    """(Cin, Cout, 4, 4) -> (9*Cin, 4*Cout): 4 parity groups over 3x3 taps."""
    cin, cout = w_pt.shape[0], w_pt.shape[1]
    wc = jnp.zeros((9, cin, 4, cout), w_pt.dtype)
    for a in (0, 1):
        for b in (0, 1):
            g = a * 2 + b
            for kh, di in _SUBPIX_TAPS[a]:
                for kw, dj in _SUBPIX_TAPS[b]:
                    t = (di + 1) * 3 + (dj + 1)
                    wc = wc.at[t, :, g, :].set(w_pt[:, :, kh, kw])
    wmat = wc.reshape(9 * cin, 4 * cout)
    return jnp.pad(wmat, ((0, 0), (0, n_pad - 4 * cout))).astype(jnp.bfloat16)


def prepare_params(raw_params):
    """One-time prep: bf16 lane-padded matmul weights + f32 BN affine params."""
    prepped = []
    for i, p in enumerate(raw_params):
        cout = p["w"].shape[1]
        if i == 0:
            n_pad = _round_up(K * K * cout, LANE)
            wmat = _prep_weight_fc(p["w"], n_pad)
        else:
            n_pad = _round_up(4 * cout, LANE)
            wmat = _prep_weight_subpixel(p["w"], n_pad)
        layer = {"wmat": wmat}
        if "gamma" in p:
            layer["gamma"] = p["gamma"].astype(jnp.float32)
            layer["beta"] = p["beta"].astype(jnp.float32)
        prepped.append(layer)
    return prepped


# ----------------------------------------------------------------------------
# Generator forward
# ----------------------------------------------------------------------------
@functools.partial(jax.jit, static_argnums=(2,))
def generator_forward(z_nchw, params, nc):
    """z: (B, nz, 1, 1) NCHW -> (B, nc, 64, 64), matching Generator.forward."""
    bsz, nz = z_nchw.shape[0], z_nchw.shape[1]

    # Layer 0: ConvTranspose on a 1x1 input == dense matmul; BN+ReLU fused.
    z2 = z_nchw.reshape(bsz, nz).astype(jnp.bfloat16)
    m_pad = _round_up(bsz, 8)
    z2 = jnp.pad(z2, ((0, m_pad - bsz), (0, 0)))
    g0 = params[0]["gamma"]
    c0 = g0.shape[0]
    act0 = _fc_bn_relu(z2, params[0]["wmat"],
                       g0.reshape(1, c0), params[0]["beta"].reshape(1, c0),
                       n_real=K * K * c0, count=bsz * K * K)
    x = act0[:bsz].reshape(bsz, K, K, c0)
    xp = jnp.pad(x, ((0, 0), (1, 1), (1, 1), (0, 0)))          # tiny (layer 0)

    # Layers 1-3: stride-2 ConvTranspose (sub-pixel) + BN + ReLU.  The epilogue
    # kernel writes the pixel-shuffled + zero-padded NHWC input of the next
    # layer directly; the reshape below is layout-compatible (free).
    for i in (1, 2, 3):
        wmat = params[i]["wmat"]
        gamma, beta = params[i]["gamma"], params[i]["beta"]
        cout = gamma.shape[0]
        n_pad = wmat.shape[1]
        h, w = xp.shape[1] - 2, xp.shape[2] - 2

        y, stats = _conv_stats(xp, wmat, h, w)
        st = jnp.sum(stats, axis=0)                            # (2, n_pad)
        s = jnp.sum(st[0, :4 * cout].reshape(4, cout), axis=0)
        ss = jnp.sum(st[1, :4 * cout].reshape(4, cout), axis=0)
        cnt = float(bsz * 4 * h * w)
        mean = s / cnt
        var = jnp.maximum(ss / cnt - mean * mean, 0.0)
        scale = gamma * lax.rsqrt(var + BN_EPS)
        shift = beta - mean * scale
        scale_l = jnp.pad(jnp.tile(scale, 4), (0, n_pad - 4 * cout)).reshape(1, n_pad)
        shift_l = jnp.pad(jnp.tile(shift, 4), (0, n_pad - 4 * cout)).reshape(1, n_pad)

        packed = _bn_relu_shuffle(y, scale_l, shift_l, h, w, cout)
        xp = packed.reshape(bsz, 2 * h + 2, 2 * w + 2, cout)

    # Layer 4: stride-2 ConvTranspose + tanh, pixel-shuffle fused in-kernel.
    h, w = xp.shape[1] - 2, xp.shape[2] - 2
    out_packed = _conv_tanh(xp, params[4]["wmat"], h, w, nc)
    img = out_packed.reshape(bsz, 2 * h, 2 * w, nc).astype(jnp.float32)
    return jnp.transpose(img, (0, 3, 1, 2))                    # NCHW


# ----------------------------------------------------------------------------
# Parameters and pure-JAX reference (f32, naive dilated conv) for validation
# ----------------------------------------------------------------------------
def init_params(key, nz, ngf, nc):
    """Deterministic synthetic parameters (DCGAN-style init), PyTorch layout."""
    chans = [(nz, ngf * 8), (ngf * 8, ngf * 4), (ngf * 4, ngf * 2),
             (ngf * 2, ngf), (ngf, nc)]
    params = []
    for i, (cin, cout) in enumerate(chans):
        key, kw, kg, kb = jax.random.split(key, 4)
        layer = {"w": 0.02 * jax.random.normal(kw, (cin, cout, K, K), jnp.float32)}
        if i < len(chans) - 1:  # BatchNorm2d affine params
            layer["gamma"] = 1.0 + 0.02 * jax.random.normal(kg, (cout,), jnp.float32)
            layer["beta"] = 0.02 * jax.random.normal(kb, (cout,), jnp.float32)
        params.append(layer)
    return params


def reference_forward(z_nchw, raw_params):
    x = jnp.transpose(z_nchw, (0, 2, 3, 1)).astype(jnp.float32)
    for i, (stride, pad) in enumerate(LAYER_CFGS):
        w_pt = raw_params[i]["w"].astype(jnp.float32)
        b, h, w, c = x.shape
        ho = (h - 1) * stride - 2 * pad + K
        wo = (w - 1) * stride - 2 * pad + K
        if stride > 1:
            xd = jnp.zeros((b, h * stride - (stride - 1),
                            w * stride - (stride - 1), c), x.dtype)
            xd = xd.at[:, ::stride, ::stride, :].set(x)
        else:
            xd = x
        p = K - 1 - pad
        xp = jnp.pad(xd, ((0, 0), (p, p), (p, p), (0, 0)))
        wf = jnp.transpose(w_pt[:, :, ::-1, ::-1], (2, 3, 0, 1))
        out = jnp.zeros((b, ho, wo, w_pt.shape[1]), jnp.float32)
        for kh in range(K):
            for kw in range(K):
                out = out + jnp.einsum("bhwc,cd->bhwd",
                                       xp[:, kh:kh + ho, kw:kw + wo, :],
                                       wf[kh, kw])
        if i < len(LAYER_CFGS) - 1:
            mean = jnp.mean(out, axis=(0, 1, 2))
            var = jnp.var(out, axis=(0, 1, 2))
            out = ((out - mean) * lax.rsqrt(var + BN_EPS)
                   * raw_params[i]["gamma"] + raw_params[i]["beta"])
            out = jnp.maximum(out, 0.0)
        else:
            out = jnp.tanh(out)
        x = out
    return jnp.transpose(x, (0, 3, 1, 2))


if __name__ == "__main__":
    ngpu, nz, ngf, nc, batch = 1, 16, 8, 3, 2   # small DCGAN-consistent shapes

    key = jax.random.PRNGKey(0)
    key, kz = jax.random.split(key)
    z = jax.random.normal(kz, (batch, nz, 1, 1), jnp.float32)   # NCHW latent

    raw_params = init_params(key, nz, ngf, nc)
    params = prepare_params(raw_params)

    out = generator_forward(z, params, nc)
    out = jax.block_until_ready(out)

    assert out.shape == (batch, nc, 64, 64), out.shape
    assert bool(jnp.all(jnp.isfinite(out)))
    assert bool(jnp.all(jnp.abs(out) <= 1.0))   # tanh output range

    # Numerical check vs. a pure-JAX f32 reference (bf16 matmuls -> loose tol).
    ref = reference_forward(z, raw_params)
    max_err = float(jnp.max(jnp.abs(out - ref)))
    assert max_err < 0.1, f"max|pallas - reference| = {max_err}"

    print("KERNEL_OK")
</pallas_src>

<mosaic_0001>
module attributes {stable_mosaic.version = 11 : i64} {
  func.func @_fc_bn_relu_kernel(%arg0: i32, %arg1: memref<8x16xbf16, #tpu.memory_space<vmem>>, %arg2: memref<16x1024xbf16, #tpu.memory_space<vmem>>, %arg3: memref<1x64xf32, #tpu.memory_space<vmem>>, %arg4: memref<1x64xf32, #tpu.memory_space<vmem>>, %arg5: memref<8x1024xbf16, #tpu.memory_space<vmem>>) attributes {dimension_semantics = [#tpu.dimension_semantics<arbitrary>], iteration_bounds = array<i64: 1>, scalar_prefetch = 0 : i64, scratch_operands = 0 : i64, tpu.core_type = #tpu.core_type<tc>, window_params = [{pipeline_mode = #tpu.pipeline_mode<synchronous>, transform_indices = @transform_0, window_bounds = array<i64: 8, 16>}, {pipeline_mode = #tpu.pipeline_mode<synchronous>, transform_indices = @transform_1, window_bounds = array<i64: 16, 1024>}, {pipeline_mode = #tpu.pipeline_mode<synchronous>, transform_indices = @transform_2, window_bounds = array<i64: 1, 64>}, {pipeline_mode = #tpu.pipeline_mode<synchronous>, transform_indices = @transform_3, window_bounds = array<i64: 1, 64>}, {pipeline_mode = #tpu.pipeline_mode<synchronous>, transform_indices = @transform_4, window_bounds = array<i64: 8, 1024>}]} {
    %c0 = arith.constant 0 : index
    %c0_0 = arith.constant 0 : index
    %0 = vector.load %arg1[%c0, %c0_0] : memref<8x16xbf16, #tpu.memory_space<vmem>>, vector<8x16xbf16>
    %c0_1 = arith.constant 0 : index
    %c0_2 = arith.constant 0 : index
    %1 = vector.load %arg2[%c0_1, %c0_2] : memref<16x1024xbf16, #tpu.memory_space<vmem>>, vector<16x1024xbf16>
    %cst = arith.constant dense<0.000000e+00> : vector<8x1024xf32>
    %2 = tpu.matmul %0, %1, %cst {dimension_numbers = #tpu.dot_dimension_numbers<[1], [0], [0], [1], [0, 0, 1, 1], [], []>} : vector<8x16xbf16>, vector<16x1024xbf16>, vector<8x1024xf32> -> vector<8x1024xf32>
    %cst_3 = arith.constant dense<0.000000e+00> : vector<1024xf32>
    %3 = vector.multi_reduction <add>, %2, %cst_3 [0] : vector<8x1024xf32> to vector<1024xf32>
    %4 = vector.shape_cast %3 : vector<1024xf32> to vector<1x1024xf32>
    %5 = arith.mulf %2, %2 : vector<8x1024xf32>
    %cst_4 = arith.constant dense<0.000000e+00> : vector<1024xf32>
    %6 = vector.multi_reduction <add>, %5, %cst_4 [0] : vector<8x1024xf32> to vector<1024xf32>
    %7 = vector.shape_cast %6 : vector<1024xf32> to vector<1x1024xf32>
    %8 = vector.extract_strided_slice %4 {offsets = [0, 0], sizes = [1, 64], strides = [1, 1]} : vector<1x1024xf32> to vector<1x64xf32>
    %cst_5 = arith.constant 0.000000e+00 : f32
    %9 = vector.broadcast %cst_5 : f32 to vector<1x64xf32>
    %10 = arith.addf %9, %8 : vector<1x64xf32>
    %11 = vector.extract_strided_slice %4 {offsets = [0, 64], sizes = [1, 64], strides = [1, 1]} : vector<1x1024xf32> to vector<1x64xf32>
    %12 = arith.addf %10, %11 : vector<1x64xf32>
    %13 = vector.extract_strided_slice %4 {offsets = [0, 128], sizes = [1, 64], strides = [1, 1]} : vector<1x1024xf32> to vector<1x64xf32>
    %14 = arith.addf %12, %13 : vector<1x64xf32>
    %15 = vector.extract_strided_slice %4 {offsets = [0, 192], sizes = [1, 64], strides = [1, 1]} : vector<1x1024xf32> to vector<1x64xf32>
    %16 = arith.addf %14, %15 : vector<1x64xf32>
    %17 = vector.extract_strided_slice %4 {offsets = [0, 256], sizes = [1, 64], strides = [1, 1]} : vector<1x1024xf32> to vector<1x64xf32>
    %18 = arith.addf %16, %17 : vector<1x64xf32>
    %19 = vector.extract_strided_slice %4 {offsets = [0, 320], sizes = [1, 64], strides = [1, 1]} : vector<1x1024xf32> to vector<1x64xf32>
    %20 = arith.addf %18, %19 : vector<1x64xf32>
    %21 = vector.extract_strided_slice %4 {offsets = [0, 384], sizes = [1, 64], strides = [1, 1]} : vector<1x1024xf32> to vector<1x64xf32>
    %22 = arith.addf %20, %21 : vector<1x64xf32>
    %23 = vector.extract_strided_slice %4 {offsets = [0, 448], sizes = [1, 64], strides = [1, 1]} : vector<1x1024xf32> to vector<1x64xf32>
    %24 = arith.addf %22, %23 : vector<1x64xf32>
    %25 = vector.extract_strided_slice %4 {offsets = [0, 512], sizes = [1, 64], strides = [1, 1]} : vector<1x1024xf32> to vector<1x64xf32>
    %26 = arith.addf %24, %25 : vector<1x64xf32>
    %27 = vector.extract_strided_slice %4 {offsets = [0, 576], sizes = [1, 64], strides = [1, 1]} : vector<1x1024xf32> to vector<1x64xf32>
    %28 = arith.addf %26, %27 : vector<1x64xf32>
    %29 = vector.extract_strided_slice %4 {offsets = [0, 640], sizes = [1, 64], strides = [1, 1]} : vector<1x1024xf32> to vector<1x64xf32>
    %30 = arith.addf %28, %29 : vector<1x64xf32>
    %31 = vector.extract_strided_slice %4 {offsets = [0, 704], sizes = [1, 64], strides = [1, 1]} : vector<1x1024xf32> to vector<1x64xf32>
    %32 = arith.addf %30, %31 : vector<1x64xf32>
    %33 = vector.extract_strided_slice %4 {offsets = [0, 768], sizes = [1, 64], strides = [1, 1]} : vector<1x1024xf32> to vector<1x64xf32>
    %34 = arith.addf %32, %33 : vector<1x64xf32>
    %35 = vector.extract_strided_slice %4 {offsets = [0, 832], sizes = [1, 64], strides = [1, 1]} : vector<1x1024xf32> to vector<1x64xf32>
    %36 = arith.addf %34, %35 : vector<1x64xf32>
    %37 = vector.extract_strided_slice %4 {offsets = [0, 896], sizes = [1, 64], strides = [1, 1]} : vector<1x1024xf32> to vector<1x64xf32>
    %38 = arith.addf %36, %37 : vector<1x64xf32>
    %39 = vector.extract_strided_slice %4 {offsets = [0, 960], sizes = [1, 64], strides = [1, 1]} : vector<1x1024xf32> to vector<1x64xf32>
    %40 = arith.addf %38, %39 : vector<1x64xf32>
    %41 = vector.extract_strided_slice %7 {offsets = [0, 0], sizes = [1, 64], strides = [1, 1]} : vector<1x1024xf32> to vector<1x64xf32>
    %cst_6 = arith.constant 0.000000e+00 : f32
    %42 = vector.broadcast %cst_6 : f32 to vector<1x64xf32>
    %43 = arith.addf %42, %41 : vector<1x64xf32>
    %44 = vector.extract_strided_slice %7 {offsets = [0, 64], sizes = [1, 64], strides = [1, 1]} : vector<1x1024xf32> to vector<1x64xf32>
    %45 = arith.addf %43, %44 : vector<1x64xf32>
    %46 = vector.extract_strided_slice %7 {offsets = [0, 128], sizes = [1, 64], strides = [1, 1]} : vector<1x1024xf32> to vector<1x64xf32>
    %47 = arith.addf %45, %46 : vector<1x64xf32>
    %48 = vector.extract_strided_slice %7 {offsets = [0, 192], sizes = [1, 64], strides = [1, 1]} : vector<1x1024xf32> to vector<1x64xf32>
    %49 = arith.addf %47, %48 : vector<1x64xf32>
    %50 = vector.extract_strided_slice %7 {offsets = [0, 256], sizes = [1, 64], strides = [1, 1]} : vector<1x1024xf32> to vector<1x64xf32>
    %51 = arith.addf %49, %50 : vector<1x64xf32>
    %52 = vector.extract_strided_slice %7 {offsets = [0, 320], sizes = [1, 64], strides = [1, 1]} : vector<1x1024xf32> to vector<1x64xf32>
    %53 = arith.addf %51, %52 : vector<1x64xf32>
    %54 = vector.extract_strided_slice %7 {offsets = [0, 384], sizes = [1, 64], strides = [1, 1]} : vector<1x1024xf32> to vector<1x64xf32>
    %55 = arith.addf %53, %54 : vector<1x64xf32>
    %56 = vector.extract_strided_slice %7 {offsets = [0, 448], sizes = [1, 64], strides = [1, 1]} : vector<1x1024xf32> to vector<1x64xf32>
    %57 = arith.addf %55, %56 : vector<1x64xf32>
    %58 = vector.extract_strided_slice %7 {offsets = [0, 512], sizes = [1, 64], strides = [1, 1]} : vector<1x1024xf32> to vector<1x64xf32>
    %59 = arith.addf %57, %58 : vector<1x64xf32>
    %60 = vector.extract_strided_slice %7 {offsets = [0, 576], sizes = [1, 64], strides = [1, 1]} : vector<1x1024xf32> to vector<1x64xf32>
    %61 = arith.addf %59, %60 : vector<1x64xf32>
    %62 = vector.extract_strided_slice %7 {offsets = [0, 640], sizes = [1, 64], strides = [1, 1]} : vector<1x1024xf32> to vector<1x64xf32>
    %63 = arith.addf %61, %62 : vector<1x64xf32>
    %64 = vector.extract_strided_slice %7 {offsets = [0, 704], sizes = [1, 64], strides = [1, 1]} : vector<1x1024xf32> to vector<1x64xf32>
    %65 = arith.addf %63, %64 : vector<1x64xf32>
    %66 = vector.extract_strided_slice %7 {offsets = [0, 768], sizes = [1, 64], strides = [1, 1]} : vector<1x1024xf32> to vector<1x64xf32>
    %67 = arith.addf %65, %66 : vector<1x64xf32>
    %68 = vector.extract_strided_slice %7 {offsets = [0, 832], sizes = [1, 64], strides = [1, 1]} : vector<1x1024xf32> to vector<1x64xf32>
    %69 = arith.addf %67, %68 : vector<1x64xf32>
    %70 = vector.extract_strided_slice %7 {offsets = [0, 896], sizes = [1, 64], strides = [1, 1]} : vector<1x1024xf32> to vector<1x64xf32>
    %71 = arith.addf %69, %70 : vector<1x64xf32>
    %72 = vector.extract_strided_slice %7 {offsets = [0, 960], sizes = [1, 64], strides = [1, 1]} : vector<1x1024xf32> to vector<1x64xf32>
    %73 = arith.addf %71, %72 : vector<1x64xf32>
    %cst_7 = arith.constant 3.200000e+01 : f32
    %74 = vector.broadcast %cst_7 : f32 to vector<1x64xf32>
    %75 = arith.divf %40, %74 : vector<1x64xf32>
    %cst_8 = arith.constant 3.200000e+01 : f32
    %76 = vector.broadcast %cst_8 : f32 to vector<1x64xf32>
    %77 = arith.divf %73, %76 : vector<1x64xf32>
    %78 = arith.mulf %75, %75 : vector<1x64xf32>
    %79 = arith.subf %77, %78 : vector<1x64xf32>
    %cst_9 = arith.constant 0.000000e+00 : f32
    %80 = vector.broadcast %cst_9 : f32 to vector<1x64xf32>
    %81 = arith.maximumf %79, %80 : vector<1x64xf32>
    %c0_10 = arith.constant 0 : index
    %c0_11 = arith.constant 0 : index
    %82 = vector.load %arg3[%c0_10, %c0_11] : memref<1x64xf32, #tpu.memory_space<vmem>>, vector<1x64xf32>
    %cst_12 = arith.constant 9.99999974E-6 : f32
    %83 = vector.broadcast %cst_12 : f32 to vector<1x64xf32>
    %84 = arith.addf %81, %83 : vector<1x64xf32>
    %85 = math.rsqrt %84 : vector<1x64xf32>
    %86 = arith.mulf %82, %85 : vector<1x64xf32>
    %c0_13 = arith.constant 0 : index
    %c0_14 = arith.constant 0 : index
    %87 = vector.load %arg4[%c0_13, %c0_14] : memref<1x64xf32, #tpu.memory_space<vmem>>, vector<1x64xf32>
    %88 = arith.mulf %75, %86 : vector<1x64xf32>
    %89 = arith.subf %87, %88 : vector<1x64xf32>
    %90 = tpu.concatenate %86, %86, %86, %86, %86, %86, %86, %86, %86, %86, %86, %86, %86, %86, %86, %86 in 1 : vector<1x64xf32>, vector<1x64xf32>, vector<1x64xf32>, vector<1x64xf32>, vector<1x64xf32>, vector<1x64xf32>, vector<1x64xf32>, vector<1x64xf32>, vector<1x64xf32>, vector<1x64xf32>, vector<1x64xf32>, vector<1x64xf32>, vector<1x64xf32>, vector<1x64xf32>, vector<1x64xf32>, vector<1x64xf32> -> vector<1x1024xf32>
    %91 = tpu.concatenate %89, %89, %89, %89, %89, %89, %89, %89, %89, %89, %89, %89, %89, %89, %89, %89 in 1 : vector<1x64xf32>, vector<1x64xf32>, vector<1x64xf32>, vector<1x64xf32>, vector<1x64xf32>, vector<1x64xf32>, vector<1x64xf32>, vector<1x64xf32>, vector<1x64xf32>, vector<1x64xf32>, vector<1x64xf32>, vector<1x64xf32>, vector<1x64xf32>, vector<1x64xf32>, vector<1x64xf32>, vector<1x64xf32> -> vector<1x1024xf32>
    %92 = vector.broadcast %90 : vector<1x1024xf32> to vector<8x1024xf32>
    %93 = arith.mulf %2, %92 : vector<8x1024xf32>
    %94 = vector.broadcast %91 : vector<1x1024xf32> to vector<8x1024xf32>
    %95 = arith.addf %93, %94 : vector<8x1024xf32>
    %cst_15 = arith.constant 0.000000e+00 : f32
    %96 = vector.broadcast %cst_15 : f32 to vector<8x1024xf32>
    %97 = arith.maximumf %95, %96 : vector<8x1024xf32>
    %98 = arith.truncf %97 : vector<8x1024xf32> to vector<8x1024xbf16>
    %c0_16 = arith.constant 0 : index
    %c0_17 = arith.constant 0 : index
    %99 = vector.load %arg5[%c0_16, %c0_17] : memref<8x1024xbf16, #tpu.memory_space<vmem>>, vector<8x1024xbf16>
    tpu.vector_store %arg5[%c0_16, %c0_17], %98 {strides = array<i32>} : memref<8x1024xbf16, #tpu.memory_space<vmem>>, vector<8x1024xbf16>,
    return
  }
  func.func @transform_0(%arg0: i32) -> (i32, i32) {
    %c0_i32 = arith.constant 0 : i32
    %c0_i32_0 = arith.constant 0 : i32
    %c0_i32_1 = arith.constant 0 : i32
    return %c0_i32, %c0_i32_0 : i32, i32
  }
  func.func @transform_1(%arg0: i32) -> (i32, i32) {
    %c0_i32 = arith.constant 0 : i32
    %c0_i32_0 = arith.constant 0 : i32
    %c0_i32_1 = arith.constant 0 : i32
    return %c0_i32, %c0_i32_0 : i32, i32
  }
  func.func @transform_2(%arg0: i32) -> (i32, i32) {
    %c0_i32 = arith.constant 0 : i32
    %c0_i32_0 = arith.constant 0 : i32
    %c0_i32_1 = arith.constant 0 : i32
    return %c0_i32, %c0_i32_0 : i32, i32
  }
  func.func @transform_3(%arg0: i32) -> (i32, i32) {
    %c0_i32 = arith.constant 0 : i32
    %c0_i32_0 = arith.constant 0 : i32
    %c0_i32_1 = arith.constant 0 : i32
    return %c0_i32, %c0_i32_0 : i32, i32
  }
  func.func @transform_4(%arg0: i32) -> (i32, i32) {
    %c0_i32 = arith.constant 0 : i32
    %c0_i32_0 = arith.constant 0 : i32
    %c0_i32_1 = arith.constant 0 : i32
    return %c0_i32, %c0_i32_0 : i32, i32
  }
}

module attributes {stable_mosaic.version = 11 : i64} {
  func.func @_conv_stats_kernel(%arg0: i32, %arg1: memref<1x6x6x64xbf16, #tpu.memory_space<vmem>>, %arg2: memref<576x128xbf16, #tpu.memory_space<vmem>>, %arg3: memref<1x4x4x128xbf16, #tpu.memory_space<vmem>>, %arg4: memref<1x2x128xf32, #tpu.memory_space<vmem>>) attributes {dimension_semantics = [#tpu.dimension_semantics<parallel>], iteration_bounds = array<i64: 2>, scalar_prefetch = 0 : i64, scratch_operands = 0 : i64, tpu.core_type = #tpu.core_type<tc>, window_params = [{transform_indices = @transform_0, window_bounds = array<i64: 1, 6, 6, 64>}, {pipeline_mode = #tpu.pipeline_mode<synchronous>, transform_indices = @transform_1, window_bounds = array<i64: 576, 128>}, {transform_indices = @transform_2, window_bounds = array<i64: 1, 4, 4, 128>}, {transform_indices = @transform_3, window_bounds = array<i64: 1, 2, 128>}]} {
    %c0 = arith.constant 0 : index
    %c0_0 = arith.constant 0 : index
    %0 = vector.load %arg2[%c0, %c0_0] : memref<576x128xbf16, #tpu.memory_space<vmem>>, vector<576x128xbf16>
    %cst = arith.constant 0.000000e+00 : f32
    %1 = vector.broadcast %cst : f32 to vector<1x128xf32>
    %c0_i32 = arith.constant 0 : i32
    %c4_i32 = arith.constant 4 : i32
    %2 = arith.addi %c0_i32, %c4_i32 : i32
    %c1_i32 = arith.constant 1 : i32
    %3:2 = scf.for %arg5 = %c0_i32 to %2 step %c1_i32 iter_args(%arg6 = %1, %arg7 = %1) -> (vector<1x128xf32>, vector<1x128xf32>)  : i32 {
      %c0_i32_5 = arith.constant 0 : i32
      %8 = arith.addi %arg5, %c0_i32_5 : i32
      %c0_6 = arith.constant 0 : index
      %9 = arith.index_cast %8 : i32 to index
      %c0_7 = arith.constant 0 : index
      %c0_8 = arith.constant 0 : index
      %10 = vector.load %arg1[%c0_6, %9, %c0_7, %c0_8] : memref<1x6x6x64xbf16, #tpu.memory_space<vmem>>, vector<1x1x4x64xbf16>
      %11 = vector.shape_cast %10 : vector<1x1x4x64xbf16> to vector<4x64xbf16>
      %c0_i32_9 = arith.constant 0 : i32
      %12 = arith.addi %arg5, %c0_i32_9 : i32
      %c0_10 = arith.constant 0 : index
      %13 = arith.index_cast %12 : i32 to index
      %c1 = arith.constant 1 : index
      %c0_11 = arith.constant 0 : index
      %14 = vector.load %arg1[%c0_10, %13, %c1, %c0_11] : memref<1x6x6x64xbf16, #tpu.memory_space<vmem>>, vector<1x1x4x64xbf16>
      %15 = vector.shape_cast %14 : vector<1x1x4x64xbf16> to vector<4x64xbf16>
      %c0_i32_12 = arith.constant 0 : i32
      %16 = arith.addi %arg5, %c0_i32_12 : i32
      %c0_13 = arith.constant 0 : index
      %17 = arith.index_cast %16 : i32 to index
      %c2 = arith.constant 2 : index
      %c0_14 = arith.constant 0 : index
      %18 = vector.load %arg1[%c0_13, %17, %c2, %c0_14] : memref<1x6x6x64xbf16, #tpu.memory_space<vmem>>, vector<1x1x4x64xbf16>
      %19 = vector.shape_cast %18 : vector<1x1x4x64xbf16> to vector<4x64xbf16>
      %c1_i32_15 = arith.constant 1 : i32
      %20 = arith.addi %arg5, %c1_i32_15 : i32
      %c0_16 = arith.constant 0 : index
      %21 = arith.index_cast %20 : i32 to index
      %c0_17 = arith.constant 0 : index
      %c0_18 = arith.constant 0 : index
      %22 = vector.load %arg1[%c0_16, %21, %c0_17, %c0_18] : memref<1x6x6x64xbf16, #tpu.memory_space<vmem>>, vector<1x1x4x64xbf16>
      %23 = vector.shape_cast %22 : vector<1x1x4x64xbf16> to vector<4x64xbf16>
      %c1_i32_19 = arith.constant 1 : i32
      %24 = arith.addi %arg5, %c1_i32_19 : i32
      %c0_20 = arith.constant 0 : index
      %25 = arith.index_cast %24 : i32 to index
      %c1_21 = arith.constant 1 : index
      %c0_22 = arith.constant 0 : index
      %26 = vector.load %arg1[%c0_20, %25, %c1_21, %c0_22] : memref<1x6x6x64xbf16, #tpu.memory_space<vmem>>, vector<1x1x4x64xbf16>
      %27 = vector.shape_cast %26 : vector<1x1x4x64xbf16> to vector<4x64xbf16>
      %c1_i32_23 = arith.constant 1 : i32
      %28 = arith.addi %arg5, %c1_i32_23 : i32
      %c0_24 = arith.constant 0 : index
      %29 = arith.index_cast %28 : i32 to index
      %c2_25 = arith.constant 2 : index
      %c0_26 = arith.constant 0 : index
      %30 = vector.load %arg1[%c0_24, %29, %c2_25, %c0_26] : memref<1x6x6x64xbf16, #tpu.memory_space<vmem>>, vector<1x1x4x64xbf16>
      %31 = vector.shape_cast %30 : vector<1x1x4x64xbf16> to vector<4x64xbf16>
      %c2_i32 = arith.constant 2 : i32
      %32 = arith.addi %arg5, %c2_i32 : i32
      %c0_27 = arith.constant 0 : index
      %33 = arith.index_cast %32 : i32 to index
      %c0_28 = arith.constant 0 : index
      %c0_29 = arith.constant 0 : index
      %34 = vector.load %arg1[%c0_27, %33, %c0_28, %c0_29] : memref<1x6x6x64xbf16, #tpu.memory_space<vmem>>, vector<1x1x4x64xbf16>
      %35 = vector.shape_cast %34 : vector<1x1x4x64xbf16> to vector<4x64xbf16>
      %c2_i32_30 = arith.constant 2 : i32
      %36 = arith.addi %arg5, %c2_i32_30 : i32
      %c0_31 = arith.constant 0 : index
      %37 = arith.index_cast %36 : i32 to index
      %c1_32 = arith.constant 1 : index
      %c0_33 = arith.constant 0 : index
      %38 = vector.load %arg1[%c0_31, %37, %c1_32, %c0_33] : memref<1x6x6x64xbf16, #tpu.memory_space<vmem>>, vector<1x1x4x64xbf16>
      %39 = vector.shape_cast %38 : vector<1x1x4x64xbf16> to vector<4x64xbf16>
      %c2_i32_34 = arith.constant 2 : i32
      %40 = arith.addi %arg5, %c2_i32_34 : i32
      %c0_35 = arith.constant 0 : index
      %41 = arith.index_cast %40 : i32 to index
      %c2_36 = arith.constant 2 : index
      %c0_37 = arith.constant 0 : index
      %42 = vector.load %arg1[%c0_35, %41, %c2_36, %c0_37] : memref<1x6x6x64xbf16, #tpu.memory_space<vmem>>, vector<1x1x4x64xbf16>
      %43 = vector.shape_cast %42 : vector<1x1x4x64xbf16> to vector<4x64xbf16>
      %44 = tpu.concatenate %11, %15, %19, %23, %27, %31, %35, %39, %43 in 1 : vector<4x64xbf16>, vector<4x64xbf16>, vector<4x64xbf16>, vector<4x64xbf16>, vector<4x64xbf16>, vector<4x64xbf16>, vector<4x64xbf16>, vector<4x64xbf16>, vector<4x64xbf16> -> vector<4x576xbf16>
      %cst_38 = arith.constant dense<0.000000e+00> : vector<4x128xf32>
      %45 = tpu.matmul %44, %0, %cst_38 {dimension_numbers = #tpu.dot_dimension_numbers<[1], [0], [0], [1], [0, 0, 1, 1], [], []>} : vector<4x576xbf16>, vector<576x128xbf16>, vector<4x128xf32> -> vector<4x128xf32>
      %46 = arith.truncf %45 : vector<4x128xf32> to vector<4x128xbf16>
      %c0_39 = arith.constant 0 : index
      %47 = arith.index_cast %arg5 : i32 to index
      %c0_40 = arith.constant 0 : index
      %c0_41 = arith.constant 0 : index
      %48 = vector.load %arg3[%c0_39, %47, %c0_40, %c0_41] : memref<1x4x4x128xbf16, #tpu.memory_space<vmem>>, vector<1x1x4x128xbf16>
      %49 = vector.shape_cast %48 : vector<1x1x4x128xbf16> to vector<4x128xbf16>
      %50 = vector.shape_cast %46 : vector<4x128xbf16> to vector<1x1x4x128xbf16>
      tpu.vector_store %arg3[%c0_39, %47, %c0_40, %c0_41], %50 {strides = array<i32>} : memref<1x4x4x128xbf16, #tpu.memory_space<vmem>>, vector<1x1x4x128xbf16>,
      %cst_42 = arith.constant dense<0.000000e+00> : vector<128xf32>
      %51 = vector.multi_reduction <add>, %45, %cst_42 [0] : vector<4x128xf32> to vector<128xf32>
      %52 = vector.shape_cast %51 : vector<128xf32> to vector<1x128xf32>
      %53 = arith.addf %arg6, %52 : vector<1x128xf32>
      %54 = arith.mulf %45, %45 : vector<4x128xf32>
      %cst_43 = arith.constant dense<0.000000e+00> : vector<128xf32>
      %55 = vector.multi_reduction <add>, %54, %cst_43 [0] : vector<4x128xf32> to vector<128xf32>
      %56 = vector.shape_cast %55 : vector<128xf32> to vector<1x128xf32>
      %57 = arith.addf %arg7, %56 : vector<1x128xf32>
      scf.yield %53, %57 : vector<1x128xf32>, vector<1x128xf32>
    }
    %c4_i32_1 = arith.constant 4 : i32
    %4 = tpu.concatenate %3#0, %3#1 in 0 : vector<1x128xf32>, vector<1x128xf32> -> vector<2x128xf32>
    %c0_2 = arith.constant 0 : index
    %c0_3 = arith.constant 0 : index
    %c0_4 = arith.constant 0 : index
    %5 = vector.load %arg4[%c0_2, %c0_3, %c0_4] : memref<1x2x128xf32, #tpu.memory_space<vmem>>, vector<1x2x128xf32>
    %6 = vector.shape_cast %5 : vector<1x2x128xf32> to vector<2x128xf32>
    %7 = vector.shape_cast %4 : vector<2x128xf32> to vector<1x2x128xf32>
    tpu.vector_store %arg4[%c0_2, %c0_3, %c0_4], %7 {strides = array<i32>} : memref<1x2x128xf32, #tpu.memory_space<vmem>>, vector<1x2x128xf32>,
    return
  }
  func.func @transform_0(%arg0: i32) -> (i32, i32, i32, i32) {
    %c0_i32 = arith.constant 0 : i32
    %c0_i32_0 = arith.constant 0 : i32
    %c0_i32_1 = arith.constant 0 : i32
    %c0_i32_2 = arith.constant 0 : i32
    return %arg0, %c0_i32, %c0_i32_0, %c0_i32_1 : i32, i32, i32, i32
  }
  func.func @transform_1(%arg0: i32) -> (i32, i32) {
    %c0_i32 = arith.constant 0 : i32
    %c0_i32_0 = arith.constant 0 : i32
    %c0_i32_1 = arith.constant 0 : i32
    return %c0_i32, %c0_i32_0 : i32, i32
  }
  func.func @transform_2(%arg0: i32) -> (i32, i32, i32, i32) {
    %c0_i32 = arith.constant 0 : i32
    %c0_i32_0 = arith.constant 0 : i32
    %c0_i32_1 = arith.constant 0 : i32
    %c0_i32_2 = arith.constant 0 : i32
    return %arg0, %c0_i32, %c0_i32_0, %c0_i32_1 : i32, i32, i32, i32
  }
  func.func @transform_3(%arg0: i32) -> (i32, i32, i32) {
    %c0_i32 = arith.constant 0 : i32
    %c0_i32_0 = arith.constant 0 : i32
    %c0_i32_1 = arith.constant 0 : i32
    return %arg0, %c0_i32, %c0_i32_0 : i32, i32, i32
  }
}

module attributes {stable_mosaic.version = 11 : i64} {
  func.func @_bn_relu_shuffle_kernel(%arg0: i32, %arg1: memref<1x4x4x128xbf16, #tpu.memory_space<vmem>>, %arg2: memref<1x128xf32, #tpu.memory_space<vmem>>, %arg3: memref<1x128xf32, #tpu.memory_space<vmem>>, %arg4: memref<5x2x5x64xbf16, #tpu.memory_space<vmem>>) attributes {dimension_semantics = [#tpu.dimension_semantics<parallel>], iteration_bounds = array<i64: 2>, scalar_prefetch = 0 : i64, scratch_operands = 0 : i64, tpu.core_type = #tpu.core_type<tc>, window_params = [{transform_indices = @transform_0, window_bounds = array<i64: 1, 4, 4, 128>}, {pipeline_mode = #tpu.pipeline_mode<synchronous>, transform_indices = @transform_1, window_bounds = array<i64: 1, 128>}, {pipeline_mode = #tpu.pipeline_mode<synchronous>, transform_indices = @transform_2, window_bounds = array<i64: 1, 128>}, {transform_indices = @transform_3, window_bounds = array<i64: 5, 2, 5, 64>}]} {
    %c0 = arith.constant 0 : index
    %c0_0 = arith.constant 0 : index
    %c0_1 = arith.constant 0 : index
    %c0_2 = arith.constant 0 : index
    %0 = vector.load %arg1[%c0, %c0_0, %c0_1, %c0_2] : memref<1x4x4x128xbf16, #tpu.memory_space<vmem>>, vector<1x4x4x128xbf16>
    %1 = vector.shape_cast %0 : vector<1x4x4x128xbf16> to vector<4x4x128xbf16>
    %2 = arith.extf %1 : vector<4x4x128xbf16> to vector<4x4x128xf32>
    %c0_3 = arith.constant 0 : index
    %c0_4 = arith.constant 0 : index
    %3 = vector.load %arg2[%c0_3, %c0_4] : memref<1x128xf32, #tpu.memory_space<vmem>>, vector<1x128xf32>
    %4 = vector.shape_cast %3 : vector<1x128xf32> to vector<1x1x128xf32>
    %5 = vector.broadcast %4 : vector<1x1x128xf32> to vector<4x4x128xf32>
    %6 = arith.mulf %2, %5 : vector<4x4x128xf32>
    %c0_5 = arith.constant 0 : index
    %c0_6 = arith.constant 0 : index
    %7 = vector.load %arg3[%c0_5, %c0_6] : memref<1x128xf32, #tpu.memory_space<vmem>>, vector<1x128xf32>
    %8 = vector.shape_cast %7 : vector<1x128xf32> to vector<1x1x128xf32>
    %9 = vector.broadcast %8 : vector<1x1x128xf32> to vector<4x4x128xf32>
    %10 = arith.addf %6, %9 : vector<4x4x128xf32>
    %cst = arith.constant 0.000000e+00 : f32
    %11 = vector.broadcast %cst : f32 to vector<4x4x128xf32>
    %12 = arith.maximumf %10, %11 : vector<4x4x128xf32>
    %13 = arith.truncf %12 : vector<4x4x128xf32> to vector<4x4x128xbf16>
    %cst_7 = arith.constant 0.000000e+00 : bf16
    %14 = vector.broadcast %cst_7 : bf16 to vector<5x2x5x64xbf16>
    %c0_8 = arith.constant 0 : index
    %c0_9 = arith.constant 0 : index
    %c0_10 = arith.constant 0 : index
    %c0_11 = arith.constant 0 : index
    %15 = vector.load %arg4[%c0_8, %c0_9, %c0_10, %c0_11] : memref<5x2x5x64xbf16, #tpu.memory_space<vmem>>, vector<5x2x5x64xbf16>
    tpu.vector_store %arg4[%c0_8, %c0_9, %c0_10, %c0_11], %14 {strides = array<i32>} : memref<5x2x5x64xbf16, #tpu.memory_space<vmem>>, vector<5x2x5x64xbf16>,
    %16 = vector.extract_strided_slice %13 {offsets = [0, 0, 0], sizes = [4, 4, 32], strides = [1, 1, 1]} : vector<4x4x128xbf16> to vector<4x4x32xbf16>
    %c0_12 = arith.constant 0 : index
    %c1 = arith.constant 1 : index
    %c0_13 = arith.constant 0 : index
    %c32 = arith.constant 32 : index
    %17 = vector.load %arg4[%c0_12, %c1, %c0_13, %c32] : memref<5x2x5x64xbf16, #tpu.memory_space<vmem>>, vector<4x1x4x32xbf16>
    %18 = vector.shape_cast %17 : vector<4x1x4x32xbf16> to vector<4x4x32xbf16>
    %19 = vector.shape_cast %16 : vector<4x4x32xbf16> to vector<4x1x4x32xbf16>
    tpu.vector_store %arg4[%c0_12, %c1, %c0_13, %c32], %19 {strides = array<i32>} : memref<5x2x5x64xbf16, #tpu.memory_space<vmem>>, vector<4x1x4x32xbf16>,
    %20 = vector.extract_strided_slice %13 {offsets = [0, 0, 32], sizes = [4, 4, 32], strides = [1, 1, 1]} : vector<4x4x128xbf16> to vector<4x4x32xbf16>
    %c0_14 = arith.constant 0 : index
    %c1_15 = arith.constant 1 : index
    %c1_16 = arith.constant 1 : index
    %c0_17 = arith.constant 0 : index
    %21 = vector.load %arg4[%c0_14, %c1_15, %c1_16, %c0_17] : memref<5x2x5x64xbf16, #tpu.memory_space<vmem>>, vector<4x1x4x32xbf16>
    %22 = vector.shape_cast %21 : vector<4x1x4x32xbf16> to vector<4x4x32xbf16>
    %23 = vector.shape_cast %20 : vector<4x4x32xbf16> to vector<4x1x4x32xbf16>
    tpu.vector_store %arg4[%c0_14, %c1_15, %c1_16, %c0_17], %23 {strides = array<i32>} : memref<5x2x5x64xbf16, #tpu.memory_space<vmem>>, vector<4x1x4x32xbf16>,
    %24 = vector.extract_strided_slice %13 {offsets = [0, 0, 64], sizes = [4, 4, 32], strides = [1, 1, 1]} : vector<4x4x128xbf16> to vector<4x4x32xbf16>
    %c1_18 = arith.constant 1 : index
    %c0_19 = arith.constant 0 : index
    %c0_20 = arith.constant 0 : index
    %c32_21 = arith.constant 32 : index
    %25 = vector.load %arg4[%c1_18, %c0_19, %c0_20, %c32_21] : memref<5x2x5x64xbf16, #tpu.memory_space<vmem>>, vector<4x1x4x32xbf16>
    %26 = vector.shape_cast %25 : vector<4x1x4x32xbf16> to vector<4x4x32xbf16>
    %27 = vector.shape_cast %24 : vector<4x4x32xbf16> to vector<4x1x4x32xbf16>
    tpu.vector_store %arg4[%c1_18, %c0_19, %c0_20, %c32_21], %27 {strides = array<i32>} : memref<5x2x5x64xbf16, #tpu.memory_space<vmem>>, vector<4x1x4x32xbf16>,
    %28 = vector.extract_strided_slice %13 {offsets = [0, 0, 96], sizes = [4, 4, 32], strides = [1, 1, 1]} : vector<4x4x128xbf16> to vector<4x4x32xbf16>
    %c1_22 = arith.constant 1 : index
    %c0_23 = arith.constant 0 : index
    %c1_24 = arith.constant 1 : index
    %c0_25 = arith.constant 0 : index
    %29 = vector.load %arg4[%c1_22, %c0_23, %c1_24, %c0_25] : memref<5x2x5x64xbf16, #tpu.memory_space<vmem>>, vector<4x1x4x32xbf16>
    %30 = vector.shape_cast %29 : vector<4x1x4x32xbf16> to vector<4x4x32xbf16>
    %31 = vector.shape_cast %28 : vector<4x4x32xbf16> to vector<4x1x4x32xbf16>
    tpu.vector_store %arg4[%c1_22, %c0_23, %c1_24, %c0_25], %31 {strides = array<i32>} : memref<5x2x5x64xbf16, #tpu.memory_space<vmem>>, vector<4x1x4x32xbf16>,
    return
  }
  func.func @transform_0(%arg0: i32) -> (i32, i32, i32, i32) {
    %c0_i32 = arith.constant 0 : i32
    %c0_i32_0 = arith.constant 0 : i32
    %c0_i32_1 = arith.constant 0 : i32
    %c0_i32_2 = arith.constant 0 : i32
    return %arg0, %c0_i32, %c0_i32_0, %c0_i32_1 : i32, i32, i32, i32
  }
  func.func @transform_1(%arg0: i32) -> (i32, i32) {
    %c0_i32 = arith.constant 0 : i32
    %c0_i32_0 = arith.constant 0 : i32
    %c0_i32_1 = arith.constant 0 : i32
    return %c0_i32, %c0_i32_0 : i32, i32
  }
  func.func @transform_2(%arg0: i32) -> (i32, i32) {
    %c0_i32 = arith.constant 0 : i32
    %c0_i32_0 = arith.constant 0 : i32
    %c0_i32_1 = arith.constant 0 : i32
    return %c0_i32, %c0_i32_0 : i32, i32
  }
  func.func @transform_3(%arg0: i32) -> (i32, i32, i32, i32) {
    %c0_i32 = arith.constant 0 : i32
    %c0_i32_0 = arith.constant 0 : i32
    %c0_i32_1 = arith.constant 0 : i32
    %c0_i32_2 = arith.constant 0 : i32
    return %arg0, %c0_i32, %c0_i32_0, %c0_i32_1 : i32, i32, i32, i32
  }
}

module attributes {stable_mosaic.version = 11 : i64} {
  func.func @_conv_stats_kernel(%arg0: i32, %arg1: memref<1x10x10x32xbf16, #tpu.memory_space<vmem>>, %arg2: memref<288x128xbf16, #tpu.memory_space<vmem>>, %arg3: memref<1x8x8x128xbf16, #tpu.memory_space<vmem>>, %arg4: memref<1x2x128xf32, #tpu.memory_space<vmem>>) attributes {dimension_semantics = [#tpu.dimension_semantics<parallel>], iteration_bounds = array<i64: 2>, scalar_prefetch = 0 : i64, scratch_operands = 0 : i64, tpu.core_type = #tpu.core_type<tc>, window_params = [{transform_indices = @transform_0, window_bounds = array<i64: 1, 10, 10, 32>}, {pipeline_mode = #tpu.pipeline_mode<synchronous>, transform_indices = @transform_1, window_bounds = array<i64: 288, 128>}, {transform_indices = @transform_2, window_bounds = array<i64: 1, 8, 8, 128>}, {transform_indices = @transform_3, window_bounds = array<i64: 1, 2, 128>}]} {
    %c0 = arith.constant 0 : index
    %c0_0 = arith.constant 0 : index
    %0 = vector.load %arg2[%c0, %c0_0] : memref<288x128xbf16, #tpu.memory_space<vmem>>, vector<288x128xbf16>
    %cst = arith.constant 0.000000e+00 : f32
    %1 = vector.broadcast %cst : f32 to vector<1x128xf32>
    %c0_i32 = arith.constant 0 : i32
    %c8_i32 = arith.constant 8 : i32
    %2 = arith.addi %c0_i32, %c8_i32 : i32
    %c1_i32 = arith.constant 1 : i32
    %3:2 = scf.for %arg5 = %c0_i32 to %2 step %c1_i32 iter_args(%arg6 = %1, %arg7 = %1) -> (vector<1x128xf32>, vector<1x128xf32>)  : i32 {
      %c0_i32_5 = arith.constant 0 : i32
      %8 = arith.addi %arg5, %c0_i32_5 : i32
      %c0_6 = arith.constant 0 : index
      %9 = arith.index_cast %8 : i32 to index
      %c0_7 = arith.constant 0 : index
      %c0_8 = arith.constant 0 : index
      %10 = vector.load %arg1[%c0_6, %9, %c0_7, %c0_8] : memref<1x10x10x32xbf16, #tpu.memory_space<vmem>>, vector<1x1x8x32xbf16>
      %11 = vector.shape_cast %10 : vector<1x1x8x32xbf16> to vector<8x32xbf16>
      %c0_i32_9 = arith.constant 0 : i32
      %12 = arith.addi %arg5, %c0_i32_9 : i32
      %c0_10 = arith.constant 0 : index
      %13 = arith.index_cast %12 : i32 to index
      %c1 = arith.constant 1 : index
      %c0_11 = arith.constant 0 : index
      %14 = vector.load %arg1[%c0_10, %13, %c1, %c0_11] : memref<1x10x10x32xbf16, #tpu.memory_space<vmem>>, vector<1x1x8x32xbf16>
      %15 = vector.shape_cast %14 : vector<1x1x8x32xbf16> to vector<8x32xbf16>
      %c0_i32_12 = arith.constant 0 : i32
      %16 = arith.addi %arg5, %c0_i32_12 : i32
      %c0_13 = arith.constant 0 : index
      %17 = arith.index_cast %16 : i32 to index
      %c2 = arith.constant 2 : index
      %c0_14 = arith.constant 0 : index
      %18 = vector.load %arg1[%c0_13, %17, %c2, %c0_14] : memref<1x10x10x32xbf16, #tpu.memory_space<vmem>>, vector<1x1x8x32xbf16>
      %19 = vector.shape_cast %18 : vector<1x1x8x32xbf16> to vector<8x32xbf16>
      %c1_i32_15 = arith.constant 1 : i32
      %20 = arith.addi %arg5, %c1_i32_15 : i32
      %c0_16 = arith.constant 0 : index
      %21 = arith.index_cast %20 : i32 to index
      %c0_17 = arith.constant 0 : index
      %c0_18 = arith.constant 0 : index
      %22 = vector.load %arg1[%c0_16, %21, %c0_17, %c0_18] : memref<1x10x10x32xbf16, #tpu.memory_space<vmem>>, vector<1x1x8x32xbf16>
      %23 = vector.shape_cast %22 : vector<1x1x8x32xbf16> to vector<8x32xbf16>
      %c1_i32_19 = arith.constant 1 : i32
      %24 = arith.addi %arg5, %c1_i32_19 : i32
      %c0_20 = arith.constant 0 : index
      %25 = arith.index_cast %24 : i32 to index
      %c1_21 = arith.constant 1 : index
      %c0_22 = arith.constant 0 : index
      %26 = vector.load %arg1[%c0_20, %25, %c1_21, %c0_22] : memref<1x10x10x32xbf16, #tpu.memory_space<vmem>>, vector<1x1x8x32xbf16>
      %27 = vector.shape_cast %26 : vector<1x1x8x32xbf16> to vector<8x32xbf16>
      %c1_i32_23 = arith.constant 1 : i32
      %28 = arith.addi %arg5, %c1_i32_23 : i32
      %c0_24 = arith.constant 0 : index
      %29 = arith.index_cast %28 : i32 to index
      %c2_25 = arith.constant 2 : index
      %c0_26 = arith.constant 0 : index
      %30 = vector.load %arg1[%c0_24, %29, %c2_25, %c0_26] : memref<1x10x10x32xbf16, #tpu.memory_space<vmem>>, vector<1x1x8x32xbf16>
      %31 = vector.shape_cast %30 : vector<1x1x8x32xbf16> to vector<8x32xbf16>
      %c2_i32 = arith.constant 2 : i32
      %32 = arith.addi %arg5, %c2_i32 : i32
      %c0_27 = arith.constant 0 : index
      %33 = arith.index_cast %32 : i32 to index
      %c0_28 = arith.constant 0 : index
      %c0_29 = arith.constant 0 : index
      %34 = vector.load %arg1[%c0_27, %33, %c0_28, %c0_29] : memref<1x10x10x32xbf16, #tpu.memory_space<vmem>>, vector<1x1x8x32xbf16>
      %35 = vector.shape_cast %34 : vector<1x1x8x32xbf16> to vector<8x32xbf16>
      %c2_i32_30 = arith.constant 2 : i32
      %36 = arith.addi %arg5, %c2_i32_30 : i32
      %c0_31 = arith.constant 0 : index
      %37 = arith.index_cast %36 : i32 to index
      %c1_32 = arith.constant 1 : index
      %c0_33 = arith.constant 0 : index
      %38 = vector.load %arg1[%c0_31, %37, %c1_32, %c0_33] : memref<1x10x10x32xbf16, #tpu.memory_space<vmem>>, vector<1x1x8x32xbf16>
      %39 = vector.shape_cast %38 : vector<1x1x8x32xbf16> to vector<8x32xbf16>
      %c2_i32_34 = arith.constant 2 : i32
      %40 = arith.addi %arg5, %c2_i32_34 : i32
      %c0_35 = arith.constant 0 : index
      %41 = arith.index_cast %40 : i32 to index
      %c2_36 = arith.constant 2 : index
      %c0_37 = arith.constant 0 : index
      %42 = vector.load %arg1[%c0_35, %41, %c2_36, %c0_37] : memref<1x10x10x32xbf16, #tpu.memory_space<vmem>>, vector<1x1x8x32xbf16>
      %43 = vector.shape_cast %42 : vector<1x1x8x32xbf16> to vector<8x32xbf16>
      %44 = tpu.concatenate %11, %15, %19, %23, %27, %31, %35, %39, %43 in 1 : vector<8x32xbf16>, vector<8x32xbf16>, vector<8x32xbf16>, vector<8x32xbf16>, vector<8x32xbf16>, vector<8x32xbf16>, vector<8x32xbf16>, vector<8x32xbf16>, vector<8x32xbf16> -> vector<8x288xbf16>
      %cst_38 = arith.constant dense<0.000000e+00> : vector<8x128xf32>
      %45 = tpu.matmul %44, %0, %cst_38 {dimension_numbers = #tpu.dot_dimension_numbers<[1], [0], [0], [1], [0, 0, 1, 1], [], []>} : vector<8x288xbf16>, vector<288x128xbf16>, vector<8x128xf32> -> vector<8x128xf32>
      %46 = arith.truncf %45 : vector<8x128xf32> to vector<8x128xbf16>
      %c0_39 = arith.constant 0 : index
      %47 = arith.index_cast %arg5 : i32 to index
      %c0_40 = arith.constant 0 : index
      %c0_41 = arith.constant 0 : index
      %48 = vector.load %arg3[%c0_39, %47, %c0_40, %c0_41] : memref<1x8x8x128xbf16, #tpu.memory_space<vmem>>, vector<1x1x8x128xbf16>
      %49 = vector.shape_cast %48 : vector<1x1x8x128xbf16> to vector<8x128xbf16>
      %50 = vector.shape_cast %46 : vector<8x128xbf16> to vector<1x1x8x128xbf16>
      tpu.vector_store %arg3[%c0_39, %47, %c0_40, %c0_41], %50 {strides = array<i32>} : memref<1x8x8x128xbf16, #tpu.memory_space<vmem>>, vector<1x1x8x128xbf16>,
      %cst_42 = arith.constant dense<0.000000e+00> : vector<128xf32>
      %51 = vector.multi_reduction <add>, %45, %cst_42 [0] : vector<8x128xf32> to vector<128xf32>
      %52 = vector.shape_cast %51 : vector<128xf32> to vector<1x128xf32>
      %53 = arith.addf %arg6, %52 : vector<1x128xf32>
      %54 = arith.mulf %45, %45 : vector<8x128xf32>
      %cst_43 = arith.constant dense<0.000000e+00> : vector<128xf32>
      %55 = vector.multi_reduction <add>, %54, %cst_43 [0] : vector<8x128xf32> to vector<128xf32>
      %56 = vector.shape_cast %55 : vector<128xf32> to vector<1x128xf32>
      %57 = arith.addf %arg7, %56 : vector<1x128xf32>
      scf.yield %53, %57 : vector<1x128xf32>, vector<1x128xf32>
    }
    %c8_i32_1 = arith.constant 8 : i32
    %4 = tpu.concatenate %3#0, %3#1 in 0 : vector<1x128xf32>, vector<1x128xf32> -> vector<2x128xf32>
    %c0_2 = arith.constant 0 : index
    %c0_3 = arith.constant 0 : index
    %c0_4 = arith.constant 0 : index
    %5 = vector.load %arg4[%c0_2, %c0_3, %c0_4] : memref<1x2x128xf32, #tpu.memory_space<vmem>>, vector<1x2x128xf32>
    %6 = vector.shape_cast %5 : vector<1x2x128xf32> to vector<2x128xf32>
    %7 = vector.shape_cast %4 : vector<2x128xf32> to vector<1x2x128xf32>
    tpu.vector_store %arg4[%c0_2, %c0_3, %c0_4], %7 {strides = array<i32>} : memref<1x2x128xf32, #tpu.memory_space<vmem>>, vector<1x2x128xf32>,
    return
  }
  func.func @transform_0(%arg0: i32) -> (i32, i32, i32, i32) {
    %c0_i32 = arith.constant 0 : i32
    %c0_i32_0 = arith.constant 0 : i32
    %c0_i32_1 = arith.constant 0 : i32
    %c0_i32_2 = arith.constant 0 : i32
    return %arg0, %c0_i32, %c0_i32_0, %c0_i32_1 : i32, i32, i32, i32
  }
  func.func @transform_1(%arg0: i32) -> (i32, i32) {
    %c0_i32 = arith.constant 0 : i32
    %c0_i32_0 = arith.constant 0 : i32
    %c0_i32_1 = arith.constant 0 : i32
    return %c0_i32, %c0_i32_0 : i32, i32
  }
  func.func @transform_2(%arg0: i32) -> (i32, i32, i32, i32) {
    %c0_i32 = arith.constant 0 : i32
    %c0_i32_0 = arith.constant 0 : i32
    %c0_i32_1 = arith.constant 0 : i32
    %c0_i32_2 = arith.constant 0 : i32
    return %arg0, %c0_i32, %c0_i32_0, %c0_i32_1 : i32, i32, i32, i32
  }
  func.func @transform_3(%arg0: i32) -> (i32, i32, i32) {
    %c0_i32 = arith.constant 0 : i32
    %c0_i32_0 = arith.constant 0 : i32
    %c0_i32_1 = arith.constant 0 : i32
    return %arg0, %c0_i32, %c0_i32_0 : i32, i32, i32
  }
}

module attributes {stable_mosaic.version = 11 : i64} {
  func.func @_bn_relu_shuffle_kernel(%arg0: i32, %arg1: memref<1x8x8x128xbf16, #tpu.memory_space<vmem>>, %arg2: memref<1x128xf32, #tpu.memory_space<vmem>>, %arg3: memref<1x128xf32, #tpu.memory_space<vmem>>, %arg4: memref<9x2x9x32xbf16, #tpu.memory_space<vmem>>) attributes {dimension_semantics = [#tpu.dimension_semantics<parallel>], iteration_bounds = array<i64: 2>, scalar_prefetch = 0 : i64, scratch_operands = 0 : i64, tpu.core_type = #tpu.core_type<tc>, window_params = [{transform_indices = @transform_0, window_bounds = array<i64: 1, 8, 8, 128>}, {pipeline_mode = #tpu.pipeline_mode<synchronous>, transform_indices = @transform_1, window_bounds = array<i64: 1, 128>}, {pipeline_mode = #tpu.pipeline_mode<synchronous>, transform_indices = @transform_2, window_bounds = array<i64: 1, 128>}, {transform_indices = @transform_3, window_bounds = array<i64: 9, 2, 9, 32>}]} {
    %c0 = arith.constant 0 : index
    %c0_0 = arith.constant 0 : index
    %c0_1 = arith.constant 0 : index
    %c0_2 = arith.constant 0 : index
    %0 = vector.load %arg1[%c0, %c0_0, %c0_1, %c0_2] : memref<1x8x8x128xbf16, #tpu.memory_space<vmem>>, vector<1x8x8x128xbf16>
    %1 = vector.shape_cast %0 : vector<1x8x8x128xbf16> to vector<8x8x128xbf16>
    %2 = arith.extf %1 : vector<8x8x128xbf16> to vector<8x8x128xf32>
    %c0_3 = arith.constant 0 : index
    %c0_4 = arith.constant 0 : index
    %3 = vector.load %arg2[%c0_3, %c0_4] : memref<1x128xf32, #tpu.memory_space<vmem>>, vector<1x128xf32>
    %4 = vector.shape_cast %3 : vector<1x128xf32> to vector<1x1x128xf32>
    %5 = vector.broadcast %4 : vector<1x1x128xf32> to vector<8x8x128xf32>
    %6 = arith.mulf %2, %5 : vector<8x8x128xf32>
    %c0_5 = arith.constant 0 : index
    %c0_6 = arith.constant 0 : index
    %7 = vector.load %arg3[%c0_5, %c0_6] : memref<1x128xf32, #tpu.memory_space<vmem>>, vector<1x128xf32>
    %8 = vector.shape_cast %7 : vector<1x128xf32> to vector<1x1x128xf32>
    %9 = vector.broadcast %8 : vector<1x1x128xf32> to vector<8x8x128xf32>
    %10 = arith.addf %6, %9 : vector<8x8x128xf32>
    %cst = arith.constant 0.000000e+00 : f32
    %11 = vector.broadcast %cst : f32 to vector<8x8x128xf32>
    %12 = arith.maximumf %10, %11 : vector<8x8x128xf32>
    %13 = arith.truncf %12 : vector<8x8x128xf32> to vector<8x8x128xbf16>
    %cst_7 = arith.constant 0.000000e+00 : bf16
    %14 = vector.broadcast %cst_7 : bf16 to vector<9x2x9x32xbf16>
    %c0_8 = arith.constant 0 : index
    %c0_9 = arith.constant 0 : index
    %c0_10 = arith.constant 0 : index
    %c0_11 = arith.constant 0 : index
    %15 = vector.load %arg4[%c0_8, %c0_9, %c0_10, %c0_11] : memref<9x2x9x32xbf16, #tpu.memory_space<vmem>>, vector<9x2x9x32xbf16>
    tpu.vector_store %arg4[%c0_8, %c0_9, %c0_10, %c0_11], %14 {strides = array<i32>} : memref<9x2x9x32xbf16, #tpu.memory_space<vmem>>, vector<9x2x9x32xbf16>,
    %16 = vector.extract_strided_slice %13 {offsets = [0, 0, 0], sizes = [8, 8, 16], strides = [1, 1, 1]} : vector<8x8x128xbf16> to vector<8x8x16xbf16>
    %c0_12 = arith.constant 0 : index
    %c1 = arith.constant 1 : index
    %c0_13 = arith.constant 0 : index
    %c16 = arith.constant 16 : index
    %17 = vector.load %arg4[%c0_12, %c1, %c0_13, %c16] : memref<9x2x9x32xbf16, #tpu.memory_space<vmem>>, vector<8x1x8x16xbf16>
    %18 = vector.shape_cast %17 : vector<8x1x8x16xbf16> to vector<8x8x16xbf16>
    %19 = vector.shape_cast %16 : vector<8x8x16xbf16> to vector<8x1x8x16xbf16>
    tpu.vector_store %arg4[%c0_12, %c1, %c0_13, %c16], %19 {strides = array<i32>} : memref<9x2x9x32xbf16, #tpu.memory_space<vmem>>, vector<8x1x8x16xbf16>,
    %20 = vector.extract_strided_slice %13 {offsets = [0, 0, 16], sizes = [8, 8, 16], strides = [1, 1, 1]} : vector<8x8x128xbf16> to vector<8x8x16xbf16>
    %c0_14 = arith.constant 0 : index
    %c1_15 = arith.constant 1 : index
    %c1_16 = arith.constant 1 : index
    %c0_17 = arith.constant 0 : index
    %21 = vector.load %arg4[%c0_14, %c1_15, %c1_16, %c0_17] : memref<9x2x9x32xbf16, #tpu.memory_space<vmem>>, vector<8x1x8x16xbf16>
    %22 = vector.shape_cast %21 : vector<8x1x8x16xbf16> to vector<8x8x16xbf16>
    %23 = vector.shape_cast %20 : vector<8x8x16xbf16> to vector<8x1x8x16xbf16>
    tpu.vector_store %arg4[%c0_14, %c1_15, %c1_16, %c0_17], %23 {strides = array<i32>} : memref<9x2x9x32xbf16, #tpu.memory_space<vmem>>, vector<8x1x8x16xbf16>,
    %24 = vector.extract_strided_slice %13 {offsets = [0, 0, 32], sizes = [8, 8, 16], strides = [1, 1, 1]} : vector<8x8x128xbf16> to vector<8x8x16xbf16>
    %c1_18 = arith.constant 1 : index
    %c0_19 = arith.constant 0 : index
    %c0_20 = arith.constant 0 : index
    %c16_21 = arith.constant 16 : index
    %25 = vector.load %arg4[%c1_18, %c0_19, %c0_20, %c16_21] : memref<9x2x9x32xbf16, #tpu.memory_space<vmem>>, vector<8x1x8x16xbf16>
    %26 = vector.shape_cast %25 : vector<8x1x8x16xbf16> to vector<8x8x16xbf16>
    %27 = vector.shape_cast %24 : vector<8x8x16xbf16> to vector<8x1x8x16xbf16>
    tpu.vector_store %arg4[%c1_18, %c0_19, %c0_20, %c16_21], %27 {strides = array<i32>} : memref<9x2x9x32xbf16, #tpu.memory_space<vmem>>, vector<8x1x8x16xbf16>,
    %28 = vector.extract_strided_slice %13 {offsets = [0, 0, 48], sizes = [8, 8, 16], strides = [1, 1, 1]} : vector<8x8x128xbf16> to vector<8x8x16xbf16>
    %c1_22 = arith.constant 1 : index
    %c0_23 = arith.constant 0 : index
    %c1_24 = arith.constant 1 : index
    %c0_25 = arith.constant 0 : index
    %29 = vector.load %arg4[%c1_22, %c0_23, %c1_24, %c0_25] : memref<9x2x9x32xbf16, #tpu.memory_space<vmem>>, vector<8x1x8x16xbf16>
    %30 = vector.shape_cast %29 : vector<8x1x8x16xbf16> to vector<8x8x16xbf16>
    %31 = vector.shape_cast %28 : vector<8x8x16xbf16> to vector<8x1x8x16xbf16>
    tpu.vector_store %arg4[%c1_22, %c0_23, %c1_24, %c0_25], %31 {strides = array<i32>} : memref<9x2x9x32xbf16, #tpu.memory_space<vmem>>, vector<8x1x8x16xbf16>,
    return
  }
  func.func @transform_0(%arg0: i32) -> (i32, i32, i32, i32) {
    %c0_i32 = arith.constant 0 : i32
    %c0_i32_0 = arith.constant 0 : i32
    %c0_i32_1 = arith.constant 0 : i32
    %c0_i32_2 = arith.constant 0 : i32
    return %arg0, %c0_i32, %c0_i32_0, %c0_i32_1 : i32, i32, i32, i32
  }
  func.func @transform_1(%arg0: i32) -> (i32, i32) {
    %c0_i32 = arith.constant 0 : i32
    %c0_i32_0 = arith.constant 0 : i32
    %c0_i32_1 = arith.constant 0 : i32
    return %c0_i32, %c0_i32_0 : i32, i32
  }
  func.func @transform_2(%arg0: i32) -> (i32, i32) {
    %c0_i32 = arith.constant 0 : i32
    %c0_i32_0 = arith.constant 0 : i32
    %c0_i32_1 = arith.constant 0 : i32
    return %c0_i32, %c0_i32_0 : i32, i32
  }
  func.func @transform_3(%arg0: i32) -> (i32, i32, i32, i32) {
    %c0_i32 = arith.constant 0 : i32
    %c0_i32_0 = arith.constant 0 : i32
    %c0_i32_1 = arith.constant 0 : i32
    %c0_i32_2 = arith.constant 0 : i32
    return %arg0, %c0_i32, %c0_i32_0, %c0_i32_1 : i32, i32, i32, i32
  }
}

module attributes {stable_mosaic.version = 11 : i64} {
  func.func @_bn_relu_shuffle_kernel(%arg0: i32, %arg1: memref<1x16x16x128xbf16, #tpu.memory_space<vmem>>, %arg2: memref<1x128xf32, #tpu.memory_space<vmem>>, %arg3: memref<1x128xf32, #tpu.memory_space<vmem>>, %arg4: memref<17x2x17x16xbf16, #tpu.memory_space<vmem>>) attributes {dimension_semantics = [#tpu.dimension_semantics<parallel>], iteration_bounds = array<i64: 2>, scalar_prefetch = 0 : i64, scratch_operands = 0 : i64, tpu.core_type = #tpu.core_type<tc>, window_params = [{transform_indices = @transform_0, window_bounds = array<i64: 1, 16, 16, 128>}, {pipeline_mode = #tpu.pipeline_mode<synchronous>, transform_indices = @transform_1, window_bounds = array<i64: 1, 128>}, {pipeline_mode = #tpu.pipeline_mode<synchronous>, transform_indices = @transform_2, window_bounds = array<i64: 1, 128>}, {transform_indices = @transform_3, window_bounds = array<i64: 17, 2, 17, 16>}]} {
    %c0 = arith.constant 0 : index
    %c0_0 = arith.constant 0 : index
    %c0_1 = arith.constant 0 : index
    %c0_2 = arith.constant 0 : index
    %0 = vector.load %arg1[%c0, %c0_0, %c0_1, %c0_2] : memref<1x16x16x128xbf16, #tpu.memory_space<vmem>>, vector<1x16x16x128xbf16>
    %1 = vector.shape_cast %0 : vector<1x16x16x128xbf16> to vector<16x16x128xbf16>
    %2 = arith.extf %1 : vector<16x16x128xbf16> to vector<16x16x128xf32>
    %c0_3 = arith.constant 0 : index
    %c0_4 = arith.constant 0 : index
    %3 = vector.load %arg2[%c0_3, %c0_4] : memref<1x128xf32, #tpu.memory_space<vmem>>, vector<1x128xf32>
    %4 = vector.shape_cast %3 : vector<1x128xf32> to vector<1x1x128xf32>
    %5 = vector.broadcast %4 : vector<1x1x128xf32> to vector<16x16x128xf32>
    %6 = arith.mulf %2, %5 : vector<16x16x128xf32>
    %c0_5 = arith.constant 0 : index
    %c0_6 = arith.constant 0 : index
    %7 = vector.load %arg3[%c0_5, %c0_6] : memref<1x128xf32, #tpu.memory_space<vmem>>, vector<1x128xf32>
    %8 = vector.shape_cast %7 : vector<1x128xf32> to vector<1x1x128xf32>
    %9 = vector.broadcast %8 : vector<1x1x128xf32> to vector<16x16x128xf32>
    %10 = arith.addf %6, %9 : vector<16x16x128xf32>
    %cst = arith.constant 0.000000e+00 : f32
    %11 = vector.broadcast %cst : f32 to vector<16x16x128xf32>
    %12 = arith.maximumf %10, %11 : vector<16x16x128xf32>
    %13 = arith.truncf %12 : vector<16x16x128xf32> to vector<16x16x128xbf16>
    %cst_7 = arith.constant 0.000000e+00 : bf16
    %14 = vector.broadcast %cst_7 : bf16 to vector<17x2x17x16xbf16>
    %c0_8 = arith.constant 0 : index
    %c0_9 = arith.constant 0 : index
    %c0_10 = arith.constant 0 : index
    %c0_11 = arith.constant 0 : index
    %15 = vector.load %arg4[%c0_8, %c0_9, %c0_10, %c0_11] : memref<17x2x17x16xbf16, #tpu.memory_space<vmem>>, vector<17x2x17x16xbf16>
    tpu.vector_store %arg4[%c0_8, %c0_9, %c0_10, %c0_11], %14 {strides = array<i32>} : memref<17x2x17x16xbf16, #tpu.memory_space<vmem>>, vector<17x2x17x16xbf16>,
    %16 = vector.extract_strided_slice %13 {offsets = [0, 0, 0], sizes = [16, 16, 8], strides = [1, 1, 1]} : vector<16x16x128xbf16> to vector<16x16x8xbf16>
    %c0_12 = arith.constant 0 : index
    %c1 = arith.constant 1 : index
    %c0_13 = arith.constant 0 : index
    %c8 = arith.constant 8 : index
    %17 = vector.load %arg4[%c0_12, %c1, %c0_13, %c8] : memref<17x2x17x16xbf16, #tpu.memory_space<vmem>>, vector<16x1x16x8xbf16>
    %18 = vector.shape_cast %17 : vector<16x1x16x8xbf16> to vector<16x16x8xbf16>
    %19 = vector.shape_cast %16 : vector<16x16x8xbf16> to vector<16x1x16x8xbf16>
    tpu.vector_store %arg4[%c0_12, %c1, %c0_13, %c8], %19 {strides = array<i32>} : memref<17x2x17x16xbf16, #tpu.memory_space<vmem>>, vector<16x1x16x8xbf16>,
    %20 = vector.extract_strided_slice %13 {offsets = [0, 0, 8], sizes = [16, 16, 8], strides = [1, 1, 1]} : vector<16x16x128xbf16> to vector<16x16x8xbf16>
    %c0_14 = arith.constant 0 : index
    %c1_15 = arith.constant 1 : index
    %c1_16 = arith.constant 1 : index
    %c0_17 = arith.constant 0 : index
    %21 = vector.load %arg4[%c0_14, %c1_15, %c1_16, %c0_17] : memref<17x2x17x16xbf16, #tpu.memory_space<vmem>>, vector<16x1x16x8xbf16>
    %22 = vector.shape_cast %21 : vector<16x1x16x8xbf16> to vector<16x16x8xbf16>
    %23 = vector.shape_cast %20 : vector<16x16x8xbf16> to vector<16x1x16x8xbf16>
    tpu.vector_store %arg4[%c0_14, %c1_15, %c1_16, %c0_17], %23 {strides = array<i32>} : memref<17x2x17x16xbf16, #tpu.memory_space<vmem>>, vector<16x1x16x8xbf16>,
    %24 = vector.extract_strided_slice %13 {offsets = [0, 0, 16], sizes = [16, 16, 8], strides = [1, 1, 1]} : vector<16x16x128xbf16> to vector<16x16x8xbf16>
    %c1_18 = arith.constant 1 : index
    %c0_19 = arith.constant 0 : index
    %c0_20 = arith.constant 0 : index
    %c8_21 = arith.constant 8 : index
    %25 = vector.load %arg4[%c1_18, %c0_19, %c0_20, %c8_21] : memref<17x2x17x16xbf16, #tpu.memory_space<vmem>>, vector<16x1x16x8xbf16>
    %26 = vector.shape_cast %25 : vector<16x1x16x8xbf16> to vector<16x16x8xbf16>
    %27 = vector.shape_cast %24 : vector<16x16x8xbf16> to vector<16x1x16x8xbf16>
    tpu.vector_store %arg4[%c1_18, %c0_19, %c0_20, %c8_21], %27 {strides = array<i32>} : memref<17x2x17x16xbf16, #tpu.memory_space<vmem>>, vector<16x1x16x8xbf16>,
    %28 = vector.extract_strided_slice %13 {offsets = [0, 0, 24], sizes = [16, 16, 8], strides = [1, 1, 1]} : vector<16x16x128xbf16> to vector<16x16x8xbf16>
    %c1_22 = arith.constant 1 : index
    %c0_23 = arith.constant 0 : index
    %c1_24 = arith.constant 1 : index
    %c0_25 = arith.constant 0 : index
    %29 = vector.load %arg4[%c1_22, %c0_23, %c1_24, %c0_25] : memref<17x2x17x16xbf16, #tpu.memory_space<vmem>>, vector<16x1x16x8xbf16>
    %30 = vector.shape_cast %29 : vector<16x1x16x8xbf16> to vector<16x16x8xbf16>
    %31 = vector.shape_cast %28 : vector<16x16x8xbf16> to vector<16x1x16x8xbf16>
    tpu.vector_store %arg4[%c1_22, %c0_23, %c1_24, %c0_25], %31 {strides = array<i32>} : memref<17x2x17x16xbf16, #tpu.memory_space<vmem>>, vector<16x1x16x8xbf16>,
    return
  }
  func.func @transform_0(%arg0: i32) -> (i32, i32, i32, i32) {
    %c0_i32 = arith.constant 0 : i32
    %c0_i32_0 = arith.constant 0 : i32
    %c0_i32_1 = arith.constant 0 : i32
    %c0_i32_2 = arith.constant 0 : i32
    return %arg0, %c0_i32, %c0_i32_0, %c0_i32_1 : i32, i32, i32, i32
  }
  func.func @transform_1(%arg0: i32) -> (i32, i32) {
    %c0_i32 = arith.constant 0 : i32
    %c0_i32_0 = arith.constant 0 : i32
    %c0_i32_1 = arith.constant 0 : i32
    return %c0_i32, %c0_i32_0 : i32, i32
  }
  func.func @transform_2(%arg0: i32) -> (i32, i32) {
    %c0_i32 = arith.constant 0 : i32
    %c0_i32_0 = arith.constant 0 : i32
    %c0_i32_1 = arith.constant 0 : i32
    return %c0_i32, %c0_i32_0 : i32, i32
  }
  func.func @transform_3(%arg0: i32) -> (i32, i32, i32, i32) {
    %c0_i32 = arith.constant 0 : i32
    %c0_i32_0 = arith.constant 0 : i32
    %c0_i32_1 = arith.constant 0 : i32
    %c0_i32_2 = arith.constant 0 : i32
    return %arg0, %c0_i32, %c0_i32_0, %c0_i32_1 : i32, i32, i32, i32
  }
}

module attributes {stable_mosaic.version = 11 : i64} {
  func.func @_conv_stats_kernel(%arg0: i32, %arg1: memref<1x18x18x16xbf16, #tpu.memory_space<vmem>>, %arg2: memref<144x128xbf16, #tpu.memory_space<vmem>>, %arg3: memref<1x16x16x128xbf16, #tpu.memory_space<vmem>>, %arg4: memref<1x2x128xf32, #tpu.memory_space<vmem>>) attributes {dimension_semantics = [#tpu.dimension_semantics<parallel>], iteration_bounds = array<i64: 2>, scalar_prefetch = 0 : i64, scratch_operands = 0 : i64, tpu.core_type = #tpu.core_type<tc>, window_params = [{transform_indices = @transform_0, window_bounds = array<i64: 1, 18, 18, 16>}, {pipeline_mode = #tpu.pipeline_mode<synchronous>, transform_indices = @transform_1, window_bounds = array<i64: 144, 128>}, {transform_indices = @transform_2, window_bounds = array<i64: 1, 16, 16, 128>}, {transform_indices = @transform_3, window_bounds = array<i64: 1, 2, 128>}]} {
    %c0 = arith.constant 0 : index
    %c0_0 = arith.constant 0 : index
    %0 = vector.load %arg2[%c0, %c0_0] : memref<144x128xbf16, #tpu.memory_space<vmem>>, vector<144x128xbf16>
    %cst = arith.constant 0.000000e+00 : f32
    %1 = vector.broadcast %cst : f32 to vector<1x128xf32>
    %c0_i32 = arith.constant 0 : i32
    %c16_i32 = arith.constant 16 : i32
    %2 = arith.addi %c0_i32, %c16_i32 : i32
    %c1_i32 = arith.constant 1 : i32
    %3:2 = scf.for %arg5 = %c0_i32 to %2 step %c1_i32 iter_args(%arg6 = %1, %arg7 = %1) -> (vector<1x128xf32>, vector<1x128xf32>)  : i32 {
      %c0_i32_5 = arith.constant 0 : i32
      %8 = arith.addi %arg5, %c0_i32_5 : i32
      %c0_6 = arith.constant 0 : index
      %9 = arith.index_cast %8 : i32 to index
      %c0_7 = arith.constant 0 : index
      %c0_8 = arith.constant 0 : index
      %10 = vector.load %arg1[%c0_6, %9, %c0_7, %c0_8] : memref<1x18x18x16xbf16, #tpu.memory_space<vmem>>, vector<1x1x16x16xbf16>
      %11 = vector.shape_cast %10 : vector<1x1x16x16xbf16> to vector<16x16xbf16>
      %c0_i32_9 = arith.constant 0 : i32
      %12 = arith.addi %arg5, %c0_i32_9 : i32
      %c0_10 = arith.constant 0 : index
      %13 = arith.index_cast %12 : i32 to index
      %c1 = arith.constant 1 : index
      %c0_11 = arith.constant 0 : index
      %14 = vector.load %arg1[%c0_10, %13, %c1, %c0_11] : memref<1x18x18x16xbf16, #tpu.memory_space<vmem>>, vector<1x1x16x16xbf16>
      %15 = vector.shape_cast %14 : vector<1x1x16x16xbf16> to vector<16x16xbf16>
      %c0_i32_12 = arith.constant 0 : i32
      %16 = arith.addi %arg5, %c0_i32_12 : i32
      %c0_13 = arith.constant 0 : index
      %17 = arith.index_cast %16 : i32 to index
      %c2 = arith.constant 2 : index
      %c0_14 = arith.constant 0 : index
      %18 = vector.load %arg1[%c0_13, %17, %c2, %c0_14] : memref<1x18x18x16xbf16, #tpu.memory_space<vmem>>, vector<1x1x16x16xbf16>
      %19 = vector.shape_cast %18 : vector<1x1x16x16xbf16> to vector<16x16xbf16>
      %c1_i32_15 = arith.constant 1 : i32
      %20 = arith.addi %arg5, %c1_i32_15 : i32
      %c0_16 = arith.constant 0 : index
      %21 = arith.index_cast %20 : i32 to index
      %c0_17 = arith.constant 0 : index
      %c0_18 = arith.constant 0 : index
      %22 = vector.load %arg1[%c0_16, %21, %c0_17, %c0_18] : memref<1x18x18x16xbf16, #tpu.memory_space<vmem>>, vector<1x1x16x16xbf16>
      %23 = vector.shape_cast %22 : vector<1x1x16x16xbf16> to vector<16x16xbf16>
      %c1_i32_19 = arith.constant 1 : i32
      %24 = arith.addi %arg5, %c1_i32_19 : i32
      %c0_20 = arith.constant 0 : index
      %25 = arith.index_cast %24 : i32 to index
      %c1_21 = arith.constant 1 : index
      %c0_22 = arith.constant 0 : index
      %26 = vector.load %arg1[%c0_20, %25, %c1_21, %c0_22] : memref<1x18x18x16xbf16, #tpu.memory_space<vmem>>, vector<1x1x16x16xbf16>
      %27 = vector.shape_cast %26 : vector<1x1x16x16xbf16> to vector<16x16xbf16>
      %c1_i32_23 = arith.constant 1 : i32
      %28 = arith.addi %arg5, %c1_i32_23 : i32
      %c0_24 = arith.constant 0 : index
      %29 = arith.index_cast %28 : i32 to index
      %c2_25 = arith.constant 2 : index
      %c0_26 = arith.constant 0 : index
      %30 = vector.load %arg1[%c0_24, %29, %c2_25, %c0_26] : memref<1x18x18x16xbf16, #tpu.memory_space<vmem>>, vector<1x1x16x16xbf16>
      %31 = vector.shape_cast %30 : vector<1x1x16x16xbf16> to vector<16x16xbf16>
      %c2_i32 = arith.constant 2 : i32
      %32 = arith.addi %arg5, %c2_i32 : i32
      %c0_27 = arith.constant 0 : index
      %33 = arith.index_cast %32 : i32 to index
      %c0_28 = arith.constant 0 : index
      %c0_29 = arith.constant 0 : index
      %34 = vector.load %arg1[%c0_27, %33, %c0_28, %c0_29] : memref<1x18x18x16xbf16, #tpu.memory_space<vmem>>, vector<1x1x16x16xbf16>
      %35 = vector.shape_cast %34 : vector<1x1x16x16xbf16> to vector<16x16xbf16>
      %c2_i32_30 = arith.constant 2 : i32
      %36 = arith.addi %arg5, %c2_i32_30 : i32
      %c0_31 = arith.constant 0 : index
      %37 = arith.index_cast %36 : i32 to index
      %c1_32 = arith.constant 1 : index
      %c0_33 = arith.constant 0 : index
      %38 = vector.load %arg1[%c0_31, %37, %c1_32, %c0_33] : memref<1x18x18x16xbf16, #tpu.memory_space<vmem>>, vector<1x1x16x16xbf16>
      %39 = vector.shape_cast %38 : vector<1x1x16x16xbf16> to vector<16x16xbf16>
      %c2_i32_34 = arith.constant 2 : i32
      %40 = arith.addi %arg5, %c2_i32_34 : i32
      %c0_35 = arith.constant 0 : index
      %41 = arith.index_cast %40 : i32 to index
      %c2_36 = arith.constant 2 : index
      %c0_37 = arith.constant 0 : index
      %42 = vector.load %arg1[%c0_35, %41, %c2_36, %c0_37] : memref<1x18x18x16xbf16, #tpu.memory_space<vmem>>, vector<1x1x16x16xbf16>
      %43 = vector.shape_cast %42 : vector<1x1x16x16xbf16> to vector<16x16xbf16>
      %44 = tpu.concatenate %11, %15, %19, %23, %27, %31, %35, %39, %43 in 1 : vector<16x16xbf16>, vector<16x16xbf16>, vector<16x16xbf16>, vector<16x16xbf16>, vector<16x16xbf16>, vector<16x16xbf16>, vector<16x16xbf16>, vector<16x16xbf16>, vector<16x16xbf16> -> vector<16x144xbf16>
      %cst_38 = arith.constant dense<0.000000e+00> : vector<16x128xf32>
      %45 = tpu.matmul %44, %0, %cst_38 {dimension_numbers = #tpu.dot_dimension_numbers<[1], [0], [0], [1], [0, 0, 1, 1], [], []>} : vector<16x144xbf16>, vector<144x128xbf16>, vector<16x128xf32> -> vector<16x128xf32>
      %46 = arith.truncf %45 : vector<16x128xf32> to vector<16x128xbf16>
      %c0_39 = arith.constant 0 : index
      %47 = arith.index_cast %arg5 : i32 to index
      %c0_40 = arith.constant 0 : index
      %c0_41 = arith.constant 0 : index
      %48 = vector.load %arg3[%c0_39, %47, %c0_40, %c0_41] : memref<1x16x16x128xbf16, #tpu.memory_space<vmem>>, vector<1x1x16x128xbf16>
      %49 = vector.shape_cast %48 : vector<1x1x16x128xbf16> to vector<16x128xbf16>
      %50 = vector.shape_cast %46 : vector<16x128xbf16> to vector<1x1x16x128xbf16>
      tpu.vector_store %arg3[%c0_39, %47, %c0_40, %c0_41], %50 {strides = array<i32>} : memref<1x16x16x128xbf16, #tpu.memory_space<vmem>>, vector<1x1x16x128xbf16>,
      %cst_42 = arith.constant dense<0.000000e+00> : vector<128xf32>
      %51 = vector.multi_reduction <add>, %45, %cst_42 [0] : vector<16x128xf32> to vector<128xf32>
      %52 = vector.shape_cast %51 : vector<128xf32> to vector<1x128xf32>
      %53 = arith.addf %arg6, %52 : vector<1x128xf32>
      %54 = arith.mulf %45, %45 : vector<16x128xf32>
      %cst_43 = arith.constant dense<0.000000e+00> : vector<128xf32>
      %55 = vector.multi_reduction <add>, %54, %cst_43 [0] : vector<16x128xf32> to vector<128xf32>
      %56 = vector.shape_cast %55 : vector<128xf32> to vector<1x128xf32>
      %57 = arith.addf %arg7, %56 : vector<1x128xf32>
      scf.yield %53, %57 : vector<1x128xf32>, vector<1x128xf32>
    }
    %c16_i32_1 = arith.constant 16 : i32
    %4 = tpu.concatenate %3#0, %3#1 in 0 : vector<1x128xf32>, vector<1x128xf32> -> vector<2x128xf32>
    %c0_2 = arith.constant 0 : index
    %c0_3 = arith.constant 0 : index
    %c0_4 = arith.constant 0 : index
    %5 = vector.load %arg4[%c0_2, %c0_3, %c0_4] : memref<1x2x128xf32, #tpu.memory_space<vmem>>, vector<1x2x128xf32>
    %6 = vector.shape_cast %5 : vector<1x2x128xf32> to vector<2x128xf32>
    %7 = vector.shape_cast %4 : vector<2x128xf32> to vector<1x2x128xf32>
    tpu.vector_store %arg4[%c0_2, %c0_3, %c0_4], %7 {strides = array<i32>} : memref<1x2x128xf32, #tpu.memory_space<vmem>>, vector<1x2x128xf32>,
    return
  }
  func.func @transform_0(%arg0: i32) -> (i32, i32, i32, i32) {
    %c0_i32 = arith.constant 0 : i32
    %c0_i32_0 = arith.constant 0 : i32
    %c0_i32_1 = arith.constant 0 : i32
    %c0_i32_2 = arith.constant 0 : i32
    return %arg0, %c0_i32, %c0_i32_0, %c0_i32_1 : i32, i32, i32, i32
  }
  func.func @transform_1(%arg0: i32) -> (i32, i32) {
    %c0_i32 = arith.constant 0 : i32
    %c0_i32_0 = arith.constant 0 : i32
    %c0_i32_1 = arith.constant 0 : i32
    return %c0_i32, %c0_i32_0 : i32, i32
  }
  func.func @transform_2(%arg0: i32) -> (i32, i32, i32, i32) {
    %c0_i32 = arith.constant 0 : i32
    %c0_i32_0 = arith.constant 0 : i32
    %c0_i32_1 = arith.constant 0 : i32
    %c0_i32_2 = arith.constant 0 : i32
    return %arg0, %c0_i32, %c0_i32_0, %c0_i32_1 : i32, i32, i32, i32
  }
  func.func @transform_3(%arg0: i32) -> (i32, i32, i32) {
    %c0_i32 = arith.constant 0 : i32
    %c0_i32_0 = arith.constant 0 : i32
    %c0_i32_1 = arith.constant 0 : i32
    return %arg0, %c0_i32, %c0_i32_0 : i32, i32, i32
  }
}

module attributes {stable_mosaic.version = 11 : i64} {
  func.func @_conv_tanh_shuffle_kernel(%arg0: i32, %arg1: memref<1x34x34x8xbf16, #tpu.memory_space<vmem>>, %arg2: memref<72x128xbf16, #tpu.memory_space<vmem>>, %arg3: memref<32x2x32x6xbf16, #tpu.memory_space<vmem>>) attributes {dimension_semantics = [#tpu.dimension_semantics<parallel>], iteration_bounds = array<i64: 2>, scalar_prefetch = 0 : i64, scratch_operands = 0 : i64, tpu.core_type = #tpu.core_type<tc>, window_params = [{transform_indices = @transform_0, window_bounds = array<i64: 1, 34, 34, 8>}, {pipeline_mode = #tpu.pipeline_mode<synchronous>, transform_indices = @transform_1, window_bounds = array<i64: 72, 128>}, {transform_indices = @transform_2, window_bounds = array<i64: 32, 2, 32, 6>}]} {
    %c0 = arith.constant 0 : index
    %c0_0 = arith.constant 0 : index
    %0 = vector.load %arg2[%c0, %c0_0] : memref<72x128xbf16, #tpu.memory_space<vmem>>, vector<72x128xbf16>
    %c0_i32 = arith.constant 0 : i32
    %c32_i32 = arith.constant 32 : i32
    %1 = arith.addi %c0_i32, %c32_i32 : i32
    %c1_i32 = arith.constant 1 : i32
    scf.for %arg4 = %c0_i32 to %1 step %c1_i32  : i32 {
      %c0_i32_2 = arith.constant 0 : i32
      %2 = arith.addi %arg4, %c0_i32_2 : i32
      %c0_3 = arith.constant 0 : index
      %3 = arith.index_cast %2 : i32 to index
      %c0_4 = arith.constant 0 : index
      %c0_5 = arith.constant 0 : index
      %4 = vector.load %arg1[%c0_3, %3, %c0_4, %c0_5] : memref<1x34x34x8xbf16, #tpu.memory_space<vmem>>, vector<1x1x32x8xbf16>
      %5 = vector.shape_cast %4 : vector<1x1x32x8xbf16> to vector<32x8xbf16>
      %c0_i32_6 = arith.constant 0 : i32
      %6 = arith.addi %arg4, %c0_i32_6 : i32
      %c0_7 = arith.constant 0 : index
      %7 = arith.index_cast %6 : i32 to index
      %c1 = arith.constant 1 : index
      %c0_8 = arith.constant 0 : index
      %8 = vector.load %arg1[%c0_7, %7, %c1, %c0_8] : memref<1x34x34x8xbf16, #tpu.memory_space<vmem>>, vector<1x1x32x8xbf16>
      %9 = vector.shape_cast %8 : vector<1x1x32x8xbf16> to vector<32x8xbf16>
      %c0_i32_9 = arith.constant 0 : i32
      %10 = arith.addi %arg4, %c0_i32_9 : i32
      %c0_10 = arith.constant 0 : index
      %11 = arith.index_cast %10 : i32 to index
      %c2 = arith.constant 2 : index
      %c0_11 = arith.constant 0 : index
      %12 = vector.load %arg1[%c0_10, %11, %c2, %c0_11] : memref<1x34x34x8xbf16, #tpu.memory_space<vmem>>, vector<1x1x32x8xbf16>
      %13 = vector.shape_cast %12 : vector<1x1x32x8xbf16> to vector<32x8xbf16>
      %c1_i32_12 = arith.constant 1 : i32
      %14 = arith.addi %arg4, %c1_i32_12 : i32
      %c0_13 = arith.constant 0 : index
      %15 = arith.index_cast %14 : i32 to index
      %c0_14 = arith.constant 0 : index
      %c0_15 = arith.constant 0 : index
      %16 = vector.load %arg1[%c0_13, %15, %c0_14, %c0_15] : memref<1x34x34x8xbf16, #tpu.memory_space<vmem>>, vector<1x1x32x8xbf16>
      %17 = vector.shape_cast %16 : vector<1x1x32x8xbf16> to vector<32x8xbf16>
      %c1_i32_16 = arith.constant 1 : i32
      %18 = arith.addi %arg4, %c1_i32_16 : i32
      %c0_17 = arith.constant 0 : index
      %19 = arith.index_cast %18 : i32 to index
      %c1_18 = arith.constant 1 : index
      %c0_19 = arith.constant 0 : index
      %20 = vector.load %arg1[%c0_17, %19, %c1_18, %c0_19] : memref<1x34x34x8xbf16, #tpu.memory_space<vmem>>, vector<1x1x32x8xbf16>
      %21 = vector.shape_cast %20 : vector<1x1x32x8xbf16> to vector<32x8xbf16>
      %c1_i32_20 = arith.constant 1 : i32
      %22 = arith.addi %arg4, %c1_i32_20 : i32
      %c0_21 = arith.constant 0 : index
      %23 = arith.index_cast %22 : i32 to index
      %c2_22 = arith.constant 2 : index
      %c0_23 = arith.constant 0 : index
      %24 = vector.load %arg1[%c0_21, %23, %c2_22, %c0_23] : memref<1x34x34x8xbf16, #tpu.memory_space<vmem>>, vector<1x1x32x8xbf16>
      %25 = vector.shape_cast %24 : vector<1x1x32x8xbf16> to vector<32x8xbf16>
      %c2_i32 = arith.constant 2 : i32
      %26 = arith.addi %arg4, %c2_i32 : i32
      %c0_24 = arith.constant 0 : index
      %27 = arith.index_cast %26 : i32 to index
      %c0_25 = arith.constant 0 : index
      %c0_26 = arith.constant 0 : index
      %28 = vector.load %arg1[%c0_24, %27, %c0_25, %c0_26] : memref<1x34x34x8xbf16, #tpu.memory_space<vmem>>, vector<1x1x32x8xbf16>
      %29 = vector.shape_cast %28 : vector<1x1x32x8xbf16> to vector<32x8xbf16>
      %c2_i32_27 = arith.constant 2 : i32
      %30 = arith.addi %arg4, %c2_i32_27 : i32
      %c0_28 = arith.constant 0 : index
      %31 = arith.index_cast %30 : i32 to index
      %c1_29 = arith.constant 1 : index
      %c0_30 = arith.constant 0 : index
      %32 = vector.load %arg1[%c0_28, %31, %c1_29, %c0_30] : memref<1x34x34x8xbf16, #tpu.memory_space<vmem>>, vector<1x1x32x8xbf16>
      %33 = vector.shape_cast %32 : vector<1x1x32x8xbf16> to vector<32x8xbf16>
      %c2_i32_31 = arith.constant 2 : i32
      %34 = arith.addi %arg4, %c2_i32_31 : i32
      %c0_32 = arith.constant 0 : index
      %35 = arith.index_cast %34 : i32 to index
      %c2_33 = arith.constant 2 : index
      %c0_34 = arith.constant 0 : index
      %36 = vector.load %arg1[%c0_32, %35, %c2_33, %c0_34] : memref<1x34x34x8xbf16, #tpu.memory_space<vmem>>, vector<1x1x32x8xbf16>
      %37 = vector.shape_cast %36 : vector<1x1x32x8xbf16> to vector<32x8xbf16>
      %38 = tpu.concatenate %5, %9, %13, %17, %21, %25, %29, %33, %37 in 1 : vector<32x8xbf16>, vector<32x8xbf16>, vector<32x8xbf16>, vector<32x8xbf16>, vector<32x8xbf16>, vector<32x8xbf16>, vector<32x8xbf16>, vector<32x8xbf16>, vector<32x8xbf16> -> vector<32x72xbf16>
      %cst = arith.constant dense<0.000000e+00> : vector<32x128xf32>
      %39 = tpu.matmul %38, %0, %cst {dimension_numbers = #tpu.dot_dimension_numbers<[1], [0], [0], [1], [0, 0, 1, 1], [], []>} : vector<32x72xbf16>, vector<72x128xbf16>, vector<32x128xf32> -> vector<32x128xf32>
      %40 = math.tanh %39 : vector<32x128xf32>
      %41 = arith.truncf %40 : vector<32x128xf32> to vector<32x128xbf16>
      %42 = vector.extract_strided_slice %41 {offsets = [0, 0], sizes = [32, 3], strides = [1, 1]} : vector<32x128xbf16> to vector<32x3xbf16>
      %43 = arith.index_cast %arg4 : i32 to index
      %c0_35 = arith.constant 0 : index
      %c0_36 = arith.constant 0 : index
      %c0_37 = arith.constant 0 : index
      %44 = vector.load %arg3[%43, %c0_35, %c0_36, %c0_37] : memref<32x2x32x6xbf16, #tpu.memory_space<vmem>>, vector<1x1x32x3xbf16>
      %45 = vector.shape_cast %44 : vector<1x1x32x3xbf16> to vector<32x3xbf16>
      %46 = vector.shape_cast %42 : vector<32x3xbf16> to vector<1x1x32x3xbf16>
      tpu.vector_store %arg3[%43, %c0_35, %c0_36, %c0_37], %46 {strides = array<i32>} : memref<32x2x32x6xbf16, #tpu.memory_space<vmem>>, vector<1x1x32x3xbf16>,
      %47 = vector.extract_strided_slice %41 {offsets = [0, 3], sizes = [32, 3], strides = [1, 1]} : vector<32x128xbf16> to vector<32x3xbf16>
      %48 = arith.index_cast %arg4 : i32 to index
      %c0_38 = arith.constant 0 : index
      %c0_39 = arith.constant 0 : index
      %c3 = arith.constant 3 : index
      %49 = vector.load %arg3[%48, %c0_38, %c0_39, %c3] : memref<32x2x32x6xbf16, #tpu.memory_space<vmem>>, vector<1x1x32x3xbf16>
      %50 = vector.shape_cast %49 : vector<1x1x32x3xbf16> to vector<32x3xbf16>
      %51 = vector.shape_cast %47 : vector<32x3xbf16> to vector<1x1x32x3xbf16>
      tpu.vector_store %arg3[%48, %c0_38, %c0_39, %c3], %51 {strides = array<i32>} : memref<32x2x32x6xbf16, #tpu.memory_space<vmem>>, vector<1x1x32x3xbf16>,
      %52 = vector.extract_strided_slice %41 {offsets = [0, 6], sizes = [32, 3], strides = [1, 1]} : vector<32x128xbf16> to vector<32x3xbf16>
      %53 = arith.index_cast %arg4 : i32 to index
      %c1_40 = arith.constant 1 : index
      %c0_41 = arith.constant 0 : index
      %c0_42 = arith.constant 0 : index
      %54 = vector.load %arg3[%53, %c1_40, %c0_41, %c0_42] : memref<32x2x32x6xbf16, #tpu.memory_space<vmem>>, vector<1x1x32x3xbf16>
      %55 = vector.shape_cast %54 : vector<1x1x32x3xbf16> to vector<32x3xbf16>
      %56 = vector.shape_cast %52 : vector<32x3xbf16> to vector<1x1x32x3xbf16>
      tpu.vector_store %arg3[%53, %c1_40, %c0_41, %c0_42], %56 {strides = array<i32>} : memref<32x2x32x6xbf16, #tpu.memory_space<vmem>>, vector<1x1x32x3xbf16>,
      %57 = vector.extract_strided_slice %41 {offsets = [0, 9], sizes = [32, 3], strides = [1, 1]} : vector<32x128xbf16> to vector<32x3xbf16>
      %58 = arith.index_cast %arg4 : i32 to index
      %c1_43 = arith.constant 1 : index
      %c0_44 = arith.constant 0 : index
      %c3_45 = arith.constant 3 : index
      %59 = vector.load %arg3[%58, %c1_43, %c0_44, %c3_45] : memref<32x2x32x6xbf16, #tpu.memory_space<vmem>>, vector<1x1x32x3xbf16>
      %60 = vector.shape_cast %59 : vector<1x1x32x3xbf16> to vector<32x3xbf16>
      %61 = vector.shape_cast %57 : vector<32x3xbf16> to vector<1x1x32x3xbf16>
      tpu.vector_store %arg3[%58, %c1_43, %c0_44, %c3_45], %61 {strides = array<i32>} : memref<32x2x32x6xbf16, #tpu.memory_space<vmem>>, vector<1x1x32x3xbf16>,
    }
    %c32_i32_1 = arith.constant 32 : i32
    return
  }
  func.func @transform_0(%arg0: i32) -> (i32, i32, i32, i32) {
    %c0_i32 = arith.constant 0 : i32
    %c0_i32_0 = arith.constant 0 : i32
    %c0_i32_1 = arith.constant 0 : i32
    %c0_i32_2 = arith.constant 0 : i32
    return %arg0, %c0_i32, %c0_i32_0, %c0_i32_1 : i32, i32, i32, i32
  }
  func.func @transform_1(%arg0: i32) -> (i32, i32) {
    %c0_i32 = arith.constant 0 : i32
    %c0_i32_0 = arith.constant 0 : i32
    %c0_i32_1 = arith.constant 0 : i32
    return %c0_i32, %c0_i32_0 : i32, i32
  }
  func.func @transform_2(%arg0: i32) -> (i32, i32, i32, i32) {
    %c0_i32 = arith.constant 0 : i32
    %c0_i32_0 = arith.constant 0 : i32
    %c0_i32_1 = arith.constant 0 : i32
    %c0_i32_2 = arith.constant 0 : i32
    return %arg0, %c0_i32, %c0_i32_0, %c0_i32_1 : i32, i32, i32, i32
  }
}

</mosaic_0001>

<llo_original>
// kernel: squeeze.6
$region0: #{squeeze.6}
  %s0 = inlined_call_operand.vmem [shape: f32[128], index: 0, kind: input, shape index: {}]
  %s1 = inlined_call_operand.vmem [shape: f32[4,32], index: 1, kind: output, shape index: {}]
  $region1: #{squeeze.6} parent=0
    #allocation0 [shape = 'u8[4096]{0}', space=vmem, size = 0x1000, scoped, tag = 'scoped mem for output reshape']
    #allocation1 [shape = 'u8[4096]{0}', space=vmem, size = 0x1000, scoped, tag = 'scoped mem for input reshape']
    %s3 = sshll.u32 1, 1
    %s4 = ssub.s32 %s3, 1
    %v5 = vld [vmem:[%s0] sm:%s4]
    %6 = vst [vmem:[#allocation1] sm:%s4] %v5
    %v7 = vld [vmem:[#allocation1] sm:$0x1]
    %vm8 = vcmask 261120
    %9 = vst.msk [vmem:[#allocation0] sm:$0x1] %vm8, %v7
    %v10 = vld [vmem:[#allocation1] sm:$0x1]
    %11 = vrot.lane.b32.xlu0 %v10, 96
    %v12 = vpop.permute.xlu0 %11
    %vm13 = vcmask 261120
    %s14 = scalar_lea.vmem [#allocation0], 1
    %15 = vst.msk [vmem:[%s14] sm:$0x1] %vm13, %v12
    %v16 = vld [vmem:[#allocation1] sm:$0x1]
    %17 = vrot.lane.b32.xlu0 %v16, 64
    %v18 = vpop.permute.xlu0 %17
    %vm19 = vcmask 261120
    %s20 = scalar_lea.vmem [#allocation0], 2
    %21 = vst.msk [vmem:[%s20] sm:$0x1] %vm19, %v18
    %v22 = vld [vmem:[#allocation1] sm:$0x1]
    %23 = vrot.lane.b32.xlu0 %v22, 32
    %v24 = vpop.permute.xlu0 %23
    %vm25 = vcmask 261120
    %s26 = scalar_lea.vmem [#allocation0], 3
    %27 = vst.msk [vmem:[%s26] sm:$0x1] %vm25, %v24
    %s29 = sshll.u32 1, 4
    %s30 = ssub.s32 %s29, 1
    %v32 = vld [vmem:[#allocation0] sm:%s30]
    %s33 = sshll.u32 1, 4
    %s34 = ssub.s32 %s33, 1
    %35 = vst [vmem:[%s1] sm:%s34] %v32

// kernel: tile.38
$region0: #{tile.38}
  #allocation0 [shape = 's32[1]{0}', space=sflag, size = 0x4, scoped, tag = 'scoped memory for tile.38']
  %s0 = inlined_call_operand.vmem [shape: f32[32], index: 0, kind: input, shape index: {}]
  %s1 = inlined_call_operand.vmem [shape: f32[4,32], index: 1, kind: output, shape index: {}]
  // Predicated region
  $region2: #{tile.38} parent=0 // pred_check
    _
  $region3: #{tile.38} parent=0 // pred_check_branch
    %3 = sbr.rel (0) target = $region5
  $region4: #{tile.38} parent=0 // pred_region
    _
  $region5: #{tile.38} parent=0 // pred_fallthru
    _
  %v4 = vld [vmem:[%s0] ss:$0 sm:$0xff]
  %5 = vst [vmem:[%s1] sm:$0xf] %v4

// kernel: generator_forward.8
$region0: #{generator_forward.8}
  #allocation0 [shape = 'u32[]', space=smem, size = 0x4, offset = 0x4, fixed_abs, tag = 'smem constant byte address 0x4 - core index']
  #allocation1 [shape = 'u32[144,128]{1,0:T(1,128)}', space=vmem, size = 0x12000, scoped, tag = 'internal scratch']
  %s0 = inlined_call_operand.vmem [shape: bf16[8,16], index: 0, kind: input, shape index: {}]
  %s1 = inlined_call_operand.hbm [shape: bf16[16,1024], index: 1, kind: input, shape index: {}]
  %s2 = inlined_call_operand.hbm [shape: f32[1,64], index: 2, kind: input, shape index: {}]
  %s3 = inlined_call_operand.hbm [shape: f32[1,64], index: 3, kind: input, shape index: {}]
  %s4 = inlined_call_operand.vmem [shape: bf16[8,1024], index: 4, kind: output, shape index: {}]
  %s5 = sld [smem:[#allocation0]]
  $region38: #{generator_forward.8} parent=0
    _
  %s7 = ssub.s32 1, %s5
  %s8 = scalar_select 0, %s7, %s5
  $region1: #{generator_forward.8} parent=0
    #allocation2 [shape = 'u8[32768]{0}', space=vmem, size = 0x8000, scoped, tag = 'input window, operand 1, single buffered']
    #allocation3 [shape = 's32[1]{0}', space=sflag, size = 0x4, scoped, tag = 'scoped memory for generator_forward.8']
    #allocation4 [shape = 'u8[512]{0}', space=vmem, size = 0x400, scoped, tag = 'input window, operand 2, single buffered']
    #allocation5 [shape = 's32[1]{0}', space=sflag, size = 0x4, scoped, tag = 'scoped memory for generator_forward.8']
    #allocation6 [shape = 'u8[512]{0}', space=vmem, size = 0x400, scoped, tag = 'input window, operand 3, single buffered']
    %9 = vsyncpa [#allocation3], 0
    %10 = vsyncpa [#allocation5], 0
    // Predicated region
    $region2: #{generator_forward.8} parent=1 // pred_check
      _
    $region3: #{generator_forward.8} parent=1 // pred_check_branch
      %12 = sbr.rel (0) target = $region5
    $region4: #{generator_forward.8} parent=1 // pred_region
      _
    $region5: #{generator_forward.8} parent=1 // pred_fallthru
      _
    // Predicated region
    $region6: #{generator_forward.8} parent=1 // pred_check
      _
    $region7: #{generator_forward.8} parent=1 // pred_check_branch
      %14 = sbr.rel (0) target = $region9
    $region8: #{generator_forward.8} parent=1 // pred_region
      %s16 = ssub.s32 1024, 1024
      %17 = vsyncadd [#allocation3], %s16
      %s18 = sshll.u32 [#allocation2], 4
      %s19 = int_to_ptr.vmem [resolvable:$true] %s18
      %24 = dma.hbm_to_vmem [thread:$0]  %s1, 1024, %s19, [#allocation3], 512, 512, 32
    $region9: #{generator_forward.8} parent=1 // pred_fallthru
      _
    // Predicated region
    $region10: #{generator_forward.8} parent=1 // pred_check
      _
    $region11: #{generator_forward.8} parent=1 // pred_check_branch
      %26 = sbr.rel (0) target = $region13
    $region12: #{generator_forward.8} parent=1 // pred_region
      %s28 = ssub.s32 16, 16
      %29 = vsyncadd [#allocation5], %s28
      %s31 = sshll.u32 [#allocation4], 4
      %s32 = int_to_ptr.vmem [resolvable:$true] %s31
      %34 = dma.hbm_to_vmem [thread:$0]  %s2, 16, %s32, [#allocation5]
    $region13: #{generator_forward.8} parent=1 // pred_fallthru
      _
    // Predicated region
    $region14: #{generator_forward.8} parent=1 // pred_check
      _
    $region15: #{generator_forward.8} parent=1 // pred_check_branch
      %36 = sbr.rel (0) target = $region17
    $region16: #{generator_forward.8} parent=1 // pred_region
      %s38 = ssub.s32 16, 16
      %39 = vsyncadd [#allocation5], %s38
      %s41 = sshll.u32 [#allocation6], 4
      %s42 = int_to_ptr.vmem [resolvable:$true] %s41
      %44 = dma.hbm_to_vmem [thread:$0]  %s3, 16, %s42, [#allocation5]
    $region17: #{generator_forward.8} parent=1 // pred_fallthru
      _
    // Predicated region
    $region18: #{generator_forward.8} parent=1 // pred_check
      _
    $region19: #{generator_forward.8} parent=1 // pred_check_branch
      %46 = sbr.rel (0) target = $region21
    $region20: #{generator_forward.8} parent=1 // pred_region
      %47 = dma.done [#allocation3], 1024
    $region21: #{generator_forward.8} parent=1 // pred_fallthru
      _
    // Predicated region
    $region22: #{generator_forward.8} parent=1 // pred_check
      _
    $region23: #{generator_forward.8} parent=1 // pred_check_branch
      %49 = sbr.rel (0) target = $region25
    $region24: #{generator_forward.8} parent=1 // pred_region
      %50 = dma.done [#allocation5], 16
    $region25: #{generator_forward.8} parent=1 // pred_fallthru
      _
    // Predicated region
    $region26: #{generator_forward.8} parent=1 // pred_check
      _
    $region27: #{generator_forward.8} parent=1 // pred_check_branch
      %52 = sbr.rel (0) target = $region29
    $region28: #{generator_forward.8} parent=1 // pred_region
      %53 = dma.done [#allocation5], 16
    $region29: #{generator_forward.8} parent=1 // pred_fallthru
      _
    %v55 = vld [vmem:[%s0] sm:$0xf]
    %v56 = vld [vmem:[#allocation2] sm:$0xff]
    %v57 = vld [vmem:[#allocation2 + $0x8] sm:$0xff]
    %v58 = vld [vmem:[#allocation2 + $0x10] sm:$0xff]
    %v59 = vld [vmem:[#allocation2 + $0x18] sm:$0xff]
    %v60 = vld [vmem:[#allocation2 + $0x20] sm:$0xff]
    %v61 = vld [vmem:[#allocation2 + $0x28] sm:$0xff]
    %v62 = vld [vmem:[#allocation2 + $0x30] sm:$0xff]
    %v63 = vld [vmem:[#allocation2 + $0x38] sm:$0xff]
    %v72 = vunpack.c.l.b16 %v56
    %v73 = vunpack.c.h.b16 %v56
    %v74 = vunpack.c.l.b16 %v57
    %v75 = vunpack.c.h.b16 %v57
    %v76 = vunpack.c.l.b16 %v58
    %v77 = vunpack.c.h.b16 %v58
    %v78 = vunpack.c.l.b16 %v59
    %v79 = vunpack.c.h.b16 %v59
    %v80 = vunpack.c.l.b16 %v60
    %v81 = vunpack.c.h.b16 %v60
    %v82 = vunpack.c.l.b16 %v61
    %v83 = vunpack.c.h.b16 %v61
    %v84 = vunpack.c.l.b16 %v62
    %v85 = vunpack.c.h.b16 %v62
    %v86 = vunpack.c.l.b16 %v63
    %v87 = vunpack.c.h.b16 %v63
    %v88 = vpack.c.b16 %v80, %v72
    %v89 = vpack.c.b16 %v81, %v73
    %v90 = vpack.c.b16 %v82, %v74
    %v91 = vpack.c.b16 %v83, %v75
    %v92 = vpack.c.b16 %v84, %v76
    %v93 = vpack.c.b16 %v85, %v77
    %v94 = vpack.c.b16 %v86, %v78
    %v95 = vpack.c.b16 %v87, %v79
    %vm104 = vcmask 130048
    %v106 = vsel %vm104, %v55, 0
    %108 = vmatprep.subr.bf16.mxu0 0
    %109 = vmatpush1.bf16.msra.mxu0 0
    %110 = vmatprep.subr.bf16.mxu0 0
    %111 = vmatpush1.bf16.msra.mxu0 0
    %112 = vmatprep.subr.bf16.mxu0 0
    %113 = vmatpush1.bf16.msra.mxu0 0
    %114 = vmatprep.subr.bf16.mxu0 0
    %115 = vmatpush1.bf16.msra.mxu0 0
    %116 = vmatprep.subr.bf16.mxu0 0
    %117 = vmatpush1.bf16.msra.mxu0 0
    %118 = vmatprep.subr.bf16.mxu0 0
    %119 = vmatpush1.bf16.msra.mxu0 0
    %120 = vmatprep.subr.bf16.mxu0 0
    %121 = vmatpush1.bf16.msra.mxu0 0
    %122 = vmatprep.subr.bf16.mxu0 %v89
    %123 = vmatpush1.bf16.msra.mxu0 %v88
    %124 = vmatprep.subr.bf16.mxu0 0
    %125 = vmatpush2.bf16.msra.mxu0 0
    %126 = vmatprep.subr.bf16.mxu0 0
    %127 = vmatpush2.bf16.msra.mxu0 0
    %128 = vmatprep.subr.bf16.mxu0 0
    %129 = vmatpush2.bf16.msra.mxu0 0
    %130 = vmatprep.subr.bf16.mxu0 0
    %131 = vmatpush2.bf16.msra.mxu0 0
    %132 = vmatprep.subr.bf16.mxu0 0
    %133 = vmatpush2.bf16.msra.mxu0 0
    %134 = vmatprep.subr.bf16.mxu0 0
    %135 = vmatpush2.bf16.msra.mxu0 0
    %136 = vmatprep.subr.bf16.mxu0 0
    %137 = vmatpush2.bf16.msra.mxu0 0
    %138 = vmatprep.subr.bf16.mxu0 0
    %139 = vmatpush2.bf16.msra.mxu0 0
    %140 = vmatprep.mubr.bf16.mxu0 0
    %141 = vmatmul.mubr.bf16.gmra.mxu0 %v106
    %v142 = vpop.f32.mrf.mxu0
    %v143 = vadd.f32 0.0, %v142
    %v144 = vpop.f32.mrf.mxu0
    %v145 = vadd.f32 0.0, %v144
    %v146 = vpop.f32.mrf.mxu0
    %v147 = vpop.f32.mrf.mxu0
    %148 = vdwg.mxu0
    %149 = vmatprep.subr.bf16.mxu0 0
    %150 = vmatpush1.bf16.msra.mxu0 0
    %151 = vmatprep.subr.bf16.mxu0 0
    %152 = vmatpush1.bf16.msra.mxu0 0
    %153 = vmatprep.subr.bf16.mxu0 0
    %154 = vmatpush1.bf16.msra.mxu0 0
    %155 = vmatprep.subr.bf16.mxu0 0
    %156 = vmatpush1.bf16.msra.mxu0 0
    %157 = vmatprep.subr.bf16.mxu0 0
    %158 = vmatpush1.bf16.msra.mxu0 0
    %159 = vmatprep.subr.bf16.mxu0 0
    %160 = vmatpush1.bf16.msra.mxu0 0
    %161 = vmatprep.subr.bf16.mxu0 0
    %162 = vmatpush1.bf16.msra.mxu0 0
    %163 = vmatprep.subr.bf16.mxu0 %v91
    %164 = vmatpush1.bf16.msra.mxu0 %v90
    %165 = vmatprep.subr.bf16.mxu0 0
    %166 = vmatpush2.bf16.msra.mxu0 0
    %167 = vmatprep.subr.bf16.mxu0 0
    %168 = vmatpush2.bf16.msra.mxu0 0
    %169 = vmatprep.subr.bf16.mxu0 0
    %170 = vmatpush2.bf16.msra.mxu0 0
    %171 = vmatprep.subr.bf16.mxu0 0
    %172 = vmatpush2.bf16.msra.mxu0 0
    %173 = vmatprep.subr.bf16.mxu0 0
    %174 = vmatpush2.bf16.msra.mxu0 0
    %175 = vmatprep.subr.bf16.mxu0 0
    %176 = vmatpush2.bf16.msra.mxu0 0
    %177 = vmatprep.subr.bf16.mxu0 0
    %178 = vmatpush2.bf16.msra.mxu0 0
    %179 = vmatprep.subr.bf16.mxu0 0
    %180 = vmatpush2.bf16.msra.mxu0 0
    %181 = vmatprep.mubr.bf16.mxu0 0
    %182 = vmatmul.mubr.bf16.gmra.mxu0 %v106
    %v183 = vpop.f32.mrf.mxu0
    %v184 = vadd.f32 0.0, %v183
    %v185 = vpop.f32.mrf.mxu0
    %v186 = vadd.f32 0.0, %v185
    %v187 = vpop.f32.mrf.mxu0
    %v188 = vpop.f32.mrf.mxu0
    %189 = vdwg.mxu0
    %190 = vmatprep.subr.bf16.mxu0 0
    %191 = vmatpush1.bf16.msra.mxu0 0
    %192 = vmatprep.subr.bf16.mxu0 0
    %193 = vmatpush1.bf16.msra.mxu0 0
    %194 = vmatprep.subr.bf16.mxu0 0
    %195 = vmatpush1.bf16.msra.mxu0 0
    %196 = vmatprep.subr.bf16.mxu0 0
    %197 = vmatpush1.bf16.msra.mxu0 0
    %198 = vmatprep.subr.bf16.mxu0 0
    %199 = vmatpush1.bf16.msra.mxu0 0
    %200 = vmatprep.subr.bf16.mxu0 0
    %201 = vmatpush1.bf16.msra.mxu0 0
    %202 = vmatprep.subr.bf16.mxu0 0
    %203 = vmatpush1.bf16.msra.mxu0 0
    %204 = vmatprep.subr.bf16.mxu0 %v93
    %205 = vmatpush1.bf16.msra.mxu0 %v92
    %206 = vmatprep.subr.bf16.mxu0 0
    %207 = vmatpush2.bf16.msra.mxu0 0
    %208 = vmatprep.subr.bf16.mxu0 0
    %209 = vmatpush2.bf16.msra.mxu0 0
    %210 = vmatprep.subr.bf16.mxu0 0
    %211 = vmatpush2.bf16.msra.mxu0 0
    %212 = vmatprep.subr.bf16.mxu0 0
    %213 = vmatpush2.bf16.msra.mxu0 0
    %214 = vmatprep.subr.bf16.mxu0 0
    %215 = vmatpush2.bf16.msra.mxu0 0
    %216 = vmatprep.subr.bf16.mxu0 0
    %217 = vmatpush2.bf16.msra.mxu0 0
    %218 = vmatprep.subr.bf16.mxu0 0
    %219 = vmatpush2.bf16.msra.mxu0 0
    %220 = vmatprep.subr.bf16.mxu0 0
    %221 = vmatpush2.bf16.msra.mxu0 0
    %222 = vmatprep.mubr.bf16.mxu0 0
    %223 = vmatmul.mubr.bf16.gmra.mxu0 %v106
    %v224 = vpop.f32.mrf.mxu0
    %v225 = vadd.f32 0.0, %v224
    %v226 = vpop.f32.mrf.mxu0
    %v227 = vadd.f32 0.0, %v226
    %v228 = vpop.f32.mrf.mxu0
    %v229 = vpop.f32.mrf.mxu0
    %230 = vdwg.mxu0
    %231 = vmatprep.subr.bf16.mxu0 0
    %232 = vmatpush1.bf16.msra.mxu0 0
    %233 = vmatprep.subr.bf16.mxu0 0
    %234 = vmatpush1.bf16.msra.mxu0 0
    %235 = vmatprep.subr.bf16.mxu0 0
    %236 = vmatpush1.bf16.msra.mxu0 0
    %237 = vmatprep.subr.bf16.mxu0 0
    %238 = vmatpush1.bf16.msra.mxu0 0
    %239 = vmatprep.subr.bf16.mxu0 0
    %240 = vmatpush1.bf16.msra.mxu0 0
    %241 = vmatprep.subr.bf16.mxu0 0
    %242 = vmatpush1.bf16.msra.mxu0 0
    %243 = vmatprep.subr.bf16.mxu0 0
    %244 = vmatpush1.bf16.msra.mxu0 0
    %245 = vmatprep.subr.bf16.mxu0 %v95
    %246 = vmatpush1.bf16.msra.mxu0 %v94
    %247 = vmatprep.subr.bf16.mxu0 0
    %248 = vmatpush2.bf16.msra.mxu0 0
    %249 = vmatprep.subr.bf16.mxu0 0
    %250 = vmatpush2.bf16.msra.mxu0 0
    %251 = vmatprep.subr.bf16.mxu0 0
    %252 = vmatpush2.bf16.msra.mxu0 0
    %253 = vmatprep.subr.bf16.mxu0 0
    %254 = vmatpush2.bf16.msra.mxu0 0
    %255 = vmatprep.subr.bf16.mxu0 0
    %256 = vmatpush2.bf16.msra.mxu0 0
    %257 = vmatprep.subr.bf16.mxu0 0
    %258 = vmatpush2.bf16.msra.mxu0 0
    %259 = vmatprep.subr.bf16.mxu0 0
    %260 = vmatpush2.bf16.msra.mxu0 0
    %261 = vmatprep.subr.bf16.mxu0 0
    %262 = vmatpush2.bf16.msra.mxu0 0
    %263 = vmatprep.mubr.bf16.mxu0 0
    %264 = vmatmul.mubr.bf16.gmra.mxu0 %v106
    %v265 = vpop.f32.mrf.mxu0
    %v266 = vadd.f32 0.0, %v265
    %v267 = vpop.f32.mrf.mxu0
    %v268 = vadd.f32 0.0, %v267
    %v269 = vpop.f32.mrf.mxu0
    %v270 = vpop.f32.mrf.mxu0
    %271 = vdwg.mxu0
    %v272 = vrot.slane %v143, 4
    %v273 = vadd.f32 %v143, %v272
    %v274 = vrot.slane %v273, 2
    %v275 = vadd.f32 %v273, %v274
    %v276 = vrot.slane %v275, 1
    %v277 = vadd.f32 %v275, %v276
    %v278 = vrot.slane %v145, 4
    %v279 = vadd.f32 %v145, %v278
    %v280 = vrot.slane %v279, 2
    %v281 = vadd.f32 %v279, %v280
    %v282 = vrot.slane %v281, 1
    %v283 = vadd.f32 %v281, %v282
    %v284 = vrot.slane %v184, 4
    %v285 = vadd.f32 %v184, %v284
    %v286 = vrot.slane %v285, 2
    %v287 = vadd.f32 %v285, %v286
    %v288 = vrot.slane %v287, 1
    %v289 = vadd.f32 %v287, %v288
    %v290 = vrot.slane %v186, 4
    %v291 = vadd.f32 %v186, %v290
    %v292 = vrot.slane %v291, 2
    %v293 = vadd.f32 %v291, %v292
    %v294 = vrot.slane %v293, 1
    %v295 = vadd.f32 %v293, %v294
    %v296 = vrot.slane %v225, 4
    %v297 = vadd.f32 %v225, %v296
    %v298 = vrot.slane %v297, 2
    %v299 = vadd.f32 %v297, %v298
    %v300 = vrot.slane %v299, 1
    %v301 = vadd.f32 %v299, %v300
    %v302 = vrot.slane %v227, 4
    %v303 = vadd.f32 %v227, %v302
    %v304 = vrot.slane %v303, 2
    %v305 = vadd.f32 %v303, %v304
    %v306 = vrot.slane %v305, 1
    %v307 = vadd.f32 %v305, %v306
    %v308 = vrot.slane %v266, 4
    %v309 = vadd.f32 %v266, %v308
    %v310 = vrot.slane %v309, 2
    %v311 = vadd.f32 %v309, %v310
    %v312 = vrot.slane %v311, 1
    %v313 = vadd.f32 %v311, %v312
    %v314 = vrot.slane %v268, 4
    %v315 = vadd.f32 %v268, %v314
    %v316 = vrot.slane %v315, 2
    %v317 = vadd.f32 %v315, %v316
    %v318 = vrot.slane %v317, 1
    %v319 = vadd.f32 %v317, %v318
    %v320 = vmul.f32 %v143, %v143
    %v321 = vmul.f32 %v145, %v145
    %v322 = vmul.f32 %v184, %v184
    %v323 = vmul.f32 %v186, %v186
    %v324 = vmul.f32 %v225, %v225
    %v325 = vmul.f32 %v227, %v227
    %v326 = vmul.f32 %v266, %v266
    %v327 = vmul.f32 %v268, %v268
    %v328 = vrot.slane %v320, 4
    %v329 = vadd.f32 %v320, %v328
    %v330 = vrot.slane %v329, 2
    %v331 = vadd.f32 %v329, %v330
    %v332 = vrot.slane %v331, 1
    %v333 = vadd.f32 %v331, %v332
    %v334 = vrot.slane %v321, 4
    %v335 = vadd.f32 %v321, %v334
    %v336 = vrot.slane %v335, 2
    %v337 = vadd.f32 %v335, %v336
    %v338 = vrot.slane %v337, 1
    %v339 = vadd.f32 %v337, %v338
    %v340 = vrot.slane %v322, 4
    %v341 = vadd.f32 %v322, %v340
    %v342 = vrot.slane %v341, 2
    %v343 = vadd.f32 %v341, %v342
    %v344 = vrot.slane %v343, 1
    %v345 = vadd.f32 %v343, %v344
    %v346 = vrot.slane %v323, 4
    %v347 = vadd.f32 %v323, %v346
    %v348 = vrot.slane %v347, 2
    %v349 = vadd.f32 %v347, %v348
    %v350 = vrot.slane %v349, 1
    %v351 = vadd.f32 %v349, %v350
    %v352 = vrot.slane %v324, 4
    %v353 = vadd.f32 %v324, %v352
    %v354 = vrot.slane %v353, 2
    %v355 = vadd.f32 %v353, %v354
    %v356 = vrot.slane %v355, 1
    %v357 = vadd.f32 %v355, %v356
    %v358 = vrot.slane %v325, 4
    %v359 = vadd.f32 %v325, %v358
    %v360 = vrot.slane %v359, 2
    %v361 = vadd.f32 %v359, %v360
    %v362 = vrot.slane %v361, 1
    %v363 = vadd.f32 %v361, %v362
    %v364 = vrot.slane %v326, 4
    %v365 = vadd.f32 %v326, %v364
    %v366 = vrot.slane %v365, 2
    %v367 = vadd.f32 %v365, %v366
    %v368 = vrot.slane %v367, 1
    %v369 = vadd.f32 %v367, %v368
    %v370 = vrot.slane %v327, 4
    %v371 = vadd.f32 %v327, %v370
    %v372 = vrot.slane %v371, 2
    %v373 = vadd.f32 %v371, %v372
    %v374 = vrot.slane %v373, 1
    %v375 = vadd.f32 %v373, %v374
    %v376 = vadd.f32 %v277, 0.0
    %378 = vrot.lane.b32.xlu0 %v277, 64
    %v379 = vpop.permute.xlu0 %378
    %v381 = vadd.f32 %v376, %v379
    %v382 = vadd.f32 %v381, %v283
    %384 = vrot.lane.b32.xlu0 %v283, 64
    %v385 = vpop.permute.xlu0 %384
    %v387 = vadd.f32 %v382, %v385
    %v388 = vadd.f32 %v387, %v289
    %390 = vrot.lane.b32.xlu0 %v289, 64
    %v391 = vpop.permute.xlu0 %390
    %v393 = vadd.f32 %v388, %v391
    %v394 = vadd.f32 %v393, %v295
    %396 = vrot.lane.b32.xlu0 %v295, 64
    %v397 = vpop.permute.xlu0 %396
    %v399 = vadd.f32 %v394, %v397
    %v400 = vadd.f32 %v399, %v301
    %402 = vrot.lane.b32.xlu0 %v301, 64
    %v403 = vpop.permute.xlu0 %402
    %v405 = vadd.f32 %v400, %v403
    %v406 = vadd.f32 %v405, %v307
    %408 = vrot.lane.b32.xlu0 %v307, 64
    %v409 = vpop.permute.xlu0 %408
    %v411 = vadd.f32 %v406, %v409
    %v412 = vadd.f32 %v411, %v313
    %414 = vrot.lane.b32.xlu0 %v313, 64
    %v415 = vpop.permute.xlu0 %414
    %v417 = vadd.f32 %v412, %v415
    %v418 = vadd.f32 %v417, %v319
    %420 = vrot.lane.b32.xlu0 %v319, 64
    %v421 = vpop.permute.xlu0 %420
    %v423 = vadd.f32 %v418, %v421
    %v424 = vadd.f32 %v333, 0.0
    %426 = vrot.lane.b32.xlu0 %v333, 64
    %v427 = vpop.permute.xlu0 %426
    %v429 = vadd.f32 %v424, %v427
    %v430 = vadd.f32 %v429, %v339
    %432 = vrot.lane.b32.xlu0 %v339, 64
    %v433 = vpop.permute.xlu0 %432
    %v435 = vadd.f32 %v430, %v433
    %v436 = vadd.f32 %v435, %v345
    %438 = vrot.lane.b32.xlu0 %v345, 64
    %v439 = vpop.permute.xlu0 %438
    %v441 = vadd.f32 %v436, %v439
    %v442 = vadd.f32 %v441, %v351
    %444 = vrot.lane.b32.xlu0 %v351, 64
    %v445 = vpop.permute.xlu0 %444
    %v447 = vadd.f32 %v442, %v445
    %v448 = vadd.f32 %v447, %v357
    %450 = vrot.lane.b32.xlu0 %v357, 64
    %v451 = vpop.permute.xlu0 %450
    %v453 = vadd.f32 %v448, %v451
    %v454 = vadd.f32 %v453, %v363
    %456 = vrot.lane.b32.xlu0 %v363, 64
    %v457 = vpop.permute.xlu0 %456
    %v459 = vadd.f32 %v454, %v457
    %v460 = vadd.f32 %v459, %v369
    %462 = vrot.lane.b32.xlu0 %v369, 64
    %v463 = vpop.permute.xlu0 %462
    %v465 = vadd.f32 %v460, %v463
    %v466 = vadd.f32 %v465, %v375
    %468 = vrot.lane.b32.xlu0 %v375, 64
    %v469 = vpop.permute.xlu0 %468
    %v471 = vadd.f32 %v466, %v469
    %v472 = vrcp.pop 32.0
    %v473 = vmul.f32 %v423, %v472
    %v474 = vmul.f32 %v471, %v472
    %v475 = vmul.f32 %v473, %v473
    %v476 = vsub.f32 %v474, %v475
    %v477 = vmax.f32 %v476, 0.0
    %v478 = vld [vmem:[#allocation4] sm:$0x1]
    %v479 = vadd.f32 %v477, 1e-05
    %v480 = vrsqrt.pop %v479
    %v481 = vmul.f32 %v478, %v480
    %v482 = vld [vmem:[#allocation6] sm:$0x1]
    %v483 = vmul.f32 %v473, %v481
    %v484 = vsub.f32 %v482, %v483
    %v486 = vlaneseq
    %v487 = vshrl.u32 %v486, 7
    %v488 = vsub.s32 0, %v487
    %v489 = vrot.slane %v481, %v488
    %490 = vrot.lane.b32.xlu0 %v489, 64
    %v491 = vpop.permute.xlu0 %490
    %vm493 = vcmask 523264
    %v494 = vsel %vm493, %v481, %v491
    %v496 = vlaneseq
    %v497 = vshrl.u32 %v496, 7
    %v498 = vsub.s32 0, %v497
    %v499 = vrot.slane %v484, %v498
    %500 = vrot.lane.b32.xlu0 %v499, 64
    %v501 = vpop.permute.xlu0 %500
    %v503 = vsel %vm493, %v484, %v501
    %v504 = vlaneseq
    %v505 = vshrl.u32 %v504, 7
    %v506 = vsub.s32 0, %v505
    %v507 = vrot.slane %v494, %v506
    %v508 = vmul.f32 %v143, %v507
    %v509 = vmul.f32 %v145, %v507
    %v510 = vmul.f32 %v184, %v507
    %v511 = vmul.f32 %v186, %v507
    %v512 = vmul.f32 %v225, %v507
    %v513 = vmul.f32 %v227, %v507
    %v514 = vmul.f32 %v266, %v507
    %v515 = vmul.f32 %v268, %v507
    %v516 = vlaneseq
    %v517 = vshrl.u32 %v516, 7
    %v518 = vsub.s32 0, %v517
    %v519 = vrot.slane %v503, %v518
    %v520 = vadd.f32 %v508, %v519
    %v521 = vadd.f32 %v509, %v519
    %v522 = vadd.f32 %v510, %v519
    %v523 = vadd.f32 %v511, %v519
    %v524 = vadd.f32 %v512, %v519
    %v525 = vadd.f32 %v513, %v519
    %v526 = vadd.f32 %v514, %v519
    %v527 = vadd.f32 %v515, %v519
    %v528 = vmax.f32 %v520, 0.0
    %v529 = vmax.f32 %v521, 0.0
    %v530 = vmax.f32 %v522, 0.0
    %v531 = vmax.f32 %v523, 0.0
    %v532 = vmax.f32 %v524, 0.0
    %v533 = vmax.f32 %v525, 0.0
    %v534 = vmax.f32 %v526, 0.0
    %v535 = vmax.f32 %v527, 0.0
    %v536 = vpack.c.bf16 %v528, %v528
    %v537 = vpack.c.bf16 %v529, %v529
    %v538 = vpack.c.bf16 %v530, %v530
    %v539 = vpack.c.bf16 %v531, %v531
    %v540 = vpack.c.bf16 %v532, %v532
    %v541 = vpack.c.bf16 %v533, %v533
    %v542 = vpack.c.bf16 %v534, %v534
    %v543 = vpack.c.bf16 %v535, %v535
    %v552 = vunpack.c.l.b16 %v536
    %v553 = vunpack.c.l.b16 %v537
    %v554 = vunpack.c.l.b16 %v538
    %v555 = vunpack.c.l.b16 %v539
    %v556 = vunpack.c.l.b16 %v540
    %v557 = vunpack.c.l.b16 %v541
    %v558 = vunpack.c.l.b16 %v542
    %v559 = vunpack.c.l.b16 %v543
    %v560 = vpack.c.b16 %v553, %v552
    %v561 = vpack.c.b16 %v555, %v554
    %v562 = vpack.c.b16 %v557, %v556
    %v563 = vpack.c.b16 %v559, %v558
    %568 = vst [vmem:[%s4] sm:$0xff] %v560
    %569 = vst [vmem:[%s4 + $0x8] sm:$0xff] %v561
    %570 = vst [vmem:[%s4 + $0x10] sm:$0xff] %v562
    %571 = vst [vmem:[%s4 + $0x18] sm:$0xff] %v563
    // Predicated region
    $region30: #{generator_forward.8} parent=1 // pred_check
      _
    $region31: #{generator_forward.8} parent=1 // pred_check_branch
      %573 = sbr.rel (0) target = $region33
    $region32: #{generator_forward.8} parent=1 // pred_region
      _
    $region33: #{generator_forward.8} parent=1 // pred_fallthru
      _
    // Predicated region
    $region34: #{generator_forward.8} parent=1 // pred_check
      _
    $region35: #{generator_forward.8} parent=1 // pred_check_branch
      %575 = sbr.rel (0) target = $region37
    $region36: #{generator_forward.8} parent=1 // pred_region
      _
    $region37: #{generator_forward.8} parent=1 // pred_fallthru
      _
    %576 = vsyncpa [#allocation3], 1
    %577 = vsyncpa [#allocation5], 1

// kernel: generator_forward.10
$region0: #{generator_forward.10}
  #allocation0 [shape = 'u32[]', space=smem, size = 0x4, offset = 0x4, fixed_abs, tag = 'smem constant byte address 0x4 - core index']
  #allocation1 [shape = 'u32[144,128]{1,0:T(1,128)}', space=vmem, size = 0x12000, scoped, tag = 'internal scratch']
  %s0 = inlined_call_operand.vmem [shape: bf16[2,4,4,128], index: 0, kind: input, shape index: {}]
  %s1 = inlined_call_operand.vmem [shape: f32[1,128], index: 1, kind: input, shape index: {}]
  %s2 = inlined_call_operand.vmem [shape: f32[1,128], index: 2, kind: input, shape index: {}]
  %s3 = inlined_call_operand.vmem [shape: bf16[10,2,5,64], index: 3, kind: output, shape index: {}]
  %s4 = sld [smem:[#allocation0]]
  $region45: #{generator_forward.10} parent=0
    _
  %s6 = ssub.s32 1, %s4
  %s7 = scalar_select 0, %s6, %s4
  loop: start=0, step=1, limit=4
  $region2: #{generator_forward.10} parent=0 // loop_pre_header
    _
  $region3: #{generator_forward.10} parent=0 // loop_header
    %s9 = sphi 0, %s13
    %p10 = scmp.ge.s32.totalorder %s9, 4
    %s19 = sphi 0, %s21
    %s22 = sphi 0, %s19
    %s23 = sphi 0, %s22
    %s39 = sphi 0, %s23
    %s43 = sphi 0, %s43
    %s45 = sphi 0, %s43
    %s46 = sphi 0, %s45
    %s60 = sphi 0, %s46
    %s64 = sphi 0, %s64
    %s66 = sphi 0, %s64
    %s67 = sphi 0, %s66
    %s81 = sphi 0, %s67
    %s87 = sphi 0, %s89
    %s90 = sphi 0, %s87
    %s91 = sphi 0, %s90
    %s107 = sphi 0, %s91
  $region4: #{generator_forward.10} parent=0 // loop_header_branch
    %12 = sbr.rel (%p10) target = $region8
  $region5: #{generator_forward.10} parent=0 // loop_body
    %s14 = ssub.s32 %s9, 1
    %s15 = ssub.s32 %s9, 2
    %s16 = sadd.s32 %s9, 1
    %s17 = ssub.s32 %s9, %s16
    %p18 = scmp.eq.s32.totalorder %s17, 0
    %s20 = sadd.s32 %s19, 1
    %s21 = scalar_select %p18, %s19, %s20
    %p24 = pneg %p18
    %p25 = scmp.eq.s32.totalorder %s9, 1
    %p26 = por %p24, %p25
    %p27 = scmp.ne.s32.totalorder %s19, %s22
    %p28 = scmp.eq.s32.totalorder %s9, 0
    %p29 = por %p27, %p28
    %p30 = scmp.ne.s32.totalorder %s19, %s22
    %p31 = scmp.eq.s32.totalorder %s14, 1
    %p32 = por %p30, %p31
    %p33 = scmp.ne.s32.totalorder %s22, %s23
    %p34 = scmp.eq.s32.totalorder %s14, 0
    %p35 = por %p33, %p34
    %p36 = scmp.ne.s32.totalorder %s22, %s23
    %p37 = scmp.eq.s32.totalorder %s15, 1
    %p38 = por %p36, %p37
    %p40 = scmp.ne.s32.totalorder %s23, %s39
    %p41 = scmp.eq.s32.totalorder %s15, 0
    %p42 = por %p40, %p41
    %s44 = sadd.s32 %s43, 1
    %p47 = scmp.eq.s32.totalorder %s9, 1
    %p48 = scmp.ne.s32.totalorder %s43, %s45
    %p49 = scmp.eq.s32.totalorder %s9, 0
    %p50 = por %p48, %p49
    %p51 = scmp.ne.s32.totalorder %s43, %s45
    %p52 = scmp.eq.s32.totalorder %s14, 1
    %p53 = por %p51, %p52
    %p54 = scmp.ne.s32.totalorder %s45, %s46
    %p55 = scmp.eq.s32.totalorder %s14, 0
    %p56 = por %p54, %p55
    %p57 = scmp.ne.s32.totalorder %s45, %s46
    %p58 = scmp.eq.s32.totalorder %s15, 1
    %p59 = por %p57, %p58
    %p61 = scmp.ne.s32.totalorder %s46, %s60
    %p62 = scmp.eq.s32.totalorder %s15, 0
    %p63 = por %p61, %p62
    %s65 = sadd.s32 %s64, 1
    %p68 = scmp.eq.s32.totalorder %s9, 1
    %p69 = scmp.ne.s32.totalorder %s64, %s66
    %p70 = scmp.eq.s32.totalorder %s9, 0
    %p71 = por %p69, %p70
    %p72 = scmp.ne.s32.totalorder %s64, %s66
    %p73 = scmp.eq.s32.totalorder %s14, 1
    %p74 = por %p72, %p73
    %p75 = scmp.ne.s32.totalorder %s66, %s67
    %p76 = scmp.eq.s32.totalorder %s14, 0
    %p77 = por %p75, %p76
    %p78 = scmp.ne.s32.totalorder %s66, %s67
    %p79 = scmp.eq.s32.totalorder %s15, 1
    %p80 = por %p78, %p79
    %p82 = scmp.ne.s32.totalorder %s67, %s81
    %p83 = scmp.eq.s32.totalorder %s15, 0
    %p84 = por %p82, %p83
    %s85 = ssub.s32 %s9, %s16
    %p86 = scmp.eq.s32.totalorder %s85, 0
    %s88 = sadd.s32 %s87, 1
    %s89 = scalar_select %p86, %s87, %s88
    %p92 = pneg %p86
    %p93 = scmp.eq.s32.totalorder %s9, 1
    %p94 = por %p92, %p93
    %p95 = scmp.ne.s32.totalorder %s87, %s90
    %p96 = scmp.eq.s32.totalorder %s9, 0
    %p97 = por %p95, %p96
    %p98 = scmp.ne.s32.totalorder %s87, %s90
    %p99 = scmp.eq.s32.totalorder %s14, 1
    %p100 = por %p98, %p99
    %p101 = scmp.ne.s32.totalorder %s90, %s91
    %p102 = scmp.eq.s32.totalorder %s14, 0
    %p103 = por %p101, %p102
    %p104 = scmp.ne.s32.totalorder %s90, %s91
    %p105 = scmp.eq.s32.totalorder %s15, 1
    %p106 = por %p104, %p105
    %p108 = scmp.ne.s32.totalorder %s91, %s107
    %p109 = scmp.eq.s32.totalorder %s15, 0
    %p110 = por %p108, %p109
    %p111 = scmp.le.s32.totalorder 1, %s9
    %p112 = scmp.lt.s32.totalorder %s9, 3
    %p113 = pnand %p111, %p112
    %p114 = pneg %p113
    // Predicated region
    $region9: #{generator_forward.10} parent=5 // pred_check
      _
    $region10: #{generator_forward.10} parent=5 // pred_check_branch
      %116 = sbr.rel (%p113) target = $region12
    $region11: #{generator_forward.10} parent=5 // pred_region
      %s117 = ssub.s32 %s9, 1
      // Predicated region
      $region13: #{generator_forward.10} parent=11 // pred_check
        %p118 = pneg %p56
      $region14: #{generator_forward.10} parent=11 // pred_check_branch
        %120 = sbr.rel (%p118) target = $region16
      $region15: #{generator_forward.10} parent=11 // pred_region
        _
      $region16: #{generator_forward.10} parent=11 // pred_fallthru
        _
      // Predicated region
      $region17: #{generator_forward.10} parent=11 // pred_check
        %p121 = pneg %p77
      $region18: #{generator_forward.10} parent=11 // pred_check_branch
        %123 = sbr.rel (%p121) target = $region20
      $region19: #{generator_forward.10} parent=11 // pred_region
        _
      $region20: #{generator_forward.10} parent=11 // pred_fallthru
        _
    $region12: #{generator_forward.10} parent=5 // pred_fallthru
      _
    %p124 = scmp.lt.s32.totalorder %s9, 2
    // Predicated region
    $region21: #{generator_forward.10} parent=5 // pred_check
      %p125 = pneg %p124
    $region22: #{generator_forward.10} parent=5 // pred_check_branch
      %127 = sbr.rel (%p125) target = $region24
    $region23: #{generator_forward.10} parent=5 // pred_region
      // Predicated region
      $region25: #{generator_forward.10} parent=23 // pred_check
        %p128 = pneg %p29
      $region26: #{generator_forward.10} parent=23 // pred_check_branch
        %130 = sbr.rel (%p128) target = $region28
      $region27: #{generator_forward.10} parent=23 // pred_region
        %p131 = scmp.lt.s32.totalorder %s9, 1
        %s132 = scalar_select %p131, %s9, 1
        %s133 = smul.addr %s132, 4
        %s134 = smul.addr %s133, 2
        %s135 = scalar_lea.vmem %s0, %s134
      $region28: #{generator_forward.10} parent=23 // pred_fallthru
        _
    $region24: #{generator_forward.10} parent=5 // pred_fallthru
      _
    %p136 = scmp.le.s32.totalorder 1, %s9
    %p137 = scmp.lt.s32.totalorder %s9, 3
    %p138 = pnand %p136, %p137
    %p139 = pneg %p138
    // Predicated region
    $region29: #{generator_forward.10} parent=5 // pred_check
      _
    $region30: #{generator_forward.10} parent=5 // pred_check_branch
      %141 = sbr.rel (%p138) target = $region32
    $region31: #{generator_forward.10} parent=5 // pred_region
      %s142 = ssub.s32 %s9, 1
      %p143 = scmp.lt.s32.totalorder %s14, 1
      %s144 = scalar_select %p143, %s14, 1
      %s145 = smul.addr %s144, 4
      %s146 = smul.addr %s145, 2
      %s147 = scalar_lea.vmem %s0, %s146
      %p148 = pneg %p35
      %p149 = pneg %p32
      %p150 = pneg %p56
      %p151 = pneg %p53
      %p152 = pneg %p77
      %p153 = pneg %p74
      %p154 = pneg %p103
      %p155 = pneg %p100
      %s156 = smul.u32 5, %s14
      %p157 = scmp.lt.s32.totalorder %s156, 9
      %s158 = scalar_select %p157, %s156, 9
      %s159 = smul.addr %s158, 2
      %s160 = smul.addr %s159, 4
      %s161 = scalar_lea.vmem %s3, %s160
      %p162 = scmp.lt.s32.totalorder %s14, 1
      %s163 = scalar_select %p162, %s14, 1
      %s164 = smul.addr %s163, 4
      %s165 = smul.addr %s164, 2
      %s166 = scalar_lea.vmem %s0, %s165
      %s167 = smul.u32 5, %s14
      %p168 = scmp.lt.s32.totalorder %s167, 9
      %s169 = scalar_select %p168, %s167, 9
      %s170 = smul.addr %s169, 2
      %s171 = smul.addr %s170, 4
      %s172 = scalar_lea.vmem %s3, %s171
      %s173 = smul.u32 5, %s14
      %v175 = vld [vmem:[%s166] sm:$0x3]
      %v176 = vld [vmem:[%s166 + $0x2] sm:$0x3]
      %v177 = vld [vmem:[%s166 + $0x4] sm:$0x3]
      %v178 = vld [vmem:[%s166 + $0x6] sm:$0x3]
      %v179 = vunpack.c.l.bf16 %v175
      %v180 = vunpack.c.l.bf16 %v176
      %v181 = vunpack.c.l.bf16 %v177
      %v182 = vunpack.c.l.bf16 %v178
      %v183 = vld [vmem:[%s1] sm:$0x1]
      %v185 = vlaneseq
      %v186 = vshrl.u32 %v185, 7
      %v187 = vsub.s32 0, %v186
      %v188 = vrot.slane %v183, %v187
      %v190 = vmul.f32 %v179, %v188
      %v191 = vmul.f32 %v180, %v188
      %v192 = vmul.f32 %v181, %v188
      %v193 = vmul.f32 %v182, %v188
      %v194 = vld [vmem:[%s2] sm:$0x1]
      %v196 = vlaneseq
      %v197 = vshrl.u32 %v196, 7
      %v198 = vsub.s32 0, %v197
      %v199 = vrot.slane %v194, %v198
      %v201 = vadd.f32 %v190, %v199
      %v202 = vadd.f32 %v191, %v199
      %v203 = vadd.f32 %v192, %v199
      %v204 = vadd.f32 %v193, %v199
      %v205 = vmax.f32 %v201, 0.0
      %v206 = vmax.f32 %v202, 0.0
      %v207 = vmax.f32 %v203, 0.0
      %v208 = vmax.f32 %v204, 0.0
      %v209 = vpack.c.bf16 %v205, %v205
      %v210 = vpack.c.bf16 %v206, %v206
      %v211 = vpack.c.bf16 %v207, %v207
      %v212 = vpack.c.bf16 %v208, %v208
      %vm213 = vcmask 518144
      %vm214 = vsmask.f32 2304
      %vm215 = vmand %vm213, %vm214
      %v216 = vld [vmem:[%s172] sm:$0x7]
      %v217 = vsel %vm215, 0, %v216
      %218 = vst [vmem:[%s172] sm:$0x7] %v217
      %v219 = vld [vmem:[%s172 + $0x4] sm:$0x7]
      %v220 = vsel %vm215, 0, %v219
      %221 = vst [vmem:[%s172 + $0x4] sm:$0x7] %v220
      %v222 = vld [vmem:[%s172 + $0x8] sm:$0x7]
      %v223 = vsel %vm215, 0, %v222
      %224 = vst [vmem:[%s172 + $0x8] sm:$0x7] %v223
      %v225 = vld [vmem:[%s172 + $0xc] sm:$0x7]
      %v226 = vsel %vm215, 0, %v225
      %227 = vst [vmem:[%s172 + $0xc] sm:$0x7] %v226
      %v228 = vld [vmem:[%s172 + $0x10] sm:$0x7]
      %v229 = vsel %vm215, 0, %v228
      %230 = vst [vmem:[%s172 + $0x10] sm:$0x7] %v229
      %v231 = vld [vmem:[%s172 + $0x14] sm:$0x7]
      %v232 = vsel %vm215, 0, %v231
      %233 = vst [vmem:[%s172 + $0x14] sm:$0x7] %v232
      %v234 = vld [vmem:[%s172 + $0x18] sm:$0x7]
      %v235 = vsel %vm215, 0, %v234
      %236 = vst [vmem:[%s172 + $0x18] sm:$0x7] %v235
      %v237 = vld [vmem:[%s172 + $0x1c] sm:$0x7]
      %v238 = vsel %vm215, 0, %v237
      %239 = vst [vmem:[%s172 + $0x1c] sm:$0x7] %v238
      %v240 = vld [vmem:[%s172 + $0x20] sm:$0x7]
      %v241 = vsel %vm215, 0, %v240
      %242 = vst [vmem:[%s172 + $0x20] sm:$0x7] %v241
      %v243 = vld [vmem:[%s172 + $0x24] sm:$0x7]
      %v244 = vsel %vm215, 0, %v243
      %245 = vst [vmem:[%s172 + $0x24] sm:$0x7] %v244
      %v250 = vunpack.c.l.b16 %v209
      %v251 = vunpack.c.l.b16 %v210
      %v252 = vunpack.c.l.b16 %v211
      %v253 = vunpack.c.l.b16 %v212
      %v254 = vpack.c.b16 %v250, %v250
      %v255 = vpack.c.b16 %v251, %v251
      %v256 = vpack.c.b16 %v252, %v252
      %v257 = vpack.c.b16 %v253, %v253
      %258 = vrot.lane.b32.xlu0 %v254, 32
      %v259 = vpop.permute.xlu0 %258
      %260 = vrot.lane.b32.xlu0 %v255, 32
      %v261 = vpop.permute.xlu0 %260
      %262 = vrot.lane.b32.xlu0 %v256, 32
      %v263 = vpop.permute.xlu0 %262
      %264 = vrot.lane.b32.xlu0 %v257, 32
      %v265 = vpop.permute.xlu0 %264
      %s270 = scalar_lea.vmem %s172, 4
      %vm271 = vcmask 517376
      %272 = vst.msk [vmem:[%s270] sm:$0x3] %vm271, %v259
      %273 = vst.msk [vmem:[%s270 + $0x8] sm:$0x3] %vm271, %v261
      %274 = vst.msk [vmem:[%s270 + $0x10] sm:$0x3] %vm271, %v263
      %275 = vst.msk [vmem:[%s270 + $0x18] sm:$0x3] %vm271, %v265
      %v277 = vshrl.u32 %v254, 16
      %v279 = vrot.slane %v277, 7
      %v280 = vshll.u32 %v254, 16
      %v282 = vor.u32 %v279, %v280
      %v284 = vshrl.u32 %v255, 16
      %v286 = vrot.slane %v284, 7
      %v287 = vshll.u32 %v255, 16
      %v289 = vor.u32 %v286, %v287
      %v291 = vshrl.u32 %v256, 16
      %v293 = vrot.slane %v291, 7
      %v294 = vshll.u32 %v256, 16
      %v296 = vor.u32 %v293, %v294
      %v298 = vshrl.u32 %v257, 16
      %v300 = vrot.slane %v298, 7
      %v301 = vshll.u32 %v257, 16
      %v303 = vor.u32 %v300, %v301
      %304 = vrot.lane.b32.xlu0 %v282, 96
      %v305 = vpop.permute.xlu0 %304
      %306 = vrot.lane.b32.xlu0 %v289, 96
      %v307 = vpop.permute.xlu0 %306
      %308 = vrot.lane.b32.xlu0 %v296, 96
      %v309 = vpop.permute.xlu0 %308
      %310 = vrot.lane.b32.xlu0 %v303, 96
      %v311 = vpop.permute.xlu0 %310
      %vm316 = vcmask 256000
      %vm317 = vsmask.f32 2306
      %vm318 = vmand %vm316, %vm317
      %v319 = vld [vmem:[%s270] sm:$0x7]
      %v320 = vsel %vm318, %v305, %v319
      %321 = vst [vmem:[%s270] sm:$0x7] %v320
      %v322 = vld [vmem:[%s270 + $0x8] sm:$0x7]
      %v323 = vsel %vm318, %v307, %v322
      %324 = vst [vmem:[%s270 + $0x8] sm:$0x7] %v323
      %v325 = vld [vmem:[%s270 + $0x10] sm:$0x7]
      %v326 = vsel %vm318, %v309, %v325
      %327 = vst [vmem:[%s270 + $0x10] sm:$0x7] %v326
      %v328 = vld [vmem:[%s270 + $0x18] sm:$0x7]
      %v329 = vsel %vm318, %v311, %v328
      %330 = vst [vmem:[%s270 + $0x18] sm:$0x7] %v329
      %331 = vrot.lane.b32.xlu0 %v254, 96
      %v332 = vpop.permute.xlu0 %331
      %333 = vrot.lane.b32.xlu0 %v255, 96
      %v334 = vpop.permute.xlu0 %333
      %335 = vrot.lane.b32.xlu0 %v256, 96
      %v336 = vpop.permute.xlu0 %335
      %337 = vrot.lane.b32.xlu0 %v257, 96
      %v338 = vpop.permute.xlu0 %337
      %s343 = scalar_lea.vmem %s172, 8
      %344 = vst.msk [vmem:[%s343] sm:$0x3] %vm271, %v332
      %345 = vst.msk [vmem:[%s343 + $0x8] sm:$0x3] %vm271, %v334
      %346 = vst.msk [vmem:[%s343 + $0x10] sm:$0x3] %vm271, %v336
      %347 = vst.msk [vmem:[%s343 + $0x18] sm:$0x3] %vm271, %v338
      %348 = vrot.lane.b32.xlu0 %v282, 32
      %v349 = vpop.permute.xlu0 %348
      %350 = vrot.lane.b32.xlu0 %v289, 32
      %v351 = vpop.permute.xlu0 %350
      %352 = vrot.lane.b32.xlu0 %v296, 32
      %v353 = vpop.permute.xlu0 %352
      %354 = vrot.lane.b32.xlu0 %v303, 32
      %v355 = vpop.permute.xlu0 %354
      %v360 = vld [vmem:[%s343] sm:$0x7]
      %v361 = vsel %vm318, %v349, %v360
      %362 = vst [vmem:[%s343] sm:$0x7] %v361
      %v363 = vld [vmem:[%s343 + $0x8] sm:$0x7]
      %v364 = vsel %vm318, %v351, %v363
      %365 = vst [vmem:[%s343 + $0x8] sm:$0x7] %v364
      %v366 = vld [vmem:[%s343 + $0x10] sm:$0x7]
      %v367 = vsel %vm318, %v353, %v366
      %368 = vst [vmem:[%s343 + $0x10] sm:$0x7] %v367
      %v369 = vld [vmem:[%s343 + $0x18] sm:$0x7]
      %v370 = vsel %vm318, %v355, %v369
      %371 = vst [vmem:[%s343 + $0x18] sm:$0x7] %v370
      %s372 = smul.u32 5, %s14
      %p373 = scmp.lt.s32.totalorder %s372, 9
      %s374 = scalar_select %p373, %s372, 9
      %s375 = smul.addr %s374, 2
      %s376 = smul.addr %s375, 4
      %s377 = scalar_lea.vmem %s3, %s376
      // Predicated region
      $region33: #{generator_forward.10} parent=31 // pred_check
        %p378 = pneg %p100
      $region34: #{generator_forward.10} parent=31 // pred_check_branch
        %380 = sbr.rel (%p378) target = $region36
      $region35: #{generator_forward.10} parent=31 // pred_region
        %s381 = smul.u32 5, %s14
      $region36: #{generator_forward.10} parent=31 // pred_fallthru
        _
    $region32: #{generator_forward.10} parent=5 // pred_fallthru
      _
    %p382 = scmp.le.s32.totalorder 2, %s9
    // Predicated region
    $region37: #{generator_forward.10} parent=5 // pred_check
      %p383 = pneg %p382
    $region38: #{generator_forward.10} parent=5 // pred_check_branch
      %385 = sbr.rel (%p383) target = $region40
    $region39: #{generator_forward.10} parent=5 // pred_region
      %s386 = ssub.s32 %s9, 2
      // Predicated region
      $region41: #{generator_forward.10} parent=39 // pred_check
        %p387 = pneg %p106
      $region42: #{generator_forward.10} parent=39 // pred_check_branch
        %389 = sbr.rel (%p387) target = $region44
      $region43: #{generator_forward.10} parent=39 // pred_region
        %s390 = smul.u32 5, %s15
        %p391 = scmp.lt.s32.totalorder %s390, 9
        %s392 = scalar_select %p391, %s390, 9
        %s393 = smul.addr %s392, 2
        %s394 = smul.addr %s393, 4
        %s395 = scalar_lea.vmem %s3, %s394
      $region44: #{generator_forward.10} parent=39 // pred_fallthru
        _
    $region40: #{generator_forward.10} parent=5 // pred_fallthru
      _
  $region6: #{generator_forward.10} parent=0 // loop_footer
    %s13 = sadd.s32 1, %s9
  $region7: #{generator_forward.10} parent=0 // loop_footer_branch
    %8 = sbr.rel target = $region3
  $region8: #{generator_forward.10} parent=0 // loop_exit
    _

// kernel: generator_forward.9
$region0: #{generator_forward.9}
  #allocation0 [shape = 'u32[]', space=smem, size = 0x4, offset = 0x4, fixed_abs, tag = 'smem constant byte address 0x4 - core index']
  #allocation1 [shape = 'u32[144,128]{1,0:T(1,128)}', space=vmem, size = 0x12000, scoped, tag = 'internal scratch']
  %s0 = inlined_call_operand.vmem [shape: bf16[2,6,6,64], index: 0, kind: input, shape index: {}]
  %s1 = inlined_call_operand.hbm [shape: bf16[576,128], index: 1, kind: input, shape index: {}]
  %s2 = inlined_call_operand.vmem [shape: bf16[2,4,4,128], index: 2, kind: output, shape index: {0}]
  %s3 = inlined_call_operand.vmem [shape: f32[2,2,128], index: 3, kind: output, shape index: {1}]
  %4 = xla_tuple %s2, %s3
  %s5 = sld [smem:[#allocation0]]
  $region60: #{generator_forward.9} parent=0
    _
  %s7 = ssub.s32 1, %s5
  %s8 = scalar_select 0, %s7, %s5
  $region1: #{generator_forward.9} parent=0
    #allocation2 [shape = 'u8[147456]{0}', space=vmem, size = 0x24000, scoped, tag = 'input window, operand 1, single buffered']
    #allocation3 [shape = 's32[2]{0}', space=sflag, size = 0x8, scoped, tag = 'scoped memory for generator_forward.9']
    %9 = vsyncpa [#allocation3], 0
    loop: start=0, step=1, limit=4
    $region2: #{generator_forward.9} parent=1 // loop_pre_header
      _
    $region3: #{generator_forward.9} parent=1 // loop_header
      %s11 = sphi 0, %s15
      %p12 = scmp.ge.s32.totalorder %s11, 4
      %s21 = sphi 0, %s23
      %s24 = sphi 0, %s21
      %s25 = sphi 0, %s24
      %s41 = sphi 0, %s25
      %s45 = sphi 0, %s45
      %s47 = sphi 0, %s45
      %s48 = sphi 0, %s47
      %s62 = sphi 0, %s48
      %s68 = sphi 0, %s70
      %s71 = sphi 0, %s68
      %s72 = sphi 0, %s71
      %s88 = sphi 0, %s72
      %s94 = sphi 0, %s96
      %s97 = sphi 0, %s94
      %s98 = sphi 0, %s97
      %s114 = sphi 0, %s98
    $region4: #{generator_forward.9} parent=1 // loop_header_branch
      %14 = sbr.rel (%p12) target = $region8
    $region5: #{generator_forward.9} parent=1 // loop_body
      %s16 = ssub.s32 %s11, 1
      %s17 = ssub.s32 %s11, 2
      %s18 = sadd.s32 %s11, 1
      %s19 = ssub.s32 %s11, %s18
      %p20 = scmp.eq.s32.totalorder %s19, 0
      %s22 = sadd.s32 %s21, 1
      %s23 = scalar_select %p20, %s21, %s22
      %p26 = pneg %p20
      %p27 = scmp.eq.s32.totalorder %s11, 1
      %p28 = por %p26, %p27
      %p29 = scmp.ne.s32.totalorder %s21, %s24
      %p30 = scmp.eq.s32.totalorder %s11, 0
      %p31 = por %p29, %p30
      %p32 = scmp.ne.s32.totalorder %s21, %s24
      %p33 = scmp.eq.s32.totalorder %s16, 1
      %p34 = por %p32, %p33
      %p35 = scmp.ne.s32.totalorder %s24, %s25
      %p36 = scmp.eq.s32.totalorder %s16, 0
      %p37 = por %p35, %p36
      %p38 = scmp.ne.s32.totalorder %s24, %s25
      %p39 = scmp.eq.s32.totalorder %s17, 1
      %p40 = por %p38, %p39
      %p42 = scmp.ne.s32.totalorder %s25, %s41
      %p43 = scmp.eq.s32.totalorder %s17, 0
      %p44 = por %p42, %p43
      %s46 = sadd.s32 %s45, 1
      %p49 = scmp.eq.s32.totalorder %s11, 1
      %p50 = scmp.ne.s32.totalorder %s45, %s47
      %p51 = scmp.eq.s32.totalorder %s11, 0
      %p52 = por %p50, %p51
      %p53 = scmp.ne.s32.totalorder %s45, %s47
      %p54 = scmp.eq.s32.totalorder %s16, 1
      %p55 = por %p53, %p54
      %p56 = scmp.ne.s32.totalorder %s47, %s48
      %p57 = scmp.eq.s32.totalorder %s16, 0
      %p58 = por %p56, %p57
      %p59 = scmp.ne.s32.totalorder %s47, %s48
      %p60 = scmp.eq.s32.totalorder %s17, 1
      %p61 = por %p59, %p60
      %p63 = scmp.ne.s32.totalorder %s48, %s62
      %p64 = scmp.eq.s32.totalorder %s17, 0
      %p65 = por %p63, %p64
      %s66 = ssub.s32 %s11, %s18
      %p67 = scmp.eq.s32.totalorder %s66, 0
      %s69 = sadd.s32 %s68, 1
      %s70 = scalar_select %p67, %s68, %s69
      %p73 = pneg %p67
      %p74 = scmp.eq.s32.totalorder %s11, 1
      %p75 = por %p73, %p74
      %p76 = scmp.ne.s32.totalorder %s68, %s71
      %p77 = scmp.eq.s32.totalorder %s11, 0
      %p78 = por %p76, %p77
      %p79 = scmp.ne.s32.totalorder %s68, %s71
      %p80 = scmp.eq.s32.totalorder %s16, 1
      %p81 = por %p79, %p80
      %p82 = scmp.ne.s32.totalorder %s71, %s72
      %p83 = scmp.eq.s32.totalorder %s16, 0
      %p84 = por %p82, %p83
      %p85 = scmp.ne.s32.totalorder %s71, %s72
      %p86 = scmp.eq.s32.totalorder %s17, 1
      %p87 = por %p85, %p86
      %p89 = scmp.ne.s32.totalorder %s72, %s88
      %p90 = scmp.eq.s32.totalorder %s17, 0
      %p91 = por %p89, %p90
      %s92 = ssub.s32 %s11, %s18
      %p93 = scmp.eq.s32.totalorder %s92, 0
      %s95 = sadd.s32 %s94, 1
      %s96 = scalar_select %p93, %s94, %s95
      %p99 = pneg %p93
      %p100 = scmp.eq.s32.totalorder %s11, 1
      %p101 = por %p99, %p100
      %p102 = scmp.ne.s32.totalorder %s94, %s97
      %p103 = scmp.eq.s32.totalorder %s11, 0
      %p104 = por %p102, %p103
      %p105 = scmp.ne.s32.totalorder %s94, %s97
      %p106 = scmp.eq.s32.totalorder %s16, 1
      %p107 = por %p105, %p106
      %p108 = scmp.ne.s32.totalorder %s97, %s98
      %p109 = scmp.eq.s32.totalorder %s16, 0
      %p110 = por %p108, %p109
      %p111 = scmp.ne.s32.totalorder %s97, %s98
      %p112 = scmp.eq.s32.totalorder %s17, 1
      %p113 = por %p111, %p112
      %p115 = scmp.ne.s32.totalorder %s98, %s114
      %p116 = scmp.eq.s32.totalorder %s17, 0
      %p117 = por %p115, %p116
      %p118 = scmp.le.s32.totalorder 1, %s11
      %p119 = scmp.lt.s32.totalorder %s11, 3
      %p120 = pnand %p118, %p119
      %p121 = pneg %p120
      // Predicated region
      $region9: #{generator_forward.9} parent=5 // pred_check
        _
      $region10: #{generator_forward.9} parent=5 // pred_check_branch
        %123 = sbr.rel (%p120) target = $region12
      $region11: #{generator_forward.9} parent=5 // pred_region
        %s124 = ssub.s32 %s11, 1
        // Predicated region
        $region13: #{generator_forward.9} parent=11 // pred_check
          %p125 = pneg %p58
        $region14: #{generator_forward.9} parent=11 // pred_check_branch
          %127 = sbr.rel (%p125) target = $region16
        $region15: #{generator_forward.9} parent=11 // pred_region
          %s129 = ssub.s32 4608, 4608
          %130 = vsyncadd [#allocation3], %s129
          %s131 = sshll.u32 [#allocation2], 4
          %s132 = int_to_ptr.vmem [resolvable:$true] %s131
          %137 = dma.hbm_to_vmem [thread:$0]  %s1, 4608, %s132, [#allocation3], 64, 64, 4
        $region16: #{generator_forward.9} parent=11 // pred_fallthru
          _
      $region12: #{generator_forward.9} parent=5 // pred_fallthru
        _
      %p138 = scmp.lt.s32.totalorder %s11, 2
      // Predicated region
      $region17: #{generator_forward.9} parent=5 // pred_check
        %p139 = pneg %p138
      $region18: #{generator_forward.9} parent=5 // pred_check_branch
        %141 = sbr.rel (%p139) target = $region20
      $region19: #{generator_forward.9} parent=5 // pred_region
        // Predicated region
        $region21: #{generator_forward.9} parent=19 // pred_check
          %p142 = pneg %p31
        $region22: #{generator_forward.9} parent=19 // pred_check_branch
          %144 = sbr.rel (%p142) target = $region24
        $region23: #{generator_forward.9} parent=19 // pred_region
          %p145 = scmp.lt.s32.totalorder %s11, 1
          %s146 = scalar_select %p145, %s11, 1
          %s147 = smul.addr %s146, 6
          %s148 = smul.addr %s147, 4
          %s149 = scalar_lea.vmem %s0, %s148
        $region24: #{generator_forward.9} parent=19 // pred_fallthru
          _
      $region20: #{generator_forward.9} parent=5 // pred_fallthru
        _
      %p150 = scmp.le.s32.totalorder 1, %s11
      %p151 = scmp.lt.s32.totalorder %s11, 3
      %p152 = pnand %p150, %p151
      %p153 = pneg %p152
      // Predicated region
      $region25: #{generator_forward.9} parent=5 // pred_check
        _
      $region26: #{generator_forward.9} parent=5 // pred_check_branch
        %155 = sbr.rel (%p152) target = $region28
      $region27: #{generator_forward.9} parent=5 // pred_region
        %s156 = ssub.s32 %s11, 1
        // Predicated region
        $region29: #{generator_forward.9} parent=27 // pred_check
          %p157 = pneg %p58
        $region30: #{generator_forward.9} parent=27 // pred_check_branch
          %159 = sbr.rel (%p157) target = $region32
        $region31: #{generator_forward.9} parent=27 // pred_region
          %160 = dma.done [#allocation3], 4608
        $region32: #{generator_forward.9} parent=27 // pred_fallthru
          _
        %p161 = scmp.lt.s32.totalorder %s16, 1
        %s162 = scalar_select %p161, %s16, 1
        %s163 = smul.addr %s162, 6
        %s164 = smul.addr %s163, 4
        %s165 = scalar_lea.vmem %s0, %s164
        %p166 = pneg %p37
        %p167 = pneg %p34
        %p168 = pneg %p58
        %p169 = pneg %p55
        %p170 = pneg %p84
        %p171 = pneg %p81
        %p172 = scmp.lt.s32.totalorder %s16, 1
        %s173 = scalar_select %p172, %s16, 1
        %s174 = smul.addr %s173, 4
        %s175 = smul.addr %s174, 2
        %s176 = scalar_lea.vmem %s2, %s175
        %p177 = pneg %p110
        %p178 = pneg %p107
        %p179 = scmp.lt.s32.totalorder %s16, 1
        %s180 = scalar_select %p179, %s16, 1
        %s181 = smul.addr %s180, 2
        %s182 = scalar_lea.vmem %s3, %s181
        %p183 = scmp.lt.s32.totalorder %s16, 1
        %s184 = scalar_select %p183, %s16, 1
        %s185 = smul.addr %s184, 6
        %s186 = smul.addr %s185, 4
        %s187 = scalar_lea.vmem %s0, %s186
        %p188 = scmp.lt.s32.totalorder %s16, 1
        %s189 = scalar_select %p188, %s16, 1
        %s190 = smul.addr %s189, 4
        %s191 = smul.addr %s190, 2
        %s192 = scalar_lea.vmem %s2, %s191
        %p193 = scmp.lt.s32.totalorder %s16, 1
        %s194 = scalar_select %p193, %s16, 1
        %s195 = smul.addr %s194, 2
        %s196 = scalar_lea.vmem %s3, %s195
        %v198 = vld [vmem:[#allocation2] sm:$0xf]
        %v199 = vld [vmem:[#allocation2 + $0x4] sm:$0xf]
        %v200 = vld [vmem:[#allocation2 + $0x8] sm:$0xf]
        %v201 = vld [vmem:[#allocation2 + $0xc] sm:$0xf]
        %v202 = vld [vmem:[#allocation2 + $0x10] sm:$0xf]
        %v203 = vld [vmem:[#allocation2 + $0x14] sm:$0xf]
        %v204 = vld [vmem:[#allocation2 + $0x18] sm:$0xf]
        %v205 = vld [vmem:[#allocation2 + $0x1c] sm:$0xf]
        %v206 = vld [vmem:[#allocation2 + $0x20] sm:$0xf]
        %v207 = vld [vmem:[#allocation2 + $0x24] sm:$0xf]
        %v208 = vld [vmem:[#allocation2 + $0x28] sm:$0xf]
        %v209 = vld [vmem:[#allocation2 + $0x2c] sm:$0xf]
        %v210 = vld [vmem:[#allocation2 + $0x30] sm:$0xf]
        %v211 = vld [vmem:[#allocation2 + $0x34] sm:$0xf]
        %v212 = vld [vmem:[#allocation2 + $0x38] sm:$0xf]
        %v213 = vld [vmem:[#allocation2 + $0x3c] sm:$0xf]
        %v214 = vld [vmem:[#allocation2 + $0x40] sm:$0xf]
        %v215 = vld [vmem:[#allocation2 + $0x44] sm:$0xf]
        %v216 = vld [vmem:[#allocation2 + $0x48] sm:$0xf]
        %v217 = vld [vmem:[#allocation2 + $0x4c] sm:$0xf]
        %v218 = vld [vmem:[#allocation2 + $0x50] sm:$0xf]
        %v219 = vld [vmem:[#allocation2 + $0x54] sm:$0xf]
        %v220 = vld [vmem:[#allocation2 + $0x58] sm:$0xf]
        %v221 = vld [vmem:[#allocation2 + $0x5c] sm:$0xf]
        %v222 = vld [vmem:[#allocation2 + $0x60] sm:$0xf]
        %v223 = vld [vmem:[#allocation2 + $0x64] sm:$0xf]
        %v224 = vld [vmem:[#allocation2 + $0x68] sm:$0xf]
        %v225 = vld [vmem:[#allocation2 + $0x6c] sm:$0xf]
        %v226 = vld [vmem:[#allocation2 + $0x70] sm:$0xf]
        %v227 = vld [vmem:[#allocation2 + $0x74] sm:$0xf]
        %v228 = vld [vmem:[#allocation2 + $0x78] sm:$0xf]
        %v229 = vld [vmem:[#allocation2 + $0x7c] sm:$0xf]
        %v230 = vld [vmem:[#allocation2 + $0x80] sm:$0xf]
        %v231 = vld [vmem:[#allocation2 + $0x84] sm:$0xf]
        %v232 = vld [vmem:[#allocation2 + $0x88] sm:$0xf]
        %v233 = vld [vmem:[#allocation2 + $0x8c] sm:$0xf]
        %v234 = vld [vmem:[#allocation2 + $0x90] sm:$0xf]
        %v235 = vld [vmem:[#allocation2 + $0x94] sm:$0xf]
        %v236 = vld [vmem:[#allocation2 + $0x98] sm:$0xf]
        %v237 = vld [vmem:[#allocation2 + $0x9c] sm:$0xf]
        %v238 = vld [vmem:[#allocation2 + $0xa0] sm:$0xf]
        %v239 = vld [vmem:[#allocation2 + $0xa4] sm:$0xf]
        %v240 = vld [vmem:[#allocation2 + $0xa8] sm:$0xf]
        %v241 = vld [vmem:[#allocation2 + $0xac] sm:$0xf]
        %v242 = vld [vmem:[#allocation2 + $0xb0] sm:$0xf]
        %v243 = vld [vmem:[#allocation2 + $0xb4] sm:$0xf]
        %v244 = vld [vmem:[#allocation2 + $0xb8] sm:$0xf]
        %v245 = vld [vmem:[#allocation2 + $0xbc] sm:$0xf]
        %v246 = vld [vmem:[#allocation2 + $0xc0] sm:$0xf]
        %v247 = vld [vmem:[#allocation2 + $0xc4] sm:$0xf]
        %v248 = vld [vmem:[#allocation2 + $0xc8] sm:$0xf]
        %v249 = vld [vmem:[#allocation2 + $0xcc] sm:$0xf]
        %v250 = vld [vmem:[#allocation2 + $0xd0] sm:$0xf]
        %v251 = vld [vmem:[#allocation2 + $0xd4] sm:$0xf]
        %v252 = vld [vmem:[#allocation2 + $0xd8] sm:$0xf]
        %v253 = vld [vmem:[#allocation2 + $0xdc] sm:$0xf]
        %v254 = vld [vmem:[#allocation2 + $0xe0] sm:$0xf]
        %v255 = vld [vmem:[#allocation2 + $0xe4] sm:$0xf]
        %v256 = vld [vmem:[#allocation2 + $0xe8] sm:$0xf]
        %v257 = vld [vmem:[#allocation2 + $0xec] sm:$0xf]
        %v258 = vld [vmem:[#allocation2 + $0xf0] sm:$0xf]
        %v259 = vld [vmem:[#allocation2 + $0xf4] sm:$0xf]
        %v260 = vld [vmem:[#allocation2 + $0xf8] sm:$0xf]
        %v261 = vld [vmem:[#allocation2 + $0xfc] sm:$0xf]
        %v262 = vld [vmem:[#allocation2 + $0x100] sm:$0xf]
        %v263 = vld [vmem:[#allocation2 + $0x104] sm:$0xf]
        %v264 = vld [vmem:[#allocation2 + $0x108] sm:$0xf]
        %v265 = vld [vmem:[#allocation2 + $0x10c] sm:$0xf]
        %v266 = vld [vmem:[#allocation2 + $0x110] sm:$0xf]
        %v267 = vld [vmem:[#allocation2 + $0x114] sm:$0xf]
        %v268 = vld [vmem:[#allocation2 + $0x118] sm:$0xf]
        %v269 = vld [vmem:[#allocation2 + $0x11c] sm:$0xf]
        loop: start=0, step=1, limit=4
        $region33: #{generator_forward.9} parent=27 // loop_pre_header
          _
        $region34: #{generator_forward.9} parent=27 // loop_header
          %s271 = sphi 0, %s275
          %p272 = scmp.ge.s32.totalorder %s271, 4
          %v276 = vphi 0.0, %v716
          %v277 = vphi 0.0, %v725
        $region35: #{generator_forward.9} parent=27 // loop_header_branch
          %274 = sbr.rel (%p272) target = $region39
        $region36: #{generator_forward.9} parent=27 // loop_body
          %s278 = smul.addr %s271, 4
          %s279 = scalar_lea.vmem %s187, %s278
          %v280 = vld [vmem:[%s279] sm:$0x3]
          %v281 = vld [vmem:[%s279] sm:$0x7]
          %v282 = vld [vmem:[%s279] sm:$0x6]
          %s283 = sadd.s32 %s271, 1
          %s284 = smul.addr %s283, 4
          %s285 = scalar_lea.vmem %s187, %s284
          %v286 = vld [vmem:[%s285] sm:$0x3]
          %v287 = vld [vmem:[%s285] sm:$0x7]
          %v288 = vld [vmem:[%s285] sm:$0x6]
          %s289 = sadd.s32 %s271, 2
          %s290 = smul.addr %s289, 4
          %s291 = scalar_lea.vmem %s187, %s290
          %v292 = vld [vmem:[%s291] sm:$0x3]
          %v293 = vld [vmem:[%s291] sm:$0x7]
          %v294 = vld [vmem:[%s291] sm:$0x6]
          %v296 = vunpack.c.l.b16 %v281
          %v297 = vpack.c.b16 %v296, %v296
          %v299 = vshrl.u32 %v297, 16
          %v301 = vshll.u32 %v297, 16
          %v303 = vrot.slane %v301, 1
          %v304 = vor.u32 %v299, %v303
          %305 = vrot.lane.b32.xlu0 %v304, 64
          %v306 = vpop.permute.xlu0 %305
          %v308 = vunpack.c.l.b16 %v282
          %v309 = vpack.c.b16 %v308, %v308
          %v310 = vrot.slane %v309, 1
          %v312 = vunpack.c.l.b16 %v286
          %v313 = vpack.c.b16 %v312, %v312
          %314 = vrot.lane.b32.xlu0 %v313, 64
          %v315 = vpop.permute.xlu0 %314
          %v317 = vunpack.c.l.b16 %v287
          %v318 = vpack.c.b16 %v317, %v317
          %v320 = vshrl.u32 %v318, 16
          %v322 = vshll.u32 %v318, 16
          %v324 = vrot.slane %v322, 1
          %v325 = vor.u32 %v320, %v324
          %v327 = vunpack.c.l.b16 %v288
          %v328 = vpack.c.b16 %v327, %v327
          %v329 = vrot.slane %v328, 1
          %330 = vrot.lane.b32.xlu0 %v329, 64
          %v331 = vpop.permute.xlu0 %330
          %v333 = vunpack.c.l.b16 %v293
          %v334 = vpack.c.b16 %v333, %v333
          %v336 = vshrl.u32 %v334, 16
          %v338 = vshll.u32 %v334, 16
          %v340 = vrot.slane %v338, 1
          %v341 = vor.u32 %v336, %v340
          %342 = vrot.lane.b32.xlu0 %v341, 64
          %v343 = vpop.permute.xlu0 %342
          %v345 = vunpack.c.l.b16 %v294
          %v346 = vpack.c.b16 %v345, %v345
          %v347 = vrot.slane %v346, 1
          %vm348 = vcmask 523264
          %v351 = vsel %vm348, %v280, %v306
          %v355 = vsel %vm348, %v310, %v315
          %v359 = vsel %vm348, %v325, %v331
          %v363 = vsel %vm348, %v292, %v343
          %v437 = vunpack.c.l.b16 %v198
          %v438 = vunpack.c.l.b16 %v199
          %v439 = vunpack.c.l.b16 %v200
          %v440 = vunpack.c.l.b16 %v201
          %v441 = vunpack.c.l.b16 %v202
          %v442 = vunpack.c.l.b16 %v203
          %v443 = vunpack.c.l.b16 %v204
          %v444 = vunpack.c.l.b16 %v205
          %v445 = vunpack.c.l.b16 %v206
          %v446 = vunpack.c.l.b16 %v207
          %v447 = vunpack.c.l.b16 %v208
          %v448 = vunpack.c.l.b16 %v209
          %v449 = vunpack.c.l.b16 %v210
          %v450 = vunpack.c.l.b16 %v211
          %v451 = vunpack.c.l.b16 %v212
          %v452 = vunpack.c.l.b16 %v213
          %v453 = vunpack.c.l.b16 %v214
          %v454 = vunpack.c.l.b16 %v215
          %v455 = vunpack.c.l.b16 %v216
          %v456 = vunpack.c.l.b16 %v217
          %v457 = vunpack.c.l.b16 %v218
          %v458 = vunpack.c.l.b16 %v219
          %v459 = vunpack.c.l.b16 %v220
          %v460 = vunpack.c.l.b16 %v221
          %v461 = vunpack.c.l.b16 %v222
          %v462 = vunpack.c.l.b16 %v223
          %v463 = vunpack.c.l.b16 %v224
          %v464 = vunpack.c.l.b16 %v225
          %v465 = vunpack.c.l.b16 %v226
          %v466 = vunpack.c.l.b16 %v227
          %v467 = vunpack.c.l.b16 %v228
          %v468 = vunpack.c.l.b16 %v229
          %v469 = vunpack.c.l.b16 %v230
          %v470 = vunpack.c.l.b16 %v231
          %v471 = vunpack.c.l.b16 %v232
          %v472 = vunpack.c.l.b16 %v233
          %v473 = vunpack.c.l.b16 %v234
          %v474 = vunpack.c.l.b16 %v235
          %v475 = vunpack.c.l.b16 %v236
          %v476 = vunpack.c.l.b16 %v237
          %v477 = vunpack.c.l.b16 %v238
          %v478 = vunpack.c.l.b16 %v239
          %v479 = vunpack.c.l.b16 %v240
          %v480 = vunpack.c.l.b16 %v241
          %v481 = vunpack.c.l.b16 %v242
          %v482 = vunpack.c.l.b16 %v243
          %v483 = vunpack.c.l.b16 %v244
          %v484 = vunpack.c.l.b16 %v245
          %v485 = vunpack.c.l.b16 %v246
          %v486 = vunpack.c.l.b16 %v247
          %v487 = vunpack.c.l.b16 %v248
          %v488 = vunpack.c.l.b16 %v249
          %v489 = vunpack.c.l.b16 %v250
          %v490 = vunpack.c.l.b16 %v251
          %v491 = vunpack.c.l.b16 %v252
          %v492 = vunpack.c.l.b16 %v253
          %v493 = vunpack.c.l.b16 %v254
          %v494 = vunpack.c.l.b16 %v255
          %v495 = vunpack.c.l.b16 %v256
          %v496 = vunpack.c.l.b16 %v257
          %v497 = vunpack.c.l.b16 %v258
          %v498 = vunpack.c.l.b16 %v259
          %v499 = vunpack.c.l.b16 %v260
          %v500 = vunpack.c.l.b16 %v261
          %v501 = vunpack.c.l.b16 %v262
          %v502 = vunpack.c.l.b16 %v263
          %v503 = vunpack.c.l.b16 %v264
          %v504 = vunpack.c.l.b16 %v265
          %v505 = vunpack.c.l.b16 %v266
          %v506 = vunpack.c.l.b16 %v267
          %v507 = vunpack.c.l.b16 %v268
          %v508 = vunpack.c.l.b16 %v269
          %v509 = vpack.c.b16 %v438, %v437
          %v510 = vpack.c.b16 %v440, %v439
          %v511 = vpack.c.b16 %v442, %v441
          %v512 = vpack.c.b16 %v444, %v443
          %v513 = vpack.c.b16 %v446, %v445
          %v514 = vpack.c.b16 %v448, %v447
          %v515 = vpack.c.b16 %v450, %v449
          %v516 = vpack.c.b16 %v452, %v451
          %v517 = vpack.c.b16 %v454, %v453
          %v518 = vpack.c.b16 %v456, %v455
          %v519 = vpack.c.b16 %v458, %v457
          %v520 = vpack.c.b16 %v460, %v459
          %v521 = vpack.c.b16 %v462, %v461
          %v522 = vpack.c.b16 %v464, %v463
          %v523 = vpack.c.b16 %v466, %v465
          %v524 = vpack.c.b16 %v468, %v467
          %v525 = vpack.c.b16 %v470, %v469
          %v526 = vpack.c.b16 %v472, %v471
          %v527 = vpack.c.b16 %v474, %v473
          %v528 = vpack.c.b16 %v476, %v475
          %v529 = vpack.c.b16 %v478, %v477
          %v530 = vpack.c.b16 %v480, %v479
          %v531 = vpack.c.b16 %v482, %v481
          %v532 = vpack.c.b16 %v484, %v483
          %v533 = vpack.c.b16 %v486, %v485
          %v534 = vpack.c.b16 %v488, %v487
          %v535 = vpack.c.b16 %v490, %v489
          %v536 = vpack.c.b16 %v492, %v491
          %v537 = vpack.c.b16 %v494, %v493
          %v538 = vpack.c.b16 %v496, %v495
          %v539 = vpack.c.b16 %v498, %v497
          %v540 = vpack.c.b16 %v500, %v499
          %v541 = vpack.c.b16 %v502, %v501
          %v542 = vpack.c.b16 %v504, %v503
          %v543 = vpack.c.b16 %v506, %v505
          %v544 = vpack.c.b16 %v508, %v507
          %v582 = vsel %vm348, %v347, 0
          %584 = vmatprep.subr.bf16.mxu0 0
          %585 = vmatpush1.bf16.msra.mxu0 %v516
          %586 = vmatprep.subr.bf16.mxu0 0
          %587 = vmatpush1.bf16.msra.mxu0 %v515
          %588 = vmatprep.subr.bf16.mxu0 0
          %589 = vmatpush1.bf16.msra.mxu0 %v514
          %590 = vmatprep.subr.bf16.mxu0 0
          %591 = vmatpush1.bf16.msra.mxu0 %v513
          %592 = vmatprep.subr.bf16.mxu0 0
          %593 = vmatpush1.bf16.msra.mxu0 %v512
          %594 = vmatprep.subr.bf16.mxu0 0
          %595 = vmatpush1.bf16.msra.mxu0 %v511
          %596 = vmatprep.subr.bf16.mxu0 0
          %597 = vmatpush1.bf16.msra.mxu0 %v510
          %598 = vmatprep.subr.bf16.mxu0 0
          %599 = vmatpush1.bf16.msra.mxu0 %v509
          %600 = vmatprep.subr.bf16.mxu0 0
          %601 = vmatpush2.bf16.msra.mxu0 %v524
          %602 = vmatprep.subr.bf16.mxu0 0
          %603 = vmatpush2.bf16.msra.mxu0 %v523
          %604 = vmatprep.subr.bf16.mxu0 0
          %605 = vmatpush2.bf16.msra.mxu0 %v522
          %606 = vmatprep.subr.bf16.mxu0 0
          %607 = vmatpush2.bf16.msra.mxu0 %v521
          %608 = vmatprep.subr.bf16.mxu0 0
          %609 = vmatpush2.bf16.msra.mxu0 %v520
          %610 = vmatprep.subr.bf16.mxu0 0
          %611 = vmatpush2.bf16.msra.mxu0 %v519
          %612 = vmatprep.subr.bf16.mxu0 0
          %613 = vmatpush2.bf16.msra.mxu0 %v518
          %614 = vmatprep.subr.bf16.mxu0 0
          %615 = vmatpush2.bf16.msra.mxu0 %v517
          %616 = vmatprep.mubr.bf16.mxu0 %v355
          %617 = vmatmul.mubr.bf16.gmra.mxu0 %v351
          %v618 = vpop.f32.mrf.mxu0
          %v619 = vadd.f32 0.0, %v618
          %v620 = vpop.f32.mrf.mxu0
          %v621 = vpop.f32.mrf.mxu0
          %v622 = vpop.f32.mrf.mxu0
          %623 = vdwg.mxu0
          %624 = vmatprep.subr.bf16.mxu0 0
          %625 = vmatpush1.bf16.msra.mxu0 %v532
          %626 = vmatprep.subr.bf16.mxu0 0
          %627 = vmatpush1.bf16.msra.mxu0 %v531
          %628 = vmatprep.subr.bf16.mxu0 0
          %629 = vmatpush1.bf16.msra.mxu0 %v530
          %630 = vmatprep.subr.bf16.mxu0 0
          %631 = vmatpush1.bf16.msra.mxu0 %v529
          %632 = vmatprep.subr.bf16.mxu0 0
          %633 = vmatpush1.bf16.msra.mxu0 %v528
          %634 = vmatprep.subr.bf16.mxu0 0
          %635 = vmatpush1.bf16.msra.mxu0 %v527
          %636 = vmatprep.subr.bf16.mxu0 0
          %637 = vmatpush1.bf16.msra.mxu0 %v526
          %638 = vmatprep.subr.bf16.mxu0 0
          %639 = vmatpush1.bf16.msra.mxu0 %v525
          %640 = vmatprep.subr.bf16.mxu0 0
          %641 = vmatpush2.bf16.msra.mxu0 %v540
          %642 = vmatprep.subr.bf16.mxu0 0
          %643 = vmatpush2.bf16.msra.mxu0 %v539
          %644 = vmatprep.subr.bf16.mxu0 0
          %645 = vmatpush2.bf16.msra.mxu0 %v538
          %646 = vmatprep.subr.bf16.mxu0 0
          %647 = vmatpush2.bf16.msra.mxu0 %v537
          %648 = vmatprep.subr.bf16.mxu0 0
          %649 = vmatpush2.bf16.msra.mxu0 %v536
          %650 = vmatprep.subr.bf16.mxu0 0
          %651 = vmatpush2.bf16.msra.mxu0 %v535
          %652 = vmatprep.subr.bf16.mxu0 0
          %653 = vmatpush2.bf16.msra.mxu0 %v534
          %654 = vmatprep.subr.bf16.mxu0 0
          %655 = vmatpush2.bf16.msra.mxu0 %v533
          %656 = vmatprep.mubr.bf16.mxu0 %v363
          %657 = vmatmul.mubr.bf16.gmra.mxu0 %v359
          %v658 = vpop.f32.mrf.mxu0
          %v659 = vadd.f32 %v619, %v658
          %v660 = vpop.f32.mrf.mxu0
          %v661 = vpop.f32.mrf.mxu0
          %v662 = vpop.f32.mrf.mxu0
          %663 = vdwg.mxu0
          %664 = vmatprep.subr.bf16.mxu0 0
          %665 = vmatpush1.bf16.msra.mxu0 0
          %666 = vmatprep.subr.bf16.mxu0 0
          %667 = vmatpush1.bf16.msra.mxu0 0
          %668 = vmatprep.subr.bf16.mxu0 0
          %669 = vmatpush1.bf16.msra.mxu0 0
          %670 = vmatprep.subr.bf16.mxu0 0
          %671 = vmatpush1.bf16.msra.mxu0 0
          %672 = vmatprep.subr.bf16.mxu0 0
          %673 = vmatpush1.bf16.msra.mxu0 %v544
          %674 = vmatprep.subr.bf16.mxu0 0
          %675 = vmatpush1.bf16.msra.mxu0 %v543
          %676 = vmatprep.subr.bf16.mxu0 0
          %677 = vmatpush1.bf16.msra.mxu0 %v542
          %678 = vmatprep.subr.bf16.mxu0 0
          %679 = vmatpush1.bf16.msra.mxu0 %v541
          %680 = vmatprep.subr.bf16.mxu0 0
          %681 = vmatpush2.bf16.msra.mxu0 0
          %682 = vmatprep.subr.bf16.mxu0 0
          %683 = vmatpush2.bf16.msra.mxu0 0
          %684 = vmatprep.subr.bf16.mxu0 0
          %685 = vmatpush2.bf16.msra.mxu0 0
          %686 = vmatprep.subr.bf16.mxu0 0
          %687 = vmatpush2.bf16.msra.mxu0 0
          %688 = vmatprep.subr.bf16.mxu0 0
          %689 = vmatpush2.bf16.msra.mxu0 0
          %690 = vmatprep.subr.bf16.mxu0 0
          %691 = vmatpush2.bf16.msra.mxu0 0
          %692 = vmatprep.subr.bf16.mxu0 0
          %693 = vmatpush2.bf16.msra.mxu0 0
          %694 = vmatprep.subr.bf16.mxu0 0
          %695 = vmatpush2.bf16.msra.mxu0 0
          %696 = vmatprep.mubr.bf16.mxu0 0
          %697 = vmatmul.mubr.bf16.gmra.mxu0 %v582
          %v698 = vpop.f32.mrf.mxu0
          %v699 = vadd.f32 %v659, %v698
          %v700 = vpop.f32.mrf.mxu0
          %v701 = vpop.f32.mrf.mxu0
          %v702 = vpop.f32.mrf.mxu0
          %703 = vdwg.mxu0
          %v704 = vpack.c.bf16 %v699, %v699
          %s705 = smul.addr %s271, 2
          %s706 = scalar_lea.vmem %s192, %s705
          %707 = vst [vmem:[%s706] sm:$0x3] %v704
          %vm708 = vcmask 1043456
          %v709 = vsel %vm708, %v699, 0.0
          %v710 = vrot.slane %v709, 4
          %v711 = vadd.f32 %v709, %v710
          %v712 = vrot.slane %v711, 2
          %v713 = vadd.f32 %v711, %v712
          %v714 = vrot.slane %v713, 1
          %v715 = vadd.f32 %v713, %v714
          %v716 = vadd.f32 %v276, %v715
          %v717 = vmul.f32 %v699, %v699
          %v718 = vsel %vm708, %v717, 0.0
          %v719 = vrot.slane %v718, 4
          %v720 = vadd.f32 %v718, %v719
          %v721 = vrot.slane %v720, 2
          %v722 = vadd.f32 %v720, %v721
          %v723 = vrot.slane %v722, 1
          %v724 = vadd.f32 %v722, %v723
          %v725 = vadd.f32 %v277, %v724
        $region37: #{generator_forward.9} parent=27 // loop_footer
          %s275 = sadd.s32 1, %s271
        $region38: #{generator_forward.9} parent=27 // loop_footer_branch
          %270 = sbr.rel target = $region34
        $region39: #{generator_forward.9} parent=27 // loop_exit
          _
        %vm726 = vcmask 1040384
        %v727 = vsel %vm726, %v276, %v277
        %728 = vst [vmem:[%s196] sm:$0x3] %v727
        %p729 = scmp.lt.s32.totalorder %s16, 1
        %s730 = scalar_select %p729, %s16, 1
        %s731 = smul.addr %s730, 4
        %s732 = smul.addr %s731, 2
        %s733 = scalar_lea.vmem %s2, %s732
        %p734 = scmp.lt.s32.totalorder %s16, 1
        %s735 = scalar_select %p734, %s16, 1
        %s736 = smul.addr %s735, 2
        %s737 = scalar_lea.vmem %s3, %s736
        // Predicated region
        $region40: #{generator_forward.9} parent=27 // pred_check
          %p738 = pneg %p81
        $region41: #{generator_forward.9} parent=27 // pred_check_branch
          %740 = sbr.rel (%p738) target = $region43
        $region42: #{generator_forward.9} parent=27 // pred_region
          _
        $region43: #{generator_forward.9} parent=27 // pred_fallthru
          _
        // Predicated region
        $region44: #{generator_forward.9} parent=27 // pred_check
          %p741 = pneg %p107
        $region45: #{generator_forward.9} parent=27 // pred_check_branch
          %743 = sbr.rel (%p741) target = $region47
        $region46: #{generator_forward.9} parent=27 // pred_region
          _
        $region47: #{generator_forward.9} parent=27 // pred_fallthru
          _
      $region28: #{generator_forward.9} parent=5 // pred_fallthru
        _
      %p744 = scmp.le.s32.totalorder 2, %s11
      // Predicated region
      $region48: #{generator_forward.9} parent=5 // pred_check
        %p745 = pneg %p744
      $region49: #{generator_forward.9} parent=5 // pred_check_branch
        %747 = sbr.rel (%p745) target = $region51
      $region50: #{generator_forward.9} parent=5 // pred_region
        %s748 = ssub.s32 %s11, 2
        // Predicated region
        $region52: #{generator_forward.9} parent=50 // pred_check
          %p749 = pneg %p87
        $region53: #{generator_forward.9} parent=50 // pred_check_branch
          %751 = sbr.rel (%p749) target = $region55
        $region54: #{generator_forward.9} parent=50 // pred_region
          %p752 = scmp.lt.s32.totalorder %s17, 1
          %s753 = scalar_select %p752, %s17, 1
          %s754 = smul.addr %s753, 4
          %s755 = smul.addr %s754, 2
          %s756 = scalar_lea.vmem %s2, %s755
        $region55: #{generator_forward.9} parent=50 // pred_fallthru
          _
        // Predicated region
        $region56: #{generator_forward.9} parent=50 // pred_check
          %p757 = pneg %p113
        $region57: #{generator_forward.9} parent=50 // pred_check_branch
          %759 = sbr.rel (%p757) target = $region59
        $region58: #{generator_forward.9} parent=50 // pred_region
          %p760 = scmp.lt.s32.totalorder %s17, 1
          %s761 = scalar_select %p760, %s17, 1
          %s762 = smul.addr %s761, 2
          %s763 = scalar_lea.vmem %s3, %s762
        $region59: #{generator_forward.9} parent=50 // pred_fallthru
          _
      $region51: #{generator_forward.9} parent=5 // pred_fallthru
        _
    $region6: #{generator_forward.9} parent=1 // loop_footer
      %s15 = sadd.s32 1, %s11
    $region7: #{generator_forward.9} parent=1 // loop_footer_branch
      %10 = sbr.rel target = $region3
    $region8: #{generator_forward.9} parent=1 // loop_exit
      _
    %764 = vsyncpa [#allocation3], 1
    %s765 = scalar_lea.sflag [#allocation3], 1
    %766 = vsyncpa %s765, 1

// kernel: squeeze.8
$region0: #{squeeze.8}
  %s0 = inlined_call_operand.vmem [shape: f32[64], index: 0, kind: input, shape index: {}]
  %s1 = inlined_call_operand.vmem [shape: f32[4,16], index: 1, kind: output, shape index: {}]
  $region1: #{squeeze.8} parent=0
    #allocation0 [shape = 'u8[4096]{0}', space=vmem, size = 0x1000, scoped, tag = 'scoped mem for output reshape']
    #allocation1 [shape = 'u8[4096]{0}', space=vmem, size = 0x1000, scoped, tag = 'scoped mem for input reshape']
    %s3 = sshll.u32 1, 1
    %s4 = ssub.s32 %s3, 1
    %v5 = vld [vmem:[%s0] sm:%s4]
    %6 = vst [vmem:[#allocation1] sm:%s4] %v5
    %v7 = vld [vmem:[#allocation1] sm:$0x1]
    %vm8 = vcmask 130048
    %9 = vst.msk [vmem:[#allocation0] sm:$0x1] %vm8, %v7
    %v10 = vld [vmem:[#allocation1] sm:$0x1]
    %11 = vrot.lane.b32.xlu0 %v10, 112
    %v12 = vpop.permute.xlu0 %11
    %vm13 = vcmask 130048
    %s14 = scalar_lea.vmem [#allocation0], 1
    %15 = vst.msk [vmem:[%s14] sm:$0x1] %vm13, %v12
    %v16 = vld [vmem:[#allocation1] sm:$0x1]
    %17 = vrot.lane.b32.xlu0 %v16, 96
    %v18 = vpop.permute.xlu0 %17
    %vm19 = vcmask 130048
    %s20 = scalar_lea.vmem [#allocation0], 2
    %21 = vst.msk [vmem:[%s20] sm:$0x1] %vm19, %v18
    %v22 = vld [vmem:[#allocation1] sm:$0x1]
    %23 = vrot.lane.b32.xlu0 %v22, 80
    %v24 = vpop.permute.xlu0 %23
    %vm25 = vcmask 130048
    %s26 = scalar_lea.vmem [#allocation0], 3
    %27 = vst.msk [vmem:[%s26] sm:$0x1] %vm25, %v24
    %s29 = sshll.u32 1, 4
    %s30 = ssub.s32 %s29, 1
    %v32 = vld [vmem:[#allocation0] sm:%s30]
    %s33 = sshll.u32 1, 4
    %s34 = ssub.s32 %s33, 1
    %35 = vst [vmem:[%s1] sm:%s34] %v32

// kernel: generator_forward.11
$region0: #{generator_forward.11}
  #allocation0 [shape = 'u32[]', space=smem, size = 0x4, offset = 0x4, fixed_abs, tag = 'smem constant byte address 0x4 - core index']
  #allocation1 [shape = 'u32[144,128]{1,0:T(1,128)}', space=vmem, size = 0x12000, scoped, tag = 'internal scratch']
  %s0 = inlined_call_operand.vmem [shape: bf16[2,10,10,32], index: 0, kind: input, shape index: {}]
  %s1 = inlined_call_operand.hbm [shape: bf16[288,128], index: 1, kind: input, shape index: {}]
  %s2 = inlined_call_operand.vmem [shape: bf16[2,8,8,128], index: 2, kind: output, shape index: {0}]
  %s3 = inlined_call_operand.vmem [shape: f32[2,2,128], index: 3, kind: output, shape index: {1}]
  %4 = xla_tuple %s2, %s3
  %s5 = sld [smem:[#allocation0]]
  $region60: #{generator_forward.11} parent=0
    _
  %s7 = ssub.s32 1, %s5
  %s8 = scalar_select 0, %s7, %s5
  $region1: #{generator_forward.11} parent=0
    #allocation2 [shape = 'u8[73728]{0}', space=vmem, size = 0x12000, scoped, tag = 'input window, operand 1, single buffered']
    #allocation3 [shape = 's32[2]{0}', space=sflag, size = 0x8, scoped, tag = 'scoped memory for generator_forward.11']
    %9 = vsyncpa [#allocation3], 0
    loop: start=0, step=1, limit=4
    $region2: #{generator_forward.11} parent=1 // loop_pre_header
      _
    $region3: #{generator_forward.11} parent=1 // loop_header
      %s11 = sphi 0, %s15
      %p12 = scmp.ge.s32.totalorder %s11, 4
      %s21 = sphi 0, %s23
      %s24 = sphi 0, %s21
      %s25 = sphi 0, %s24
      %s41 = sphi 0, %s25
      %s45 = sphi 0, %s45
      %s47 = sphi 0, %s45
      %s48 = sphi 0, %s47
      %s62 = sphi 0, %s48
      %s68 = sphi 0, %s70
      %s71 = sphi 0, %s68
      %s72 = sphi 0, %s71
      %s88 = sphi 0, %s72
      %s94 = sphi 0, %s96
      %s97 = sphi 0, %s94
      %s98 = sphi 0, %s97
      %s114 = sphi 0, %s98
    $region4: #{generator_forward.11} parent=1 // loop_header_branch
      %14 = sbr.rel (%p12) target = $region8
    $region5: #{generator_forward.11} parent=1 // loop_body
      %s16 = ssub.s32 %s11, 1
      %s17 = ssub.s32 %s11, 2
      %s18 = sadd.s32 %s11, 1
      %s19 = ssub.s32 %s11, %s18
      %p20 = scmp.eq.s32.totalorder %s19, 0
      %s22 = sadd.s32 %s21, 1
      %s23 = scalar_select %p20, %s21, %s22
      %p26 = pneg %p20
      %p27 = scmp.eq.s32.totalorder %s11, 1
      %p28 = por %p26, %p27
      %p29 = scmp.ne.s32.totalorder %s21, %s24
      %p30 = scmp.eq.s32.totalorder %s11, 0
      %p31 = por %p29, %p30
      %p32 = scmp.ne.s32.totalorder %s21, %s24
      %p33 = scmp.eq.s32.totalorder %s16, 1
      %p34 = por %p32, %p33
      %p35 = scmp.ne.s32.totalorder %s24, %s25
      %p36 = scmp.eq.s32.totalorder %s16, 0
      %p37 = por %p35, %p36
      %p38 = scmp.ne.s32.totalorder %s24, %s25
      %p39 = scmp.eq.s32.totalorder %s17, 1
      %p40 = por %p38, %p39
      %p42 = scmp.ne.s32.totalorder %s25, %s41
      %p43 = scmp.eq.s32.totalorder %s17, 0
      %p44 = por %p42, %p43
      %s46 = sadd.s32 %s45, 1
      %p49 = scmp.eq.s32.totalorder %s11, 1
      %p50 = scmp.ne.s32.totalorder %s45, %s47
      %p51 = scmp.eq.s32.totalorder %s11, 0
      %p52 = por %p50, %p51
      %p53 = scmp.ne.s32.totalorder %s45, %s47
      %p54 = scmp.eq.s32.totalorder %s16, 1
      %p55 = por %p53, %p54
      %p56 = scmp.ne.s32.totalorder %s47, %s48
      %p57 = scmp.eq.s32.totalorder %s16, 0
      %p58 = por %p56, %p57
      %p59 = scmp.ne.s32.totalorder %s47, %s48
      %p60 = scmp.eq.s32.totalorder %s17, 1
      %p61 = por %p59, %p60
      %p63 = scmp.ne.s32.totalorder %s48, %s62
      %p64 = scmp.eq.s32.totalorder %s17, 0
      %p65 = por %p63, %p64
      %s66 = ssub.s32 %s11, %s18
      %p67 = scmp.eq.s32.totalorder %s66, 0
      %s69 = sadd.s32 %s68, 1
      %s70 = scalar_select %p67, %s68, %s69
      %p73 = pneg %p67
      %p74 = scmp.eq.s32.totalorder %s11, 1
      %p75 = por %p73, %p74
      %p76 = scmp.ne.s32.totalorder %s68, %s71
      %p77 = scmp.eq.s32.totalorder %s11, 0
      %p78 = por %p76, %p77
      %p79 = scmp.ne.s32.totalorder %s68, %s71
      %p80 = scmp.eq.s32.totalorder %s16, 1
      %p81 = por %p79, %p80
      %p82 = scmp.ne.s32.totalorder %s71, %s72
      %p83 = scmp.eq.s32.totalorder %s16, 0
      %p84 = por %p82, %p83
      %p85 = scmp.ne.s32.totalorder %s71, %s72
      %p86 = scmp.eq.s32.totalorder %s17, 1
      %p87 = por %p85, %p86
      %p89 = scmp.ne.s32.totalorder %s72, %s88
      %p90 = scmp.eq.s32.totalorder %s17, 0
      %p91 = por %p89, %p90
      %s92 = ssub.s32 %s11, %s18
      %p93 = scmp.eq.s32.totalorder %s92, 0
      %s95 = sadd.s32 %s94, 1
      %s96 = scalar_select %p93, %s94, %s95
      %p99 = pneg %p93
      %p100 = scmp.eq.s32.totalorder %s11, 1
      %p101 = por %p99, %p100
      %p102 = scmp.ne.s32.totalorder %s94, %s97
      %p103 = scmp.eq.s32.totalorder %s11, 0
      %p104 = por %p102, %p103
      %p105 = scmp.ne.s32.totalorder %s94, %s97
      %p106 = scmp.eq.s32.totalorder %s16, 1
      %p107 = por %p105, %p106
      %p108 = scmp.ne.s32.totalorder %s97, %s98
      %p109 = scmp.eq.s32.totalorder %s16, 0
      %p110 = por %p108, %p109
      %p111 = scmp.ne.s32.totalorder %s97, %s98
      %p112 = scmp.eq.s32.totalorder %s17, 1
      %p113 = por %p111, %p112
      %p115 = scmp.ne.s32.totalorder %s98, %s114
      %p116 = scmp.eq.s32.totalorder %s17, 0
      %p117 = por %p115, %p116
      %p118 = scmp.le.s32.totalorder 1, %s11
      %p119 = scmp.lt.s32.totalorder %s11, 3
      %p120 = pnand %p118, %p119
      %p121 = pneg %p120
      // Predicated region
      $region9: #{generator_forward.11} parent=5 // pred_check
        _
      $region10: #{generator_forward.11} parent=5 // pred_check_branch
        %123 = sbr.rel (%p120) target = $region12
      $region11: #{generator_forward.11} parent=5 // pred_region
        %s124 = ssub.s32 %s11, 1
        // Predicated region
        $region13: #{generator_forward.11} parent=11 // pred_check
          %p125 = pneg %p58
        $region14: #{generator_forward.11} parent=11 // pred_check_branch
          %127 = sbr.rel (%p125) target = $region16
        $region15: #{generator_forward.11} parent=11 // pred_region
          %s129 = ssub.s32 2304, 2304
          %130 = vsyncadd [#allocation3], %s129
          %s131 = sshll.u32 [#allocation2], 4
          %s132 = int_to_ptr.vmem [resolvable:$true] %s131
          %137 = dma.hbm_to_vmem [thread:$0]  %s1, 2304, %s132, [#allocation3], 64, 64, 4
        $region16: #{generator_forward.11} parent=11 // pred_fallthru
          _
      $region12: #{generator_forward.11} parent=5 // pred_fallthru
        _
      %p138 = scmp.lt.s32.totalorder %s11, 2
      // Predicated region
      $region17: #{generator_forward.11} parent=5 // pred_check
        %p139 = pneg %p138
      $region18: #{generator_forward.11} parent=5 // pred_check_branch
        %141 = sbr.rel (%p139) target = $region20
      $region19: #{generator_forward.11} parent=5 // pred_region
        // Predicated region
        $region21: #{generator_forward.11} parent=19 // pred_check
          %p142 = pneg %p31
        $region22: #{generator_forward.11} parent=19 // pred_check_branch
          %144 = sbr.rel (%p142) target = $region24
        $region23: #{generator_forward.11} parent=19 // pred_region
          %p145 = scmp.lt.s32.totalorder %s11, 1
          %s146 = scalar_select %p145, %s11, 1
          %s147 = smul.addr %s146, 20
          %s148 = smul.addr %s147, 4
          %s149 = scalar_lea.vmem %s0, %s148
        $region24: #{generator_forward.11} parent=19 // pred_fallthru
          _
      $region20: #{generator_forward.11} parent=5 // pred_fallthru
        _
      %p150 = scmp.le.s32.totalorder 1, %s11
      %p151 = scmp.lt.s32.totalorder %s11, 3
      %p152 = pnand %p150, %p151
      %p153 = pneg %p152
      // Predicated region
      $region25: #{generator_forward.11} parent=5 // pred_check
        _
      $region26: #{generator_forward.11} parent=5 // pred_check_branch
        %155 = sbr.rel (%p152) target = $region28
      $region27: #{generator_forward.11} parent=5 // pred_region
        %s156 = ssub.s32 %s11, 1
        // Predicated region
        $region29: #{generator_forward.11} parent=27 // pred_check
          %p157 = pneg %p58
        $region30: #{generator_forward.11} parent=27 // pred_check_branch
          %159 = sbr.rel (%p157) target = $region32
        $region31: #{generator_forward.11} parent=27 // pred_region
          %160 = dma.done [#allocation3], 2304
        $region32: #{generator_forward.11} parent=27 // pred_fallthru
          _
        %p161 = scmp.lt.s32.totalorder %s16, 1
        %s162 = scalar_select %p161, %s16, 1
        %s163 = smul.addr %s162, 20
        %s164 = smul.addr %s163, 4
        %s165 = scalar_lea.vmem %s0, %s164
        %p166 = pneg %p37
        %p167 = pneg %p34
        %p168 = pneg %p58
        %p169 = pneg %p55
        %p170 = pneg %p84
        %p171 = pneg %p81
        %p172 = scmp.lt.s32.totalorder %s16, 1
        %s173 = scalar_select %p172, %s16, 1
        %s174 = smul.addr %s173, 8
        %s175 = smul.addr %s174, 4
        %s176 = scalar_lea.vmem %s2, %s175
        %p177 = pneg %p110
        %p178 = pneg %p107
        %p179 = scmp.lt.s32.totalorder %s16, 1
        %s180 = scalar_select %p179, %s16, 1
        %s181 = smul.addr %s180, 2
        %s182 = scalar_lea.vmem %s3, %s181
        %p183 = scmp.lt.s32.totalorder %s16, 1
        %s184 = scalar_select %p183, %s16, 1
        %s185 = smul.addr %s184, 20
        %s186 = smul.addr %s185, 4
        %s187 = scalar_lea.vmem %s0, %s186
        %p188 = scmp.lt.s32.totalorder %s16, 1
        %s189 = scalar_select %p188, %s16, 1
        %s190 = smul.addr %s189, 8
        %s191 = smul.addr %s190, 4
        %s192 = scalar_lea.vmem %s2, %s191
        %p193 = scmp.lt.s32.totalorder %s16, 1
        %s194 = scalar_select %p193, %s16, 1
        %s195 = smul.addr %s194, 2
        %s196 = scalar_lea.vmem %s3, %s195
        %v198 = vld [vmem:[#allocation2] sm:$0xf]
        %v199 = vld [vmem:[#allocation2 + $0x4] sm:$0xf]
        %v200 = vld [vmem:[#allocation2 + $0x8] sm:$0xf]
        %v201 = vld [vmem:[#allocation2 + $0xc] sm:$0xf]
        %v202 = vld [vmem:[#allocation2 + $0x10] sm:$0xf]
        %v203 = vld [vmem:[#allocation2 + $0x14] sm:$0xf]
        %v204 = vld [vmem:[#allocation2 + $0x18] sm:$0xf]
        %v205 = vld [vmem:[#allocation2 + $0x1c] sm:$0xf]
        %v206 = vld [vmem:[#allocation2 + $0x20] sm:$0xf]
        %v207 = vld [vmem:[#allocation2 + $0x24] sm:$0xf]
        %v208 = vld [vmem:[#allocation2 + $0x28] sm:$0xf]
        %v209 = vld [vmem:[#allocation2 + $0x2c] sm:$0xf]
        %v210 = vld [vmem:[#allocation2 + $0x30] sm:$0xf]
        %v211 = vld [vmem:[#allocation2 + $0x34] sm:$0xf]
        %v212 = vld [vmem:[#allocation2 + $0x38] sm:$0xf]
        %v213 = vld [vmem:[#allocation2 + $0x3c] sm:$0xf]
        %v214 = vld [vmem:[#allocation2 + $0x40] sm:$0xf]
        %v215 = vld [vmem:[#allocation2 + $0x44] sm:$0xf]
        %v216 = vld [vmem:[#allocation2 + $0x48] sm:$0xf]
        %v217 = vld [vmem:[#allocation2 + $0x4c] sm:$0xf]
        %v218 = vld [vmem:[#allocation2 + $0x50] sm:$0xf]
        %v219 = vld [vmem:[#allocation2 + $0x54] sm:$0xf]
        %v220 = vld [vmem:[#allocation2 + $0x58] sm:$0xf]
        %v221 = vld [vmem:[#allocation2 + $0x5c] sm:$0xf]
        %v222 = vld [vmem:[#allocation2 + $0x60] sm:$0xf]
        %v223 = vld [vmem:[#allocation2 + $0x64] sm:$0xf]
        %v224 = vld [vmem:[#allocation2 + $0x68] sm:$0xf]
        %v225 = vld [vmem:[#allocation2 + $0x6c] sm:$0xf]
        %v226 = vld [vmem:[#allocation2 + $0x70] sm:$0xf]
        %v227 = vld [vmem:[#allocation2 + $0x74] sm:$0xf]
        %v228 = vld [vmem:[#allocation2 + $0x78] sm:$0xf]
        %v229 = vld [vmem:[#allocation2 + $0x7c] sm:$0xf]
        %v230 = vld [vmem:[#allocation2 + $0x80] sm:$0xf]
        %v231 = vld [vmem:[#allocation2 + $0x84] sm:$0xf]
        %v232 = vld [vmem:[#allocation2 + $0x88] sm:$0xf]
        %v233 = vld [vmem:[#allocation2 + $0x8c] sm:$0xf]
        loop: start=0, step=1, limit=8
        $region33: #{generator_forward.11} parent=27 // loop_pre_header
          _
        $region34: #{generator_forward.11} parent=27 // loop_header
          %s235 = sphi 0, %s239
          %p236 = scmp.ge.s32.totalorder %s235, 8
          %v240 = vphi 0.0, %v544
          %v241 = vphi 0.0, %v552
        $region35: #{generator_forward.11} parent=27 // loop_header_branch
          %238 = sbr.rel (%p236) target = $region39
        $region36: #{generator_forward.11} parent=27 // loop_body
          %s242 = smul.u32 %s235, 2
          %s243 = smul.addr %s242, 4
          %s244 = scalar_lea.vmem %s187, %s243
          %v245 = vld [vmem:[%s244] sm:$0xf]
          %v246 = vld [vmem:[%s244 + $0x4] sm:$0x1]
          %v247 = vld [vmem:[%s244] sm:$0xe]
          %s248 = sadd.s32 %s235, 1
          %s249 = smul.u32 %s248, 2
          %s250 = smul.addr %s249, 4
          %s251 = scalar_lea.vmem %s187, %s250
          %v252 = vld [vmem:[%s251] sm:$0xf]
          %v253 = vld [vmem:[%s251 + $0x4] sm:$0x1]
          %v254 = vld [vmem:[%s251] sm:$0xe]
          %s255 = sadd.s32 %s235, 2
          %s256 = smul.u32 %s255, 2
          %s257 = smul.addr %s256, 4
          %s258 = scalar_lea.vmem %s187, %s257
          %v259 = vld [vmem:[%s258] sm:$0xf]
          %v260 = vld [vmem:[%s258 + $0x4] sm:$0x1]
          %v261 = vld [vmem:[%s258] sm:$0xe]
          %v264 = vunpack.c.l.b16 %v245
          %v265 = vunpack.c.l.b16 %v246
          %v266 = vpack.c.b16 %v265, %v264
          %v268 = vshrl.u32 %v266, 16
          %v270 = vshll.u32 %v266, 16
          %v272 = vrot.slane %v270, 1
          %v273 = vor.u32 %v268, %v272
          %274 = vrot.lane.b32.xlu0 %v273, 32
          %v275 = vpop.permute.xlu0 %274
          %v277 = vunpack.c.l.b16 %v247
          %v278 = vpack.c.b16 %v265, %v277
          %v279 = vrot.slane %v278, 1
          %280 = vrot.lane.b32.xlu0 %v279, 64
          %v281 = vpop.permute.xlu0 %280
          %v283 = vunpack.c.l.b16 %v252
          %v284 = vpack.c.b16 %v283, %v283
          %285 = vrot.lane.b32.xlu0 %v284, 96
          %v286 = vpop.permute.xlu0 %285
          %v288 = vunpack.c.l.b16 %v253
          %v289 = vpack.c.b16 %v288, %v283
          %v291 = vshrl.u32 %v289, 16
          %v293 = vshll.u32 %v289, 16
          %v295 = vrot.slane %v293, 1
          %v296 = vor.u32 %v291, %v295
          %v298 = vunpack.c.l.b16 %v254
          %v299 = vpack.c.b16 %v288, %v298
          %v300 = vrot.slane %v299, 1
          %301 = vrot.lane.b32.xlu0 %v300, 32
          %v302 = vpop.permute.xlu0 %301
          %v304 = vunpack.c.l.b16 %v259
          %v305 = vpack.c.b16 %v304, %v304
          %306 = vrot.lane.b32.xlu0 %v305, 64
          %v307 = vpop.permute.xlu0 %306
          %v309 = vunpack.c.l.b16 %v260
          %v310 = vpack.c.b16 %v309, %v304
          %v312 = vshrl.u32 %v310, 16
          %v314 = vshll.u32 %v310, 16
          %v316 = vrot.slane %v314, 1
          %v317 = vor.u32 %v312, %v316
          %318 = vrot.lane.b32.xlu0 %v317, 96
          %v319 = vpop.permute.xlu0 %318
          %v321 = vunpack.c.l.b16 %v261
          %v322 = vpack.c.b16 %v309, %v321
          %v323 = vrot.slane %v322, 1
          %vm324 = vcmask 261120
          %v327 = vsel %vm324, %v245, %v275
          %vm328 = vcmask 523264
          %v330 = vsel %vm328, %v327, %v281
          %vm331 = vcmask 785408
          %v333 = vsel %vm331, %v330, %v286
          %v337 = vsel %vm324, %v296, %v302
          %v339 = vsel %vm328, %v337, %v307
          %v341 = vsel %vm331, %v339, %v319
          %v379 = vunpack.c.l.b16 %v198
          %v380 = vunpack.c.l.b16 %v199
          %v381 = vunpack.c.l.b16 %v200
          %v382 = vunpack.c.l.b16 %v201
          %v383 = vunpack.c.l.b16 %v202
          %v384 = vunpack.c.l.b16 %v203
          %v385 = vunpack.c.l.b16 %v204
          %v386 = vunpack.c.l.b16 %v205
          %v387 = vunpack.c.l.b16 %v206
          %v388 = vunpack.c.l.b16 %v207
          %v389 = vunpack.c.l.b16 %v208
          %v390 = vunpack.c.l.b16 %v209
          %v391 = vunpack.c.l.b16 %v210
          %v392 = vunpack.c.l.b16 %v211
          %v393 = vunpack.c.l.b16 %v212
          %v394 = vunpack.c.l.b16 %v213
          %v395 = vunpack.c.l.b16 %v214
          %v396 = vunpack.c.l.b16 %v215
          %v397 = vunpack.c.l.b16 %v216
          %v398 = vunpack.c.l.b16 %v217
          %v399 = vunpack.c.l.b16 %v218
          %v400 = vunpack.c.l.b16 %v219
          %v401 = vunpack.c.l.b16 %v220
          %v402 = vunpack.c.l.b16 %v221
          %v403 = vunpack.c.l.b16 %v222
          %v404 = vunpack.c.l.b16 %v223
          %v405 = vunpack.c.l.b16 %v224
          %v406 = vunpack.c.l.b16 %v225
          %v407 = vunpack.c.l.b16 %v226
          %v408 = vunpack.c.l.b16 %v227
          %v409 = vunpack.c.l.b16 %v228
          %v410 = vunpack.c.l.b16 %v229
          %v411 = vunpack.c.l.b16 %v230
          %v412 = vunpack.c.l.b16 %v231
          %v413 = vunpack.c.l.b16 %v232
          %v414 = vunpack.c.l.b16 %v233
          %v415 = vpack.c.b16 %v380, %v379
          %v416 = vpack.c.b16 %v382, %v381
          %v417 = vpack.c.b16 %v384, %v383
          %v418 = vpack.c.b16 %v386, %v385
          %v419 = vpack.c.b16 %v388, %v387
          %v420 = vpack.c.b16 %v390, %v389
          %v421 = vpack.c.b16 %v392, %v391
          %v422 = vpack.c.b16 %v394, %v393
          %v423 = vpack.c.b16 %v396, %v395
          %v424 = vpack.c.b16 %v398, %v397
          %v425 = vpack.c.b16 %v400, %v399
          %v426 = vpack.c.b16 %v402, %v401
          %v427 = vpack.c.b16 %v404, %v403
          %v428 = vpack.c.b16 %v406, %v405
          %v429 = vpack.c.b16 %v408, %v407
          %v430 = vpack.c.b16 %v410, %v409
          %v431 = vpack.c.b16 %v412, %v411
          %v432 = vpack.c.b16 %v414, %v413
          %v452 = vsel %vm324, %v323, 0
          %454 = vmatprep.subr.bf16.mxu0 0
          %455 = vmatpush1.bf16.msra.mxu0 %v422
          %456 = vmatprep.subr.bf16.mxu0 0
          %457 = vmatpush1.bf16.msra.mxu0 %v421
          %458 = vmatprep.subr.bf16.mxu0 0
          %459 = vmatpush1.bf16.msra.mxu0 %v420
          %460 = vmatprep.subr.bf16.mxu0 0
          %461 = vmatpush1.bf16.msra.mxu0 %v419
          %462 = vmatprep.subr.bf16.mxu0 0
          %463 = vmatpush1.bf16.msra.mxu0 %v418
          %464 = vmatprep.subr.bf16.mxu0 0
          %465 = vmatpush1.bf16.msra.mxu0 %v417
          %466 = vmatprep.subr.bf16.mxu0 0
          %467 = vmatpush1.bf16.msra.mxu0 %v416
          %468 = vmatprep.subr.bf16.mxu0 0
          %469 = vmatpush1.bf16.msra.mxu0 %v415
          %470 = vmatprep.subr.bf16.mxu0 0
          %471 = vmatpush2.bf16.msra.mxu0 %v430
          %472 = vmatprep.subr.bf16.mxu0 0
          %473 = vmatpush2.bf16.msra.mxu0 %v429
          %474 = vmatprep.subr.bf16.mxu0 0
          %475 = vmatpush2.bf16.msra.mxu0 %v428
          %476 = vmatprep.subr.bf16.mxu0 0
          %477 = vmatpush2.bf16.msra.mxu0 %v427
          %478 = vmatprep.subr.bf16.mxu0 0
          %479 = vmatpush2.bf16.msra.mxu0 %v426
          %480 = vmatprep.subr.bf16.mxu0 0
          %481 = vmatpush2.bf16.msra.mxu0 %v425
          %482 = vmatprep.subr.bf16.mxu0 0
          %483 = vmatpush2.bf16.msra.mxu0 %v424
          %484 = vmatprep.subr.bf16.mxu0 0
          %485 = vmatpush2.bf16.msra.mxu0 %v423
          %486 = vmatprep.mubr.bf16.mxu0 %v341
          %487 = vmatmul.mubr.bf16.gmra.mxu0 %v333
          %v488 = vpop.f32.mrf.mxu0
          %v489 = vadd.f32 0.0, %v488
          %v490 = vpop.f32.mrf.mxu0
          %v491 = vpop.f32.mrf.mxu0
          %v492 = vpop.f32.mrf.mxu0
          %493 = vdwg.mxu0
          %494 = vmatprep.subr.bf16.mxu0 0
          %495 = vmatpush1.bf16.msra.mxu0 0
          %496 = vmatprep.subr.bf16.mxu0 0
          %497 = vmatpush1.bf16.msra.mxu0 0
          %498 = vmatprep.subr.bf16.mxu0 0
          %499 = vmatpush1.bf16.msra.mxu0 0
          %500 = vmatprep.subr.bf16.mxu0 0
          %501 = vmatpush1.bf16.msra.mxu0 0
          %502 = vmatprep.subr.bf16.mxu0 0
          %503 = vmatpush1.bf16.msra.mxu0 0
          %504 = vmatprep.subr.bf16.mxu0 0
          %505 = vmatpush1.bf16.msra.mxu0 0
          %506 = vmatprep.subr.bf16.mxu0 0
          %507 = vmatpush1.bf16.msra.mxu0 %v432
          %508 = vmatprep.subr.bf16.mxu0 0
          %509 = vmatpush1.bf16.msra.mxu0 %v431
          %510 = vmatprep.subr.bf16.mxu0 0
          %511 = vmatpush2.bf16.msra.mxu0 0
          %512 = vmatprep.subr.bf16.mxu0 0
          %513 = vmatpush2.bf16.msra.mxu0 0
          %514 = vmatprep.subr.bf16.mxu0 0
          %515 = vmatpush2.bf16.msra.mxu0 0
          %516 = vmatprep.subr.bf16.mxu0 0
          %517 = vmatpush2.bf16.msra.mxu0 0
          %518 = vmatprep.subr.bf16.mxu0 0
          %519 = vmatpush2.bf16.msra.mxu0 0
          %520 = vmatprep.subr.bf16.mxu0 0
          %521 = vmatpush2.bf16.msra.mxu0 0
          %522 = vmatprep.subr.bf16.mxu0 0
          %523 = vmatpush2.bf16.msra.mxu0 0
          %524 = vmatprep.subr.bf16.mxu0 0
          %525 = vmatpush2.bf16.msra.mxu0 0
          %526 = vmatprep.mubr.bf16.mxu0 0
          %527 = vmatmul.mubr.bf16.gmra.mxu0 %v452
          %v528 = vpop.f32.mrf.mxu0
          %v529 = vadd.f32 %v489, %v528
          %v530 = vpop.f32.mrf.mxu0
          %v531 = vpop.f32.mrf.mxu0
          %v532 = vpop.f32.mrf.mxu0
          %533 = vdwg.mxu0
          %v534 = vpack.c.bf16 %v529, %v529
          %s535 = smul.addr %s235, 4
          %s536 = scalar_lea.vmem %s192, %s535
          %537 = vst [vmem:[%s536] sm:$0xf] %v534
          %v538 = vrot.slane %v529, 4
          %v539 = vadd.f32 %v529, %v538
          %v540 = vrot.slane %v539, 2
          %v541 = vadd.f32 %v539, %v540
          %v542 = vrot.slane %v541, 1
          %v543 = vadd.f32 %v541, %v542
          %v544 = vadd.f32 %v240, %v543
          %v545 = vmul.f32 %v529, %v529
          %v546 = vrot.slane %v545, 4
          %v547 = vadd.f32 %v545, %v546
          %v548 = vrot.slane %v547, 2
          %v549 = vadd.f32 %v547, %v548
          %v550 = vrot.slane %v549, 1
          %v551 = vadd.f32 %v549, %v550
          %v552 = vadd.f32 %v241, %v551
        $region37: #{generator_forward.11} parent=27 // loop_footer
          %s239 = sadd.s32 1, %s235
        $region38: #{generator_forward.11} parent=27 // loop_footer_branch
          %234 = sbr.rel target = $region34
        $region39: #{generator_forward.11} parent=27 // loop_exit
          _
        %vm553 = vcmask 1040384
        %v554 = vsel %vm553, %v240, %v241
        %555 = vst [vmem:[%s196] sm:$0x3] %v554
        %p556 = scmp.lt.s32.totalorder %s16, 1
        %s557 = scalar_select %p556, %s16, 1
        %s558 = smul.addr %s557, 8
        %s559 = smul.addr %s558, 4
        %s560 = scalar_lea.vmem %s2, %s559
        %p561 = scmp.lt.s32.totalorder %s16, 1
        %s562 = scalar_select %p561, %s16, 1
        %s563 = smul.addr %s562, 2
        %s564 = scalar_lea.vmem %s3, %s563
        // Predicated region
        $region40: #{generator_forward.11} parent=27 // pred_check
          %p565 = pneg %p81
        $region41: #{generator_forward.11} parent=27 // pred_check_branch
          %567 = sbr.rel (%p565) target = $region43
        $region42: #{generator_forward.11} parent=27 // pred_region
          _
        $region43: #{generator_forward.11} parent=27 // pred_fallthru
          _
        // Predicated region
        $region44: #{generator_forward.11} parent=27 // pred_check
          %p568 = pneg %p107
        $region45: #{generator_forward.11} parent=27 // pred_check_branch
          %570 = sbr.rel (%p568) target = $region47
        $region46: #{generator_forward.11} parent=27 // pred_region
          _
        $region47: #{generator_forward.11} parent=27 // pred_fallthru
          _
      $region28: #{generator_forward.11} parent=5 // pred_fallthru
        _
      %p571 = scmp.le.s32.totalorder 2, %s11
      // Predicated region
      $region48: #{generator_forward.11} parent=5 // pred_check
        %p572 = pneg %p571
      $region49: #{generator_forward.11} parent=5 // pred_check_branch
        %574 = sbr.rel (%p572) target = $region51
      $region50: #{generator_forward.11} parent=5 // pred_region
        %s575 = ssub.s32 %s11, 2
        // Predicated region
        $region52: #{generator_forward.11} parent=50 // pred_check
          %p576 = pneg %p87
        $region53: #{generator_forward.11} parent=50 // pred_check_branch
          %578 = sbr.rel (%p576) target = $region55
        $region54: #{generator_forward.11} parent=50 // pred_region
          %p579 = scmp.lt.s32.totalorder %s17, 1
          %s580 = scalar_select %p579, %s17, 1
          %s581 = smul.addr %s580, 8
          %s582 = smul.addr %s581, 4
          %s583 = scalar_lea.vmem %s2, %s582
        $region55: #{generator_forward.11} parent=50 // pred_fallthru
          _
        // Predicated region
        $region56: #{generator_forward.11} parent=50 // pred_check
          %p584 = pneg %p113
        $region57: #{generator_forward.11} parent=50 // pred_check_branch
          %586 = sbr.rel (%p584) target = $region59
        $region58: #{generator_forward.11} parent=50 // pred_region
          %p587 = scmp.lt.s32.totalorder %s17, 1
          %s588 = scalar_select %p587, %s17, 1
          %s589 = smul.addr %s588, 2
          %s590 = scalar_lea.vmem %s3, %s589
        $region59: #{generator_forward.11} parent=50 // pred_fallthru
          _
      $region51: #{generator_forward.11} parent=5 // pred_fallthru
        _
    $region6: #{generator_forward.11} parent=1 // loop_footer
      %s15 = sadd.s32 1, %s11
    $region7: #{generator_forward.11} parent=1 // loop_footer_branch
      %10 = sbr.rel target = $region3
    $region8: #{generator_forward.11} parent=1 // loop_exit
      _
    %591 = vsyncpa [#allocation3], 1
    %s592 = scalar_lea.sflag [#allocation3], 1
    %593 = vsyncpa %s592, 1

// kernel: tile.48
$region0: #{tile.48}
  #allocation0 [shape = 's32[1]{0}', space=sflag, size = 0x4, scoped, tag = 'scoped memory for tile.48']
  %s0 = inlined_call_operand.vmem [shape: f32[16], index: 0, kind: input, shape index: {}]
  %s1 = inlined_call_operand.vmem [shape: f32[4,16], index: 1, kind: output, shape index: {}]
  // Predicated region
  $region2: #{tile.48} parent=0 // pred_check
    _
  $region3: #{tile.48} parent=0 // pred_check_branch
    %3 = sbr.rel (0) target = $region5
  $region4: #{tile.48} parent=0 // pred_region
    _
  $region5: #{tile.48} parent=0 // pred_fallthru
    _
  %v4 = vld [vmem:[%s0] ss:$0 sm:$0xff]
  %5 = vst [vmem:[%s1] sm:$0xf] %v4

// kernel: tile.49
$region0: #{tile.49}
  %s0 = inlined_call_operand.vmem [shape: f32[4,16], index: 0, kind: input, shape index: {}]
  %s1 = inlined_call_operand.vmem [shape: f32[64], index: 1, kind: output, shape index: {}]
  $region1: #{tile.49} parent=0
    #allocation0 [shape = 'u8[4096]{0}', space=vmem, size = 0x1000, scoped, tag = 'scoped mem for output reshape']
    #allocation1 [shape = 'u8[4096]{0}', space=vmem, size = 0x1000, scoped, tag = 'scoped mem for input reshape']
    %s3 = sshll.u32 1, 4
    %s4 = ssub.s32 %s3, 1
    %v5 = vld [vmem:[%s0] sm:%s4]
    %6 = vst [vmem:[#allocation1] sm:%s4] %v5
    %v7 = vld [vmem:[#allocation1] sm:$0x1]
    %vm8 = vcmask 130048
    %9 = vst.msk [vmem:[#allocation0] sm:$0x1] %vm8, %v7
    %s10 = scalar_lea.vmem [#allocation1], 3
    %v11 = vld [vmem:[%s10] sm:$0x1]
    %12 = vrot.lane.b32.xlu0 %v11, 48
    %v13 = vpop.permute.xlu0 %12
    %vm14 = vcmask 523648
    %15 = vst.msk [vmem:[#allocation0] sm:$0x1] %vm14, %v13
    %s16 = scalar_lea.vmem [#allocation1], 2
    %v17 = vld [vmem:[%s16] sm:$0x1]
    %18 = vrot.lane.b32.xlu0 %v17, 32
    %v19 = vpop.permute.xlu0 %18
    %vm20 = vcmask 392448
    %21 = vst.msk [vmem:[#allocation0] sm:$0x1] %vm20, %v19
    %s22 = scalar_lea.vmem [#allocation1], 1
    %v23 = vld [vmem:[%s22] sm:$0x1]
    %24 = vrot.lane.b32.xlu0 %v23, 16
    %v25 = vpop.permute.xlu0 %24
    %vm26 = vcmask 261248
    %27 = vst.msk [vmem:[#allocation0] sm:$0x1] %vm26, %v25
    %s29 = sshll.u32 1, 1
    %s30 = ssub.s32 %s29, 1
    %v32 = vld [vmem:[#allocation0] sm:%s30]
    %s33 = sshll.u32 1, 1
    %s34 = ssub.s32 %s33, 1
    %35 = vst [vmem:[%s1] sm:%s34] %v32

// kernel: squeeze.10
$region0: #{squeeze.10}
  %s0 = inlined_call_operand.vmem [shape: f32[32], index: 0, kind: input, shape index: {}]
  %s1 = inlined_call_operand.vmem [shape: f32[4,8], index: 1, kind: output, shape index: {}]
  $region1: #{squeeze.10} parent=0
    #allocation0 [shape = 'u8[4096]{0}', space=vmem, size = 0x1000, scoped, tag = 'scoped mem for output reshape']
    #allocation1 [shape = 'u8[4096]{0}', space=vmem, size = 0x1000, scoped, tag = 'scoped mem for input reshape']
    %s3 = sshll.u32 1, 1
    %s4 = ssub.s32 %s3, 1
    %v5 = vld [vmem:[%s0] sm:%s4]
    %6 = vst [vmem:[#allocation1] sm:%s4] %v5
    %v7 = vld [vmem:[#allocation1] sm:$0x1]
    %vm8 = vcmask 64512
    %9 = vst.msk [vmem:[#allocation0] sm:$0x1] %vm8, %v7
    %v10 = vld [vmem:[#allocation1] sm:$0x1]
    %11 = vrot.lane.b32.xlu0 %v10, 120
    %v12 = vpop.permute.xlu0 %11
    %vm13 = vcmask 64512
    %s14 = scalar_lea.vmem [#allocation0], 1
    %15 = vst.msk [vmem:[%s14] sm:$0x1] %vm13, %v12
    %v16 = vld [vmem:[#allocation1] sm:$0x1]
    %17 = vrot.lane.b32.xlu0 %v16, 112
    %v18 = vpop.permute.xlu0 %17
    %vm19 = vcmask 64512
    %s20 = scalar_lea.vmem [#allocation0], 2
    %21 = vst.msk [vmem:[%s20] sm:$0x1] %vm19, %v18
    %v22 = vld [vmem:[#allocation1] sm:$0x1]
    %23 = vrot.lane.b32.xlu0 %v22, 104
    %v24 = vpop.permute.xlu0 %23
    %vm25 = vcmask 64512
    %s26 = scalar_lea.vmem [#allocation0], 3
    %27 = vst.msk [vmem:[%s26] sm:$0x1] %vm25, %v24
    %s29 = sshll.u32 1, 4
    %s30 = ssub.s32 %s29, 1
    %v32 = vld [vmem:[#allocation0] sm:%s30]
    %s33 = sshll.u32 1, 4
    %s34 = ssub.s32 %s33, 1
    %35 = vst [vmem:[%s1] sm:%s34] %v32

// kernel: tile.58
$region0: #{tile.58}
  #allocation0 [shape = 's32[1]{0}', space=sflag, size = 0x4, scoped, tag = 'scoped memory for tile.58']
  %s0 = inlined_call_operand.vmem [shape: f32[8], index: 0, kind: input, shape index: {}]
  %s1 = inlined_call_operand.vmem [shape: f32[4,8], index: 1, kind: output, shape index: {}]
  // Predicated region
  $region2: #{tile.58} parent=0 // pred_check
    _
  $region3: #{tile.58} parent=0 // pred_check_branch
    %3 = sbr.rel (0) target = $region5
  $region4: #{tile.58} parent=0 // pred_region
    _
  $region5: #{tile.58} parent=0 // pred_fallthru
    _
  %v4 = vld [vmem:[%s0] ss:$0 sm:$0xff]
  %5 = vst [vmem:[%s1] sm:$0xf] %v4

// kernel: tile.59
$region0: #{tile.59}
  %s0 = inlined_call_operand.vmem [shape: f32[4,8], index: 0, kind: input, shape index: {}]
  %s1 = inlined_call_operand.vmem [shape: f32[32], index: 1, kind: output, shape index: {}]
  $region1: #{tile.59} parent=0
    #allocation0 [shape = 'u8[4096]{0}', space=vmem, size = 0x1000, scoped, tag = 'scoped mem for output reshape']
    #allocation1 [shape = 'u8[4096]{0}', space=vmem, size = 0x1000, scoped, tag = 'scoped mem for input reshape']
    %s3 = sshll.u32 1, 4
    %s4 = ssub.s32 %s3, 1
    %v5 = vld [vmem:[%s0] sm:%s4]
    %6 = vst [vmem:[#allocation1] sm:%s4] %v5
    %v7 = vld [vmem:[#allocation1] sm:$0x1]
    %vm8 = vcmask 64512
    %9 = vst.msk [vmem:[#allocation0] sm:$0x1] %vm8, %v7
    %s10 = scalar_lea.vmem [#allocation1], 3
    %v11 = vld [vmem:[%s10] sm:$0x1]
    %12 = vrot.lane.b32.xlu0 %v11, 24
    %v13 = vpop.permute.xlu0 %12
    %vm14 = vcmask 261312
    %15 = vst.msk [vmem:[#allocation0] sm:$0x1] %vm14, %v13
    %s16 = scalar_lea.vmem [#allocation1], 2
    %v17 = vld [vmem:[%s16] sm:$0x1]
    %18 = vrot.lane.b32.xlu0 %v17, 16
    %v19 = vpop.permute.xlu0 %18
    %vm20 = vcmask 195712
    %21 = vst.msk [vmem:[#allocation0] sm:$0x1] %vm20, %v19
    %s22 = scalar_lea.vmem [#allocation1], 1
    %v23 = vld [vmem:[%s22] sm:$0x1]
    %24 = vrot.lane.b32.xlu0 %v23, 8
    %v25 = vpop.permute.xlu0 %24
    %vm26 = vcmask 130112
    %27 = vst.msk [vmem:[#allocation0] sm:$0x1] %vm26, %v25
    %s29 = sshll.u32 1, 1
    %s30 = ssub.s32 %s29, 1
    %v32 = vld [vmem:[#allocation0] sm:%s30]
    %s33 = sshll.u32 1, 1
    %s34 = ssub.s32 %s33, 1
    %35 = vst [vmem:[%s1] sm:%s34] %v32

// kernel: generator_forward.12
$region0: #{generator_forward.12}
  #allocation0 [shape = 'u32[]', space=smem, size = 0x4, offset = 0x4, fixed_abs, tag = 'smem constant byte address 0x4 - core index']
  #allocation1 [shape = 'u32[144,128]{1,0:T(1,128)}', space=vmem, size = 0x12000, scoped, tag = 'internal scratch']
  %s0 = inlined_call_operand.vmem [shape: bf16[2,8,8,128], index: 0, kind: input, shape index: {}]
  %s1 = inlined_call_operand.vmem [shape: f32[1,128], index: 1, kind: input, shape index: {}]
  %s2 = inlined_call_operand.vmem [shape: f32[1,128], index: 2, kind: input, shape index: {}]
  %s3 = inlined_call_operand.vmem [shape: bf16[18,2,9,32], index: 3, kind: output, shape index: {}]
  %s4 = sld [smem:[#allocation0]]
  $region45: #{generator_forward.12} parent=0
    _
  %s6 = ssub.s32 1, %s4
  %s7 = scalar_select 0, %s6, %s4
  loop: start=0, step=1, limit=4
  $region2: #{generator_forward.12} parent=0 // loop_pre_header
    _
  $region3: #{generator_forward.12} parent=0 // loop_header
    %s9 = sphi 0, %s13
    %p10 = scmp.ge.s32.totalorder %s9, 4
    %s19 = sphi 0, %s21
    %s22 = sphi 0, %s19
    %s23 = sphi 0, %s22
    %s39 = sphi 0, %s23
    %s43 = sphi 0, %s43
    %s45 = sphi 0, %s43
    %s46 = sphi 0, %s45
    %s60 = sphi 0, %s46
    %s64 = sphi 0, %s64
    %s66 = sphi 0, %s64
    %s67 = sphi 0, %s66
    %s81 = sphi 0, %s67
    %s87 = sphi 0, %s89
    %s90 = sphi 0, %s87
    %s91 = sphi 0, %s90
    %s107 = sphi 0, %s91
  $region4: #{generator_forward.12} parent=0 // loop_header_branch
    %12 = sbr.rel (%p10) target = $region8
  $region5: #{generator_forward.12} parent=0 // loop_body
    %s14 = ssub.s32 %s9, 1
    %s15 = ssub.s32 %s9, 2
    %s16 = sadd.s32 %s9, 1
    %s17 = ssub.s32 %s9, %s16
    %p18 = scmp.eq.s32.totalorder %s17, 0
    %s20 = sadd.s32 %s19, 1
    %s21 = scalar_select %p18, %s19, %s20
    %p24 = pneg %p18
    %p25 = scmp.eq.s32.totalorder %s9, 1
    %p26 = por %p24, %p25
    %p27 = scmp.ne.s32.totalorder %s19, %s22
    %p28 = scmp.eq.s32.totalorder %s9, 0
    %p29 = por %p27, %p28
    %p30 = scmp.ne.s32.totalorder %s19, %s22
    %p31 = scmp.eq.s32.totalorder %s14, 1
    %p32 = por %p30, %p31
    %p33 = scmp.ne.s32.totalorder %s22, %s23
    %p34 = scmp.eq.s32.totalorder %s14, 0
    %p35 = por %p33, %p34
    %p36 = scmp.ne.s32.totalorder %s22, %s23
    %p37 = scmp.eq.s32.totalorder %s15, 1
    %p38 = por %p36, %p37
    %p40 = scmp.ne.s32.totalorder %s23, %s39
    %p41 = scmp.eq.s32.totalorder %s15, 0
    %p42 = por %p40, %p41
    %s44 = sadd.s32 %s43, 1
    %p47 = scmp.eq.s32.totalorder %s9, 1
    %p48 = scmp.ne.s32.totalorder %s43, %s45
    %p49 = scmp.eq.s32.totalorder %s9, 0
    %p50 = por %p48, %p49
    %p51 = scmp.ne.s32.totalorder %s43, %s45
    %p52 = scmp.eq.s32.totalorder %s14, 1
    %p53 = por %p51, %p52
    %p54 = scmp.ne.s32.totalorder %s45, %s46
    %p55 = scmp.eq.s32.totalorder %s14, 0
    %p56 = por %p54, %p55
    %p57 = scmp.ne.s32.totalorder %s45, %s46
    %p58 = scmp.eq.s32.totalorder %s15, 1
    %p59 = por %p57, %p58
    %p61 = scmp.ne.s32.totalorder %s46, %s60
    %p62 = scmp.eq.s32.totalorder %s15, 0
    %p63 = por %p61, %p62
    %s65 = sadd.s32 %s64, 1
    %p68 = scmp.eq.s32.totalorder %s9, 1
    %p69 = scmp.ne.s32.totalorder %s64, %s66
    %p70 = scmp.eq.s32.totalorder %s9, 0
    %p71 = por %p69, %p70
    %p72 = scmp.ne.s32.totalorder %s64, %s66
    %p73 = scmp.eq.s32.totalorder %s14, 1
    %p74 = por %p72, %p73
    %p75 = scmp.ne.s32.totalorder %s66, %s67
    %p76 = scmp.eq.s32.totalorder %s14, 0
    %p77 = por %p75, %p76
    %p78 = scmp.ne.s32.totalorder %s66, %s67
    %p79 = scmp.eq.s32.totalorder %s15, 1
    %p80 = por %p78, %p79
    %p82 = scmp.ne.s32.totalorder %s67, %s81
    %p83 = scmp.eq.s32.totalorder %s15, 0
    %p84 = por %p82, %p83
    %s85 = ssub.s32 %s9, %s16
    %p86 = scmp.eq.s32.totalorder %s85, 0
    %s88 = sadd.s32 %s87, 1
    %s89 = scalar_select %p86, %s87, %s88
    %p92 = pneg %p86
    %p93 = scmp.eq.s32.totalorder %s9, 1
    %p94 = por %p92, %p93
    %p95 = scmp.ne.s32.totalorder %s87, %s90
    %p96 = scmp.eq.s32.totalorder %s9, 0
    %p97 = por %p95, %p96
    %p98 = scmp.ne.s32.totalorder %s87, %s90
    %p99 = scmp.eq.s32.totalorder %s14, 1
    %p100 = por %p98, %p99
    %p101 = scmp.ne.s32.totalorder %s90, %s91
    %p102 = scmp.eq.s32.totalorder %s14, 0
    %p103 = por %p101, %p102
    %p104 = scmp.ne.s32.totalorder %s90, %s91
    %p105 = scmp.eq.s32.totalorder %s15, 1
    %p106 = por %p104, %p105
    %p108 = scmp.ne.s32.totalorder %s91, %s107
    %p109 = scmp.eq.s32.totalorder %s15, 0
    %p110 = por %p108, %p109
    %p111 = scmp.le.s32.totalorder 1, %s9
    %p112 = scmp.lt.s32.totalorder %s9, 3
    %p113 = pnand %p111, %p112
    %p114 = pneg %p113
    // Predicated region
    $region9: #{generator_forward.12} parent=5 // pred_check
      _
    $region10: #{generator_forward.12} parent=5 // pred_check_branch
      %116 = sbr.rel (%p113) target = $region12
    $region11: #{generator_forward.12} parent=5 // pred_region
      %s117 = ssub.s32 %s9, 1
      // Predicated region
      $region13: #{generator_forward.12} parent=11 // pred_check
        %p118 = pneg %p56
      $region14: #{generator_forward.12} parent=11 // pred_check_branch
        %120 = sbr.rel (%p118) target = $region16
      $region15: #{generator_forward.12} parent=11 // pred_region
        _
      $region16: #{generator_forward.12} parent=11 // pred_fallthru
        _
      // Predicated region
      $region17: #{generator_forward.12} parent=11 // pred_check
        %p121 = pneg %p77
      $region18: #{generator_forward.12} parent=11 // pred_check_branch
        %123 = sbr.rel (%p121) target = $region20
      $region19: #{generator_forward.12} parent=11 // pred_region
        _
      $region20: #{generator_forward.12} parent=11 // pred_fallthru
        _
    $region12: #{generator_forward.12} parent=5 // pred_fallthru
      _
    %p124 = scmp.lt.s32.totalorder %s9, 2
    // Predicated region
    $region21: #{generator_forward.12} parent=5 // pred_check
      %p125 = pneg %p124
    $region22: #{generator_forward.12} parent=5 // pred_check_branch
      %127 = sbr.rel (%p125) target = $region24
    $region23: #{generator_forward.12} parent=5 // pred_region
      // Predicated region
      $region25: #{generator_forward.12} parent=23 // pred_check
        %p128 = pneg %p29
      $region26: #{generator_forward.12} parent=23 // pred_check_branch
        %130 = sbr.rel (%p128) target = $region28
      $region27: #{generator_forward.12} parent=23 // pred_region
        %p131 = scmp.lt.s32.totalorder %s9, 1
        %s132 = scalar_select %p131, %s9, 1
        %s133 = smul.addr %s132, 8
        %s134 = smul.addr %s133, 4
        %s135 = scalar_lea.vmem %s0, %s134
      $region28: #{generator_forward.12} parent=23 // pred_fallthru
        _
    $region24: #{generator_forward.12} parent=5 // pred_fallthru
      _
    %p136 = scmp.le.s32.totalorder 1, %s9
    %p137 = scmp.lt.s32.totalorder %s9, 3
    %p138 = pnand %p136, %p137
    %p139 = pneg %p138
    // Predicated region
    $region29: #{generator_forward.12} parent=5 // pred_check
      _
    $region30: #{generator_forward.12} parent=5 // pred_check_branch
      %141 = sbr.rel (%p138) target = $region32
    $region31: #{generator_forward.12} parent=5 // pred_region
      %s142 = ssub.s32 %s9, 1
      %p143 = scmp.lt.s32.totalorder %s14, 1
      %s144 = scalar_select %p143, %s14, 1
      %s145 = smul.addr %s144, 8
      %s146 = smul.addr %s145, 4
      %s147 = scalar_lea.vmem %s0, %s146
      %p148 = pneg %p35
      %p149 = pneg %p32
      %p150 = pneg %p56
      %p151 = pneg %p53
      %p152 = pneg %p77
      %p153 = pneg %p74
      %p154 = pneg %p103
      %p155 = pneg %p100
      %s156 = smul.u32 9, %s14
      %p157 = scmp.lt.s32.totalorder %s156, 17
      %s158 = scalar_select %p157, %s156, 17
      %s159 = smul.addr %s158, 4
      %s160 = smul.addr %s159, 4
      %s161 = scalar_lea.vmem %s3, %s160
      %p162 = scmp.lt.s32.totalorder %s14, 1
      %s163 = scalar_select %p162, %s14, 1
      %s164 = smul.addr %s163, 8
      %s165 = smul.addr %s164, 4
      %s166 = scalar_lea.vmem %s0, %s165
      %s167 = smul.u32 9, %s14
      %p168 = scmp.lt.s32.totalorder %s167, 17
      %s169 = scalar_select %p168, %s167, 17
      %s170 = smul.addr %s169, 4
      %s171 = smul.addr %s170, 4
      %s172 = scalar_lea.vmem %s3, %s171
      %s173 = smul.u32 9, %s14
      %v175 = vld [vmem:[%s166] sm:$0xf]
      %v176 = vld [vmem:[%s166 + $0x4] sm:$0xf]
      %v177 = vld [vmem:[%s166 + $0x8] sm:$0xf]
      %v178 = vld [vmem:[%s166 + $0xc] sm:$0xf]
      %v179 = vld [vmem:[%s166 + $0x10] sm:$0xf]
      %v180 = vld [vmem:[%s166 + $0x14] sm:$0xf]
      %v181 = vld [vmem:[%s166 + $0x18] sm:$0xf]
      %v182 = vld [vmem:[%s166 + $0x1c] sm:$0xf]
      %v183 = vunpack.c.l.bf16 %v175
      %v184 = vunpack.c.l.bf16 %v176
      %v185 = vunpack.c.l.bf16 %v177
      %v186 = vunpack.c.l.bf16 %v178
      %v187 = vunpack.c.l.bf16 %v179
      %v188 = vunpack.c.l.bf16 %v180
      %v189 = vunpack.c.l.bf16 %v181
      %v190 = vunpack.c.l.bf16 %v182
      %v191 = vld [vmem:[%s1] sm:$0x1]
      %v193 = vlaneseq
      %v194 = vshrl.u32 %v193, 7
      %v195 = vsub.s32 0, %v194
      %v196 = vrot.slane %v191, %v195
      %v198 = vmul.f32 %v183, %v196
      %v199 = vmul.f32 %v184, %v196
      %v200 = vmul.f32 %v185, %v196
      %v201 = vmul.f32 %v186, %v196
      %v202 = vmul.f32 %v187, %v196
      %v203 = vmul.f32 %v188, %v196
      %v204 = vmul.f32 %v189, %v196
      %v205 = vmul.f32 %v190, %v196
      %v206 = vld [vmem:[%s2] sm:$0x1]
      %v208 = vlaneseq
      %v209 = vshrl.u32 %v208, 7
      %v210 = vsub.s32 0, %v209
      %v211 = vrot.slane %v206, %v210
      %v213 = vadd.f32 %v198, %v211
      %v214 = vadd.f32 %v199, %v211
      %v215 = vadd.f32 %v200, %v211
      %v216 = vadd.f32 %v201, %v211
      %v217 = vadd.f32 %v202, %v211
      %v218 = vadd.f32 %v203, %v211
      %v219 = vadd.f32 %v204, %v211
      %v220 = vadd.f32 %v205, %v211
      %v221 = vmax.f32 %v213, 0.0
      %v222 = vmax.f32 %v214, 0.0
      %v223 = vmax.f32 %v215, 0.0
      %v224 = vmax.f32 %v216, 0.0
      %v225 = vmax.f32 %v217, 0.0
      %v226 = vmax.f32 %v218, 0.0
      %v227 = vmax.f32 %v219, 0.0
      %v228 = vmax.f32 %v220, 0.0
      %v229 = vpack.c.bf16 %v221, %v221
      %v230 = vpack.c.bf16 %v222, %v222
      %v231 = vpack.c.bf16 %v223, %v223
      %v232 = vpack.c.bf16 %v224, %v224
      %v233 = vpack.c.bf16 %v225, %v225
      %v234 = vpack.c.bf16 %v226, %v226
      %v235 = vpack.c.bf16 %v227, %v227
      %v236 = vpack.c.bf16 %v228, %v228
      %vm237 = vcmask 257024
      %238 = vst.msk [vmem:[%s172] sm:$0xf] %vm237, 0
      %vm239 = vcmask 253952
      %vm240 = vsmask.f32 256
      %vm241 = vmand %vm239, %vm240
      %v242 = vld [vmem:[%s172 + $0x4] sm:$0x1]
      %v243 = vsel %vm241, 0, %v242
      %244 = vst [vmem:[%s172 + $0x4] sm:$0x1] %v243
      %245 = vst.msk [vmem:[%s172 + $0x8] sm:$0xf] %vm237, 0
      %v246 = vld [vmem:[%s172 + $0xc] sm:$0x1]
      %v247 = vsel %vm241, 0, %v246
      %248 = vst [vmem:[%s172 + $0xc] sm:$0x1] %v247
      %249 = vst.msk [vmem:[%s172 + $0x10] sm:$0xf] %vm237, 0
      %v250 = vld [vmem:[%s172 + $0x14] sm:$0x1]
      %v251 = vsel %vm241, 0, %v250
      %252 = vst [vmem:[%s172 + $0x14] sm:$0x1] %v251
      %253 = vst.msk [vmem:[%s172 + $0x18] sm:$0xf] %vm237, 0
      %v254 = vld [vmem:[%s172 + $0x1c] sm:$0x1]
      %v255 = vsel %vm241, 0, %v254
      %256 = vst [vmem:[%s172 + $0x1c] sm:$0x1] %v255
      %257 = vst.msk [vmem:[%s172 + $0x20] sm:$0xf] %vm237, 0
      %v258 = vld [vmem:[%s172 + $0x24] sm:$0x1]
      %v259 = vsel %vm241, 0, %v258
      %260 = vst [vmem:[%s172 + $0x24] sm:$0x1] %v259
      %261 = vst.msk [vmem:[%s172 + $0x28] sm:$0xf] %vm237, 0
      %v262 = vld [vmem:[%s172 + $0x2c] sm:$0x1]
      %v263 = vsel %vm241, 0, %v262
      %264 = vst [vmem:[%s172 + $0x2c] sm:$0x1] %v263
      %265 = vst.msk [vmem:[%s172 + $0x30] sm:$0xf] %vm237, 0
      %v266 = vld [vmem:[%s172 + $0x34] sm:$0x1]
      %v267 = vsel %vm241, 0, %v266
      %268 = vst [vmem:[%s172 + $0x34] sm:$0x1] %v267
      %269 = vst.msk [vmem:[%s172 + $0x38] sm:$0xf] %vm237, 0
      %v270 = vld [vmem:[%s172 + $0x3c] sm:$0x1]
      %v271 = vsel %vm241, 0, %v270
      %272 = vst [vmem:[%s172 + $0x3c] sm:$0x1] %v271
      %273 = vst.msk [vmem:[%s172 + $0x40] sm:$0xf] %vm237, 0
      %v274 = vld [vmem:[%s172 + $0x44] sm:$0x1]
      %v275 = vsel %vm241, 0, %v274
      %276 = vst [vmem:[%s172 + $0x44] sm:$0x1] %v275
      %277 = vst.msk [vmem:[%s172 + $0x48] sm:$0xf] %vm237, 0
      %v278 = vld [vmem:[%s172 + $0x4c] sm:$0x1]
      %v279 = vsel %vm241, 0, %v278
      %280 = vst [vmem:[%s172 + $0x4c] sm:$0x1] %v279
      %281 = vst.msk [vmem:[%s172 + $0x50] sm:$0xf] %vm237, 0
      %v282 = vld [vmem:[%s172 + $0x54] sm:$0x1]
      %v283 = vsel %vm241, 0, %v282
      %284 = vst [vmem:[%s172 + $0x54] sm:$0x1] %v283
      %285 = vst.msk [vmem:[%s172 + $0x58] sm:$0xf] %vm237, 0
      %v286 = vld [vmem:[%s172 + $0x5c] sm:$0x1]
      %v287 = vsel %vm241, 0, %v286
      %288 = vst [vmem:[%s172 + $0x5c] sm:$0x1] %v287
      %289 = vst.msk [vmem:[%s172 + $0x60] sm:$0xf] %vm237, 0
      %v290 = vld [vmem:[%s172 + $0x64] sm:$0x1]
      %v291 = vsel %vm241, 0, %v290
      %292 = vst [vmem:[%s172 + $0x64] sm:$0x1] %v291
      %293 = vst.msk [vmem:[%s172 + $0x68] sm:$0xf] %vm237, 0
      %v294 = vld [vmem:[%s172 + $0x6c] sm:$0x1]
      %v295 = vsel %vm241, 0, %v294
      %296 = vst [vmem:[%s172 + $0x6c] sm:$0x1] %v295
      %297 = vst.msk [vmem:[%s172 + $0x70] sm:$0xf] %vm237, 0
      %v298 = vld [vmem:[%s172 + $0x74] sm:$0x1]
      %v299 = vsel %vm241, 0, %v298
      %300 = vst [vmem:[%s172 + $0x74] sm:$0x1] %v299
      %301 = vst.msk [vmem:[%s172 + $0x78] sm:$0xf] %vm237, 0
      %v302 = vld [vmem:[%s172 + $0x7c] sm:$0x1]
      %v303 = vsel %vm241, 0, %v302
      %304 = vst [vmem:[%s172 + $0x7c] sm:$0x1] %v303
      %305 = vst.msk [vmem:[%s172 + $0x80] sm:$0xf] %vm237, 0
      %v306 = vld [vmem:[%s172 + $0x84] sm:$0x1]
      %v307 = vsel %vm241, 0, %v306
      %308 = vst [vmem:[%s172 + $0x84] sm:$0x1] %v307
      %309 = vst.msk [vmem:[%s172 + $0x88] sm:$0xf] %vm237, 0
      %v310 = vld [vmem:[%s172 + $0x8c] sm:$0x1]
      %v311 = vsel %vm241, 0, %v310
      %312 = vst [vmem:[%s172 + $0x8c] sm:$0x1] %v311
      %v321 = vunpack.c.l.b16 %v229
      %v322 = vunpack.c.l.b16 %v230
      %v323 = vunpack.c.l.b16 %v231
      %v324 = vunpack.c.l.b16 %v232
      %v325 = vunpack.c.l.b16 %v233
      %v326 = vunpack.c.l.b16 %v234
      %v327 = vunpack.c.l.b16 %v235
      %v328 = vunpack.c.l.b16 %v236
      %v329 = vpack.c.b16 %v321, %v321
      %v330 = vpack.c.b16 %v322, %v322
      %v331 = vpack.c.b16 %v323, %v323
      %v332 = vpack.c.b16 %v324, %v324
      %v333 = vpack.c.b16 %v325, %v325
      %v334 = vpack.c.b16 %v326, %v326
      %v335 = vpack.c.b16 %v327, %v327
      %v336 = vpack.c.b16 %v328, %v328
      %337 = vrot.lane.b32.xlu0 %v329, 16
      %v338 = vpop.permute.xlu0 %337
      %339 = vrot.lane.b32.xlu0 %v330, 16
      %v340 = vpop.permute.xlu0 %339
      %341 = vrot.lane.b32.xlu0 %v331, 16
      %v342 = vpop.permute.xlu0 %341
      %343 = vrot.lane.b32.xlu0 %v332, 16
      %v344 = vpop.permute.xlu0 %343
      %345 = vrot.lane.b32.xlu0 %v333, 16
      %v346 = vpop.permute.xlu0 %345
      %347 = vrot.lane.b32.xlu0 %v334, 16
      %v348 = vpop.permute.xlu0 %347
      %349 = vrot.lane.b32.xlu0 %v335, 16
      %v350 = vpop.permute.xlu0 %349
      %351 = vrot.lane.b32.xlu0 %v336, 16
      %v352 = vpop.permute.xlu0 %351
      %s361 = scalar_lea.vmem %s172, 8
      %vm362 = vcmask 257152
      %363 = vst.msk [vmem:[%s361] sm:$0xf] %vm362, %v338
      %364 = vst.msk [vmem:[%s361 + $0x10] sm:$0xf] %vm362, %v340
      %365 = vst.msk [vmem:[%s361 + $0x20] sm:$0xf] %vm362, %v342
      %366 = vst.msk [vmem:[%s361 + $0x30] sm:$0xf] %vm362, %v344
      %367 = vst.msk [vmem:[%s361 + $0x40] sm:$0xf] %vm362, %v346
      %368 = vst.msk [vmem:[%s361 + $0x50] sm:$0xf] %vm362, %v348
      %369 = vst.msk [vmem:[%s361 + $0x60] sm:$0xf] %vm362, %v350
      %370 = vst.msk [vmem:[%s361 + $0x70] sm:$0xf] %vm362, %v352
      %v372 = vshrl.u32 %v329, 16
      %v374 = vrot.slane %v372, 7
      %v375 = vshll.u32 %v329, 16
      %v377 = vor.u32 %v374, %v375
      %v378 = vrot.slane %v374, 4
      %v380 = vshrl.u32 %v330, 16
      %v382 = vrot.slane %v380, 7
      %v383 = vshll.u32 %v330, 16
      %v385 = vor.u32 %v382, %v383
      %v386 = vrot.slane %v382, 4
      %v388 = vshrl.u32 %v331, 16
      %v390 = vrot.slane %v388, 7
      %v391 = vshll.u32 %v331, 16
      %v393 = vor.u32 %v390, %v391
      %v394 = vrot.slane %v390, 4
      %v396 = vshrl.u32 %v332, 16
      %v398 = vrot.slane %v396, 7
      %v399 = vshll.u32 %v332, 16
      %v401 = vor.u32 %v398, %v399
      %v402 = vrot.slane %v398, 4
      %v404 = vshrl.u32 %v333, 16
      %v406 = vrot.slane %v404, 7
      %v407 = vshll.u32 %v333, 16
      %v409 = vor.u32 %v406, %v407
      %v410 = vrot.slane %v406, 4
      %v412 = vshrl.u32 %v334, 16
      %v414 = vrot.slane %v412, 7
      %v415 = vshll.u32 %v334, 16
      %v417 = vor.u32 %v414, %v415
      %v418 = vrot.slane %v414, 4
      %v420 = vshrl.u32 %v335, 16
      %v422 = vrot.slane %v420, 7
      %v423 = vshll.u32 %v335, 16
      %v425 = vor.u32 %v422, %v423
      %v426 = vrot.slane %v422, 4
      %v428 = vshrl.u32 %v336, 16
      %v430 = vrot.slane %v428, 7
      %v431 = vshll.u32 %v336, 16
      %v433 = vor.u32 %v430, %v431
      %v434 = vrot.slane %v430, 4
      %435 = vrot.lane.b32.xlu0 %v377, 112
      %v436 = vpop.permute.xlu0 %435
      %437 = vrot.lane.b32.xlu0 %v378, 112
      %v438 = vpop.permute.xlu0 %437
      %439 = vrot.lane.b32.xlu0 %v385, 112
      %v440 = vpop.permute.xlu0 %439
      %441 = vrot.lane.b32.xlu0 %v386, 112
      %v442 = vpop.permute.xlu0 %441
      %443 = vrot.lane.b32.xlu0 %v393, 112
      %v444 = vpop.permute.xlu0 %443
      %445 = vrot.lane.b32.xlu0 %v394, 112
      %v446 = vpop.permute.xlu0 %445
      %447 = vrot.lane.b32.xlu0 %v401, 112
      %v448 = vpop.permute.xlu0 %447
      %449 = vrot.lane.b32.xlu0 %v402, 112
      %v450 = vpop.permute.xlu0 %449
      %451 = vrot.lane.b32.xlu0 %v409, 112
      %v452 = vpop.permute.xlu0 %451
      %453 = vrot.lane.b32.xlu0 %v410, 112
      %v454 = vpop.permute.xlu0 %453
      %455 = vrot.lane.b32.xlu0 %v417, 112
      %v456 = vpop.permute.xlu0 %455
      %457 = vrot.lane.b32.xlu0 %v418, 112
      %v458 = vpop.permute.xlu0 %457
      %459 = vrot.lane.b32.xlu0 %v425, 112
      %v460 = vpop.permute.xlu0 %459
      %461 = vrot.lane.b32.xlu0 %v426, 112
      %v462 = vpop.permute.xlu0 %461
      %463 = vrot.lane.b32.xlu0 %v433, 112
      %v464 = vpop.permute.xlu0 %463
      %465 = vrot.lane.b32.xlu0 %v434, 112
      %v466 = vpop.permute.xlu0 %465
      %vm483 = vcmask 125952
      %vm484 = vsmask.f32 7938
      %vm485 = vmand %vm483, %vm484
      %v486 = vld [vmem:[%s361] sm:$0xf]
      %v487 = vsel %vm485, %v436, %v486
      %488 = vst [vmem:[%s361] sm:$0xf] %v487
      %vm489 = vcmask 122880
      %vm490 = vmand %vm489, %vm240
      %v491 = vld [vmem:[%s361 + $0x4] sm:$0x1]
      %v492 = vsel %vm490, %v438, %v491
      %493 = vst [vmem:[%s361 + $0x4] sm:$0x1] %v492
      %v494 = vld [vmem:[%s361 + $0x10] sm:$0xf]
      %v495 = vsel %vm485, %v440, %v494
      %496 = vst [vmem:[%s361 + $0x10] sm:$0xf] %v495
      %v497 = vld [vmem:[%s361 + $0x14] sm:$0x1]
      %v498 = vsel %vm490, %v442, %v497
      %499 = vst [vmem:[%s361 + $0x14] sm:$0x1] %v498
      %v500 = vld [vmem:[%s361 + $0x20] sm:$0xf]
      %v501 = vsel %vm485, %v444, %v500
      %502 = vst [vmem:[%s361 + $0x20] sm:$0xf] %v501
      %v503 = vld [vmem:[%s361 + $0x24] sm:$0x1]
      %v504 = vsel %vm490, %v446, %v503
      %505 = vst [vmem:[%s361 + $0x24] sm:$0x1] %v504
      %v506 = vld [vmem:[%s361 + $0x30] sm:$0xf]
      %v507 = vsel %vm485, %v448, %v506
      %508 = vst [vmem:[%s361 + $0x30] sm:$0xf] %v507
      %v509 = vld [vmem:[%s361 + $0x34] sm:$0x1]
      %v510 = vsel %vm490, %v450, %v509
      %511 = vst [vmem:[%s361 + $0x34] sm:$0x1] %v510
      %v512 = vld [vmem:[%s361 + $0x40] sm:$0xf]
      %v513 = vsel %vm485, %v452, %v512
      %514 = vst [vmem:[%s361 + $0x40] sm:$0xf] %v513
      %v515 = vld [vmem:[%s361 + $0x44] sm:$0x1]
      %v516 = vsel %vm490, %v454, %v515
      %517 = vst [vmem:[%s361 + $0x44] sm:$0x1] %v516
      %v518 = vld [vmem:[%s361 + $0x50] sm:$0xf]
      %v519 = vsel %vm485, %v456, %v518
      %520 = vst [vmem:[%s361 + $0x50] sm:$0xf] %v519
      %v521 = vld [vmem:[%s361 + $0x54] sm:$0x1]
      %v522 = vsel %vm490, %v458, %v521
      %523 = vst [vmem:[%s361 + $0x54] sm:$0x1] %v522
      %v524 = vld [vmem:[%s361 + $0x60] sm:$0xf]
      %v525 = vsel %vm485, %v460, %v524
      %526 = vst [vmem:[%s361 + $0x60] sm:$0xf] %v525
      %v527 = vld [vmem:[%s361 + $0x64] sm:$0x1]
      %v528 = vsel %vm490, %v462, %v527
      %529 = vst [vmem:[%s361 + $0x64] sm:$0x1] %v528
      %v530 = vld [vmem:[%s361 + $0x70] sm:$0xf]
      %v531 = vsel %vm485, %v464, %v530
      %532 = vst [vmem:[%s361 + $0x70] sm:$0xf] %v531
      %v533 = vld [vmem:[%s361 + $0x74] sm:$0x1]
      %v534 = vsel %vm490, %v466, %v533
      %535 = vst [vmem:[%s361 + $0x74] sm:$0x1] %v534
      %536 = vrot.lane.b32.xlu0 %v329, 112
      %v537 = vpop.permute.xlu0 %536
      %538 = vrot.lane.b32.xlu0 %v330, 112
      %v539 = vpop.permute.xlu0 %538
      %540 = vrot.lane.b32.xlu0 %v331, 112
      %v541 = vpop.permute.xlu0 %540
      %542 = vrot.lane.b32.xlu0 %v332, 112
      %v543 = vpop.permute.xlu0 %542
      %544 = vrot.lane.b32.xlu0 %v333, 112
      %v545 = vpop.permute.xlu0 %544
      %546 = vrot.lane.b32.xlu0 %v334, 112
      %v547 = vpop.permute.xlu0 %546
      %548 = vrot.lane.b32.xlu0 %v335, 112
      %v549 = vpop.permute.xlu0 %548
      %550 = vrot.lane.b32.xlu0 %v336, 112
      %v551 = vpop.permute.xlu0 %550
      %s560 = scalar_lea.vmem %s172, 16
      %561 = vst.msk [vmem:[%s560] sm:$0xf] %vm362, %v537
      %562 = vst.msk [vmem:[%s560 + $0x10] sm:$0xf] %vm362, %v539
      %563 = vst.msk [vmem:[%s560 + $0x20] sm:$0xf] %vm362, %v541
      %564 = vst.msk [vmem:[%s560 + $0x30] sm:$0xf] %vm362, %v543
      %565 = vst.msk [vmem:[%s560 + $0x40] sm:$0xf] %vm362, %v545
      %566 = vst.msk [vmem:[%s560 + $0x50] sm:$0xf] %vm362, %v547
      %567 = vst.msk [vmem:[%s560 + $0x60] sm:$0xf] %vm362, %v549
      %568 = vst.msk [vmem:[%s560 + $0x70] sm:$0xf] %vm362, %v551
      %569 = vrot.lane.b32.xlu0 %v377, 80
      %v570 = vpop.permute.xlu0 %569
      %571 = vrot.lane.b32.xlu0 %v378, 80
      %v572 = vpop.permute.xlu0 %571
      %573 = vrot.lane.b32.xlu0 %v385, 80
      %v574 = vpop.permute.xlu0 %573
      %575 = vrot.lane.b32.xlu0 %v386, 80
      %v576 = vpop.permute.xlu0 %575
      %577 = vrot.lane.b32.xlu0 %v393, 80
      %v578 = vpop.permute.xlu0 %577
      %579 = vrot.lane.b32.xlu0 %v394, 80
      %v580 = vpop.permute.xlu0 %579
      %581 = vrot.lane.b32.xlu0 %v401, 80
      %v582 = vpop.permute.xlu0 %581
      %583 = vrot.lane.b32.xlu0 %v402, 80
      %v584 = vpop.permute.xlu0 %583
      %585 = vrot.lane.b32.xlu0 %v409, 80
      %v586 = vpop.permute.xlu0 %585
      %587 = vrot.lane.b32.xlu0 %v410, 80
      %v588 = vpop.permute.xlu0 %587
      %589 = vrot.lane.b32.xlu0 %v417, 80
      %v590 = vpop.permute.xlu0 %589
      %591 = vrot.lane.b32.xlu0 %v418, 80
      %v592 = vpop.permute.xlu0 %591
      %593 = vrot.lane.b32.xlu0 %v425, 80
      %v594 = vpop.permute.xlu0 %593
      %595 = vrot.lane.b32.xlu0 %v426, 80
      %v596 = vpop.permute.xlu0 %595
      %597 = vrot.lane.b32.xlu0 %v433, 80
      %v598 = vpop.permute.xlu0 %597
      %599 = vrot.lane.b32.xlu0 %v434, 80
      %v600 = vpop.permute.xlu0 %599
      %v617 = vld [vmem:[%s560] sm:$0xf]
      %v618 = vsel %vm485, %v570, %v617
      %619 = vst [vmem:[%s560] sm:$0xf] %v618
      %v620 = vld [vmem:[%s560 + $0x4] sm:$0x1]
      %v621 = vsel %vm490, %v572, %v620
      %622 = vst [vmem:[%s560 + $0x4] sm:$0x1] %v621
      %v623 = vld [vmem:[%s560 + $0x10] sm:$0xf]
      %v624 = vsel %vm485, %v574, %v623
      %625 = vst [vmem:[%s560 + $0x10] sm:$0xf] %v624
      %v626 = vld [vmem:[%s560 + $0x14] sm:$0x1]
      %v627 = vsel %vm490, %v576, %v626
      %628 = vst [vmem:[%s560 + $0x14] sm:$0x1] %v627
      %v629 = vld [vmem:[%s560 + $0x20] sm:$0xf]
      %v630 = vsel %vm485, %v578, %v629
      %631 = vst [vmem:[%s560 + $0x20] sm:$0xf] %v630
      %v632 = vld [vmem:[%s560 + $0x24] sm:$0x1]
      %v633 = vsel %vm490, %v580, %v632
      %634 = vst [vmem:[%s560 + $0x24] sm:$0x1] %v633
      %v635 = vld [vmem:[%s560 + $0x30] sm:$0xf]
      %v636 = vsel %vm485, %v582, %v635
      %637 = vst [vmem:[%s560 + $0x30] sm:$0xf] %v636
      %v638 = vld [vmem:[%s560 + $0x34] sm:$0x1]
      %v639 = vsel %vm490, %v584, %v638
      %640 = vst [vmem:[%s560 + $0x34] sm:$0x1] %v639
      %v641 = vld [vmem:[%s560 + $0x40] sm:$0xf]
      %v642 = vsel %vm485, %v586, %v641
      %643 = vst [vmem:[%s560 + $0x40] sm:$0xf] %v642
      %v644 = vld [vmem:[%s560 + $0x44] sm:$0x1]
      %v645 = vsel %vm490, %v588, %v644
      %646 = vst [vmem:[%s560 + $0x44] sm:$0x1] %v645
      %v647 = vld [vmem:[%s560 + $0x50] sm:$0xf]
      %v648 = vsel %vm485, %v590, %v647
      %649 = vst [vmem:[%s560 + $0x50] sm:$0xf] %v648
      %v650 = vld [vmem:[%s560 + $0x54] sm:$0x1]
      %v651 = vsel %vm490, %v592, %v650
      %652 = vst [vmem:[%s560 + $0x54] sm:$0x1] %v651
      %v653 = vld [vmem:[%s560 + $0x60] sm:$0xf]
      %v654 = vsel %vm485, %v594, %v653
      %655 = vst [vmem:[%s560 + $0x60] sm:$0xf] %v654
      %v656 = vld [vmem:[%s560 + $0x64] sm:$0x1]
      %v657 = vsel %vm490, %v596, %v656
      %658 = vst [vmem:[%s560 + $0x64] sm:$0x1] %v657
      %v659 = vld [vmem:[%s560 + $0x70] sm:$0xf]
      %v660 = vsel %vm485, %v598, %v659
      %661 = vst [vmem:[%s560 + $0x70] sm:$0xf] %v660
      %v662 = vld [vmem:[%s560 + $0x74] sm:$0x1]
      %v663 = vsel %vm490, %v600, %v662
      %664 = vst [vmem:[%s560 + $0x74] sm:$0x1] %v663
      %s665 = smul.u32 9, %s14
      %p666 = scmp.lt.s32.totalorder %s665, 17
      %s667 = scalar_select %p666, %s665, 17
      %s668 = smul.addr %s667, 4
      %s669 = smul.addr %s668, 4
      %s670 = scalar_lea.vmem %s3, %s669
      // Predicated region
      $region33: #{generator_forward.12} parent=31 // pred_check
        %p671 = pneg %p100
      $region34: #{generator_forward.12} parent=31 // pred_check_branch
        %673 = sbr.rel (%p671) target = $region36
      $region35: #{generator_forward.12} parent=31 // pred_region
        %s674 = smul.u32 9, %s14
      $region36: #{generator_forward.12} parent=31 // pred_fallthru
        _
    $region32: #{generator_forward.12} parent=5 // pred_fallthru
      _
    %p675 = scmp.le.s32.totalorder 2, %s9
    // Predicated region
    $region37: #{generator_forward.12} parent=5 // pred_check
      %p676 = pneg %p675
    $region38: #{generator_forward.12} parent=5 // pred_check_branch
      %678 = sbr.rel (%p676) target = $region40
    $region39: #{generator_forward.12} parent=5 // pred_region
      %s679 = ssub.s32 %s9, 2
      // Predicated region
      $region41: #{generator_forward.12} parent=39 // pred_check
        %p680 = pneg %p106
      $region42: #{generator_forward.12} parent=39 // pred_check_branch
        %682 = sbr.rel (%p680) target = $region44
      $region43: #{generator_forward.12} parent=39 // pred_region
        %s683 = smul.u32 9, %s15
        %p684 = scmp.lt.s32.totalorder %s683, 17
        %s685 = scalar_select %p684, %s683, 17
        %s686 = smul.addr %s685, 4
        %s687 = smul.addr %s686, 4
        %s688 = scalar_lea.vmem %s3, %s687
      $region44: #{generator_forward.12} parent=39 // pred_fallthru
        _
    $region40: #{generator_forward.12} parent=5 // pred_fallthru
      _
  $region6: #{generator_forward.12} parent=0 // loop_footer
    %s13 = sadd.s32 1, %s9
  $region7: #{generator_forward.12} parent=0 // loop_footer_branch
    %8 = sbr.rel target = $region3
  $region8: #{generator_forward.12} parent=0 // loop_exit
    _

// kernel: generator_forward.13
$region0: #{generator_forward.13}
  #allocation0 [shape = 'u32[]', space=smem, size = 0x4, offset = 0x4, fixed_abs, tag = 'smem constant byte address 0x4 - core index']
  #allocation1 [shape = 'u32[144,128]{1,0:T(1,128)}', space=vmem, size = 0x12000, scoped, tag = 'internal scratch']
  %s0 = inlined_call_operand.vmem [shape: bf16[2,18,18,16], index: 0, kind: input, shape index: {}]
  %s1 = inlined_call_operand.hbm [shape: bf16[144,128], index: 1, kind: input, shape index: {}]
  %s2 = inlined_call_operand.vmem [shape: bf16[2,16,16,128], index: 2, kind: output, shape index: {0}]
  %s3 = inlined_call_operand.vmem [shape: f32[2,2,128], index: 3, kind: output, shape index: {1}]
  %4 = xla_tuple %s2, %s3
  %s5 = sld [smem:[#allocation0]]
  $region60: #{generator_forward.13} parent=0
    _
  %s7 = ssub.s32 1, %s5
  %s8 = scalar_select 0, %s7, %s5
  $region1: #{generator_forward.13} parent=0
    #allocation2 [shape = 'u8[36864]{0}', space=vmem, size = 0x9000, scoped, tag = 'input window, operand 1, single buffered']
    #allocation3 [shape = 's32[2]{0}', space=sflag, size = 0x8, scoped, tag = 'scoped memory for generator_forward.13']
    %9 = vsyncpa [#allocation3], 0
    loop: start=0, step=1, limit=4
    $region2: #{generator_forward.13} parent=1 // loop_pre_header
      _
    $region3: #{generator_forward.13} parent=1 // loop_header
      %s11 = sphi 0, %s15
      %p12 = scmp.ge.s32.totalorder %s11, 4
      %s21 = sphi 0, %s23
      %s24 = sphi 0, %s21
      %s25 = sphi 0, %s24
      %s41 = sphi 0, %s25
      %s45 = sphi 0, %s45
      %s47 = sphi 0, %s45
      %s48 = sphi 0, %s47
      %s62 = sphi 0, %s48
      %s68 = sphi 0, %s70
      %s71 = sphi 0, %s68
      %s72 = sphi 0, %s71
      %s88 = sphi 0, %s72
      %s94 = sphi 0, %s96
      %s97 = sphi 0, %s94
      %s98 = sphi 0, %s97
      %s114 = sphi 0, %s98
    $region4: #{generator_forward.13} parent=1 // loop_header_branch
      %14 = sbr.rel (%p12) target = $region8
    $region5: #{generator_forward.13} parent=1 // loop_body
      %s16 = ssub.s32 %s11, 1
      %s17 = ssub.s32 %s11, 2
      %s18 = sadd.s32 %s11, 1
      %s19 = ssub.s32 %s11, %s18
      %p20 = scmp.eq.s32.totalorder %s19, 0
      %s22 = sadd.s32 %s21, 1
      %s23 = scalar_select %p20, %s21, %s22
      %p26 = pneg %p20
      %p27 = scmp.eq.s32.totalorder %s11, 1
      %p28 = por %p26, %p27
      %p29 = scmp.ne.s32.totalorder %s21, %s24
      %p30 = scmp.eq.s32.totalorder %s11, 0
      %p31 = por %p29, %p30
      %p32 = scmp.ne.s32.totalorder %s21, %s24
      %p33 = scmp.eq.s32.totalorder %s16, 1
      %p34 = por %p32, %p33
      %p35 = scmp.ne.s32.totalorder %s24, %s25
      %p36 = scmp.eq.s32.totalorder %s16, 0
      %p37 = por %p35, %p36
      %p38 = scmp.ne.s32.totalorder %s24, %s25
      %p39 = scmp.eq.s32.totalorder %s17, 1
      %p40 = por %p38, %p39
      %p42 = scmp.ne.s32.totalorder %s25, %s41
      %p43 = scmp.eq.s32.totalorder %s17, 0
      %p44 = por %p42, %p43
      %s46 = sadd.s32 %s45, 1
      %p49 = scmp.eq.s32.totalorder %s11, 1
      %p50 = scmp.ne.s32.totalorder %s45, %s47
      %p51 = scmp.eq.s32.totalorder %s11, 0
      %p52 = por %p50, %p51
      %p53 = scmp.ne.s32.totalorder %s45, %s47
      %p54 = scmp.eq.s32.totalorder %s16, 1
      %p55 = por %p53, %p54
      %p56 = scmp.ne.s32.totalorder %s47, %s48
      %p57 = scmp.eq.s32.totalorder %s16, 0
      %p58 = por %p56, %p57
      %p59 = scmp.ne.s32.totalorder %s47, %s48
      %p60 = scmp.eq.s32.totalorder %s17, 1
      %p61 = por %p59, %p60
      %p63 = scmp.ne.s32.totalorder %s48, %s62
      %p64 = scmp.eq.s32.totalorder %s17, 0
      %p65 = por %p63, %p64
      %s66 = ssub.s32 %s11, %s18
      %p67 = scmp.eq.s32.totalorder %s66, 0
      %s69 = sadd.s32 %s68, 1
      %s70 = scalar_select %p67, %s68, %s69
      %p73 = pneg %p67
      %p74 = scmp.eq.s32.totalorder %s11, 1
      %p75 = por %p73, %p74
      %p76 = scmp.ne.s32.totalorder %s68, %s71
      %p77 = scmp.eq.s32.totalorder %s11, 0
      %p78 = por %p76, %p77
      %p79 = scmp.ne.s32.totalorder %s68, %s71
      %p80 = scmp.eq.s32.totalorder %s16, 1
      %p81 = por %p79, %p80
      %p82 = scmp.ne.s32.totalorder %s71, %s72
      %p83 = scmp.eq.s32.totalorder %s16, 0
      %p84 = por %p82, %p83
      %p85 = scmp.ne.s32.totalorder %s71, %s72
      %p86 = scmp.eq.s32.totalorder %s17, 1
      %p87 = por %p85, %p86
      %p89 = scmp.ne.s32.totalorder %s72, %s88
      %p90 = scmp.eq.s32.totalorder %s17, 0
      %p91 = por %p89, %p90
      %s92 = ssub.s32 %s11, %s18
      %p93 = scmp.eq.s32.totalorder %s92, 0
      %s95 = sadd.s32 %s94, 1
      %s96 = scalar_select %p93, %s94, %s95
      %p99 = pneg %p93
      %p100 = scmp.eq.s32.totalorder %s11, 1
      %p101 = por %p99, %p100
      %p102 = scmp.ne.s32.totalorder %s94, %s97
      %p103 = scmp.eq.s32.totalorder %s11, 0
      %p104 = por %p102, %p103
      %p105 = scmp.ne.s32.totalorder %s94, %s97
      %p106 = scmp.eq.s32.totalorder %s16, 1
      %p107 = por %p105, %p106
      %p108 = scmp.ne.s32.totalorder %s97, %s98
      %p109 = scmp.eq.s32.totalorder %s16, 0
      %p110 = por %p108, %p109
      %p111 = scmp.ne.s32.totalorder %s97, %s98
      %p112 = scmp.eq.s32.totalorder %s17, 1
      %p113 = por %p111, %p112
      %p115 = scmp.ne.s32.totalorder %s98, %s114
      %p116 = scmp.eq.s32.totalorder %s17, 0
      %p117 = por %p115, %p116
      %p118 = scmp.le.s32.totalorder 1, %s11
      %p119 = scmp.lt.s32.totalorder %s11, 3
      %p120 = pnand %p118, %p119
      %p121 = pneg %p120
      // Predicated region
      $region9: #{generator_forward.13} parent=5 // pred_check
        _
      $region10: #{generator_forward.13} parent=5 // pred_check_branch
        %123 = sbr.rel (%p120) target = $region12
      $region11: #{generator_forward.13} parent=5 // pred_region
        %s124 = ssub.s32 %s11, 1
        // Predicated region
        $region13: #{generator_forward.13} parent=11 // pred_check
          %p125 = pneg %p58
        $region14: #{generator_forward.13} parent=11 // pred_check_branch
          %127 = sbr.rel (%p125) target = $region16
        $region15: #{generator_forward.13} parent=11 // pred_region
          %s129 = ssub.s32 1152, 1152
          %130 = vsyncadd [#allocation3], %s129
          %s131 = sshll.u32 [#allocation2], 4
          %s132 = int_to_ptr.vmem [resolvable:$true] %s131
          %137 = dma.hbm_to_vmem [thread:$0]  %s1, 1152, %s132, [#allocation3], 64, 64, 4
        $region16: #{generator_forward.13} parent=11 // pred_fallthru
          _
      $region12: #{generator_forward.13} parent=5 // pred_fallthru
        _
      %p138 = scmp.lt.s32.totalorder %s11, 2
      // Predicated region
      $region17: #{generator_forward.13} parent=5 // pred_check
        %p139 = pneg %p138
      $region18: #{generator_forward.13} parent=5 // pred_check_branch
        %141 = sbr.rel (%p139) target = $region20
      $region19: #{generator_forward.13} parent=5 // pred_region
        // Predicated region
        $region21: #{generator_forward.13} parent=19 // pred_check
          %p142 = pneg %p31
        $region22: #{generator_forward.13} parent=19 // pred_check_branch
          %144 = sbr.rel (%p142) target = $region24
        $region23: #{generator_forward.13} parent=19 // pred_region
          %p145 = scmp.lt.s32.totalorder %s11, 1
          %s146 = scalar_select %p145, %s11, 1
          %s147 = smul.addr %s146, 54
          %s148 = smul.addr %s147, 4
          %s149 = scalar_lea.vmem %s0, %s148
        $region24: #{generator_forward.13} parent=19 // pred_fallthru
          _
      $region20: #{generator_forward.13} parent=5 // pred_fallthru
        _
      %p150 = scmp.le.s32.totalorder 1, %s11
      %p151 = scmp.lt.s32.totalorder %s11, 3
      %p152 = pnand %p150, %p151
      %p153 = pneg %p152
      // Predicated region
      $region25: #{generator_forward.13} parent=5 // pred_check
        _
      $region26: #{generator_forward.13} parent=5 // pred_check_branch
        %155 = sbr.rel (%p152) target = $region28
      $region27: #{generator_forward.13} parent=5 // pred_region
        %s156 = ssub.s32 %s11, 1
        // Predicated region
        $region29: #{generator_forward.13} parent=27 // pred_check
          %p157 = pneg %p58
        $region30: #{generator_forward.13} parent=27 // pred_check_branch
          %159 = sbr.rel (%p157) target = $region32
        $region31: #{generator_forward.13} parent=27 // pred_region
          %160 = dma.done [#allocation3], 1152
        $region32: #{generator_forward.13} parent=27 // pred_fallthru
          _
        %p161 = scmp.lt.s32.totalorder %s16, 1
        %s162 = scalar_select %p161, %s16, 1
        %s163 = smul.addr %s162, 54
        %s164 = smul.addr %s163, 4
        %s165 = scalar_lea.vmem %s0, %s164
        %p166 = pneg %p37
        %p167 = pneg %p34
        %p168 = pneg %p58
        %p169 = pneg %p55
        %p170 = pneg %p84
        %p171 = pneg %p81
        %p172 = scmp.lt.s32.totalorder %s16, 1
        %s173 = scalar_select %p172, %s16, 1
        %s174 = smul.addr %s173, 32
        %s175 = smul.addr %s174, 4
        %s176 = scalar_lea.vmem %s2, %s175
        %p177 = pneg %p110
        %p178 = pneg %p107
        %p179 = scmp.lt.s32.totalorder %s16, 1
        %s180 = scalar_select %p179, %s16, 1
        %s181 = smul.addr %s180, 2
        %s182 = scalar_lea.vmem %s3, %s181
        %p183 = scmp.lt.s32.totalorder %s16, 1
        %s184 = scalar_select %p183, %s16, 1
        %s185 = smul.addr %s184, 54
        %s186 = smul.addr %s185, 4
        %s187 = scalar_lea.vmem %s0, %s186
        %p188 = scmp.lt.s32.totalorder %s16, 1
        %s189 = scalar_select %p188, %s16, 1
        %s190 = smul.addr %s189, 32
        %s191 = smul.addr %s190, 4
        %s192 = scalar_lea.vmem %s2, %s191
        %p193 = scmp.lt.s32.totalorder %s16, 1
        %s194 = scalar_select %p193, %s16, 1
        %s195 = smul.addr %s194, 2
        %s196 = scalar_lea.vmem %s3, %s195
        %v198 = vld [vmem:[#allocation2] sm:$0xf]
        %v199 = vld [vmem:[#allocation2 + $0x4] sm:$0xf]
        %v200 = vld [vmem:[#allocation2 + $0x8] sm:$0xf]
        %v201 = vld [vmem:[#allocation2 + $0xc] sm:$0xf]
        %v202 = vld [vmem:[#allocation2 + $0x10] sm:$0xf]
        %v203 = vld [vmem:[#allocation2 + $0x14] sm:$0xf]
        %v204 = vld [vmem:[#allocation2 + $0x18] sm:$0xf]
        %v205 = vld [vmem:[#allocation2 + $0x1c] sm:$0xf]
        %v206 = vld [vmem:[#allocation2 + $0x20] sm:$0xf]
        %v207 = vld [vmem:[#allocation2 + $0x24] sm:$0xf]
        %v208 = vld [vmem:[#allocation2 + $0x28] sm:$0xf]
        %v209 = vld [vmem:[#allocation2 + $0x2c] sm:$0xf]
        %v210 = vld [vmem:[#allocation2 + $0x30] sm:$0xf]
        %v211 = vld [vmem:[#allocation2 + $0x34] sm:$0xf]
        %v212 = vld [vmem:[#allocation2 + $0x38] sm:$0xf]
        %v213 = vld [vmem:[#allocation2 + $0x3c] sm:$0xf]
        %v214 = vld [vmem:[#allocation2 + $0x40] sm:$0xf]
        %v215 = vld [vmem:[#allocation2 + $0x44] sm:$0xf]
        loop: start=0, step=1, limit=16
        $region33: #{generator_forward.13} parent=27 // loop_pre_header
          _
        $region34: #{generator_forward.13} parent=27 // loop_header
          %s217 = sphi 0, %s221
          %p218 = scmp.ge.s32.totalorder %s217, 16
          %v222 = vphi 0.0, %v481
          %v223 = vphi 0.0, %v491
        $region35: #{generator_forward.13} parent=27 // loop_header_branch
          %220 = sbr.rel (%p218) target = $region39
        $region36: #{generator_forward.13} parent=27 // loop_body
          %s224 = smul.u32 %s217, 3
          %s225 = smul.addr %s224, 4
          %s226 = scalar_lea.vmem %s187, %s225
          %v227 = vld [vmem:[%s226] sm:$0xf]
          %v228 = vld [vmem:[%s226 + $0x4] sm:$0xf]
          %v229 = vld [vmem:[%s226 + $0x8] sm:$0x1]
          %v230 = vld [vmem:[%s226] sm:$0xe]
          %s231 = sadd.s32 %s217, 1
          %s232 = smul.u32 %s231, 3
          %s233 = smul.addr %s232, 4
          %s234 = scalar_lea.vmem %s187, %s233
          %v235 = vld [vmem:[%s234] sm:$0xf]
          %v236 = vld [vmem:[%s234 + $0x4] sm:$0xf]
          %v237 = vld [vmem:[%s234 + $0x8] sm:$0x1]
          %v238 = vld [vmem:[%s234] sm:$0xe]
          %s239 = sadd.s32 %s217, 2
          %s240 = smul.u32 %s239, 3
          %s241 = smul.addr %s240, 4
          %s242 = scalar_lea.vmem %s187, %s241
          %v243 = vld [vmem:[%s242] sm:$0xf]
          %v244 = vld [vmem:[%s242 + $0x4] sm:$0xf]
          %v245 = vld [vmem:[%s242 + $0x8] sm:$0x1]
          %v246 = vld [vmem:[%s242] sm:$0xe]
          %v249 = vunpack.c.l.b16 %v227
          %v250 = vunpack.c.l.b16 %v228
          %v251 = vpack.c.b16 %v250, %v249
          %v253 = vunpack.c.l.b16 %v229
          %v254 = vpack.c.b16 %v253, %v253
          %vm255 = vsmask.f32 7424
          %v257 = vshrl.u32 %v251, 16
          %v259 = vshll.u32 %v251, 16
          %v261 = vrot.slane %v259, 1
          %v262 = vor.u32 %v257, %v261
          %v264 = vshll.u32 %v254, 16
          %v266 = vrot.slane %v264, 1
          %v267 = vsel %vm255, %v262, %v266
          %268 = vrot.lane.b32.xlu0 %v267, 16
          %v269 = vpop.permute.xlu0 %268
          %v271 = vunpack.c.l.b16 %v230
          %v272 = vpack.c.b16 %v250, %v271
          %vm273 = vcmask 1046528
          %v274 = vrot.slane %v272, 1
          %v275 = vrot.slane %v254, 1
          %v276 = vsel %vm273, %v274, %v275
          %277 = vrot.lane.b32.xlu0 %v276, 32
          %v278 = vpop.permute.xlu0 %277
          %v281 = vunpack.c.l.b16 %v235
          %v282 = vunpack.c.l.b16 %v236
          %v283 = vpack.c.b16 %v282, %v281
          %284 = vrot.lane.b32.xlu0 %v283, 48
          %v285 = vpop.permute.xlu0 %284
          %v287 = vunpack.c.l.b16 %v237
          %v288 = vpack.c.b16 %v287, %v287
          %v290 = vshrl.u32 %v283, 16
          %v292 = vshll.u32 %v283, 16
          %v294 = vrot.slane %v292, 1
          %v295 = vor.u32 %v290, %v294
          %v297 = vshll.u32 %v288, 16
          %v299 = vrot.slane %v297, 1
          %v300 = vsel %vm255, %v295, %v299
          %301 = vrot.lane.b32.xlu0 %v300, 64
          %v302 = vpop.permute.xlu0 %301
          %v304 = vunpack.c.l.b16 %v238
          %v305 = vpack.c.b16 %v282, %v304
          %v306 = vrot.slane %v305, 1
          %v307 = vrot.slane %v288, 1
          %v308 = vsel %vm273, %v306, %v307
          %309 = vrot.lane.b32.xlu0 %v308, 80
          %v310 = vpop.permute.xlu0 %309
          %v313 = vunpack.c.l.b16 %v243
          %v314 = vunpack.c.l.b16 %v244
          %v315 = vpack.c.b16 %v314, %v313
          %316 = vrot.lane.b32.xlu0 %v315, 96
          %v317 = vpop.permute.xlu0 %316
          %v319 = vunpack.c.l.b16 %v245
          %v320 = vpack.c.b16 %v319, %v319
          %v322 = vshrl.u32 %v315, 16
          %v324 = vshll.u32 %v315, 16
          %v326 = vrot.slane %v324, 1
          %v327 = vor.u32 %v322, %v326
          %v329 = vshll.u32 %v320, 16
          %v331 = vrot.slane %v329, 1
          %v332 = vsel %vm255, %v327, %v331
          %333 = vrot.lane.b32.xlu0 %v332, 112
          %v334 = vpop.permute.xlu0 %333
          %v336 = vunpack.c.l.b16 %v246
          %v337 = vpack.c.b16 %v314, %v336
          %v338 = vrot.slane %v337, 1
          %v339 = vrot.slane %v320, 1
          %v340 = vsel %vm273, %v338, %v339
          %vm341 = vcmask 130048
          %v343 = vsel %vm341, %v251, %v269
          %vm344 = vcmask 261120
          %v346 = vsel %vm344, %v343, %v278
          %vm347 = vcmask 392192
          %v349 = vsel %vm347, %v346, %v285
          %vm350 = vcmask 523264
          %v352 = vsel %vm350, %v349, %v302
          %vm353 = vcmask 654336
          %v355 = vsel %vm353, %v352, %v310
          %vm356 = vcmask 785408
          %v358 = vsel %vm356, %v355, %v317
          %vm359 = vcmask 916480
          %v361 = vsel %vm359, %v358, %v334
          %v381 = vunpack.c.l.b16 %v198
          %v382 = vunpack.c.l.b16 %v199
          %v383 = vunpack.c.l.b16 %v200
          %v384 = vunpack.c.l.b16 %v201
          %v385 = vunpack.c.l.b16 %v202
          %v386 = vunpack.c.l.b16 %v203
          %v387 = vunpack.c.l.b16 %v204
          %v388 = vunpack.c.l.b16 %v205
          %v389 = vunpack.c.l.b16 %v206
          %v390 = vunpack.c.l.b16 %v207
          %v391 = vunpack.c.l.b16 %v208
          %v392 = vunpack.c.l.b16 %v209
          %v393 = vunpack.c.l.b16 %v210
          %v394 = vunpack.c.l.b16 %v211
          %v395 = vunpack.c.l.b16 %v212
          %v396 = vunpack.c.l.b16 %v213
          %v397 = vunpack.c.l.b16 %v214
          %v398 = vunpack.c.l.b16 %v215
          %v399 = vpack.c.b16 %v382, %v381
          %v400 = vpack.c.b16 %v384, %v383
          %v401 = vpack.c.b16 %v386, %v385
          %v402 = vpack.c.b16 %v388, %v387
          %v403 = vpack.c.b16 %v390, %v389
          %v404 = vpack.c.b16 %v392, %v391
          %v405 = vpack.c.b16 %v394, %v393
          %v406 = vpack.c.b16 %v396, %v395
          %v407 = vpack.c.b16 %v398, %v397
          %v418 = vsel %vm341, %v340, 0
          %420 = vmatprep.subr.bf16.mxu0 0
          %421 = vmatpush1.bf16.msra.mxu0 %v406
          %422 = vmatprep.subr.bf16.mxu0 0
          %423 = vmatpush1.bf16.msra.mxu0 %v405
          %424 = vmatprep.subr.bf16.mxu0 0
          %425 = vmatpush1.bf16.msra.mxu0 %v404
          %426 = vmatprep.subr.bf16.mxu0 0
          %427 = vmatpush1.bf16.msra.mxu0 %v403
          %428 = vmatprep.subr.bf16.mxu0 0
          %429 = vmatpush1.bf16.msra.mxu0 %v402
          %430 = vmatprep.subr.bf16.mxu0 0
          %431 = vmatpush1.bf16.msra.mxu0 %v401
          %432 = vmatprep.subr.bf16.mxu0 0
          %433 = vmatpush1.bf16.msra.mxu0 %v400
          %434 = vmatprep.subr.bf16.mxu0 0
          %435 = vmatpush1.bf16.msra.mxu0 %v399
          %436 = vmatprep.subr.bf16.mxu0 0
          %437 = vmatpush2.bf16.msra.mxu0 0
          %438 = vmatprep.subr.bf16.mxu0 0
          %439 = vmatpush2.bf16.msra.mxu0 0
          %440 = vmatprep.subr.bf16.mxu0 0
          %441 = vmatpush2.bf16.msra.mxu0 0
          %442 = vmatprep.subr.bf16.mxu0 0
          %443 = vmatpush2.bf16.msra.mxu0 0
          %444 = vmatprep.subr.bf16.mxu0 0
          %445 = vmatpush2.bf16.msra.mxu0 0
          %446 = vmatprep.subr.bf16.mxu0 0
          %447 = vmatpush2.bf16.msra.mxu0 0
          %448 = vmatprep.subr.bf16.mxu0 0
          %449 = vmatpush2.bf16.msra.mxu0 0
          %450 = vmatprep.subr.bf16.mxu0 0
          %451 = vmatpush2.bf16.msra.mxu0 %v407
          %452 = vmatprep.mubr.bf16.mxu0 %v418
          %453 = vmatmul.mubr.bf16.gmra.mxu0 %v361
          %v454 = vpop.f32.mrf.mxu0
          %v455 = vadd.f32 0.0, %v454
          %v456 = vpop.f32.mrf.mxu0
          %v457 = vpop.f32.mrf.mxu0
          %v458 = vadd.f32 0.0, %v457
          %v459 = vpop.f32.mrf.mxu0
          %460 = vdwg.mxu0
          %v461 = vpack.c.bf16 %v458, %v455
          %v463 = vunpack.c.l.b16 %v461
          %v464 = vunpack.c.h.b16 %v461
          %v465 = vpack.c.b16 %v463, %v463
          %v466 = vpack.c.b16 %v464, %v464
          %s469 = smul.u32 %s217, 2
          %s470 = smul.addr %s469, 4
          %s471 = scalar_lea.vmem %s192, %s470
          %472 = vst [vmem:[%s471] sm:$0xf] %v465
          %473 = vst [vmem:[%s471 + $0x4] sm:$0xf] %v466
          %v474 = vadd.f32 %v455, %v458
          %v475 = vrot.slane %v474, 4
          %v476 = vadd.f32 %v474, %v475
          %v477 = vrot.slane %v476, 2
          %v478 = vadd.f32 %v476, %v477
          %v479 = vrot.slane %v478, 1
          %v480 = vadd.f32 %v478, %v479
          %v481 = vadd.f32 %v222, %v480
          %v482 = vmul.f32 %v455, %v455
          %v483 = vmul.f32 %v458, %v458
          %v484 = vadd.f32 %v482, %v483
          %v485 = vrot.slane %v484, 4
          %v486 = vadd.f32 %v484, %v485
          %v487 = vrot.slane %v486, 2
          %v488 = vadd.f32 %v486, %v487
          %v489 = vrot.slane %v488, 1
          %v490 = vadd.f32 %v488, %v489
          %v491 = vadd.f32 %v223, %v490
        $region37: #{generator_forward.13} parent=27 // loop_footer
          %s221 = sadd.s32 1, %s217
        $region38: #{generator_forward.13} parent=27 // loop_footer_branch
          %216 = sbr.rel target = $region34
        $region39: #{generator_forward.13} parent=27 // loop_exit
          _
        %vm492 = vcmask 1040384
        %v493 = vsel %vm492, %v222, %v223
        %494 = vst [vmem:[%s196] sm:$0x3] %v493
        %p495 = scmp.lt.s32.totalorder %s16, 1
        %s496 = scalar_select %p495, %s16, 1
        %s497 = smul.addr %s496, 32
        %s498 = smul.addr %s497, 4
        %s499 = scalar_lea.vmem %s2, %s498
        %p500 = scmp.lt.s32.totalorder %s16, 1
        %s501 = scalar_select %p500, %s16, 1
        %s502 = smul.addr %s501, 2
        %s503 = scalar_lea.vmem %s3, %s502
        // Predicated region
        $region40: #{generator_forward.13} parent=27 // pred_check
          %p504 = pneg %p81
        $region41: #{generator_forward.13} parent=27 // pred_check_branch
          %506 = sbr.rel (%p504) target = $region43
        $region42: #{generator_forward.13} parent=27 // pred_region
          _
        $region43: #{generator_forward.13} parent=27 // pred_fallthru
          _
        // Predicated region
        $region44: #{generator_forward.13} parent=27 // pred_check
          %p507 = pneg %p107
        $region45: #{generator_forward.13} parent=27 // pred_check_branch
          %509 = sbr.rel (%p507) target = $region47
        $region46: #{generator_forward.13} parent=27 // pred_region
          _
        $region47: #{generator_forward.13} parent=27 // pred_fallthru
          _
      $region28: #{generator_forward.13} parent=5 // pred_fallthru
        _
      %p510 = scmp.le.s32.totalorder 2, %s11
      // Predicated region
      $region48: #{generator_forward.13} parent=5 // pred_check
        %p511 = pneg %p510
      $region49: #{generator_forward.13} parent=5 // pred_check_branch
        %513 = sbr.rel (%p511) target = $region51
      $region50: #{generator_forward.13} parent=5 // pred_region
        %s514 = ssub.s32 %s11, 2
        // Predicated region
        $region52: #{generator_forward.13} parent=50 // pred_check
          %p515 = pneg %p87
        $region53: #{generator_forward.13} parent=50 // pred_check_branch
          %517 = sbr.rel (%p515) target = $region55
        $region54: #{generator_forward.13} parent=50 // pred_region
          %p518 = scmp.lt.s32.totalorder %s17, 1
          %s519 = scalar_select %p518, %s17, 1
          %s520 = smul.addr %s519, 32
          %s521 = smul.addr %s520, 4
          %s522 = scalar_lea.vmem %s2, %s521
        $region55: #{generator_forward.13} parent=50 // pred_fallthru
          _
        // Predicated region
        $region56: #{generator_forward.13} parent=50 // pred_check
          %p523 = pneg %p113
        $region57: #{generator_forward.13} parent=50 // pred_check_branch
          %525 = sbr.rel (%p523) target = $region59
        $region58: #{generator_forward.13} parent=50 // pred_region
          %p526 = scmp.lt.s32.totalorder %s17, 1
          %s527 = scalar_select %p526, %s17, 1
          %s528 = smul.addr %s527, 2
          %s529 = scalar_lea.vmem %s3, %s528
        $region59: #{generator_forward.13} parent=50 // pred_fallthru
          _
      $region51: #{generator_forward.13} parent=5 // pred_fallthru
        _
    $region6: #{generator_forward.13} parent=1 // loop_footer
      %s15 = sadd.s32 1, %s11
    $region7: #{generator_forward.13} parent=1 // loop_footer_branch
      %10 = sbr.rel target = $region3
    $region8: #{generator_forward.13} parent=1 // loop_exit
      _
    %530 = vsyncpa [#allocation3], 1
    %s531 = scalar_lea.sflag [#allocation3], 1
    %532 = vsyncpa %s531, 1

// kernel: generator_forward.14
$region0: #{generator_forward.14}
  #allocation0 [shape = 'u32[]', space=smem, size = 0x4, offset = 0x4, fixed_abs, tag = 'smem constant byte address 0x4 - core index']
  #allocation1 [shape = 'u32[144,128]{1,0:T(1,128)}', space=vmem, size = 0x12000, scoped, tag = 'internal scratch']
  %s0 = inlined_call_operand.vmem [shape: bf16[2,16,16,128], index: 0, kind: input, shape index: {}]
  %s1 = inlined_call_operand.vmem [shape: f32[1,128], index: 1, kind: input, shape index: {}]
  %s2 = inlined_call_operand.vmem [shape: f32[1,128], index: 2, kind: input, shape index: {}]
  %s3 = inlined_call_operand.vmem [shape: bf16[34,2,17,16], index: 3, kind: output, shape index: {}]
  %s4 = sld [smem:[#allocation0]]
  $region45: #{generator_forward.14} parent=0
    _
  %s6 = ssub.s32 1, %s4
  %s7 = scalar_select 0, %s6, %s4
  loop: start=0, step=1, limit=4
  $region2: #{generator_forward.14} parent=0 // loop_pre_header
    _
  $region3: #{generator_forward.14} parent=0 // loop_header
    %s9 = sphi 0, %s13
    %p10 = scmp.ge.s32.totalorder %s9, 4
    %s19 = sphi 0, %s21
    %s22 = sphi 0, %s19
    %s23 = sphi 0, %s22
    %s39 = sphi 0, %s23
    %s43 = sphi 0, %s43
    %s45 = sphi 0, %s43
    %s46 = sphi 0, %s45
    %s60 = sphi 0, %s46
    %s64 = sphi 0, %s64
    %s66 = sphi 0, %s64
    %s67 = sphi 0, %s66
    %s81 = sphi 0, %s67
    %s87 = sphi 0, %s89
    %s90 = sphi 0, %s87
    %s91 = sphi 0, %s90
    %s107 = sphi 0, %s91
  $region4: #{generator_forward.14} parent=0 // loop_header_branch
    %12 = sbr.rel (%p10) target = $region8
  $region5: #{generator_forward.14} parent=0 // loop_body
    %s14 = ssub.s32 %s9, 1
    %s15 = ssub.s32 %s9, 2
    %s16 = sadd.s32 %s9, 1
    %s17 = ssub.s32 %s9, %s16
    %p18 = scmp.eq.s32.totalorder %s17, 0
    %s20 = sadd.s32 %s19, 1
    %s21 = scalar_select %p18, %s19, %s20
    %p24 = pneg %p18
    %p25 = scmp.eq.s32.totalorder %s9, 1
    %p26 = por %p24, %p25
    %p27 = scmp.ne.s32.totalorder %s19, %s22
    %p28 = scmp.eq.s32.totalorder %s9, 0
    %p29 = por %p27, %p28
    %p30 = scmp.ne.s32.totalorder %s19, %s22
    %p31 = scmp.eq.s32.totalorder %s14, 1
    %p32 = por %p30, %p31
    %p33 = scmp.ne.s32.totalorder %s22, %s23
    %p34 = scmp.eq.s32.totalorder %s14, 0
    %p35 = por %p33, %p34
    %p36 = scmp.ne.s32.totalorder %s22, %s23
    %p37 = scmp.eq.s32.totalorder %s15, 1
    %p38 = por %p36, %p37
    %p40 = scmp.ne.s32.totalorder %s23, %s39
    %p41 = scmp.eq.s32.totalorder %s15, 0
    %p42 = por %p40, %p41
    %s44 = sadd.s32 %s43, 1
    %p47 = scmp.eq.s32.totalorder %s9, 1
    %p48 = scmp.ne.s32.totalorder %s43, %s45
    %p49 = scmp.eq.s32.totalorder %s9, 0
    %p50 = por %p48, %p49
    %p51 = scmp.ne.s32.totalorder %s43, %s45
    %p52 = scmp.eq.s32.totalorder %s14, 1
    %p53 = por %p51, %p52
    %p54 = scmp.ne.s32.totalorder %s45, %s46
    %p55 = scmp.eq.s32.totalorder %s14, 0
    %p56 = por %p54, %p55
    %p57 = scmp.ne.s32.totalorder %s45, %s46
    %p58 = scmp.eq.s32.totalorder %s15, 1
    %p59 = por %p57, %p58
    %p61 = scmp.ne.s32.totalorder %s46, %s60
    %p62 = scmp.eq.s32.totalorder %s15, 0
    %p63 = por %p61, %p62
    %s65 = sadd.s32 %s64, 1
    %p68 = scmp.eq.s32.totalorder %s9, 1
    %p69 = scmp.ne.s32.totalorder %s64, %s66
    %p70 = scmp.eq.s32.totalorder %s9, 0
    %p71 = por %p69, %p70
    %p72 = scmp.ne.s32.totalorder %s64, %s66
    %p73 = scmp.eq.s32.totalorder %s14, 1
    %p74 = por %p72, %p73
    %p75 = scmp.ne.s32.totalorder %s66, %s67
    %p76 = scmp.eq.s32.totalorder %s14, 0
    %p77 = por %p75, %p76
    %p78 = scmp.ne.s32.totalorder %s66, %s67
    %p79 = scmp.eq.s32.totalorder %s15, 1
    %p80 = por %p78, %p79
    %p82 = scmp.ne.s32.totalorder %s67, %s81
    %p83 = scmp.eq.s32.totalorder %s15, 0
    %p84 = por %p82, %p83
    %s85 = ssub.s32 %s9, %s16
    %p86 = scmp.eq.s32.totalorder %s85, 0
    %s88 = sadd.s32 %s87, 1
    %s89 = scalar_select %p86, %s87, %s88
    %p92 = pneg %p86
    %p93 = scmp.eq.s32.totalorder %s9, 1
    %p94 = por %p92, %p93
    %p95 = scmp.ne.s32.totalorder %s87, %s90
    %p96 = scmp.eq.s32.totalorder %s9, 0
    %p97 = por %p95, %p96
    %p98 = scmp.ne.s32.totalorder %s87, %s90
    %p99 = scmp.eq.s32.totalorder %s14, 1
    %p100 = por %p98, %p99
    %p101 = scmp.ne.s32.totalorder %s90, %s91
    %p102 = scmp.eq.s32.totalorder %s14, 0
    %p103 = por %p101, %p102
    %p104 = scmp.ne.s32.totalorder %s90, %s91
    %p105 = scmp.eq.s32.totalorder %s15, 1
    %p106 = por %p104, %p105
    %p108 = scmp.ne.s32.totalorder %s91, %s107
    %p109 = scmp.eq.s32.totalorder %s15, 0
    %p110 = por %p108, %p109
    %p111 = scmp.le.s32.totalorder 1, %s9
    %p112 = scmp.lt.s32.totalorder %s9, 3
    %p113 = pnand %p111, %p112
    %p114 = pneg %p113
    // Predicated region
    $region9: #{generator_forward.14} parent=5 // pred_check
      _
    $region10: #{generator_forward.14} parent=5 // pred_check_branch
      %116 = sbr.rel (%p113) target = $region12
    $region11: #{generator_forward.14} parent=5 // pred_region
      %s117 = ssub.s32 %s9, 1
      // Predicated region
      $region13: #{generator_forward.14} parent=11 // pred_check
        %p118 = pneg %p56
      $region14: #{generator_forward.14} parent=11 // pred_check_branch
        %120 = sbr.rel (%p118) target = $region16
      $region15: #{generator_forward.14} parent=11 // pred_region
        _
      $region16: #{generator_forward.14} parent=11 // pred_fallthru
        _
      // Predicated region
      $region17: #{generator_forward.14} parent=11 // pred_check
        %p121 = pneg %p77
      $region18: #{generator_forward.14} parent=11 // pred_check_branch
        %123 = sbr.rel (%p121) target = $region20
      $region19: #{generator_forward.14} parent=11 // pred_region
        _
      $region20: #{generator_forward.14} parent=11 // pred_fallthru
        _
    $region12: #{generator_forward.14} parent=5 // pred_fallthru
      _
    %p124 = scmp.lt.s32.totalorder %s9, 2
    // Predicated region
    $region21: #{generator_forward.14} parent=5 // pred_check
      %p125 = pneg %p124
    $region22: #{generator_forward.14} parent=5 // pred_check_branch
      %127 = sbr.rel (%p125) target = $region24
    $region23: #{generator_forward.14} parent=5 // pred_region
      // Predicated region
      $region25: #{generator_forward.14} parent=23 // pred_check
        %p128 = pneg %p29
      $region26: #{generator_forward.14} parent=23 // pred_check_branch
        %130 = sbr.rel (%p128) target = $region28
      $region27: #{generator_forward.14} parent=23 // pred_region
        %p131 = scmp.lt.s32.totalorder %s9, 1
        %s132 = scalar_select %p131, %s9, 1
        %s133 = smul.addr %s132, 32
        %s134 = smul.addr %s133, 4
        %s135 = scalar_lea.vmem %s0, %s134
      $region28: #{generator_forward.14} parent=23 // pred_fallthru
        _
    $region24: #{generator_forward.14} parent=5 // pred_fallthru
      _
    %p136 = scmp.le.s32.totalorder 1, %s9
    %p137 = scmp.lt.s32.totalorder %s9, 3
    %p138 = pnand %p136, %p137
    %p139 = pneg %p138
    // Predicated region
    $region29: #{generator_forward.14} parent=5 // pred_check
      _
    $region30: #{generator_forward.14} parent=5 // pred_check_branch
      %141 = sbr.rel (%p138) target = $region32
    $region31: #{generator_forward.14} parent=5 // pred_region
      %s142 = ssub.s32 %s9, 1
      %p143 = scmp.lt.s32.totalorder %s14, 1
      %s144 = scalar_select %p143, %s14, 1
      %s145 = smul.addr %s144, 32
      %s146 = smul.addr %s145, 4
      %s147 = scalar_lea.vmem %s0, %s146
      %p148 = pneg %p35
      %p149 = pneg %p32
      %p150 = pneg %p56
      %p151 = pneg %p53
      %p152 = pneg %p77
      %p153 = pneg %p74
      %p154 = pneg %p103
      %p155 = pneg %p100
      %s156 = smul.u32 17, %s14
      %p157 = scmp.lt.s32.totalorder %s156, 33
      %s158 = scalar_select %p157, %s156, 33
      %s159 = smul.addr %s158, 6
      %s160 = smul.addr %s159, 4
      %s161 = scalar_lea.vmem %s3, %s160
      %p162 = scmp.lt.s32.totalorder %s14, 1
      %s163 = scalar_select %p162, %s14, 1
      %s164 = smul.addr %s163, 32
      %s165 = smul.addr %s164, 4
      %s166 = scalar_lea.vmem %s0, %s165
      %s167 = smul.u32 17, %s14
      %p168 = scmp.lt.s32.totalorder %s167, 33
      %s169 = scalar_select %p168, %s167, 33
      %s170 = smul.addr %s169, 6
      %s171 = smul.addr %s170, 4
      %s172 = scalar_lea.vmem %s3, %s171
      %s173 = smul.u32 17, %s14
      %v175 = vld [vmem:[%s166] sm:$0xf]
      %v176 = vld [vmem:[%s166 + $0x4] sm:$0xf]
      %v177 = vld [vmem:[%s166 + $0x8] sm:$0xf]
      %v178 = vld [vmem:[%s166 + $0xc] sm:$0xf]
      %v179 = vld [vmem:[%s166 + $0x10] sm:$0xf]
      %v180 = vld [vmem:[%s166 + $0x14] sm:$0xf]
      %v181 = vld [vmem:[%s166 + $0x18] sm:$0xf]
      %v182 = vld [vmem:[%s166 + $0x1c] sm:$0xf]
      %v183 = vld [vmem:[%s166 + $0x20] sm:$0xf]
      %v184 = vld [vmem:[%s166 + $0x24] sm:$0xf]
      %v185 = vld [vmem:[%s166 + $0x28] sm:$0xf]
      %v186 = vld [vmem:[%s166 + $0x2c] sm:$0xf]
      %v187 = vld [vmem:[%s166 + $0x30] sm:$0xf]
      %v188 = vld [vmem:[%s166 + $0x34] sm:$0xf]
      %v189 = vld [vmem:[%s166 + $0x38] sm:$0xf]
      %v190 = vld [vmem:[%s166 + $0x3c] sm:$0xf]
      %v191 = vld [vmem:[%s166 + $0x40] sm:$0xf]
      %v192 = vld [vmem:[%s166 + $0x44] sm:$0xf]
      %v193 = vld [vmem:[%s166 + $0x48] sm:$0xf]
      %v194 = vld [vmem:[%s166 + $0x4c] sm:$0xf]
      %v195 = vld [vmem:[%s166 + $0x50] sm:$0xf]
      %v196 = vld [vmem:[%s166 + $0x54] sm:$0xf]
      %v197 = vld [vmem:[%s166 + $0x58] sm:$0xf]
      %v198 = vld [vmem:[%s166 + $0x5c] sm:$0xf]
      %v199 = vld [vmem:[%s166 + $0x60] sm:$0xf]
      %v200 = vld [vmem:[%s166 + $0x64] sm:$0xf]
      %v201 = vld [vmem:[%s166 + $0x68] sm:$0xf]
      %v202 = vld [vmem:[%s166 + $0x6c] sm:$0xf]
      %v203 = vld [vmem:[%s166 + $0x70] sm:$0xf]
      %v204 = vld [vmem:[%s166 + $0x74] sm:$0xf]
      %v205 = vld [vmem:[%s166 + $0x78] sm:$0xf]
      %v206 = vld [vmem:[%s166 + $0x7c] sm:$0xf]
      %v207 = vunpack.c.l.bf16 %v175
      %v208 = vunpack.c.l.bf16 %v176
      %v209 = vunpack.c.l.bf16 %v177
      %v210 = vunpack.c.l.bf16 %v178
      %v211 = vunpack.c.l.bf16 %v179
      %v212 = vunpack.c.l.bf16 %v180
      %v213 = vunpack.c.l.bf16 %v181
      %v214 = vunpack.c.l.bf16 %v182
      %v215 = vunpack.c.l.bf16 %v183
      %v216 = vunpack.c.l.bf16 %v184
      %v217 = vunpack.c.l.bf16 %v185
      %v218 = vunpack.c.l.bf16 %v186
      %v219 = vunpack.c.l.bf16 %v187
      %v220 = vunpack.c.l.bf16 %v188
      %v221 = vunpack.c.l.bf16 %v189
      %v222 = vunpack.c.l.bf16 %v190
      %v223 = vunpack.c.l.bf16 %v191
      %v224 = vunpack.c.l.bf16 %v192
      %v225 = vunpack.c.l.bf16 %v193
      %v226 = vunpack.c.l.bf16 %v194
      %v227 = vunpack.c.l.bf16 %v195
      %v228 = vunpack.c.l.bf16 %v196
      %v229 = vunpack.c.l.bf16 %v197
      %v230 = vunpack.c.l.bf16 %v198
      %v231 = vunpack.c.l.bf16 %v199
      %v232 = vunpack.c.l.bf16 %v200
      %v233 = vunpack.c.l.bf16 %v201
      %v234 = vunpack.c.l.bf16 %v202
      %v235 = vunpack.c.l.bf16 %v203
      %v236 = vunpack.c.l.bf16 %v204
      %v237 = vunpack.c.l.bf16 %v205
      %v238 = vunpack.c.l.bf16 %v206
      %v239 = vld [vmem:[%s1] sm:$0x1]
      %v241 = vlaneseq
      %v242 = vshrl.u32 %v241, 7
      %v243 = vsub.s32 0, %v242
      %v244 = vrot.slane %v239, %v243
      %v246 = vmul.f32 %v207, %v244
      %v247 = vmul.f32 %v208, %v244
      %v248 = vmul.f32 %v209, %v244
      %v249 = vmul.f32 %v210, %v244
      %v250 = vmul.f32 %v211, %v244
      %v251 = vmul.f32 %v212, %v244
      %v252 = vmul.f32 %v213, %v244
      %v253 = vmul.f32 %v214, %v244
      %v254 = vmul.f32 %v215, %v244
      %v255 = vmul.f32 %v216, %v244
      %v256 = vmul.f32 %v217, %v244
      %v257 = vmul.f32 %v218, %v244
      %v258 = vmul.f32 %v219, %v244
      %v259 = vmul.f32 %v220, %v244
      %v260 = vmul.f32 %v221, %v244
      %v261 = vmul.f32 %v222, %v244
      %v262 = vmul.f32 %v223, %v244
      %v263 = vmul.f32 %v224, %v244
      %v264 = vmul.f32 %v225, %v244
      %v265 = vmul.f32 %v226, %v244
      %v266 = vmul.f32 %v227, %v244
      %v267 = vmul.f32 %v228, %v244
      %v268 = vmul.f32 %v229, %v244
      %v269 = vmul.f32 %v230, %v244
      %v270 = vmul.f32 %v231, %v244
      %v271 = vmul.f32 %v232, %v244
      %v272 = vmul.f32 %v233, %v244
      %v273 = vmul.f32 %v234, %v244
      %v274 = vmul.f32 %v235, %v244
      %v275 = vmul.f32 %v236, %v244
      %v276 = vmul.f32 %v237, %v244
      %v277 = vmul.f32 %v238, %v244
      %v278 = vld [vmem:[%s2] sm:$0x1]
      %v280 = vlaneseq
      %v281 = vshrl.u32 %v280, 7
      %v282 = vsub.s32 0, %v281
      %v283 = vrot.slane %v278, %v282
      %v285 = vadd.f32 %v246, %v283
      %v286 = vadd.f32 %v247, %v283
      %v287 = vadd.f32 %v248, %v283
      %v288 = vadd.f32 %v249, %v283
      %v289 = vadd.f32 %v250, %v283
      %v290 = vadd.f32 %v251, %v283
      %v291 = vadd.f32 %v252, %v283
      %v292 = vadd.f32 %v253, %v283
      %v293 = vadd.f32 %v254, %v283
      %v294 = vadd.f32 %v255, %v283
      %v295 = vadd.f32 %v256, %v283
      %v296 = vadd.f32 %v257, %v283
      %v297 = vadd.f32 %v258, %v283
      %v298 = vadd.f32 %v259, %v283
      %v299 = vadd.f32 %v260, %v283
      %v300 = vadd.f32 %v261, %v283
      %v301 = vadd.f32 %v262, %v283
      %v302 = vadd.f32 %v263, %v283
      %v303 = vadd.f32 %v264, %v283
      %v304 = vadd.f32 %v265, %v283
      %v305 = vadd.f32 %v266, %v283
      %v306 = vadd.f32 %v267, %v283
      %v307 = vadd.f32 %v268, %v283
      %v308 = vadd.f32 %v269, %v283
      %v309 = vadd.f32 %v270, %v283
      %v310 = vadd.f32 %v271, %v283
      %v311 = vadd.f32 %v272, %v283
      %v312 = vadd.f32 %v273, %v283
      %v313 = vadd.f32 %v274, %v283
      %v314 = vadd.f32 %v275, %v283
      %v315 = vadd.f32 %v276, %v283
      %v316 = vadd.f32 %v277, %v283
      %v317 = vmax.f32 %v285, 0.0
      %v318 = vmax.f32 %v286, 0.0
      %v319 = vmax.f32 %v287, 0.0
      %v320 = vmax.f32 %v288, 0.0
      %v321 = vmax.f32 %v289, 0.0
      %v322 = vmax.f32 %v290, 0.0
      %v323 = vmax.f32 %v291, 0.0
      %v324 = vmax.f32 %v292, 0.0
      %v325 = vmax.f32 %v293, 0.0
      %v326 = vmax.f32 %v294, 0.0
      %v327 = vmax.f32 %v295, 0.0
      %v328 = vmax.f32 %v296, 0.0
      %v329 = vmax.f32 %v297, 0.0
      %v330 = vmax.f32 %v298, 0.0
      %v331 = vmax.f32 %v299, 0.0
      %v332 = vmax.f32 %v300, 0.0
      %v333 = vmax.f32 %v301, 0.0
      %v334 = vmax.f32 %v302, 0.0
      %v335 = vmax.f32 %v303, 0.0
      %v336 = vmax.f32 %v304, 0.0
      %v337 = vmax.f32 %v305, 0.0
      %v338 = vmax.f32 %v306, 0.0
      %v339 = vmax.f32 %v307, 0.0
      %v340 = vmax.f32 %v308, 0.0
      %v341 = vmax.f32 %v309, 0.0
      %v342 = vmax.f32 %v310, 0.0
      %v343 = vmax.f32 %v311, 0.0
      %v344 = vmax.f32 %v312, 0.0
      %v345 = vmax.f32 %v313, 0.0
      %v346 = vmax.f32 %v314, 0.0
      %v347 = vmax.f32 %v315, 0.0
      %v348 = vmax.f32 %v316, 0.0
      %v349 = vpack.c.bf16 %v318, %v317
      %v350 = vpack.c.bf16 %v320, %v319
      %v351 = vpack.c.bf16 %v322, %v321
      %v352 = vpack.c.bf16 %v324, %v323
      %v353 = vpack.c.bf16 %v326, %v325
      %v354 = vpack.c.bf16 %v328, %v327
      %v355 = vpack.c.bf16 %v330, %v329
      %v356 = vpack.c.bf16 %v332, %v331
      %v357 = vpack.c.bf16 %v334, %v333
      %v358 = vpack.c.bf16 %v336, %v335
      %v359 = vpack.c.bf16 %v338, %v337
      %v360 = vpack.c.bf16 %v340, %v339
      %v361 = vpack.c.bf16 %v342, %v341
      %v362 = vpack.c.bf16 %v344, %v343
      %v363 = vpack.c.bf16 %v346, %v345
      %v364 = vpack.c.bf16 %v348, %v347
      %vm365 = vcmask 125952
      %366 = vst.msk [vmem:[%s172] sm:$0xf] %vm365, 0
      %367 = vst.msk [vmem:[%s172 + $0x4] sm:$0xf] %vm365, 0
      %vm368 = vcmask 122880
      %vm369 = vsmask.f32 256
      %vm370 = vmand %vm368, %vm369
      %v371 = vld [vmem:[%s172 + $0x8] sm:$0x1]
      %v372 = vsel %vm370, 0, %v371
      %373 = vst [vmem:[%s172 + $0x8] sm:$0x1] %v372
      %374 = vst.msk [vmem:[%s172 + $0xc] sm:$0xf] %vm365, 0
      %375 = vst.msk [vmem:[%s172 + $0x10] sm:$0xf] %vm365, 0
      %v376 = vld [vmem:[%s172 + $0x14] sm:$0x1]
      %v377 = vsel %vm370, 0, %v376
      %378 = vst [vmem:[%s172 + $0x14] sm:$0x1] %v377
      %379 = vst.msk [vmem:[%s172 + $0x18] sm:$0xf] %vm365, 0
      %380 = vst.msk [vmem:[%s172 + $0x1c] sm:$0xf] %vm365, 0
      %v381 = vld [vmem:[%s172 + $0x20] sm:$0x1]
      %v382 = vsel %vm370, 0, %v381
      %383 = vst [vmem:[%s172 + $0x20] sm:$0x1] %v382
      %384 = vst.msk [vmem:[%s172 + $0x24] sm:$0xf] %vm365, 0
      %385 = vst.msk [vmem:[%s172 + $0x28] sm:$0xf] %vm365, 0
      %v386 = vld [vmem:[%s172 + $0x2c] sm:$0x1]
      %v387 = vsel %vm370, 0, %v386
      %388 = vst [vmem:[%s172 + $0x2c] sm:$0x1] %v387
      %389 = vst.msk [vmem:[%s172 + $0x30] sm:$0xf] %vm365, 0
      %390 = vst.msk [vmem:[%s172 + $0x34] sm:$0xf] %vm365, 0
      %v391 = vld [vmem:[%s172 + $0x38] sm:$0x1]
      %v392 = vsel %vm370, 0, %v391
      %393 = vst [vmem:[%s172 + $0x38] sm:$0x1] %v392
      %394 = vst.msk [vmem:[%s172 + $0x3c] sm:$0xf] %vm365, 0
      %395 = vst.msk [vmem:[%s172 + $0x40] sm:$0xf] %vm365, 0
      %v396 = vld [vmem:[%s172 + $0x44] sm:$0x1]
      %v397 = vsel %vm370, 0, %v396
      %398 = vst [vmem:[%s172 + $0x44] sm:$0x1] %v397
      %399 = vst.msk [vmem:[%s172 + $0x48] sm:$0xf] %vm365, 0
      %400 = vst.msk [vmem:[%s172 + $0x4c] sm:$0xf] %vm365, 0
      %v401 = vld [vmem:[%s172 + $0x50] sm:$0x1]
      %v402 = vsel %vm370, 0, %v401
      %403 = vst [vmem:[%s172 + $0x50] sm:$0x1] %v402
      %404 = vst.msk [vmem:[%s172 + $0x54] sm:$0xf] %vm365, 0
      %405 = vst.msk [vmem:[%s172 + $0x58] sm:$0xf] %vm365, 0
      %v406 = vld [vmem:[%s172 + $0x5c] sm:$0x1]
      %v407 = vsel %vm370, 0, %v406
      %408 = vst [vmem:[%s172 + $0x5c] sm:$0x1] %v407
      %409 = vst.msk [vmem:[%s172 + $0x60] sm:$0xf] %vm365, 0
      %410 = vst.msk [vmem:[%s172 + $0x64] sm:$0xf] %vm365, 0
      %v411 = vld [vmem:[%s172 + $0x68] sm:$0x1]
      %v412 = vsel %vm370, 0, %v411
      %413 = vst [vmem:[%s172 + $0x68] sm:$0x1] %v412
      %414 = vst.msk [vmem:[%s172 + $0x6c] sm:$0xf] %vm365, 0
      %415 = vst.msk [vmem:[%s172 + $0x70] sm:$0xf] %vm365, 0
      %v416 = vld [vmem:[%s172 + $0x74] sm:$0x1]
      %v417 = vsel %vm370, 0, %v416
      %418 = vst [vmem:[%s172 + $0x74] sm:$0x1] %v417
      %419 = vst.msk [vmem:[%s172 + $0x78] sm:$0xf] %vm365, 0
      %420 = vst.msk [vmem:[%s172 + $0x7c] sm:$0xf] %vm365, 0
      %v421 = vld [vmem:[%s172 + $0x80] sm:$0x1]
      %v422 = vsel %vm370, 0, %v421
      %423 = vst [vmem:[%s172 + $0x80] sm:$0x1] %v422
      %424 = vst.msk [vmem:[%s172 + $0x84] sm:$0xf] %vm365, 0
      %425 = vst.msk [vmem:[%s172 + $0x88] sm:$0xf] %vm365, 0
      %v426 = vld [vmem:[%s172 + $0x8c] sm:$0x1]
      %v427 = vsel %vm370, 0, %v426
      %428 = vst [vmem:[%s172 + $0x8c] sm:$0x1] %v427
      %429 = vst.msk [vmem:[%s172 + $0x90] sm:$0xf] %vm365, 0
      %430 = vst.msk [vmem:[%s172 + $0x94] sm:$0xf] %vm365, 0
      %v431 = vld [vmem:[%s172 + $0x98] sm:$0x1]
      %v432 = vsel %vm370, 0, %v431
      %433 = vst [vmem:[%s172 + $0x98] sm:$0x1] %v432
      %434 = vst.msk [vmem:[%s172 + $0x9c] sm:$0xf] %vm365, 0
      %435 = vst.msk [vmem:[%s172 + $0xa0] sm:$0xf] %vm365, 0
      %v436 = vld [vmem:[%s172 + $0xa4] sm:$0x1]
      %v437 = vsel %vm370, 0, %v436
      %438 = vst [vmem:[%s172 + $0xa4] sm:$0x1] %v437
      %439 = vst.msk [vmem:[%s172 + $0xa8] sm:$0xf] %vm365, 0
      %440 = vst.msk [vmem:[%s172 + $0xac] sm:$0xf] %vm365, 0
      %v441 = vld [vmem:[%s172 + $0xb0] sm:$0x1]
      %v442 = vsel %vm370, 0, %v441
      %443 = vst [vmem:[%s172 + $0xb0] sm:$0x1] %v442
      %444 = vst.msk [vmem:[%s172 + $0xb4] sm:$0xf] %vm365, 0
      %445 = vst.msk [vmem:[%s172 + $0xb8] sm:$0xf] %vm365, 0
      %v446 = vld [vmem:[%s172 + $0xbc] sm:$0x1]
      %v447 = vsel %vm370, 0, %v446
      %448 = vst [vmem:[%s172 + $0xbc] sm:$0x1] %v447
      %449 = vst.msk [vmem:[%s172 + $0xc0] sm:$0xf] %vm365, 0
      %450 = vst.msk [vmem:[%s172 + $0xc4] sm:$0xf] %vm365, 0
      %v451 = vld [vmem:[%s172 + $0xc8] sm:$0x1]
      %v452 = vsel %vm370, 0, %v451
      %453 = vst [vmem:[%s172 + $0xc8] sm:$0x1] %v452
      %454 = vst.msk [vmem:[%s172 + $0xcc] sm:$0xf] %vm365, 0
      %455 = vst.msk [vmem:[%s172 + $0xd0] sm:$0xf] %vm365, 0
      %v456 = vld [vmem:[%s172 + $0xd4] sm:$0x1]
      %v457 = vsel %vm370, 0, %v456
      %458 = vst [vmem:[%s172 + $0xd4] sm:$0x1] %v457
      %459 = vst.msk [vmem:[%s172 + $0xd8] sm:$0xf] %vm365, 0
      %460 = vst.msk [vmem:[%s172 + $0xdc] sm:$0xf] %vm365, 0
      %v461 = vld [vmem:[%s172 + $0xe0] sm:$0x1]
      %v462 = vsel %vm370, 0, %v461
      %463 = vst [vmem:[%s172 + $0xe0] sm:$0x1] %v462
      %464 = vst.msk [vmem:[%s172 + $0xe4] sm:$0xf] %vm365, 0
      %465 = vst.msk [vmem:[%s172 + $0xe8] sm:$0xf] %vm365, 0
      %v466 = vld [vmem:[%s172 + $0xec] sm:$0x1]
      %v467 = vsel %vm370, 0, %v466
      %468 = vst [vmem:[%s172 + $0xec] sm:$0x1] %v467
      %469 = vst.msk [vmem:[%s172 + $0xf0] sm:$0xf] %vm365, 0
      %470 = vst.msk [vmem:[%s172 + $0xf4] sm:$0xf] %vm365, 0
      %v471 = vld [vmem:[%s172 + $0xf8] sm:$0x1]
      %v472 = vsel %vm370, 0, %v471
      %473 = vst [vmem:[%s172 + $0xf8] sm:$0x1] %v472
      %474 = vst.msk [vmem:[%s172 + $0xfc] sm:$0xf] %vm365, 0
      %475 = vst.msk [vmem:[%s172 + $0x100] sm:$0xf] %vm365, 0
      %v476 = vld [vmem:[%s172 + $0x104] sm:$0x1]
      %v477 = vsel %vm370, 0, %v476
      %478 = vst [vmem:[%s172 + $0x104] sm:$0x1] %v477
      %479 = vst.msk [vmem:[%s172 + $0x108] sm:$0xf] %vm365, 0
      %480 = vst.msk [vmem:[%s172 + $0x10c] sm:$0xf] %vm365, 0
      %v481 = vld [vmem:[%s172 + $0x110] sm:$0x1]
      %v482 = vsel %vm370, 0, %v481
      %483 = vst [vmem:[%s172 + $0x110] sm:$0x1] %v482
      %484 = vst.msk [vmem:[%s172 + $0x114] sm:$0xf] %vm365, 0
      %485 = vst.msk [vmem:[%s172 + $0x118] sm:$0xf] %vm365, 0
      %v486 = vld [vmem:[%s172 + $0x11c] sm:$0x1]
      %v487 = vsel %vm370, 0, %v486
      %488 = vst [vmem:[%s172 + $0x11c] sm:$0x1] %v487
      %489 = vst.msk [vmem:[%s172 + $0x120] sm:$0xf] %vm365, 0
      %490 = vst.msk [vmem:[%s172 + $0x124] sm:$0xf] %vm365, 0
      %v491 = vld [vmem:[%s172 + $0x128] sm:$0x1]
      %v492 = vsel %vm370, 0, %v491
      %493 = vst [vmem:[%s172 + $0x128] sm:$0x1] %v492
      %494 = vst.msk [vmem:[%s172 + $0x12c] sm:$0xf] %vm365, 0
      %495 = vst.msk [vmem:[%s172 + $0x130] sm:$0xf] %vm365, 0
      %v496 = vld [vmem:[%s172 + $0x134] sm:$0x1]
      %v497 = vsel %vm370, 0, %v496
      %498 = vst [vmem:[%s172 + $0x134] sm:$0x1] %v497
      %499 = vst.msk [vmem:[%s172 + $0x138] sm:$0xf] %vm365, 0
      %500 = vst.msk [vmem:[%s172 + $0x13c] sm:$0xf] %vm365, 0
      %v501 = vld [vmem:[%s172 + $0x140] sm:$0x1]
      %v502 = vsel %vm370, 0, %v501
      %503 = vst [vmem:[%s172 + $0x140] sm:$0x1] %v502
      %504 = vst.msk [vmem:[%s172 + $0x144] sm:$0xf] %vm365, 0
      %505 = vst.msk [vmem:[%s172 + $0x148] sm:$0xf] %vm365, 0
      %v506 = vld [vmem:[%s172 + $0x14c] sm:$0x1]
      %v507 = vsel %vm370, 0, %v506
      %508 = vst [vmem:[%s172 + $0x14c] sm:$0x1] %v507
      %509 = vst.msk [vmem:[%s172 + $0x150] sm:$0xf] %vm365, 0
      %510 = vst.msk [vmem:[%s172 + $0x154] sm:$0xf] %vm365, 0
      %v511 = vld [vmem:[%s172 + $0x158] sm:$0x1]
      %v512 = vsel %vm370, 0, %v511
      %513 = vst [vmem:[%s172 + $0x158] sm:$0x1] %v512
      %514 = vst.msk [vmem:[%s172 + $0x15c] sm:$0xf] %vm365, 0
      %515 = vst.msk [vmem:[%s172 + $0x160] sm:$0xf] %vm365, 0
      %v516 = vld [vmem:[%s172 + $0x164] sm:$0x1]
      %v517 = vsel %vm370, 0, %v516
      %518 = vst [vmem:[%s172 + $0x164] sm:$0x1] %v517
      %519 = vst.msk [vmem:[%s172 + $0x168] sm:$0xf] %vm365, 0
      %520 = vst.msk [vmem:[%s172 + $0x16c] sm:$0xf] %vm365, 0
      %v521 = vld [vmem:[%s172 + $0x170] sm:$0x1]
      %v522 = vsel %vm370, 0, %v521
      %523 = vst [vmem:[%s172 + $0x170] sm:$0x1] %v522
      %524 = vst.msk [vmem:[%s172 + $0x174] sm:$0xf] %vm365, 0
      %525 = vst.msk [vmem:[%s172 + $0x178] sm:$0xf] %vm365, 0
      %v526 = vld [vmem:[%s172 + $0x17c] sm:$0x1]
      %v527 = vsel %vm370, 0, %v526
      %528 = vst [vmem:[%s172 + $0x17c] sm:$0x1] %v527
      %529 = vst.msk [vmem:[%s172 + $0x180] sm:$0xf] %vm365, 0
      %530 = vst.msk [vmem:[%s172 + $0x184] sm:$0xf] %vm365, 0
      %v531 = vld [vmem:[%s172 + $0x188] sm:$0x1]
      %v532 = vsel %vm370, 0, %v531
      %533 = vst [vmem:[%s172 + $0x188] sm:$0x1] %v532
      %534 = vst.msk [vmem:[%s172 + $0x18c] sm:$0xf] %vm365, 0
      %535 = vst.msk [vmem:[%s172 + $0x190] sm:$0xf] %vm365, 0
      %v536 = vld [vmem:[%s172 + $0x194] sm:$0x1]
      %v537 = vsel %vm370, 0, %v536
      %538 = vst [vmem:[%s172 + $0x194] sm:$0x1] %v537
      %v555 = vunpack.c.l.b16 %v349
      %v556 = vunpack.c.h.b16 %v349
      %v557 = vunpack.c.l.b16 %v350
      %v558 = vunpack.c.h.b16 %v350
      %v559 = vunpack.c.l.b16 %v351
      %v560 = vunpack.c.h.b16 %v351
      %v561 = vunpack.c.l.b16 %v352
      %v562 = vunpack.c.h.b16 %v352
      %v563 = vunpack.c.l.b16 %v353
      %v564 = vunpack.c.h.b16 %v353
      %v565 = vunpack.c.l.b16 %v354
      %v566 = vunpack.c.h.b16 %v354
      %v567 = vunpack.c.l.b16 %v355
      %v568 = vunpack.c.h.b16 %v355
      %v569 = vunpack.c.l.b16 %v356
      %v570 = vunpack.c.h.b16 %v356
      %v571 = vunpack.c.l.b16 %v357
      %v572 = vunpack.c.h.b16 %v357
      %v573 = vunpack.c.l.b16 %v358
      %v574 = vunpack.c.h.b16 %v358
      %v575 = vunpack.c.l.b16 %v359
      %v576 = vunpack.c.h.b16 %v359
      %v577 = vunpack.c.l.b16 %v360
      %v578 = vunpack.c.h.b16 %v360
      %v579 = vunpack.c.l.b16 %v361
      %v580 = vunpack.c.h.b16 %v361
      %v581 = vunpack.c.l.b16 %v362
      %v582 = vunpack.c.h.b16 %v362
      %v583 = vunpack.c.l.b16 %v363
      %v584 = vunpack.c.h.b16 %v363
      %v585 = vunpack.c.l.b16 %v364
      %v586 = vunpack.c.h.b16 %v364
      %v587 = vpack.c.b16 %v555, %v555
      %v588 = vpack.c.b16 %v556, %v556
      %v589 = vpack.c.b16 %v557, %v557
      %v590 = vpack.c.b16 %v558, %v558
      %v591 = vpack.c.b16 %v559, %v559
      %v592 = vpack.c.b16 %v560, %v560
      %v593 = vpack.c.b16 %v561, %v561
      %v594 = vpack.c.b16 %v562, %v562
      %v595 = vpack.c.b16 %v563, %v563
      %v596 = vpack.c.b16 %v564, %v564
      %v597 = vpack.c.b16 %v565, %v565
      %v598 = vpack.c.b16 %v566, %v566
      %v599 = vpack.c.b16 %v567, %v567
      %v600 = vpack.c.b16 %v568, %v568
      %v601 = vpack.c.b16 %v569, %v569
      %v602 = vpack.c.b16 %v570, %v570
      %v603 = vpack.c.b16 %v571, %v571
      %v604 = vpack.c.b16 %v572, %v572
      %v605 = vpack.c.b16 %v573, %v573
      %v606 = vpack.c.b16 %v574, %v574
      %v607 = vpack.c.b16 %v575, %v575
      %v608 = vpack.c.b16 %v576, %v576
      %v609 = vpack.c.b16 %v577, %v577
      %v610 = vpack.c.b16 %v578, %v578
      %v611 = vpack.c.b16 %v579, %v579
      %v612 = vpack.c.b16 %v580, %v580
      %v613 = vpack.c.b16 %v581, %v581
      %v614 = vpack.c.b16 %v582, %v582
      %v615 = vpack.c.b16 %v583, %v583
      %v616 = vpack.c.b16 %v584, %v584
      %v617 = vpack.c.b16 %v585, %v585
      %v618 = vpack.c.b16 %v586, %v586
      %619 = vrot.lane.b32.xlu0 %v587, 8
      %v620 = vpop.permute.xlu0 %619
      %621 = vrot.lane.b32.xlu0 %v588, 8
      %v622 = vpop.permute.xlu0 %621
      %623 = vrot.lane.b32.xlu0 %v589, 8
      %v624 = vpop.permute.xlu0 %623
      %625 = vrot.lane.b32.xlu0 %v590, 8
      %v626 = vpop.permute.xlu0 %625
      %627 = vrot.lane.b32.xlu0 %v591, 8
      %v628 = vpop.permute.xlu0 %627
      %629 = vrot.lane.b32.xlu0 %v592, 8
      %v630 = vpop.permute.xlu0 %629
      %631 = vrot.lane.b32.xlu0 %v593, 8
      %v632 = vpop.permute.xlu0 %631
      %633 = vrot.lane.b32.xlu0 %v594, 8
      %v634 = vpop.permute.xlu0 %633
      %635 = vrot.lane.b32.xlu0 %v595, 8
      %v636 = vpop.permute.xlu0 %635
      %637 = vrot.lane.b32.xlu0 %v596, 8
      %v638 = vpop.permute.xlu0 %637
      %639 = vrot.lane.b32.xlu0 %v597, 8
      %v640 = vpop.permute.xlu0 %639
      %641 = vrot.lane.b32.xlu0 %v598, 8
      %v642 = vpop.permute.xlu0 %641
      %643 = vrot.lane.b32.xlu0 %v599, 8
      %v644 = vpop.permute.xlu0 %643
      %645 = vrot.lane.b32.xlu0 %v600, 8
      %v646 = vpop.permute.xlu0 %645
      %647 = vrot.lane.b32.xlu0 %v601, 8
      %v648 = vpop.permute.xlu0 %647
      %649 = vrot.lane.b32.xlu0 %v602, 8
      %v650 = vpop.permute.xlu0 %649
      %651 = vrot.lane.b32.xlu0 %v603, 8
      %v652 = vpop.permute.xlu0 %651
      %653 = vrot.lane.b32.xlu0 %v604, 8
      %v654 = vpop.permute.xlu0 %653
      %655 = vrot.lane.b32.xlu0 %v605, 8
      %v656 = vpop.permute.xlu0 %655
      %657 = vrot.lane.b32.xlu0 %v606, 8
      %v658 = vpop.permute.xlu0 %657
      %659 = vrot.lane.b32.xlu0 %v607, 8
      %v660 = vpop.permute.xlu0 %659
      %661 = vrot.lane.b32.xlu0 %v608, 8
      %v662 = vpop.permute.xlu0 %661
      %663 = vrot.lane.b32.xlu0 %v609, 8
      %v664 = vpop.permute.xlu0 %663
      %665 = vrot.lane.b32.xlu0 %v610, 8
      %v666 = vpop.permute.xlu0 %665
      %667 = vrot.lane.b32.xlu0 %v611, 8
      %v668 = vpop.permute.xlu0 %667
      %669 = vrot.lane.b32.xlu0 %v612, 8
      %v670 = vpop.permute.xlu0 %669
      %671 = vrot.lane.b32.xlu0 %v613, 8
      %v672 = vpop.permute.xlu0 %671
      %673 = vrot.lane.b32.xlu0 %v614, 8
      %v674 = vpop.permute.xlu0 %673
      %675 = vrot.lane.b32.xlu0 %v615, 8
      %v676 = vpop.permute.xlu0 %675
      %677 = vrot.lane.b32.xlu0 %v616, 8
      %v678 = vpop.permute.xlu0 %677
      %679 = vrot.lane.b32.xlu0 %v617, 8
      %v680 = vpop.permute.xlu0 %679
      %681 = vrot.lane.b32.xlu0 %v618, 8
      %v682 = vpop.permute.xlu0 %681
      %s715 = scalar_lea.vmem %s172, 12
      %vm716 = vcmask 126016
      %717 = vst.msk [vmem:[%s715] sm:$0xf] %vm716, %v620
      %718 = vst.msk [vmem:[%s715 + $0x4] sm:$0xf] %vm716, %v622
      %719 = vst.msk [vmem:[%s715 + $0x18] sm:$0xf] %vm716, %v624
      %720 = vst.msk [vmem:[%s715 + $0x1c] sm:$0xf] %vm716, %v626
      %721 = vst.msk [vmem:[%s715 + $0x30] sm:$0xf] %vm716, %v628
      %722 = vst.msk [vmem:[%s715 + $0x34] sm:$0xf] %vm716, %v630
      %723 = vst.msk [vmem:[%s715 + $0x48] sm:$0xf] %vm716, %v632
      %724 = vst.msk [vmem:[%s715 + $0x4c] sm:$0xf] %vm716, %v634
      %725 = vst.msk [vmem:[%s715 + $0x60] sm:$0xf] %vm716, %v636
      %726 = vst.msk [vmem:[%s715 + $0x64] sm:$0xf] %vm716, %v638
      %727 = vst.msk [vmem:[%s715 + $0x78] sm:$0xf] %vm716, %v640
      %728 = vst.msk [vmem:[%s715 + $0x7c] sm:$0xf] %vm716, %v642
      %729 = vst.msk [vmem:[%s715 + $0x90] sm:$0xf] %vm716, %v644
      %730 = vst.msk [vmem:[%s715 + $0x94] sm:$0xf] %vm716, %v646
      %731 = vst.msk [vmem:[%s715 + $0xa8] sm:$0xf] %vm716, %v648
      %732 = vst.msk [vmem:[%s715 + $0xac] sm:$0xf] %vm716, %v650
      %733 = vst.msk [vmem:[%s715 + $0xc0] sm:$0xf] %vm716, %v652
      %734 = vst.msk [vmem:[%s715 + $0xc4] sm:$0xf] %vm716, %v654
      %735 = vst.msk [vmem:[%s715 + $0xd8] sm:$0xf] %vm716, %v656
      %736 = vst.msk [vmem:[%s715 + $0xdc] sm:$0xf] %vm716, %v658
      %737 = vst.msk [vmem:[%s715 + $0xf0] sm:$0xf] %vm716, %v660
      %738 = vst.msk [vmem:[%s715 + $0xf4] sm:$0xf] %vm716, %v662
      %739 = vst.msk [vmem:[%s715 + $0x108] sm:$0xf] %vm716, %v664
      %740 = vst.msk [vmem:[%s715 + $0x10c] sm:$0xf] %vm716, %v666
      %741 = vst.msk [vmem:[%s715 + $0x120] sm:$0xf] %vm716, %v668
      %742 = vst.msk [vmem:[%s715 + $0x124] sm:$0xf] %vm716, %v670
      %743 = vst.msk [vmem:[%s715 + $0x138] sm:$0xf] %vm716, %v672
      %744 = vst.msk [vmem:[%s715 + $0x13c] sm:$0xf] %vm716, %v674
      %745 = vst.msk [vmem:[%s715 + $0x150] sm:$0xf] %vm716, %v676
      %746 = vst.msk [vmem:[%s715 + $0x154] sm:$0xf] %vm716, %v678
      %747 = vst.msk [vmem:[%s715 + $0x168] sm:$0xf] %vm716, %v680
      %748 = vst.msk [vmem:[%s715 + $0x16c] sm:$0xf] %vm716, %v682
      %vm749 = vsmask.f32 4368
      %vm750 = vmor %vm369, %vm749
      %v752 = vshrl.u32 %v587, 16
      %v754 = vrot.slane %v752, 7
      %v755 = vshll.u32 %v587, 16
      %v757 = vor.u32 %v754, %v755
      %v758 = vrot.slane %v754, 4
      %v760 = vshrl.u32 %v588, 16
      %v762 = vrot.slane %v760, 7
      %v763 = vshll.u32 %v588, 16
      %v765 = vor.u32 %v762, %v763
      %v766 = vsel %vm750, %v758, %v765
      %v767 = vrot.slane %v762, 4
      %v769 = vshrl.u32 %v589, 16
      %v771 = vrot.slane %v769, 7
      %v772 = vshll.u32 %v589, 16
      %v774 = vor.u32 %v771, %v772
      %v775 = vrot.slane %v771, 4
      %v777 = vshrl.u32 %v590, 16
      %v779 = vrot.slane %v777, 7
      %v780 = vshll.u32 %v590, 16
      %v782 = vor.u32 %v779, %v780
      %v783 = vsel %vm750, %v775, %v782
      %v784 = vrot.slane %v779, 4
      %v786 = vshrl.u32 %v591, 16
      %v788 = vrot.slane %v786, 7
      %v789 = vshll.u32 %v591, 16
      %v791 = vor.u32 %v788, %v789
      %v792 = vrot.slane %v788, 4
      %v794 = vshrl.u32 %v592, 16
      %v796 = vrot.slane %v794, 7
      %v797 = vshll.u32 %v592, 16
      %v799 = vor.u32 %v796, %v797
      %v800 = vsel %vm750, %v792, %v799
      %v801 = vrot.slane %v796, 4
      %v803 = vshrl.u32 %v593, 16
      %v805 = vrot.slane %v803, 7
      %v806 = vshll.u32 %v593, 16
      %v808 = vor.u32 %v805, %v806
      %v809 = vrot.slane %v805, 4
      %v811 = vshrl.u32 %v594, 16
      %v813 = vrot.slane %v811, 7
      %v814 = vshll.u32 %v594, 16
      %v816 = vor.u32 %v813, %v814
      %v817 = vsel %vm750, %v809, %v816
      %v818 = vrot.slane %v813, 4
      %v820 = vshrl.u32 %v595, 16
      %v822 = vrot.slane %v820, 7
      %v823 = vshll.u32 %v595, 16
      %v825 = vor.u32 %v822, %v823
      %v826 = vrot.slane %v822, 4
      %v828 = vshrl.u32 %v596, 16
      %v830 = vrot.slane %v828, 7
      %v831 = vshll.u32 %v596, 16
      %v833 = vor.u32 %v830, %v831
      %v834 = vsel %vm750, %v826, %v833
      %v835 = vrot.slane %v830, 4
      %v837 = vshrl.u32 %v597, 16
      %v839 = vrot.slane %v837, 7
      %v840 = vshll.u32 %v597, 16
      %v842 = vor.u32 %v839, %v840
      %v843 = vrot.slane %v839, 4
      %v845 = vshrl.u32 %v598, 16
      %v847 = vrot.slane %v845, 7
      %v848 = vshll.u32 %v598, 16
      %v850 = vor.u32 %v847, %v848
      %v851 = vsel %vm750, %v843, %v850
      %v852 = vrot.slane %v847, 4
      %v854 = vshrl.u32 %v599, 16
      %v856 = vrot.slane %v854, 7
      %v857 = vshll.u32 %v599, 16
      %v859 = vor.u32 %v856, %v857
      %v860 = vrot.slane %v856, 4
      %v862 = vshrl.u32 %v600, 16
      %v864 = vrot.slane %v862, 7
      %v865 = vshll.u32 %v600, 16
      %v867 = vor.u32 %v864, %v865
      %v868 = vsel %vm750, %v860, %v867
      %v869 = vrot.slane %v864, 4
      %v871 = vshrl.u32 %v601, 16
      %v873 = vrot.slane %v871, 7
      %v874 = vshll.u32 %v601, 16
      %v876 = vor.u32 %v873, %v874
      %v877 = vrot.slane %v873, 4
      %v879 = vshrl.u32 %v602, 16
      %v881 = vrot.slane %v879, 7
      %v882 = vshll.u32 %v602, 16
      %v884 = vor.u32 %v881, %v882
      %v885 = vsel %vm750, %v877, %v884
      %v886 = vrot.slane %v881, 4
      %v888 = vshrl.u32 %v603, 16
      %v890 = vrot.slane %v888, 7
      %v891 = vshll.u32 %v603, 16
      %v893 = vor.u32 %v890, %v891
      %v894 = vrot.slane %v890, 4
      %v896 = vshrl.u32 %v604, 16
      %v898 = vrot.slane %v896, 7
      %v899 = vshll.u32 %v604, 16
      %v901 = vor.u32 %v898, %v899
      %v902 = vsel %vm750, %v894, %v901
      %v903 = vrot.slane %v898, 4
      %v905 = vshrl.u32 %v605, 16
      %v907 = vrot.slane %v905, 7
      %v908 = vshll.u32 %v605, 16
      %v910 = vor.u32 %v907, %v908
      %v911 = vrot.slane %v907, 4
      %v913 = vshrl.u32 %v606, 16
      %v915 = vrot.slane %v913, 7
      %v916 = vshll.u32 %v606, 16
      %v918 = vor.u32 %v915, %v916
      %v919 = vsel %vm750, %v911, %v918
      %v920 = vrot.slane %v915, 4
      %v922 = vshrl.u32 %v607, 16
      %v924 = vrot.slane %v922, 7
      %v925 = vshll.u32 %v607, 16
      %v927 = vor.u32 %v924, %v925
      %v928 = vrot.slane %v924, 4
      %v930 = vshrl.u32 %v608, 16
      %v932 = vrot.slane %v930, 7
      %v933 = vshll.u32 %v608, 16
      %v935 = vor.u32 %v932, %v933
      %v936 = vsel %vm750, %v928, %v935
      %v937 = vrot.slane %v932, 4
      %v939 = vshrl.u32 %v609, 16
      %v941 = vrot.slane %v939, 7
      %v942 = vshll.u32 %v609, 16
      %v944 = vor.u32 %v941, %v942
      %v945 = vrot.slane %v941, 4
      %v947 = vshrl.u32 %v610, 16
      %v949 = vrot.slane %v947, 7
      %v950 = vshll.u32 %v610, 16
      %v952 = vor.u32 %v949, %v950
      %v953 = vsel %vm750, %v945, %v952
      %v954 = vrot.slane %v949, 4
      %v956 = vshrl.u32 %v611, 16
      %v958 = vrot.slane %v956, 7
      %v959 = vshll.u32 %v611, 16
      %v961 = vor.u32 %v958, %v959
      %v962 = vrot.slane %v958, 4
      %v964 = vshrl.u32 %v612, 16
      %v966 = vrot.slane %v964, 7
      %v967 = vshll.u32 %v612, 16
      %v969 = vor.u32 %v966, %v967
      %v970 = vsel %vm750, %v962, %v969
      %v971 = vrot.slane %v966, 4
      %v973 = vshrl.u32 %v613, 16
      %v975 = vrot.slane %v973, 7
      %v976 = vshll.u32 %v613, 16
      %v978 = vor.u32 %v975, %v976
      %v979 = vrot.slane %v975, 4
      %v981 = vshrl.u32 %v614, 16
      %v983 = vrot.slane %v981, 7
      %v984 = vshll.u32 %v614, 16
      %v986 = vor.u32 %v983, %v984
      %v987 = vsel %vm750, %v979, %v986
      %v988 = vrot.slane %v983, 4
      %v990 = vshrl.u32 %v615, 16
      %v992 = vrot.slane %v990, 7
      %v993 = vshll.u32 %v615, 16
      %v995 = vor.u32 %v992, %v993
      %v996 = vrot.slane %v992, 4
      %v998 = vshrl.u32 %v616, 16
      %v1000 = vrot.slane %v998, 7
      %v1001 = vshll.u32 %v616, 16
      %v1003 = vor.u32 %v1000, %v1001
      %v1004 = vsel %vm750, %v996, %v1003
      %v1005 = vrot.slane %v1000, 4
      %v1007 = vshrl.u32 %v617, 16
      %v1009 = vrot.slane %v1007, 7
      %v1010 = vshll.u32 %v617, 16
      %v1012 = vor.u32 %v1009, %v1010
      %v1013 = vrot.slane %v1009, 4
      %v1015 = vshrl.u32 %v618, 16
      %v1017 = vrot.slane %v1015, 7
      %v1018 = vshll.u32 %v618, 16
      %v1020 = vor.u32 %v1017, %v1018
      %v1021 = vsel %vm750, %v1013, %v1020
      %v1022 = vrot.slane %v1017, 4
      %1023 = vrot.lane.b32.xlu0 %v757, 120
      %v1024 = vpop.permute.xlu0 %1023
      %1025 = vrot.lane.b32.xlu0 %v766, 120
      %v1026 = vpop.permute.xlu0 %1025
      %1027 = vrot.lane.b32.xlu0 %v767, 120
      %v1028 = vpop.permute.xlu0 %1027
      %1029 = vrot.lane.b32.xlu0 %v774, 120
      %v1030 = vpop.permute.xlu0 %1029
      %1031 = vrot.lane.b32.xlu0 %v783, 120
      %v1032 = vpop.permute.xlu0 %1031
      %1033 = vrot.lane.b32.xlu0 %v784, 120
      %v1034 = vpop.permute.xlu0 %1033
      %1035 = vrot.lane.b32.xlu0 %v791, 120
      %v1036 = vpop.permute.xlu0 %1035
      %1037 = vrot.lane.b32.xlu0 %v800, 120
      %v1038 = vpop.permute.xlu0 %1037
      %1039 = vrot.lane.b32.xlu0 %v801, 120
      %v1040 = vpop.permute.xlu0 %1039
      %1041 = vrot.lane.b32.xlu0 %v808, 120
      %v1042 = vpop.permute.xlu0 %1041
      %1043 = vrot.lane.b32.xlu0 %v817, 120
      %v1044 = vpop.permute.xlu0 %1043
      %1045 = vrot.lane.b32.xlu0 %v818, 120
      %v1046 = vpop.permute.xlu0 %1045
      %1047 = vrot.lane.b32.xlu0 %v825, 120
      %v1048 = vpop.permute.xlu0 %1047
      %1049 = vrot.lane.b32.xlu0 %v834, 120
      %v1050 = vpop.permute.xlu0 %1049
      %1051 = vrot.lane.b32.xlu0 %v835, 120
      %v1052 = vpop.permute.xlu0 %1051
      %1053 = vrot.lane.b32.xlu0 %v842, 120
      %v1054 = vpop.permute.xlu0 %1053
      %1055 = vrot.lane.b32.xlu0 %v851, 120
      %v1056 = vpop.permute.xlu0 %1055
      %1057 = vrot.lane.b32.xlu0 %v852, 120
      %v1058 = vpop.permute.xlu0 %1057
      %1059 = vrot.lane.b32.xlu0 %v859, 120
      %v1060 = vpop.permute.xlu0 %1059
      %1061 = vrot.lane.b32.xlu0 %v868, 120
      %v1062 = vpop.permute.xlu0 %1061
      %1063 = vrot.lane.b32.xlu0 %v869, 120
      %v1064 = vpop.permute.xlu0 %1063
      %1065 = vrot.lane.b32.xlu0 %v876, 120
      %v1066 = vpop.permute.xlu0 %1065
      %1067 = vrot.lane.b32.xlu0 %v885, 120
      %v1068 = vpop.permute.xlu0 %1067
      %1069 = vrot.lane.b32.xlu0 %v886, 120
      %v1070 = vpop.permute.xlu0 %1069
      %1071 = vrot.lane.b32.xlu0 %v893, 120
      %v1072 = vpop.permute.xlu0 %1071
      %1073 = vrot.lane.b32.xlu0 %v902, 120
      %v1074 = vpop.permute.xlu0 %1073
      %1075 = vrot.lane.b32.xlu0 %v903, 120
      %v1076 = vpop.permute.xlu0 %1075
      %1077 = vrot.lane.b32.xlu0 %v910, 120
      %v1078 = vpop.permute.xlu0 %1077
      %1079 = vrot.lane.b32.xlu0 %v919, 120
      %v1080 = vpop.permute.xlu0 %1079
      %1081 = vrot.lane.b32.xlu0 %v920, 120
      %v1082 = vpop.permute.xlu0 %1081
      %1083 = vrot.lane.b32.xlu0 %v927, 120
      %v1084 = vpop.permute.xlu0 %1083
      %1085 = vrot.lane.b32.xlu0 %v936, 120
      %v1086 = vpop.permute.xlu0 %1085
      %1087 = vrot.lane.b32.xlu0 %v937, 120
      %v1088 = vpop.permute.xlu0 %1087
      %1089 = vrot.lane.b32.xlu0 %v944, 120
      %v1090 = vpop.permute.xlu0 %1089
      %1091 = vrot.lane.b32.xlu0 %v953, 120
      %v1092 = vpop.permute.xlu0 %1091
      %1093 = vrot.lane.b32.xlu0 %v954, 120
      %v1094 = vpop.permute.xlu0 %1093
      %1095 = vrot.lane.b32.xlu0 %v961, 120
      %v1096 = vpop.permute.xlu0 %1095
      %1097 = vrot.lane.b32.xlu0 %v970, 120
      %v1098 = vpop.permute.xlu0 %1097
      %1099 = vrot.lane.b32.xlu0 %v971, 120
      %v1100 = vpop.permute.xlu0 %1099
      %1101 = vrot.lane.b32.xlu0 %v978, 120
      %v1102 = vpop.permute.xlu0 %1101
      %1103 = vrot.lane.b32.xlu0 %v987, 120
      %v1104 = vpop.permute.xlu0 %1103
      %1105 = vrot.lane.b32.xlu0 %v988, 120
      %v1106 = vpop.permute.xlu0 %1105
      %1107 = vrot.lane.b32.xlu0 %v995, 120
      %v1108 = vpop.permute.xlu0 %1107
      %1109 = vrot.lane.b32.xlu0 %v1004, 120
      %v1110 = vpop.permute.xlu0 %1109
      %1111 = vrot.lane.b32.xlu0 %v1005, 120
      %v1112 = vpop.permute.xlu0 %1111
      %1113 = vrot.lane.b32.xlu0 %v1012, 120
      %v1114 = vpop.permute.xlu0 %1113
      %1115 = vrot.lane.b32.xlu0 %v1021, 120
      %v1116 = vpop.permute.xlu0 %1115
      %1117 = vrot.lane.b32.xlu0 %v1022, 120
      %v1118 = vpop.permute.xlu0 %1117
      %vm1167 = vcmask 60416
      %vm1168 = vsmask.f32 7938
      %vm1169 = vmand %vm1167, %vm1168
      %v1170 = vld [vmem:[%s715] sm:$0xf]
      %v1171 = vsel %vm1169, %v1024, %v1170
      %1172 = vst [vmem:[%s715] sm:$0xf] %v1171
      %vm1173 = vcmask 60416
      %1174 = vst.msk [vmem:[%s715 + $0x4] sm:$0xf] %vm1173, %v1026
      %vm1175 = vcmask 57344
      %vm1176 = vmand %vm1175, %vm369
      %v1177 = vld [vmem:[%s715 + $0x8] sm:$0x1]
      %v1178 = vsel %vm1176, %v1028, %v1177
      %1179 = vst [vmem:[%s715 + $0x8] sm:$0x1] %v1178
      %v1180 = vld [vmem:[%s715 + $0x18] sm:$0xf]
      %v1181 = vsel %vm1169, %v1030, %v1180
      %1182 = vst [vmem:[%s715 + $0x18] sm:$0xf] %v1181
      %1183 = vst.msk [vmem:[%s715 + $0x1c] sm:$0xf] %vm1173, %v1032
      %v1184 = vld [vmem:[%s715 + $0x20] sm:$0x1]
      %v1185 = vsel %vm1176, %v1034, %v1184
      %1186 = vst [vmem:[%s715 + $0x20] sm:$0x1] %v1185
      %v1187 = vld [vmem:[%s715 + $0x30] sm:$0xf]
      %v1188 = vsel %vm1169, %v1036, %v1187
      %1189 = vst [vmem:[%s715 + $0x30] sm:$0xf] %v1188
      %1190 = vst.msk [vmem:[%s715 + $0x34] sm:$0xf] %vm1173, %v1038
      %v1191 = vld [vmem:[%s715 + $0x38] sm:$0x1]
      %v1192 = vsel %vm1176, %v1040, %v1191
      %1193 = vst [vmem:[%s715 + $0x38] sm:$0x1] %v1192
      %v1194 = vld [vmem:[%s715 + $0x48] sm:$0xf]
      %v1195 = vsel %vm1169, %v1042, %v1194
      %1196 = vst [vmem:[%s715 + $0x48] sm:$0xf] %v1195
      %1197 = vst.msk [vmem:[%s715 + $0x4c] sm:$0xf] %vm1173, %v1044
      %v1198 = vld [vmem:[%s715 + $0x50] sm:$0x1]
      %v1199 = vsel %vm1176, %v1046, %v1198
      %1200 = vst [vmem:[%s715 + $0x50] sm:$0x1] %v1199
      %v1201 = vld [vmem:[%s715 + $0x60] sm:$0xf]
      %v1202 = vsel %vm1169, %v1048, %v1201
      %1203 = vst [vmem:[%s715 + $0x60] sm:$0xf] %v1202
      %1204 = vst.msk [vmem:[%s715 + $0x64] sm:$0xf] %vm1173, %v1050
      %v1205 = vld [vmem:[%s715 + $0x68] sm:$0x1]
      %v1206 = vsel %vm1176, %v1052, %v1205
      %1207 = vst [vmem:[%s715 + $0x68] sm:$0x1] %v1206
      %v1208 = vld [vmem:[%s715 + $0x78] sm:$0xf]
      %v1209 = vsel %vm1169, %v1054, %v1208
      %1210 = vst [vmem:[%s715 + $0x78] sm:$0xf] %v1209
      %1211 = vst.msk [vmem:[%s715 + $0x7c] sm:$0xf] %vm1173, %v1056
      %v1212 = vld [vmem:[%s715 + $0x80] sm:$0x1]
      %v1213 = vsel %vm1176, %v1058, %v1212
      %1214 = vst [vmem:[%s715 + $0x80] sm:$0x1] %v1213
      %v1215 = vld [vmem:[%s715 + $0x90] sm:$0xf]
      %v1216 = vsel %vm1169, %v1060, %v1215
      %1217 = vst [vmem:[%s715 + $0x90] sm:$0xf] %v1216
      %1218 = vst.msk [vmem:[%s715 + $0x94] sm:$0xf] %vm1173, %v1062
      %v1219 = vld [vmem:[%s715 + $0x98] sm:$0x1]
      %v1220 = vsel %vm1176, %v1064, %v1219
      %1221 = vst [vmem:[%s715 + $0x98] sm:$0x1] %v1220
      %v1222 = vld [vmem:[%s715 + $0xa8] sm:$0xf]
      %v1223 = vsel %vm1169, %v1066, %v1222
      %1224 = vst [vmem:[%s715 + $0xa8] sm:$0xf] %v1223
      %1225 = vst.msk [vmem:[%s715 + $0xac] sm:$0xf] %vm1173, %v1068
      %v1226 = vld [vmem:[%s715 + $0xb0] sm:$0x1]
      %v1227 = vsel %vm1176, %v1070, %v1226
      %1228 = vst [vmem:[%s715 + $0xb0] sm:$0x1] %v1227
      %v1229 = vld [vmem:[%s715 + $0xc0] sm:$0xf]
      %v1230 = vsel %vm1169, %v1072, %v1229
      %1231 = vst [vmem:[%s715 + $0xc0] sm:$0xf] %v1230
      %1232 = vst.msk [vmem:[%s715 + $0xc4] sm:$0xf] %vm1173, %v1074
      %v1233 = vld [vmem:[%s715 + $0xc8] sm:$0x1]
      %v1234 = vsel %vm1176, %v1076, %v1233
      %1235 = vst [vmem:[%s715 + $0xc8] sm:$0x1] %v1234
      %v1236 = vld [vmem:[%s715 + $0xd8] sm:$0xf]
      %v1237 = vsel %vm1169, %v1078, %v1236
      %1238 = vst [vmem:[%s715 + $0xd8] sm:$0xf] %v1237
      %1239 = vst.msk [vmem:[%s715 + $0xdc] sm:$0xf] %vm1173, %v1080
      %v1240 = vld [vmem:[%s715 + $0xe0] sm:$0x1]
      %v1241 = vsel %vm1176, %v1082, %v1240
      %1242 = vst [vmem:[%s715 + $0xe0] sm:$0x1] %v1241
      %v1243 = vld [vmem:[%s715 + $0xf0] sm:$0xf]
      %v1244 = vsel %vm1169, %v1084, %v1243
      %1245 = vst [vmem:[%s715 + $0xf0] sm:$0xf] %v1244
      %1246 = vst.msk [vmem:[%s715 + $0xf4] sm:$0xf] %vm1173, %v1086
      %v1247 = vld [vmem:[%s715 + $0xf8] sm:$0x1]
      %v1248 = vsel %vm1176, %v1088, %v1247
      %1249 = vst [vmem:[%s715 + $0xf8] sm:$0x1] %v1248
      %v1250 = vld [vmem:[%s715 + $0x108] sm:$0xf]
      %v1251 = vsel %vm1169, %v1090, %v1250
      %1252 = vst [vmem:[%s715 + $0x108] sm:$0xf] %v1251
      %1253 = vst.msk [vmem:[%s715 + $0x10c] sm:$0xf] %vm1173, %v1092
      %v1254 = vld [vmem:[%s715 + $0x110] sm:$0x1]
      %v1255 = vsel %vm1176, %v1094, %v1254
      %1256 = vst [vmem:[%s715 + $0x110] sm:$0x1] %v1255
      %v1257 = vld [vmem:[%s715 + $0x120] sm:$0xf]
      %v1258 = vsel %vm1169, %v1096, %v1257
      %1259 = vst [vmem:[%s715 + $0x120] sm:$0xf] %v1258
      %1260 = vst.msk [vmem:[%s715 + $0x124] sm:$0xf] %vm1173, %v1098
      %v1261 = vld [vmem:[%s715 + $0x128] sm:$0x1]
      %v1262 = vsel %vm1176, %v1100, %v1261
      %1263 = vst [vmem:[%s715 + $0x128] sm:$0x1] %v1262
      %v1264 = vld [vmem:[%s715 + $0x138] sm:$0xf]
      %v1265 = vsel %vm1169, %v1102, %v1264
      %1266 = vst [vmem:[%s715 + $0x138] sm:$0xf] %v1265
      %1267 = vst.msk [vmem:[%s715 + $0x13c] sm:$0xf] %vm1173, %v1104
      %v1268 = vld [vmem:[%s715 + $0x140] sm:$0x1]
      %v1269 = vsel %vm1176, %v1106, %v1268
      %1270 = vst [vmem:[%s715 + $0x140] sm:$0x1] %v1269
      %v1271 = vld [vmem:[%s715 + $0x150] sm:$0xf]
      %v1272 = vsel %vm1169, %v1108, %v1271
      %1273 = vst [vmem:[%s715 + $0x150] sm:$0xf] %v1272
      %1274 = vst.msk [vmem:[%s715 + $0x154] sm:$0xf] %vm1173, %v1110
      %v1275 = vld [vmem:[%s715 + $0x158] sm:$0x1]
      %v1276 = vsel %vm1176, %v1112, %v1275
      %1277 = vst [vmem:[%s715 + $0x158] sm:$0x1] %v1276
      %v1278 = vld [vmem:[%s715 + $0x168] sm:$0xf]
      %v1279 = vsel %vm1169, %v1114, %v1278
      %1280 = vst [vmem:[%s715 + $0x168] sm:$0xf] %v1279
      %1281 = vst.msk [vmem:[%s715 + $0x16c] sm:$0xf] %vm1173, %v1116
      %v1282 = vld [vmem:[%s715 + $0x170] sm:$0x1]
      %v1283 = vsel %vm1176, %v1118, %v1282
      %1284 = vst [vmem:[%s715 + $0x170] sm:$0x1] %v1283
      %1285 = vrot.lane.b32.xlu0 %v587, 120
      %v1286 = vpop.permute.xlu0 %1285
      %1287 = vrot.lane.b32.xlu0 %v588, 120
      %v1288 = vpop.permute.xlu0 %1287
      %1289 = vrot.lane.b32.xlu0 %v589, 120
      %v1290 = vpop.permute.xlu0 %1289
      %1291 = vrot.lane.b32.xlu0 %v590, 120
      %v1292 = vpop.permute.xlu0 %1291
      %1293 = vrot.lane.b32.xlu0 %v591, 120
      %v1294 = vpop.permute.xlu0 %1293
      %1295 = vrot.lane.b32.xlu0 %v592, 120
      %v1296 = vpop.permute.xlu0 %1295
      %1297 = vrot.lane.b32.xlu0 %v593, 120
      %v1298 = vpop.permute.xlu0 %1297
      %1299 = vrot.lane.b32.xlu0 %v594, 120
      %v1300 = vpop.permute.xlu0 %1299
      %1301 = vrot.lane.b32.xlu0 %v595, 120
      %v1302 = vpop.permute.xlu0 %1301
      %1303 = vrot.lane.b32.xlu0 %v596, 120
      %v1304 = vpop.permute.xlu0 %1303
      %1305 = vrot.lane.b32.xlu0 %v597, 120
      %v1306 = vpop.permute.xlu0 %1305
      %1307 = vrot.lane.b32.xlu0 %v598, 120
      %v1308 = vpop.permute.xlu0 %1307
      %1309 = vrot.lane.b32.xlu0 %v599, 120
      %v1310 = vpop.permute.xlu0 %1309
      %1311 = vrot.lane.b32.xlu0 %v600, 120
      %v1312 = vpop.permute.xlu0 %1311
      %1313 = vrot.lane.b32.xlu0 %v601, 120
      %v1314 = vpop.permute.xlu0 %1313
      %1315 = vrot.lane.b32.xlu0 %v602, 120
      %v1316 = vpop.permute.xlu0 %1315
      %1317 = vrot.lane.b32.xlu0 %v603, 120
      %v1318 = vpop.permute.xlu0 %1317
      %1319 = vrot.lane.b32.xlu0 %v604, 120
      %v1320 = vpop.permute.xlu0 %1319
      %1321 = vrot.lane.b32.xlu0 %v605, 120
      %v1322 = vpop.permute.xlu0 %1321
      %1323 = vrot.lane.b32.xlu0 %v606, 120
      %v1324 = vpop.permute.xlu0 %1323
      %1325 = vrot.lane.b32.xlu0 %v607, 120
      %v1326 = vpop.permute.xlu0 %1325
      %1327 = vrot.lane.b32.xlu0 %v608, 120
      %v1328 = vpop.permute.xlu0 %1327
      %1329 = vrot.lane.b32.xlu0 %v609, 120
      %v1330 = vpop.permute.xlu0 %1329
      %1331 = vrot.lane.b32.xlu0 %v610, 120
      %v1332 = vpop.permute.xlu0 %1331
      %1333 = vrot.lane.b32.xlu0 %v611, 120
      %v1334 = vpop.permute.xlu0 %1333
      %1335 = vrot.lane.b32.xlu0 %v612, 120
      %v1336 = vpop.permute.xlu0 %1335
      %1337 = vrot.lane.b32.xlu0 %v613, 120
      %v1338 = vpop.permute.xlu0 %1337
      %1339 = vrot.lane.b32.xlu0 %v614, 120
      %v1340 = vpop.permute.xlu0 %1339
      %1341 = vrot.lane.b32.xlu0 %v615, 120
      %v1342 = vpop.permute.xlu0 %1341
      %1343 = vrot.lane.b32.xlu0 %v616, 120
      %v1344 = vpop.permute.xlu0 %1343
      %1345 = vrot.lane.b32.xlu0 %v617, 120
      %v1346 = vpop.permute.xlu0 %1345
      %1347 = vrot.lane.b32.xlu0 %v618, 120
      %v1348 = vpop.permute.xlu0 %1347
      %s1381 = scalar_lea.vmem %s172, 24
      %1382 = vst.msk [vmem:[%s1381] sm:$0xf] %vm716, %v1286
      %1383 = vst.msk [vmem:[%s1381 + $0x4] sm:$0xf] %vm716, %v1288
      %1384 = vst.msk [vmem:[%s1381 + $0x18] sm:$0xf] %vm716, %v1290
      %1385 = vst.msk [vmem:[%s1381 + $0x1c] sm:$0xf] %vm716, %v1292
      %1386 = vst.msk [vmem:[%s1381 + $0x30] sm:$0xf] %vm716, %v1294
      %1387 = vst.msk [vmem:[%s1381 + $0x34] sm:$0xf] %vm716, %v1296
      %1388 = vst.msk [vmem:[%s1381 + $0x48] sm:$0xf] %vm716, %v1298
      %1389 = vst.msk [vmem:[%s1381 + $0x4c] sm:$0xf] %vm716, %v1300
      %1390 = vst.msk [vmem:[%s1381 + $0x60] sm:$0xf] %vm716, %v1302
      %1391 = vst.msk [vmem:[%s1381 + $0x64] sm:$0xf] %vm716, %v1304
      %1392 = vst.msk [vmem:[%s1381 + $0x78] sm:$0xf] %vm716, %v1306
      %1393 = vst.msk [vmem:[%s1381 + $0x7c] sm:$0xf] %vm716, %v1308
      %1394 = vst.msk [vmem:[%s1381 + $0x90] sm:$0xf] %vm716, %v1310
      %1395 = vst.msk [vmem:[%s1381 + $0x94] sm:$0xf] %vm716, %v1312
      %1396 = vst.msk [vmem:[%s1381 + $0xa8] sm:$0xf] %vm716, %v1314
      %1397 = vst.msk [vmem:[%s1381 + $0xac] sm:$0xf] %vm716, %v1316
      %1398 = vst.msk [vmem:[%s1381 + $0xc0] sm:$0xf] %vm716, %v1318
      %1399 = vst.msk [vmem:[%s1381 + $0xc4] sm:$0xf] %vm716, %v1320
      %1400 = vst.msk [vmem:[%s1381 + $0xd8] sm:$0xf] %vm716, %v1322
      %1401 = vst.msk [vmem:[%s1381 + $0xdc] sm:$0xf] %vm716, %v1324
      %1402 = vst.msk [vmem:[%s1381 + $0xf0] sm:$0xf] %vm716, %v1326
      %1403 = vst.msk [vmem:[%s1381 + $0xf4] sm:$0xf] %vm716, %v1328
      %1404 = vst.msk [vmem:[%s1381 + $0x108] sm:$0xf] %vm716, %v1330
      %1405 = vst.msk [vmem:[%s1381 + $0x10c] sm:$0xf] %vm716, %v1332
      %1406 = vst.msk [vmem:[%s1381 + $0x120] sm:$0xf] %vm716, %v1334
      %1407 = vst.msk [vmem:[%s1381 + $0x124] sm:$0xf] %vm716, %v1336
      %1408 = vst.msk [vmem:[%s1381 + $0x138] sm:$0xf] %vm716, %v1338
      %1409 = vst.msk [vmem:[%s1381 + $0x13c] sm:$0xf] %vm716, %v1340
      %1410 = vst.msk [vmem:[%s1381 + $0x150] sm:$0xf] %vm716, %v1342
      %1411 = vst.msk [vmem:[%s1381 + $0x154] sm:$0xf] %vm716, %v1344
      %1412 = vst.msk [vmem:[%s1381 + $0x168] sm:$0xf] %vm716, %v1346
      %1413 = vst.msk [vmem:[%s1381 + $0x16c] sm:$0xf] %vm716, %v1348
      %1414 = vrot.lane.b32.xlu0 %v757, 104
      %v1415 = vpop.permute.xlu0 %1414
      %1416 = vrot.lane.b32.xlu0 %v766, 104
      %v1417 = vpop.permute.xlu0 %1416
      %1418 = vrot.lane.b32.xlu0 %v767, 104
      %v1419 = vpop.permute.xlu0 %1418
      %1420 = vrot.lane.b32.xlu0 %v774, 104
      %v1421 = vpop.permute.xlu0 %1420
      %1422 = vrot.lane.b32.xlu0 %v783, 104
      %v1423 = vpop.permute.xlu0 %1422
      %1424 = vrot.lane.b32.xlu0 %v784, 104
      %v1425 = vpop.permute.xlu0 %1424
      %1426 = vrot.lane.b32.xlu0 %v791, 104
      %v1427 = vpop.permute.xlu0 %1426
      %1428 = vrot.lane.b32.xlu0 %v800, 104
      %v1429 = vpop.permute.xlu0 %1428
      %1430 = vrot.lane.b32.xlu0 %v801, 104
      %v1431 = vpop.permute.xlu0 %1430
      %1432 = vrot.lane.b32.xlu0 %v808, 104
      %v1433 = vpop.permute.xlu0 %1432
      %1434 = vrot.lane.b32.xlu0 %v817, 104
      %v1435 = vpop.permute.xlu0 %1434
      %1436 = vrot.lane.b32.xlu0 %v818, 104
      %v1437 = vpop.permute.xlu0 %1436
      %1438 = vrot.lane.b32.xlu0 %v825, 104
      %v1439 = vpop.permute.xlu0 %1438
      %1440 = vrot.lane.b32.xlu0 %v834, 104
      %v1441 = vpop.permute.xlu0 %1440
      %1442 = vrot.lane.b32.xlu0 %v835, 104
      %v1443 = vpop.permute.xlu0 %1442
      %1444 = vrot.lane.b32.xlu0 %v842, 104
      %v1445 = vpop.permute.xlu0 %1444
      %1446 = vrot.lane.b32.xlu0 %v851, 104
      %v1447 = vpop.permute.xlu0 %1446
      %1448 = vrot.lane.b32.xlu0 %v852, 104
      %v1449 = vpop.permute.xlu0 %1448
      %1450 = vrot.lane.b32.xlu0 %v859, 104
      %v1451 = vpop.permute.xlu0 %1450
      %1452 = vrot.lane.b32.xlu0 %v868, 104
      %v1453 = vpop.permute.xlu0 %1452
      %1454 = vrot.lane.b32.xlu0 %v869, 104
      %v1455 = vpop.permute.xlu0 %1454
      %1456 = vrot.lane.b32.xlu0 %v876, 104
      %v1457 = vpop.permute.xlu0 %1456
      %1458 = vrot.lane.b32.xlu0 %v885, 104
      %v1459 = vpop.permute.xlu0 %1458
      %1460 = vrot.lane.b32.xlu0 %v886, 104
      %v1461 = vpop.permute.xlu0 %1460
      %1462 = vrot.lane.b32.xlu0 %v893, 104
      %v1463 = vpop.permute.xlu0 %1462
      %1464 = vrot.lane.b32.xlu0 %v902, 104
      %v1465 = vpop.permute.xlu0 %1464
      %1466 = vrot.lane.b32.xlu0 %v903, 104
      %v1467 = vpop.permute.xlu0 %1466
      %1468 = vrot.lane.b32.xlu0 %v910, 104
      %v1469 = vpop.permute.xlu0 %1468
      %1470 = vrot.lane.b32.xlu0 %v919, 104
      %v1471 = vpop.permute.xlu0 %1470
      %1472 = vrot.lane.b32.xlu0 %v920, 104
      %v1473 = vpop.permute.xlu0 %1472
      %1474 = vrot.lane.b32.xlu0 %v927, 104
      %v1475 = vpop.permute.xlu0 %1474
      %1476 = vrot.lane.b32.xlu0 %v936, 104
      %v1477 = vpop.permute.xlu0 %1476
      %1478 = vrot.lane.b32.xlu0 %v937, 104
      %v1479 = vpop.permute.xlu0 %1478
      %1480 = vrot.lane.b32.xlu0 %v944, 104
      %v1481 = vpop.permute.xlu0 %1480
      %1482 = vrot.lane.b32.xlu0 %v953, 104
      %v1483 = vpop.permute.xlu0 %1482
      %1484 = vrot.lane.b32.xlu0 %v954, 104
      %v1485 = vpop.permute.xlu0 %1484
      %1486 = vrot.lane.b32.xlu0 %v961, 104
      %v1487 = vpop.permute.xlu0 %1486
      %1488 = vrot.lane.b32.xlu0 %v970, 104
      %v1489 = vpop.permute.xlu0 %1488
      %1490 = vrot.lane.b32.xlu0 %v971, 104
      %v1491 = vpop.permute.xlu0 %1490
      %1492 = vrot.lane.b32.xlu0 %v978, 104
      %v1493 = vpop.permute.xlu0 %1492
      %1494 = vrot.lane.b32.xlu0 %v987, 104
      %v1495 = vpop.permute.xlu0 %1494
      %1496 = vrot.lane.b32.xlu0 %v988, 104
      %v1497 = vpop.permute.xlu0 %1496
      %1498 = vrot.lane.b32.xlu0 %v995, 104
      %v1499 = vpop.permute.xlu0 %1498
      %1500 = vrot.lane.b32.xlu0 %v1004, 104
      %v1501 = vpop.permute.xlu0 %1500
      %1502 = vrot.lane.b32.xlu0 %v1005, 104
      %v1503 = vpop.permute.xlu0 %1502
      %1504 = vrot.lane.b32.xlu0 %v1012, 104
      %v1505 = vpop.permute.xlu0 %1504
      %1506 = vrot.lane.b32.xlu0 %v1021, 104
      %v1507 = vpop.permute.xlu0 %1506
      %1508 = vrot.lane.b32.xlu0 %v1022, 104
      %v1509 = vpop.permute.xlu0 %1508
      %v1558 = vld [vmem:[%s1381] sm:$0xf]
      %v1559 = vsel %vm1169, %v1415, %v1558
      %1560 = vst [vmem:[%s1381] sm:$0xf] %v1559
      %1561 = vst.msk [vmem:[%s1381 + $0x4] sm:$0xf] %vm1173, %v1417
      %v1562 = vld [vmem:[%s1381 + $0x8] sm:$0x1]
      %v1563 = vsel %vm1176, %v1419, %v1562
      %1564 = vst [vmem:[%s1381 + $0x8] sm:$0x1] %v1563
      %v1565 = vld [vmem:[%s1381 + $0x18] sm:$0xf]
      %v1566 = vsel %vm1169, %v1421, %v1565
      %1567 = vst [vmem:[%s1381 + $0x18] sm:$0xf] %v1566
      %1568 = vst.msk [vmem:[%s1381 + $0x1c] sm:$0xf] %vm1173, %v1423
      %v1569 = vld [vmem:[%s1381 + $0x20] sm:$0x1]
      %v1570 = vsel %vm1176, %v1425, %v1569
      %1571 = vst [vmem:[%s1381 + $0x20] sm:$0x1] %v1570
      %v1572 = vld [vmem:[%s1381 + $0x30] sm:$0xf]
      %v1573 = vsel %vm1169, %v1427, %v1572
      %1574 = vst [vmem:[%s1381 + $0x30] sm:$0xf] %v1573
      %1575 = vst.msk [vmem:[%s1381 + $0x34] sm:$0xf] %vm1173, %v1429
      %v1576 = vld [vmem:[%s1381 + $0x38] sm:$0x1]
      %v1577 = vsel %vm1176, %v1431, %v1576
      %1578 = vst [vmem:[%s1381 + $0x38] sm:$0x1] %v1577
      %v1579 = vld [vmem:[%s1381 + $0x48] sm:$0xf]
      %v1580 = vsel %vm1169, %v1433, %v1579
      %1581 = vst [vmem:[%s1381 + $0x48] sm:$0xf] %v1580
      %1582 = vst.msk [vmem:[%s1381 + $0x4c] sm:$0xf] %vm1173, %v1435
      %v1583 = vld [vmem:[%s1381 + $0x50] sm:$0x1]
      %v1584 = vsel %vm1176, %v1437, %v1583
      %1585 = vst [vmem:[%s1381 + $0x50] sm:$0x1] %v1584
      %v1586 = vld [vmem:[%s1381 + $0x60] sm:$0xf]
      %v1587 = vsel %vm1169, %v1439, %v1586
      %1588 = vst [vmem:[%s1381 + $0x60] sm:$0xf] %v1587
      %1589 = vst.msk [vmem:[%s1381 + $0x64] sm:$0xf] %vm1173, %v1441
      %v1590 = vld [vmem:[%s1381 + $0x68] sm:$0x1]
      %v1591 = vsel %vm1176, %v1443, %v1590
      %1592 = vst [vmem:[%s1381 + $0x68] sm:$0x1] %v1591
      %v1593 = vld [vmem:[%s1381 + $0x78] sm:$0xf]
      %v1594 = vsel %vm1169, %v1445, %v1593
      %1595 = vst [vmem:[%s1381 + $0x78] sm:$0xf] %v1594
      %1596 = vst.msk [vmem:[%s1381 + $0x7c] sm:$0xf] %vm1173, %v1447
      %v1597 = vld [vmem:[%s1381 + $0x80] sm:$0x1]
      %v1598 = vsel %vm1176, %v1449, %v1597
      %1599 = vst [vmem:[%s1381 + $0x80] sm:$0x1] %v1598
      %v1600 = vld [vmem:[%s1381 + $0x90] sm:$0xf]
      %v1601 = vsel %vm1169, %v1451, %v1600
      %1602 = vst [vmem:[%s1381 + $0x90] sm:$0xf] %v1601
      %1603 = vst.msk [vmem:[%s1381 + $0x94] sm:$0xf] %vm1173, %v1453
      %v1604 = vld [vmem:[%s1381 + $0x98] sm:$0x1]
      %v1605 = vsel %vm1176, %v1455, %v1604
      %1606 = vst [vmem:[%s1381 + $0x98] sm:$0x1] %v1605
      %v1607 = vld [vmem:[%s1381 + $0xa8] sm:$0xf]
      %v1608 = vsel %vm1169, %v1457, %v1607
      %1609 = vst [vmem:[%s1381 + $0xa8] sm:$0xf] %v1608
      %1610 = vst.msk [vmem:[%s1381 + $0xac] sm:$0xf] %vm1173, %v1459
      %v1611 = vld [vmem:[%s1381 + $0xb0] sm:$0x1]
      %v1612 = vsel %vm1176, %v1461, %v1611
      %1613 = vst [vmem:[%s1381 + $0xb0] sm:$0x1] %v1612
      %v1614 = vld [vmem:[%s1381 + $0xc0] sm:$0xf]
      %v1615 = vsel %vm1169, %v1463, %v1614
      %1616 = vst [vmem:[%s1381 + $0xc0] sm:$0xf] %v1615
      %1617 = vst.msk [vmem:[%s1381 + $0xc4] sm:$0xf] %vm1173, %v1465
      %v1618 = vld [vmem:[%s1381 + $0xc8] sm:$0x1]
      %v1619 = vsel %vm1176, %v1467, %v1618
      %1620 = vst [vmem:[%s1381 + $0xc8] sm:$0x1] %v1619
      %v1621 = vld [vmem:[%s1381 + $0xd8] sm:$0xf]
      %v1622 = vsel %vm1169, %v1469, %v1621
      %1623 = vst [vmem:[%s1381 + $0xd8] sm:$0xf] %v1622
      %1624 = vst.msk [vmem:[%s1381 + $0xdc] sm:$0xf] %vm1173, %v1471
      %v1625 = vld [vmem:[%s1381 + $0xe0] sm:$0x1]
      %v1626 = vsel %vm1176, %v1473, %v1625
      %1627 = vst [vmem:[%s1381 + $0xe0] sm:$0x1] %v1626
      %v1628 = vld [vmem:[%s1381 + $0xf0] sm:$0xf]
      %v1629 = vsel %vm1169, %v1475, %v1628
      %1630 = vst [vmem:[%s1381 + $0xf0] sm:$0xf] %v1629
      %1631 = vst.msk [vmem:[%s1381 + $0xf4] sm:$0xf] %vm1173, %v1477
      %v1632 = vld [vmem:[%s1381 + $0xf8] sm:$0x1]
      %v1633 = vsel %vm1176, %v1479, %v1632
      %1634 = vst [vmem:[%s1381 + $0xf8] sm:$0x1] %v1633
      %v1635 = vld [vmem:[%s1381 + $0x108] sm:$0xf]
      %v1636 = vsel %vm1169, %v1481, %v1635
      %1637 = vst [vmem:[%s1381 + $0x108] sm:$0xf] %v1636
      %1638 = vst.msk [vmem:[%s1381 + $0x10c] sm:$0xf] %vm1173, %v1483
      %v1639 = vld [vmem:[%s1381 + $0x110] sm:$0x1]
      %v1640 = vsel %vm1176, %v1485, %v1639
      %1641 = vst [vmem:[%s1381 + $0x110] sm:$0x1] %v1640
      %v1642 = vld [vmem:[%s1381 + $0x120] sm:$0xf]
      %v1643 = vsel %vm1169, %v1487, %v1642
      %1644 = vst [vmem:[%s1381 + $0x120] sm:$0xf] %v1643
      %1645 = vst.msk [vmem:[%s1381 + $0x124] sm:$0xf] %vm1173, %v1489
      %v1646 = vld [vmem:[%s1381 + $0x128] sm:$0x1]
      %v1647 = vsel %vm1176, %v1491, %v1646
      %1648 = vst [vmem:[%s1381 + $0x128] sm:$0x1] %v1647
      %v1649 = vld [vmem:[%s1381 + $0x138] sm:$0xf]
      %v1650 = vsel %vm1169, %v1493, %v1649
      %1651 = vst [vmem:[%s1381 + $0x138] sm:$0xf] %v1650
      %1652 = vst.msk [vmem:[%s1381 + $0x13c] sm:$0xf] %vm1173, %v1495
      %v1653 = vld [vmem:[%s1381 + $0x140] sm:$0x1]
      %v1654 = vsel %vm1176, %v1497, %v1653
      %1655 = vst [vmem:[%s1381 + $0x140] sm:$0x1] %v1654
      %v1656 = vld [vmem:[%s1381 + $0x150] sm:$0xf]
      %v1657 = vsel %vm1169, %v1499, %v1656
      %1658 = vst [vmem:[%s1381 + $0x150] sm:$0xf] %v1657
      %1659 = vst.msk [vmem:[%s1381 + $0x154] sm:$0xf] %vm1173, %v1501
      %v1660 = vld [vmem:[%s1381 + $0x158] sm:$0x1]
      %v1661 = vsel %vm1176, %v1503, %v1660
      %1662 = vst [vmem:[%s1381 + $0x158] sm:$0x1] %v1661
      %v1663 = vld [vmem:[%s1381 + $0x168] sm:$0xf]
      %v1664 = vsel %vm1169, %v1505, %v1663
      %1665 = vst [vmem:[%s1381 + $0x168] sm:$0xf] %v1664
      %1666 = vst.msk [vmem:[%s1381 + $0x16c] sm:$0xf] %vm1173, %v1507
      %v1667 = vld [vmem:[%s1381 + $0x170] sm:$0x1]
      %v1668 = vsel %vm1176, %v1509, %v1667
      %1669 = vst [vmem:[%s1381 + $0x170] sm:$0x1] %v1668
      %s1670 = smul.u32 17, %s14
      %p1671 = scmp.lt.s32.totalorder %s1670, 33
      %s1672 = scalar_select %p1671, %s1670, 33
      %s1673 = smul.addr %s1672, 6
      %s1674 = smul.addr %s1673, 4
      %s1675 = scalar_lea.vmem %s3, %s1674
      // Predicated region
      $region33: #{generator_forward.14} parent=31 // pred_check
        %p1676 = pneg %p100
      $region34: #{generator_forward.14} parent=31 // pred_check_branch
        %1678 = sbr.rel (%p1676) target = $region36
      $region35: #{generator_forward.14} parent=31 // pred_region
        %s1679 = smul.u32 17, %s14
      $region36: #{generator_forward.14} parent=31 // pred_fallthru
        _
    $region32: #{generator_forward.14} parent=5 // pred_fallthru
      _
    %p1680 = scmp.le.s32.totalorder 2, %s9
    // Predicated region
    $region37: #{generator_forward.14} parent=5 // pred_check
      %p1681 = pneg %p1680
    $region38: #{generator_forward.14} parent=5 // pred_check_branch
      %1683 = sbr.rel (%p1681) target = $region40
    $region39: #{generator_forward.14} parent=5 // pred_region
      %s1684 = ssub.s32 %s9, 2
      // Predicated region
      $region41: #{generator_forward.14} parent=39 // pred_check
        %p1685 = pneg %p106
      $region42: #{generator_forward.14} parent=39 // pred_check_branch
        %1687 = sbr.rel (%p1685) target = $region44
      $region43: #{generator_forward.14} parent=39 // pred_region
        %s1688 = smul.u32 17, %s15
        %p1689 = scmp.lt.s32.totalorder %s1688, 33
        %s1690 = scalar_select %p1689, %s1688, 33
        %s1691 = smul.addr %s1690, 6
        %s1692 = smul.addr %s1691, 4
        %s1693 = scalar_lea.vmem %s3, %s1692
      $region44: #{generator_forward.14} parent=39 // pred_fallthru
        _
    $region40: #{generator_forward.14} parent=5 // pred_fallthru
      _
  $region6: #{generator_forward.14} parent=0 // loop_footer
    %s13 = sadd.s32 1, %s9
  $region7: #{generator_forward.14} parent=0 // loop_footer_branch
    %8 = sbr.rel target = $region3
  $region8: #{generator_forward.14} parent=0 // loop_exit
    _

// kernel: generator_forward.15
$region0: #{generator_forward.15}
  #allocation0 [shape = 'u32[]', space=smem, size = 0x4, offset = 0x4, fixed_abs, tag = 'smem constant byte address 0x4 - core index']
  #allocation1 [shape = 'u32[144,128]{1,0:T(1,128)}', space=vmem, size = 0x12000, scoped, tag = 'internal scratch']
  %s0 = inlined_call_operand.vmem [shape: bf16[2,34,34,8], index: 0, kind: input, shape index: {}]
  %s1 = inlined_call_operand.hbm [shape: bf16[72,128], index: 1, kind: input, shape index: {}]
  %s2 = inlined_call_operand.vmem [shape: bf16[64,2,32,6], index: 2, kind: output, shape index: {}]
  %s3 = sld [smem:[#allocation0]]
  $region52: #{generator_forward.15} parent=0
    _
  %s5 = ssub.s32 1, %s3
  %s6 = scalar_select 0, %s5, %s3
  $region1: #{generator_forward.15} parent=0
    #allocation2 [shape = 'u8[18432]{0}', space=vmem, size = 0x4800, scoped, tag = 'input window, operand 1, single buffered']
    #allocation3 [shape = 's32[2]{0}', space=sflag, size = 0x8, scoped, tag = 'scoped memory for generator_forward.15']
    %7 = vsyncpa [#allocation3], 0
    loop: start=0, step=1, limit=4
    $region2: #{generator_forward.15} parent=1 // loop_pre_header
      _
    $region3: #{generator_forward.15} parent=1 // loop_header
      %s9 = sphi 0, %s13
      %p10 = scmp.ge.s32.totalorder %s9, 4
      %s19 = sphi 0, %s21
      %s22 = sphi 0, %s19
      %s23 = sphi 0, %s22
      %s39 = sphi 0, %s23
      %s43 = sphi 0, %s43
      %s45 = sphi 0, %s43
      %s46 = sphi 0, %s45
      %s60 = sphi 0, %s46
      %s66 = sphi 0, %s68
      %s69 = sphi 0, %s66
      %s70 = sphi 0, %s69
      %s86 = sphi 0, %s70
    $region4: #{generator_forward.15} parent=1 // loop_header_branch
      %12 = sbr.rel (%p10) target = $region8
    $region5: #{generator_forward.15} parent=1 // loop_body
      %s14 = ssub.s32 %s9, 1
      %s15 = ssub.s32 %s9, 2
      %s16 = sadd.s32 %s9, 1
      %s17 = ssub.s32 %s9, %s16
      %p18 = scmp.eq.s32.totalorder %s17, 0
      %s20 = sadd.s32 %s19, 1
      %s21 = scalar_select %p18, %s19, %s20
      %p24 = pneg %p18
      %p25 = scmp.eq.s32.totalorder %s9, 1
      %p26 = por %p24, %p25
      %p27 = scmp.ne.s32.totalorder %s19, %s22
      %p28 = scmp.eq.s32.totalorder %s9, 0
      %p29 = por %p27, %p28
      %p30 = scmp.ne.s32.totalorder %s19, %s22
      %p31 = scmp.eq.s32.totalorder %s14, 1
      %p32 = por %p30, %p31
      %p33 = scmp.ne.s32.totalorder %s22, %s23
      %p34 = scmp.eq.s32.totalorder %s14, 0
      %p35 = por %p33, %p34
      %p36 = scmp.ne.s32.totalorder %s22, %s23
      %p37 = scmp.eq.s32.totalorder %s15, 1
      %p38 = por %p36, %p37
      %p40 = scmp.ne.s32.totalorder %s23, %s39
      %p41 = scmp.eq.s32.totalorder %s15, 0
      %p42 = por %p40, %p41
      %s44 = sadd.s32 %s43, 1
      %p47 = scmp.eq.s32.totalorder %s9, 1
      %p48 = scmp.ne.s32.totalorder %s43, %s45
      %p49 = scmp.eq.s32.totalorder %s9, 0
      %p50 = por %p48, %p49
      %p51 = scmp.ne.s32.totalorder %s43, %s45
      %p52 = scmp.eq.s32.totalorder %s14, 1
      %p53 = por %p51, %p52
      %p54 = scmp.ne.s32.totalorder %s45, %s46
      %p55 = scmp.eq.s32.totalorder %s14, 0
      %p56 = por %p54, %p55
      %p57 = scmp.ne.s32.totalorder %s45, %s46
      %p58 = scmp.eq.s32.totalorder %s15, 1
      %p59 = por %p57, %p58
      %p61 = scmp.ne.s32.totalorder %s46, %s60
      %p62 = scmp.eq.s32.totalorder %s15, 0
      %p63 = por %p61, %p62
      %s64 = ssub.s32 %s9, %s16
      %p65 = scmp.eq.s32.totalorder %s64, 0
      %s67 = sadd.s32 %s66, 1
      %s68 = scalar_select %p65, %s66, %s67
      %p71 = pneg %p65
      %p72 = scmp.eq.s32.totalorder %s9, 1
      %p73 = por %p71, %p72
      %p74 = scmp.ne.s32.totalorder %s66, %s69
      %p75 = scmp.eq.s32.totalorder %s9, 0
      %p76 = por %p74, %p75
      %p77 = scmp.ne.s32.totalorder %s66, %s69
      %p78 = scmp.eq.s32.totalorder %s14, 1
      %p79 = por %p77, %p78
      %p80 = scmp.ne.s32.totalorder %s69, %s70
      %p81 = scmp.eq.s32.totalorder %s14, 0
      %p82 = por %p80, %p81
      %p83 = scmp.ne.s32.totalorder %s69, %s70
      %p84 = scmp.eq.s32.totalorder %s15, 1
      %p85 = por %p83, %p84
      %p87 = scmp.ne.s32.totalorder %s70, %s86
      %p88 = scmp.eq.s32.totalorder %s15, 0
      %p89 = por %p87, %p88
      %p90 = scmp.le.s32.totalorder 1, %s9
      %p91 = scmp.lt.s32.totalorder %s9, 3
      %p92 = pnand %p90, %p91
      %p93 = pneg %p92
      // Predicated region
      $region9: #{generator_forward.15} parent=5 // pred_check
        _
      $region10: #{generator_forward.15} parent=5 // pred_check_branch
        %95 = sbr.rel (%p92) target = $region12
      $region11: #{generator_forward.15} parent=5 // pred_region
        %s96 = ssub.s32 %s9, 1
        // Predicated region
        $region13: #{generator_forward.15} parent=11 // pred_check
          %p97 = pneg %p56
        $region14: #{generator_forward.15} parent=11 // pred_check_branch
          %99 = sbr.rel (%p97) target = $region16
        $region15: #{generator_forward.15} parent=11 // pred_region
          %s101 = ssub.s32 576, 576
          %102 = vsyncadd [#allocation3], %s101
          %s103 = sshll.u32 [#allocation2], 4
          %s104 = int_to_ptr.vmem [resolvable:$true] %s103
          %109 = dma.hbm_to_vmem [thread:$0]  %s1, 576, %s104, [#allocation3], 64, 64, 4
        $region16: #{generator_forward.15} parent=11 // pred_fallthru
          _
      $region12: #{generator_forward.15} parent=5 // pred_fallthru
        _
      %p110 = scmp.lt.s32.totalorder %s9, 2
      // Predicated region
      $region17: #{generator_forward.15} parent=5 // pred_check
        %p111 = pneg %p110
      $region18: #{generator_forward.15} parent=5 // pred_check_branch
        %113 = sbr.rel (%p111) target = $region20
      $region19: #{generator_forward.15} parent=5 // pred_region
        // Predicated region
        $region21: #{generator_forward.15} parent=19 // pred_check
          %p114 = pneg %p29
        $region22: #{generator_forward.15} parent=19 // pred_check_branch
          %116 = sbr.rel (%p114) target = $region24
        $region23: #{generator_forward.15} parent=19 // pred_region
          %p117 = scmp.lt.s32.totalorder %s9, 1
          %s118 = scalar_select %p117, %s9, 1
          %s119 = smul.addr %s118, 170
          %s120 = smul.addr %s119, 4
          %s121 = scalar_lea.vmem %s0, %s120
        $region24: #{generator_forward.15} parent=19 // pred_fallthru
          _
      $region20: #{generator_forward.15} parent=5 // pred_fallthru
        _
      %p122 = scmp.le.s32.totalorder 1, %s9
      %p123 = scmp.lt.s32.totalorder %s9, 3
      %p124 = pnand %p122, %p123
      %p125 = pneg %p124
      // Predicated region
      $region25: #{generator_forward.15} parent=5 // pred_check
        _
      $region26: #{generator_forward.15} parent=5 // pred_check_branch
        %127 = sbr.rel (%p124) target = $region28
      $region27: #{generator_forward.15} parent=5 // pred_region
        %s128 = ssub.s32 %s9, 1
        // Predicated region
        $region29: #{generator_forward.15} parent=27 // pred_check
          %p129 = pneg %p56
        $region30: #{generator_forward.15} parent=27 // pred_check_branch
          %131 = sbr.rel (%p129) target = $region32
        $region31: #{generator_forward.15} parent=27 // pred_region
          %132 = dma.done [#allocation3], 576
        $region32: #{generator_forward.15} parent=27 // pred_fallthru
          _
        %p133 = scmp.lt.s32.totalorder %s14, 1
        %s134 = scalar_select %p133, %s14, 1
        %s135 = smul.addr %s134, 170
        %s136 = smul.addr %s135, 4
        %s137 = scalar_lea.vmem %s0, %s136
        %p138 = pneg %p35
        %p139 = pneg %p32
        %p140 = pneg %p56
        %p141 = pneg %p53
        %p142 = pneg %p82
        %p143 = pneg %p79
        %s144 = smul.u32 32, %s14
        %p145 = scmp.lt.s32.totalorder %s144, 63
        %s146 = scalar_select %p145, %s144, 63
        %s147 = smul.addr %s146, 8
        %s148 = smul.addr %s147, 4
        %s149 = scalar_lea.vmem %s2, %s148
        %p150 = scmp.lt.s32.totalorder %s14, 1
        %s151 = scalar_select %p150, %s14, 1
        %s152 = smul.addr %s151, 170
        %s153 = smul.addr %s152, 4
        %s154 = scalar_lea.vmem %s0, %s153
        %s155 = smul.u32 32, %s14
        %p156 = scmp.lt.s32.totalorder %s155, 63
        %s157 = scalar_select %p156, %s155, 63
        %s158 = smul.addr %s157, 8
        %s159 = smul.addr %s158, 4
        %s160 = scalar_lea.vmem %s2, %s159
        %s161 = smul.u32 32, %s14
        %v163 = vld [vmem:[#allocation2] sm:$0xf]
        %v164 = vld [vmem:[#allocation2 + $0x4] sm:$0xf]
        %v165 = vld [vmem:[#allocation2 + $0x8] sm:$0xf]
        %v166 = vld [vmem:[#allocation2 + $0xc] sm:$0xf]
        %v167 = vld [vmem:[#allocation2 + $0x10] sm:$0xf]
        %v168 = vld [vmem:[#allocation2 + $0x14] sm:$0xf]
        %v169 = vld [vmem:[#allocation2 + $0x18] sm:$0xf]
        %v170 = vld [vmem:[#allocation2 + $0x1c] sm:$0xf]
        %v171 = vld [vmem:[#allocation2 + $0x20] sm:$0xf]
        loop: start=0, step=1, limit=32
        $region33: #{generator_forward.15} parent=27 // loop_pre_header
          _
        $region34: #{generator_forward.15} parent=27 // loop_header
          %s173 = sphi 0, %s177
          %p174 = scmp.ge.s32.totalorder %s173, 32
        $region35: #{generator_forward.15} parent=27 // loop_header_branch
          %176 = sbr.rel (%p174) target = $region39
        $region36: #{generator_forward.15} parent=27 // loop_body
          %s178 = smul.u32 %s173, 5
          %s179 = smul.addr %s178, 4
          %s180 = scalar_lea.vmem %s154, %s179
          %v181 = vld [vmem:[%s180] sm:$0xf]
          %v182 = vld [vmem:[%s180 + $0x4] sm:$0xf]
          %v183 = vld [vmem:[%s180 + $0x8] sm:$0xf]
          %v184 = vld [vmem:[%s180 + $0xc] sm:$0xf]
          %v185 = vld [vmem:[%s180 + $0x10] sm:$0x1]
          %v186 = vld [vmem:[%s180] sm:$0xe]
          %s187 = sadd.s32 %s173, 1
          %s188 = smul.u32 %s187, 5
          %s189 = smul.addr %s188, 4
          %s190 = scalar_lea.vmem %s154, %s189
          %v191 = vld [vmem:[%s190] sm:$0xf]
          %v192 = vld [vmem:[%s190 + $0x4] sm:$0xf]
          %v193 = vld [vmem:[%s190 + $0x8] sm:$0xf]
          %v194 = vld [vmem:[%s190 + $0xc] sm:$0xf]
          %v195 = vld [vmem:[%s190 + $0x10] sm:$0x1]
          %v196 = vld [vmem:[%s190] sm:$0xe]
          %s197 = sadd.s32 %s173, 2
          %s198 = smul.u32 %s197, 5
          %s199 = smul.addr %s198, 4
          %s200 = scalar_lea.vmem %s154, %s199
          %v201 = vld [vmem:[%s200] sm:$0xf]
          %v202 = vld [vmem:[%s200 + $0x4] sm:$0xf]
          %v203 = vld [vmem:[%s200 + $0x8] sm:$0xf]
          %v204 = vld [vmem:[%s200 + $0xc] sm:$0xf]
          %v205 = vld [vmem:[%s200 + $0x10] sm:$0x1]
          %v206 = vld [vmem:[%s200] sm:$0xe]
          %v211 = vunpack.c.l.b16 %v181
          %v212 = vunpack.c.l.b16 %v182
          %v213 = vunpack.c.l.b16 %v183
          %v214 = vunpack.c.l.b16 %v184
          %v215 = vpack.c.b16 %v212, %v211
          %v216 = vpack.c.b16 %v214, %v213
          %v218 = vunpack.c.l.b16 %v185
          %v219 = vpack.c.b16 %v218, %v218
          %vm220 = vsmask.f32 7424
          %v222 = vshrl.u32 %v215, 16
          %v224 = vshll.u32 %v215, 16
          %v226 = vrot.slane %v224, 1
          %v227 = vor.u32 %v222, %v226
          %v229 = vshll.u32 %v216, 16
          %v231 = vrot.slane %v229, 1
          %v232 = vsel %vm220, %v227, %v231
          %v233 = vshrl.u32 %v216, 16
          %v235 = vor.u32 %v233, %v231
          %v237 = vshll.u32 %v219, 16
          %v239 = vrot.slane %v237, 1
          %v240 = vsel %vm220, %v235, %v239
          %241 = vrot.lane.b32.xlu0 %v232, 8
          %v242 = vpop.permute.xlu0 %241
          %243 = vrot.lane.b32.xlu0 %v240, 8
          %v244 = vpop.permute.xlu0 %243
          %v246 = vunpack.c.l.b16 %v186
          %v247 = vpack.c.b16 %v212, %v246
          %vm248 = vcmask 1046528
          %v249 = vrot.slane %v247, 1
          %v250 = vrot.slane %v216, 1
          %v251 = vsel %vm248, %v249, %v250
          %v252 = vrot.slane %v219, 1
          %v253 = vsel %vm248, %v250, %v252
          %254 = vrot.lane.b32.xlu0 %v251, 16
          %v255 = vpop.permute.xlu0 %254
          %256 = vrot.lane.b32.xlu0 %v253, 16
          %v257 = vpop.permute.xlu0 %256
          %v262 = vunpack.c.l.b16 %v191
          %v263 = vunpack.c.l.b16 %v192
          %v264 = vunpack.c.l.b16 %v193
          %v265 = vunpack.c.l.b16 %v194
          %v266 = vpack.c.b16 %v263, %v262
          %v267 = vpack.c.b16 %v265, %v264
          %268 = vrot.lane.b32.xlu0 %v266, 24
          %v269 = vpop.permute.xlu0 %268
          %270 = vrot.lane.b32.xlu0 %v267, 24
          %v271 = vpop.permute.xlu0 %270
          %v273 = vunpack.c.l.b16 %v195
          %v274 = vpack.c.b16 %v273, %v273
          %v276 = vshrl.u32 %v266, 16
          %v278 = vshll.u32 %v266, 16
          %v280 = vrot.slane %v278, 1
          %v281 = vor.u32 %v276, %v280
          %v283 = vshll.u32 %v267, 16
          %v285 = vrot.slane %v283, 1
          %v286 = vsel %vm220, %v281, %v285
          %v287 = vshrl.u32 %v267, 16
          %v289 = vor.u32 %v287, %v285
          %v291 = vshll.u32 %v274, 16
          %v293 = vrot.slane %v291, 1
          %v294 = vsel %vm220, %v289, %v293
          %295 = vrot.lane.b32.xlu0 %v286, 32
          %v296 = vpop.permute.xlu0 %295
          %297 = vrot.lane.b32.xlu0 %v294, 32
          %v298 = vpop.permute.xlu0 %297
          %v300 = vunpack.c.l.b16 %v196
          %v301 = vpack.c.b16 %v263, %v300
          %v302 = vrot.slane %v301, 1
          %v303 = vrot.slane %v267, 1
          %v304 = vsel %vm248, %v302, %v303
          %v305 = vrot.slane %v274, 1
          %v306 = vsel %vm248, %v303, %v305
          %307 = vrot.lane.b32.xlu0 %v304, 40
          %v308 = vpop.permute.xlu0 %307
          %309 = vrot.lane.b32.xlu0 %v306, 40
          %v310 = vpop.permute.xlu0 %309
          %v315 = vunpack.c.l.b16 %v201
          %v316 = vunpack.c.l.b16 %v202
          %v317 = vunpack.c.l.b16 %v203
          %v318 = vunpack.c.l.b16 %v204
          %v319 = vpack.c.b16 %v316, %v315
          %v320 = vpack.c.b16 %v318, %v317
          %321 = vrot.lane.b32.xlu0 %v319, 48
          %v322 = vpop.permute.xlu0 %321
          %323 = vrot.lane.b32.xlu0 %v320, 48
          %v324 = vpop.permute.xlu0 %323
          %v326 = vunpack.c.l.b16 %v205
          %v327 = vpack.c.b16 %v326, %v326
          %v329 = vshrl.u32 %v319, 16
          %v331 = vshll.u32 %v319, 16
          %v333 = vrot.slane %v331, 1
          %v334 = vor.u32 %v329, %v333
          %v336 = vshll.u32 %v320, 16
          %v338 = vrot.slane %v336, 1
          %v339 = vsel %vm220, %v334, %v338
          %v340 = vshrl.u32 %v320, 16
          %v342 = vor.u32 %v340, %v338
          %v344 = vshll.u32 %v327, 16
          %v346 = vrot.slane %v344, 1
          %v347 = vsel %vm220, %v342, %v346
          %348 = vrot.lane.b32.xlu0 %v339, 56
          %v349 = vpop.permute.xlu0 %348
          %350 = vrot.lane.b32.xlu0 %v347, 56
          %v351 = vpop.permute.xlu0 %350
          %v353 = vunpack.c.l.b16 %v206
          %v354 = vpack.c.b16 %v316, %v353
          %v355 = vrot.slane %v354, 1
          %v356 = vrot.slane %v320, 1
          %v357 = vsel %vm248, %v355, %v356
          %v358 = vrot.slane %v327, 1
          %v359 = vsel %vm248, %v356, %v358
          %360 = vrot.lane.b32.xlu0 %v357, 64
          %v361 = vpop.permute.xlu0 %360
          %362 = vrot.lane.b32.xlu0 %v359, 64
          %v363 = vpop.permute.xlu0 %362
          %vm364 = vcmask 64512
          %v366 = vsel %vm364, %v215, %v242
          %v368 = vsel %vm364, %v216, %v244
          %vm369 = vcmask 130048
          %v371 = vsel %vm369, %v366, %v255
          %v373 = vsel %vm369, %v368, %v257
          %vm374 = vcmask 195584
          %v376 = vsel %vm374, %v371, %v269
          %v378 = vsel %vm374, %v373, %v271
          %vm379 = vcmask 261120
          %v381 = vsel %vm379, %v376, %v296
          %v383 = vsel %vm379, %v378, %v298
          %vm384 = vcmask 326656
          %v386 = vsel %vm384, %v381, %v308
          %v388 = vsel %vm384, %v383, %v310
          %vm389 = vcmask 392192
          %v391 = vsel %vm389, %v386, %v322
          %v393 = vsel %vm389, %v388, %v324
          %vm394 = vcmask 457728
          %v396 = vsel %vm394, %v391, %v349
          %v398 = vsel %vm394, %v393, %v351
          %vm399 = vcmask 523264
          %v401 = vsel %vm399, %v396, %v361
          %v403 = vsel %vm399, %v398, %v363
          %v413 = vunpack.c.l.b16 %v163
          %v414 = vunpack.c.l.b16 %v164
          %v415 = vunpack.c.l.b16 %v165
          %v416 = vunpack.c.l.b16 %v166
          %v417 = vunpack.c.l.b16 %v167
          %v418 = vunpack.c.l.b16 %v168
          %v419 = vunpack.c.l.b16 %v169
          %v420 = vunpack.c.l.b16 %v170
          %v421 = vunpack.c.l.b16 %v171
          %v422 = vpack.c.b16 %v414, %v413
          %v423 = vpack.c.b16 %v416, %v415
          %v424 = vpack.c.b16 %v418, %v417
          %v425 = vpack.c.b16 %v420, %v419
          %v426 = vpack.c.b16 %v421, %v421
          %vm431 = vcmask 588800
          %v432 = vsel %vm431, %v401, 0
          %v434 = vsel %vm431, %v403, 0
          %vm436 = vcmask 1043456
          %v438 = vsel %vm436, %v426, 0
          %440 = vmatprep.subr.bf16.mxu0 0
          %441 = vmatpush1.bf16.msra.mxu0 0
          %442 = vmatprep.subr.bf16.mxu0 0
          %443 = vmatpush1.bf16.msra.mxu0 0
          %444 = vmatprep.subr.bf16.mxu0 0
          %445 = vmatpush1.bf16.msra.mxu0 0
          %446 = vmatprep.subr.bf16.mxu0 0
          %447 = vmatpush1.bf16.msra.mxu0 %v438
          %448 = vmatprep.subr.bf16.mxu0 0
          %449 = vmatpush1.bf16.msra.mxu0 %v425
          %450 = vmatprep.subr.bf16.mxu0 0
          %451 = vmatpush1.bf16.msra.mxu0 %v424
          %452 = vmatprep.subr.bf16.mxu0 0
          %453 = vmatpush1.bf16.msra.mxu0 %v423
          %454 = vmatprep.subr.bf16.mxu0 0
          %455 = vmatpush1.bf16.msra.mxu0 %v422
          %456 = vmatprep.subr.bf16.mxu0 0
          %457 = vmatpush2.bf16.msra.mxu0 0
          %458 = vmatprep.subr.bf16.mxu0 0
          %459 = vmatpush2.bf16.msra.mxu0 0
          %460 = vmatprep.subr.bf16.mxu0 0
          %461 = vmatpush2.bf16.msra.mxu0 0
          %462 = vmatprep.subr.bf16.mxu0 0
          %463 = vmatpush2.bf16.msra.mxu0 0
          %464 = vmatprep.subr.bf16.mxu0 0
          %465 = vmatpush2.bf16.msra.mxu0 0
          %466 = vmatprep.subr.bf16.mxu0 0
          %467 = vmatpush2.bf16.msra.mxu0 0
          %468 = vmatprep.subr.bf16.mxu0 0
          %469 = vmatpush2.bf16.msra.mxu0 0
          %470 = vmatprep.subr.bf16.mxu0 0
          %471 = vmatpush2.bf16.msra.mxu0 0
          %472 = vmatprep.mubr.bf16.mxu0 0
          %473 = vmatmul.mubr.bf16.gmra.mxu0 %v432
          %v474 = vpop.f32.mrf.mxu0
          %v475 = vadd.f32 0.0, %v474
          %v476 = vpop.f32.mrf.mxu0
          %v477 = vpop.f32.mrf.mxu0
          %v478 = vadd.f32 0.0, %v477
          %v479 = vpop.f32.mrf.mxu0
          %480 = vmatprep.mubr.bf16.mxu0 0
          %481 = vmatmul.mubr.bf16.gmra.mxu0 %v434
          %v482 = vpop.f32.mrf.mxu0
          %v483 = vadd.f32 0.0, %v482
          %v484 = vpop.f32.mrf.mxu0
          %v485 = vpop.f32.mrf.mxu0
          %v486 = vadd.f32 0.0, %v485
          %v487 = vpop.f32.mrf.mxu0
          %488 = vdwg.mxu0
          %v489 = vtanh.pop %v475
          %v490 = vtanh.pop %v478
          %v491 = vtanh.pop %v483
          %v492 = vtanh.pop %v486
          %v493 = vpack.c.bf16 %v490, %v489
          %v494 = vpack.c.bf16 %v492, %v491
          %v497 = vunpack.c.l.b16 %v493
          %v498 = vunpack.c.h.b16 %v493
          %v499 = vunpack.c.l.b16 %v494
          %v500 = vunpack.c.h.b16 %v494
          %v501 = vpack.c.b16 %v497, %v497
          %v502 = vpack.c.b16 %v498, %v498
          %v503 = vpack.c.b16 %v499, %v499
          %v504 = vpack.c.b16 %v500, %v500
          %s509 = smul.u32 %s173, 8
          %s510 = smul.addr %s509, 4
          %s511 = scalar_lea.vmem %s160, %s510
          %vm512 = vcmask 19456
          %513 = vst.msk [vmem:[%s511] sm:$0xf] %vm512, %v501
          %514 = vst.msk [vmem:[%s511 + $0x4] sm:$0xf] %vm512, %v502
          %515 = vst.msk [vmem:[%s511 + $0x8] sm:$0xf] %vm512, %v503
          %516 = vst.msk [vmem:[%s511 + $0xc] sm:$0xf] %vm512, %v504
          %vm517 = vcmask 44056
          %518 = vst.msk [vmem:[%s511] sm:$0xf] %vm517, %v501
          %519 = vst.msk [vmem:[%s511 + $0x4] sm:$0xf] %vm517, %v502
          %520 = vst.msk [vmem:[%s511 + $0x8] sm:$0xf] %vm517, %v503
          %521 = vst.msk [vmem:[%s511 + $0xc] sm:$0xf] %vm517, %v504
          %522 = vrot.lane.b32.xlu0 %v501, 122
          %v523 = vpop.permute.xlu0 %522
          %524 = vrot.lane.b32.xlu0 %v502, 122
          %v525 = vpop.permute.xlu0 %524
          %526 = vrot.lane.b32.xlu0 %v503, 122
          %v527 = vpop.permute.xlu0 %526
          %528 = vrot.lane.b32.xlu0 %v504, 122
          %v529 = vpop.permute.xlu0 %528
          %s534 = sadd.s32 4, %s509
          %s535 = smul.addr %s534, 4
          %s536 = scalar_lea.vmem %s160, %s535
          %537 = vst.msk [vmem:[%s536] sm:$0xf] %vm512, %v523
          %538 = vst.msk [vmem:[%s536 + $0x4] sm:$0xf] %vm512, %v525
          %539 = vst.msk [vmem:[%s536 + $0x8] sm:$0xf] %vm512, %v527
          %540 = vst.msk [vmem:[%s536 + $0xc] sm:$0xf] %vm512, %v529
          %541 = vst.msk [vmem:[%s536] sm:$0xf] %vm517, %v523
          %542 = vst.msk [vmem:[%s536 + $0x4] sm:$0xf] %vm517, %v525
          %543 = vst.msk [vmem:[%s536 + $0x8] sm:$0xf] %vm517, %v527
          %544 = vst.msk [vmem:[%s536 + $0xc] sm:$0xf] %vm517, %v529
        $region37: #{generator_forward.15} parent=27 // loop_footer
          %s177 = sadd.s32 1, %s173
        $region38: #{generator_forward.15} parent=27 // loop_footer_branch
          %172 = sbr.rel target = $region34
        $region39: #{generator_forward.15} parent=27 // loop_exit
          _
        %s545 = smul.u32 32, %s14
        %p546 = scmp.lt.s32.totalorder %s545, 63
        %s547 = scalar_select %p546, %s545, 63
        %s548 = smul.addr %s547, 8
        %s549 = smul.addr %s548, 4
        %s550 = scalar_lea.vmem %s2, %s549
        // Predicated region
        $region40: #{generator_forward.15} parent=27 // pred_check
          %p551 = pneg %p79
        $region41: #{generator_forward.15} parent=27 // pred_check_branch
          %553 = sbr.rel (%p551) target = $region43
        $region42: #{generator_forward.15} parent=27 // pred_region
          %s554 = smul.u32 32, %s14
        $region43: #{generator_forward.15} parent=27 // pred_fallthru
          _
      $region28: #{generator_forward.15} parent=5 // pred_fallthru
        _
      %p555 = scmp.le.s32.totalorder 2, %s9
      // Predicated region
      $region44: #{generator_forward.15} parent=5 // pred_check
        %p556 = pneg %p555
      $region45: #{generator_forward.15} parent=5 // pred_check_branch
        %558 = sbr.rel (%p556) target = $region47
      $region46: #{generator_forward.15} parent=5 // pred_region
        %s559 = ssub.s32 %s9, 2
        // Predicated region
        $region48: #{generator_forward.15} parent=46 // pred_check
          %p560 = pneg %p85
        $region49: #{generator_forward.15} parent=46 // pred_check_branch
          %562 = sbr.rel (%p560) target = $region51
        $region50: #{generator_forward.15} parent=46 // pred_region
          %s563 = smul.u32 32, %s15
          %p564 = scmp.lt.s32.totalorder %s563, 63
          %s565 = scalar_select %p564, %s563, 63
          %s566 = smul.addr %s565, 8
          %s567 = smul.addr %s566, 4
          %s568 = scalar_lea.vmem %s2, %s567
        $region51: #{generator_forward.15} parent=46 // pred_fallthru
          _
      $region47: #{generator_forward.15} parent=5 // pred_fallthru
        _
    $region6: #{generator_forward.15} parent=1 // loop_footer
      %s13 = sadd.s32 1, %s9
    $region7: #{generator_forward.15} parent=1 // loop_footer_branch
      %8 = sbr.rel target = $region3
    $region8: #{generator_forward.15} parent=1 // loop_exit
      _
    %569 = vsyncpa [#allocation3], 1
    %s570 = scalar_lea.sflag [#allocation3], 1
    %571 = vsyncpa %s570, 1

</llo_original>
